<compile_context>
chip_gen: v7x
topology: tpu7x:2x2x1
jax: 0.10.0
libtpu: 0.0.40
codegen_flags: <defaults>
</compile_context>

<pallas_src>
import functools
import math

import jax
import jax.numpy as jnp
from jax.experimental import pallas as pl
from jax.experimental.pallas import tpu as pltpu


def _mm(a, b):  # a @ b on the MXU with f32 accumulation
    return jax.lax.dot_general(a, b, (((1,), (0,)), ((), ())),
                               preferred_element_type=jnp.float32)


def _sfm_kernel(x_ref, re_ref, im_ref, w_all_ref, b_all_ref, u_all_ref,
                ua_ref, ba_ref, wp_ref, bp_ref, fcw_ref, fcb_ref,
                out_ref, xall_s, *, T, BN, H, F):
    G = 4 * H

    # Hoisted input projections: ONE (T*BN, d_feat) @ (d_feat, 4H+F) matmul for
    # every gate and every time step, written to a lane-contiguous VMEM scratch.
    xall_s[...] = _mm(x_ref[...], w_all_ref[...]) + b_all_ref[...]

    # Loop-invariant operands, loaded once.
    u_all = u_all_ref[...]                 # (H, 4H+F) fused recurrent weights
    ua = ua_ref[...][None]                 # (1, F, H)  U_a replicated along H
    ba = ba_ref[...]                       # (1, H)

    def hsig(v):                           # torch.nn.Hardsigmoid
        return jnp.clip(v * (1.0 / 6.0) + 0.5, 0.0, 1.0)

    h = jnp.zeros((BN, H), jnp.float32)
    s_re = jnp.zeros((BN, F, H), jnp.float32)   # H on the lane axis
    s_im = jnp.zeros((BN, F, H), jnp.float32)

    # Short static recurrence -> fully unrolled Python loop (static indices).
    for t in range(T):
        row = t * BN
        # one fused recurrent MXU push; result is lane-dense (4H = 128 .. +F)
        pre = xall_s[row:row + BN, :] + _mm(h, u_all)     # (BN, 4H+F)
        g_i = hsig(pre[:, 0:H])
        g_ste = hsig(pre[:, H:2 * H])
        c = g_i * jnp.tanh(pre[:, 2 * H:3 * H])
        g_o = hsig(pre[:, 3 * H:G])
        g_fre = hsig(pre[:, G:G + F])                     # (BN, F)

        # state-frequency update, implicit broadcasting only
        f3 = g_fre[:, :, None] * g_ste[:, None, :]        # (BN, F, H)
        c3 = c[:, None, :]                                # (BN, 1, H)
        s_re = f3 * s_re + c3 * re_ref[t][None]           # re_ref[t]: (F, H)
        s_im = f3 * s_im + c3 * im_ref[t][None]

        amp = s_re * s_re + s_im * s_im                   # (BN, F, H)
        a = jnp.tanh(jnp.sum(amp * ua, axis=1) + ba)      # (BN, H)
        h = g_o * a

    # p = h @ W_p + b_p  (output_dim == 1 -> lane reduction), then fc(1 -> 1)
    p = jnp.sum(h * wp_ref[...], axis=1, keepdims=True) + bp_ref[...]  # (BN, 1)
    out_ref[...] = p * fcw_ref[...] + fcb_ref[...]


def sfm_forward(x, params, *, d_feat=6, freq_dim=10, hidden_size=32,
                output_dim=1, block_n=8):
    # TODO(synk): only output_dim == 1 (the module default) is implemented; a
    # general output head needs a (H, output_dim) matmul + (output_dim, 1) fc.
    assert output_dim == 1
    N = x.shape[0]
    T = x.shape[1] // d_feat
    H, F = hidden_size, freq_dim
    G = 4 * H

    x = x.astype(jnp.float32)
    # Pad the batch to a multiple of block_n so the ("parallel",) grid keeps
    # every TensorCore busy on multi-core chips; tail rows are dropped below.
    n_pad = (-N) % block_n
    if n_pad:
        x = jnp.concatenate([x, jnp.zeros((n_pad, x.shape[1]), jnp.float32)], 0)
    Np = N + n_pad
    nb = Np // block_n

    # reshape(N, d_feat, T).permute(0, 2, 1) -> (T, N, d); group rows so each
    # grid block reads one contiguous (T*block_n, d) slab, t-major inside it.
    x_seq = jnp.transpose(x.reshape(Np, d_feat, T), (2, 0, 1))          # (T,Np,d)
    x_ord = jnp.transpose(x_seq.reshape(T, nb, block_n, d_feat),
                          (1, 0, 2, 3)).reshape(nb * T * block_n, d_feat)

    # Fused weights, gate order [i | ste | c | o | fre] along the lane axis.
    W_all = jnp.concatenate([params["W_i"], params["W_ste"], params["W_c"],
                             params["W_o"], params["W_fre"]], axis=1)   # (d,4H+F)
    U_all = jnp.concatenate([params["U_i"], params["U_ste"], params["U_c"],
                             params["U_o"], params["U_fre"]], axis=1)   # (H,4H+F)
    b_all = jnp.concatenate([params["b_i"], params["b_ste"], params["b_c"],
                             params["b_o"], params["b_fre"]]).reshape(1, G + F)

    # cos/sin tables: omega_t = 2*pi*(t+1)*[0, 1/F, ..., (F-1)/F], replicated
    # along H so the (BN, F, H) state update needs no in-kernel lane broadcast.
    t_idx = jnp.arange(1, T + 1, dtype=jnp.float32).reshape(T, 1)
    freq = (jnp.arange(F, dtype=jnp.float32) / F).reshape(1, F)
    omega = (2.0 * math.pi) * t_idx * freq                              # (T, F)
    re_tab = jnp.tile(jnp.cos(omega)[:, :, None], (1, 1, H))            # (T,F,H)
    im_tab = jnp.tile(jnp.sin(omega)[:, :, None], (1, 1, H))            # (T,F,H)

    ua_rep = jnp.tile(params["U_a"].reshape(F, 1), (1, H))              # (F, H)
    b_a = params["b_a"].reshape(1, H)
    wp_t = params["W_p"][:, 0].reshape(1, H)                            # transposed
    b_p = params["b_p"].reshape(1, 1)
    fc_w = params["fc_w"].reshape(1, 1)
    fc_b = params["fc_b"].reshape(1, 1)

    args = (x_ord, re_tab, im_tab, W_all, b_all, U_all, ua_rep, b_a,
            wp_t, b_p, fc_w, fc_b)

    def rep(shape):            # whole-array block, identical for every grid step
        nd = len(shape)
        return pl.BlockSpec(shape, lambda i, _nd=nd: (0,) * _nd)

    in_specs = [pl.BlockSpec((T * block_n, d_feat), lambda i: (i, 0))]
    in_specs += [rep(a.shape) for a in args[1:]]

    out = pl.pallas_call(
        functools.partial(_sfm_kernel, T=T, BN=block_n, H=H, F=F),
        out_shape=jax.ShapeDtypeStruct((Np, 1), jnp.float32),
        grid=(nb,),
        in_specs=in_specs,
        out_specs=pl.BlockSpec((block_n, 1), lambda i: (i, 0)),
        scratch_shapes=[pltpu.VMEM((T * block_n, G + F), jnp.float32)],
        compiler_params=pltpu.CompilerParams(
            dimension_semantics=("parallel",)),
    )(*args)
    return out[:N, 0]                                          # .squeeze()


def init_params(key, d_feat, H, F, output_dim=1):
    ks = jax.random.split(key, 14)

    def xavier(k, shape):
        bound = math.sqrt(6.0 / (shape[0] + shape[1]))
        return jax.random.uniform(k, shape, jnp.float32, -bound, bound)

    def orth(k, shape):        # torch.nn.init.orthogonal_
        r_, c_ = shape
        a = jax.random.normal(k, (max(r_, c_), min(r_, c_)), jnp.float32)
        q, rq = jnp.linalg.qr(a)
        q = q * jnp.sign(jnp.diag(rq))[None, :]
        return q if r_ >= c_ else q.T

    return {
        "W_i": xavier(ks[0], (d_feat, H)),   "U_i": orth(ks[1], (H, H)),
        "b_i": jnp.zeros((H,), jnp.float32),
        "W_ste": xavier(ks[2], (d_feat, H)), "U_ste": orth(ks[3], (H, H)),
        "b_ste": jnp.ones((H,), jnp.float32),
        "W_fre": xavier(ks[4], (d_feat, F)), "U_fre": orth(ks[5], (H, F)),
        "b_fre": jnp.ones((F,), jnp.float32),
        "W_c": xavier(ks[6], (d_feat, H)),   "U_c": orth(ks[7], (H, H)),
        "b_c": jnp.zeros((H,), jnp.float32),
        "W_o": xavier(ks[8], (d_feat, H)),   "U_o": orth(ks[9], (H, H)),
        "b_o": jnp.zeros((H,), jnp.float32),
        "U_a": orth(ks[10], (F, 1)),
        "b_a": jnp.zeros((H,), jnp.float32),
        "W_p": xavier(ks[11], (H, output_dim)),
        "b_p": jnp.zeros((output_dim,), jnp.float32),
        "fc_w": jax.random.uniform(ks[12], (1, output_dim), jnp.float32, -1.0, 1.0),
        "fc_b": jax.random.uniform(ks[13], (1,), jnp.float32, -1.0, 1.0),
    }


if __name__ == "__main__":
    N, D_FEAT, T, H, F = 16, 6, 8, 32, 10

    key = jax.random.PRNGKey(0)
    k_param, k_x = jax.random.split(key)

    params = init_params(k_param, D_FEAT, H, F)
    x = jax.random.normal(k_x, (N, D_FEAT * T), jnp.float32)

    pred = sfm_forward(x, params, d_feat=D_FEAT, freq_dim=F, hidden_size=H,
                       block_n=8)
    pred = jax.block_until_ready(pred)

    assert pred.shape == (N,)
    assert bool(jnp.all(jnp.isfinite(pred)))
    print("KERNEL_OK")
</pallas_src>

<mosaic_0001>
module attributes {stable_mosaic.version = 11 : i64} {
  func.func @_sfm_kernel(%arg0: i32, %arg1: memref<64x6xf32, #tpu.memory_space<vmem>>, %arg2: memref<8x10x32xf32, #tpu.memory_space<vmem>>, %arg3: memref<8x10x32xf32, #tpu.memory_space<vmem>>, %arg4: memref<6x138xf32, #tpu.memory_space<vmem>>, %arg5: memref<1x138xf32, #tpu.memory_space<vmem>>, %arg6: memref<32x138xf32, #tpu.memory_space<vmem>>, %arg7: memref<10x32xf32, #tpu.memory_space<vmem>>, %arg8: memref<1x32xf32, #tpu.memory_space<vmem>>, %arg9: memref<1x32xf32, #tpu.memory_space<vmem>>, %arg10: memref<1x1xf32, #tpu.memory_space<vmem>>, %arg11: memref<1x1xf32, #tpu.memory_space<vmem>>, %arg12: memref<1x1xf32, #tpu.memory_space<vmem>>, %arg13: memref<8x1xf32, #tpu.memory_space<vmem>>, %arg14: memref<64x138xf32, #tpu.memory_space<vmem>>) attributes {dimension_semantics = [#tpu.dimension_semantics<parallel>], iteration_bounds = array<i64: 2>, scalar_prefetch = 0 : i64, scratch_operands = 1 : i64, tpu.core_type = #tpu.core_type<tc>, window_params = [{transform_indices = @transform_0, window_bounds = array<i64: 64, 6>}, {pipeline_mode = #tpu.pipeline_mode<synchronous>, transform_indices = @transform_1, window_bounds = array<i64: 8, 10, 32>}, {pipeline_mode = #tpu.pipeline_mode<synchronous>, transform_indices = @transform_2, window_bounds = array<i64: 8, 10, 32>}, {pipeline_mode = #tpu.pipeline_mode<synchronous>, transform_indices = @transform_3, window_bounds = array<i64: 6, 138>}, {pipeline_mode = #tpu.pipeline_mode<synchronous>, transform_indices = @transform_4, window_bounds = array<i64: 1, 138>}, {pipeline_mode = #tpu.pipeline_mode<synchronous>, transform_indices = @transform_5, window_bounds = array<i64: 32, 138>}, {pipeline_mode = #tpu.pipeline_mode<synchronous>, transform_indices = @transform_6, window_bounds = array<i64: 10, 32>}, {pipeline_mode = #tpu.pipeline_mode<synchronous>, transform_indices = @transform_7, window_bounds = array<i64: 1, 32>}, {pipeline_mode = #tpu.pipeline_mode<synchronous>, transform_indices = @transform_8, window_bounds = array<i64: 1, 32>}, {pipeline_mode = #tpu.pipeline_mode<synchronous>, transform_indices = @transform_9, window_bounds = array<i64: 1, 1>}, {pipeline_mode = #tpu.pipeline_mode<synchronous>, transform_indices = @transform_10, window_bounds = array<i64: 1, 1>}, {pipeline_mode = #tpu.pipeline_mode<synchronous>, transform_indices = @transform_11, window_bounds = array<i64: 1, 1>}, {transform_indices = @transform_12, window_bounds = array<i64: 8, 1>}]} {
    %c0 = arith.constant 0 : index
    %c0_0 = arith.constant 0 : index
    %0 = vector.load %arg1[%c0, %c0_0] : memref<64x6xf32, #tpu.memory_space<vmem>>, vector<64x6xf32>
    %c0_1 = arith.constant 0 : index
    %c0_2 = arith.constant 0 : index
    %1 = vector.load %arg4[%c0_1, %c0_2] : memref<6x138xf32, #tpu.memory_space<vmem>>, vector<6x138xf32>
    %cst = arith.constant dense<0.000000e+00> : vector<64x138xf32>
    %2 = tpu.matmul %0, %1, %cst {dimension_numbers = #tpu.dot_dimension_numbers<[1], [0], [0], [1], [0, 0, 1, 1], [], []>} : vector<64x6xf32>, vector<6x138xf32>, vector<64x138xf32> -> vector<64x138xf32>
    %c0_3 = arith.constant 0 : index
    %c0_4 = arith.constant 0 : index
    %3 = vector.load %arg5[%c0_3, %c0_4] : memref<1x138xf32, #tpu.memory_space<vmem>>, vector<1x138xf32>
    %4 = vector.broadcast %3 : vector<1x138xf32> to vector<64x138xf32>
    %5 = arith.addf %2, %4 : vector<64x138xf32>
    %c0_5 = arith.constant 0 : index
    %c0_6 = arith.constant 0 : index
    %6 = vector.load %arg14[%c0_5, %c0_6] : memref<64x138xf32, #tpu.memory_space<vmem>>, vector<64x138xf32>
    tpu.vector_store %arg14[%c0_5, %c0_6], %5 {strides = array<i32>} : memref<64x138xf32, #tpu.memory_space<vmem>>, vector<64x138xf32>,
    %c0_7 = arith.constant 0 : index
    %c0_8 = arith.constant 0 : index
    %7 = vector.load %arg6[%c0_7, %c0_8] : memref<32x138xf32, #tpu.memory_space<vmem>>, vector<32x138xf32>
    %c0_9 = arith.constant 0 : index
    %c0_10 = arith.constant 0 : index
    %8 = vector.load %arg7[%c0_9, %c0_10] : memref<10x32xf32, #tpu.memory_space<vmem>>, vector<10x32xf32>
    %9 = vector.shape_cast %8 : vector<10x32xf32> to vector<1x10x32xf32>
    %c0_11 = arith.constant 0 : index
    %c0_12 = arith.constant 0 : index
    %10 = vector.load %arg8[%c0_11, %c0_12] : memref<1x32xf32, #tpu.memory_space<vmem>>, vector<1x32xf32>
    %cst_13 = arith.constant 0.000000e+00 : f32
    %11 = vector.broadcast %cst_13 : f32 to vector<8x32xf32>
    %cst_14 = arith.constant 0.000000e+00 : f32
    %12 = vector.broadcast %cst_14 : f32 to vector<8x10x32xf32>
    %cst_15 = arith.constant 0.000000e+00 : f32
    %13 = vector.broadcast %cst_15 : f32 to vector<8x10x32xf32>
    %c0_16 = arith.constant 0 : index
    %c0_17 = arith.constant 0 : index
    %14 = vector.load %arg14[%c0_16, %c0_17] : memref<64x138xf32, #tpu.memory_space<vmem>>, vector<8x138xf32>
    %cst_18 = arith.constant dense<0.000000e+00> : vector<8x138xf32>
    %15 = tpu.matmul %11, %7, %cst_18 {dimension_numbers = #tpu.dot_dimension_numbers<[1], [0], [0], [1], [0, 0, 1, 1], [], []>} : vector<8x32xf32>, vector<32x138xf32>, vector<8x138xf32> -> vector<8x138xf32>
    %16 = arith.addf %14, %15 : vector<8x138xf32>
    %17 = vector.extract_strided_slice %16 {offsets = [0, 0], sizes = [8, 32], strides = [1, 1]} : vector<8x138xf32> to vector<8x32xf32>
    %cst_19 = arith.constant 0.166666672 : f32
    %18 = vector.broadcast %cst_19 : f32 to vector<8x32xf32>
    %19 = arith.mulf %17, %18 : vector<8x32xf32>
    %cst_20 = arith.constant 5.000000e-01 : f32
    %20 = vector.broadcast %cst_20 : f32 to vector<8x32xf32>
    %21 = arith.addf %19, %20 : vector<8x32xf32>
    %cst_21 = arith.constant 0.000000e+00 : f32
    %cst_22 = arith.constant 1.000000e+00 : f32
    %22 = vector.broadcast %cst_21 : f32 to vector<8x32xf32>
    %23 = arith.maximumf %22, %21 : vector<8x32xf32>
    %24 = vector.broadcast %cst_22 : f32 to vector<8x32xf32>
    %25 = arith.minimumf %24, %23 : vector<8x32xf32>
    %26 = vector.extract_strided_slice %16 {offsets = [0, 32], sizes = [8, 32], strides = [1, 1]} : vector<8x138xf32> to vector<8x32xf32>
    %cst_23 = arith.constant 0.166666672 : f32
    %27 = vector.broadcast %cst_23 : f32 to vector<8x32xf32>
    %28 = arith.mulf %26, %27 : vector<8x32xf32>
    %cst_24 = arith.constant 5.000000e-01 : f32
    %29 = vector.broadcast %cst_24 : f32 to vector<8x32xf32>
    %30 = arith.addf %28, %29 : vector<8x32xf32>
    %cst_25 = arith.constant 0.000000e+00 : f32
    %cst_26 = arith.constant 1.000000e+00 : f32
    %31 = vector.broadcast %cst_25 : f32 to vector<8x32xf32>
    %32 = arith.maximumf %31, %30 : vector<8x32xf32>
    %33 = vector.broadcast %cst_26 : f32 to vector<8x32xf32>
    %34 = arith.minimumf %33, %32 : vector<8x32xf32>
    %35 = vector.extract_strided_slice %16 {offsets = [0, 64], sizes = [8, 32], strides = [1, 1]} : vector<8x138xf32> to vector<8x32xf32>
    %36 = math.tanh %35 : vector<8x32xf32>
    %37 = arith.mulf %25, %36 : vector<8x32xf32>
    %38 = vector.extract_strided_slice %16 {offsets = [0, 96], sizes = [8, 32], strides = [1, 1]} : vector<8x138xf32> to vector<8x32xf32>
    %cst_27 = arith.constant 0.166666672 : f32
    %39 = vector.broadcast %cst_27 : f32 to vector<8x32xf32>
    %40 = arith.mulf %38, %39 : vector<8x32xf32>
    %cst_28 = arith.constant 5.000000e-01 : f32
    %41 = vector.broadcast %cst_28 : f32 to vector<8x32xf32>
    %42 = arith.addf %40, %41 : vector<8x32xf32>
    %cst_29 = arith.constant 0.000000e+00 : f32
    %cst_30 = arith.constant 1.000000e+00 : f32
    %43 = vector.broadcast %cst_29 : f32 to vector<8x32xf32>
    %44 = arith.maximumf %43, %42 : vector<8x32xf32>
    %45 = vector.broadcast %cst_30 : f32 to vector<8x32xf32>
    %46 = arith.minimumf %45, %44 : vector<8x32xf32>
    %47 = vector.extract_strided_slice %16 {offsets = [0, 128], sizes = [8, 10], strides = [1, 1]} : vector<8x138xf32> to vector<8x10xf32>
    %cst_31 = arith.constant 0.166666672 : f32
    %48 = vector.broadcast %cst_31 : f32 to vector<8x10xf32>
    %49 = arith.mulf %47, %48 : vector<8x10xf32>
    %cst_32 = arith.constant 5.000000e-01 : f32
    %50 = vector.broadcast %cst_32 : f32 to vector<8x10xf32>
    %51 = arith.addf %49, %50 : vector<8x10xf32>
    %cst_33 = arith.constant 0.000000e+00 : f32
    %cst_34 = arith.constant 1.000000e+00 : f32
    %52 = vector.broadcast %cst_33 : f32 to vector<8x10xf32>
    %53 = arith.maximumf %52, %51 : vector<8x10xf32>
    %54 = vector.broadcast %cst_34 : f32 to vector<8x10xf32>
    %55 = arith.minimumf %54, %53 : vector<8x10xf32>
    %56 = vector.shape_cast %55 : vector<8x10xf32> to vector<8x10x1xf32>
    %57 = vector.shape_cast %34 : vector<8x32xf32> to vector<8x1x32xf32>
    %58 = vector.broadcast %56 : vector<8x10x1xf32> to vector<8x10x32xf32>
    %59 = vector.broadcast %57 : vector<8x1x32xf32> to vector<8x10x32xf32>
    %60 = arith.mulf %58, %59 : vector<8x10x32xf32>
    %61 = vector.shape_cast %37 : vector<8x32xf32> to vector<8x1x32xf32>
    %62 = arith.mulf %60, %12 : vector<8x10x32xf32>
    %c0_35 = arith.constant 0 : index
    %c0_36 = arith.constant 0 : index
    %c0_37 = arith.constant 0 : index
    %63 = vector.load %arg2[%c0_35, %c0_36, %c0_37] : memref<8x10x32xf32, #tpu.memory_space<vmem>>, vector<1x10x32xf32>
    %64 = vector.shape_cast %63 : vector<1x10x32xf32> to vector<10x32xf32>
    %65 = vector.shape_cast %64 : vector<10x32xf32> to vector<1x10x32xf32>
    %66 = vector.broadcast %61 : vector<8x1x32xf32> to vector<8x10x32xf32>
    %67 = vector.broadcast %65 : vector<1x10x32xf32> to vector<8x10x32xf32>
    %68 = arith.mulf %66, %67 : vector<8x10x32xf32>
    %69 = arith.addf %62, %68 : vector<8x10x32xf32>
    %70 = arith.mulf %60, %13 : vector<8x10x32xf32>
    %c0_38 = arith.constant 0 : index
    %c0_39 = arith.constant 0 : index
    %c0_40 = arith.constant 0 : index
    %71 = vector.load %arg3[%c0_38, %c0_39, %c0_40] : memref<8x10x32xf32, #tpu.memory_space<vmem>>, vector<1x10x32xf32>
    %72 = vector.shape_cast %71 : vector<1x10x32xf32> to vector<10x32xf32>
    %73 = vector.shape_cast %72 : vector<10x32xf32> to vector<1x10x32xf32>
    %74 = vector.broadcast %61 : vector<8x1x32xf32> to vector<8x10x32xf32>
    %75 = vector.broadcast %73 : vector<1x10x32xf32> to vector<8x10x32xf32>
    %76 = arith.mulf %74, %75 : vector<8x10x32xf32>
    %77 = arith.addf %70, %76 : vector<8x10x32xf32>
    %78 = arith.mulf %69, %69 : vector<8x10x32xf32>
    %79 = arith.mulf %77, %77 : vector<8x10x32xf32>
    %80 = arith.addf %78, %79 : vector<8x10x32xf32>
    %81 = vector.broadcast %9 : vector<1x10x32xf32> to vector<8x10x32xf32>
    %82 = arith.mulf %80, %81 : vector<8x10x32xf32>
    %cst_41 = arith.constant dense<0.000000e+00> : vector<8x32xf32>
    %83 = vector.multi_reduction <add>, %82, %cst_41 [1] : vector<8x10x32xf32> to vector<8x32xf32>
    %84 = vector.broadcast %10 : vector<1x32xf32> to vector<8x32xf32>
    %85 = arith.addf %83, %84 : vector<8x32xf32>
    %86 = math.tanh %85 : vector<8x32xf32>
    %87 = arith.mulf %46, %86 : vector<8x32xf32>
    %c8 = arith.constant 8 : index
    %c0_42 = arith.constant 0 : index
    %88 = vector.load %arg14[%c8, %c0_42] : memref<64x138xf32, #tpu.memory_space<vmem>>, vector<8x138xf32>
    %cst_43 = arith.constant dense<0.000000e+00> : vector<8x138xf32>
    %89 = tpu.matmul %87, %7, %cst_43 {dimension_numbers = #tpu.dot_dimension_numbers<[1], [0], [0], [1], [0, 0, 1, 1], [], []>} : vector<8x32xf32>, vector<32x138xf32>, vector<8x138xf32> -> vector<8x138xf32>
    %90 = arith.addf %88, %89 : vector<8x138xf32>
    %91 = vector.extract_strided_slice %90 {offsets = [0, 0], sizes = [8, 32], strides = [1, 1]} : vector<8x138xf32> to vector<8x32xf32>
    %cst_44 = arith.constant 0.166666672 : f32
    %92 = vector.broadcast %cst_44 : f32 to vector<8x32xf32>
    %93 = arith.mulf %91, %92 : vector<8x32xf32>
    %cst_45 = arith.constant 5.000000e-01 : f32
    %94 = vector.broadcast %cst_45 : f32 to vector<8x32xf32>
    %95 = arith.addf %93, %94 : vector<8x32xf32>
    %cst_46 = arith.constant 0.000000e+00 : f32
    %cst_47 = arith.constant 1.000000e+00 : f32
    %96 = vector.broadcast %cst_46 : f32 to vector<8x32xf32>
    %97 = arith.maximumf %96, %95 : vector<8x32xf32>
    %98 = vector.broadcast %cst_47 : f32 to vector<8x32xf32>
    %99 = arith.minimumf %98, %97 : vector<8x32xf32>
    %100 = vector.extract_strided_slice %90 {offsets = [0, 32], sizes = [8, 32], strides = [1, 1]} : vector<8x138xf32> to vector<8x32xf32>
    %cst_48 = arith.constant 0.166666672 : f32
    %101 = vector.broadcast %cst_48 : f32 to vector<8x32xf32>
    %102 = arith.mulf %100, %101 : vector<8x32xf32>
    %cst_49 = arith.constant 5.000000e-01 : f32
    %103 = vector.broadcast %cst_49 : f32 to vector<8x32xf32>
    %104 = arith.addf %102, %103 : vector<8x32xf32>
    %cst_50 = arith.constant 0.000000e+00 : f32
    %cst_51 = arith.constant 1.000000e+00 : f32
    %105 = vector.broadcast %cst_50 : f32 to vector<8x32xf32>
    %106 = arith.maximumf %105, %104 : vector<8x32xf32>
    %107 = vector.broadcast %cst_51 : f32 to vector<8x32xf32>
    %108 = arith.minimumf %107, %106 : vector<8x32xf32>
    %109 = vector.extract_strided_slice %90 {offsets = [0, 64], sizes = [8, 32], strides = [1, 1]} : vector<8x138xf32> to vector<8x32xf32>
    %110 = math.tanh %109 : vector<8x32xf32>
    %111 = arith.mulf %99, %110 : vector<8x32xf32>
    %112 = vector.extract_strided_slice %90 {offsets = [0, 96], sizes = [8, 32], strides = [1, 1]} : vector<8x138xf32> to vector<8x32xf32>
    %cst_52 = arith.constant 0.166666672 : f32
    %113 = vector.broadcast %cst_52 : f32 to vector<8x32xf32>
    %114 = arith.mulf %112, %113 : vector<8x32xf32>
    %cst_53 = arith.constant 5.000000e-01 : f32
    %115 = vector.broadcast %cst_53 : f32 to vector<8x32xf32>
    %116 = arith.addf %114, %115 : vector<8x32xf32>
    %cst_54 = arith.constant 0.000000e+00 : f32
    %cst_55 = arith.constant 1.000000e+00 : f32
    %117 = vector.broadcast %cst_54 : f32 to vector<8x32xf32>
    %118 = arith.maximumf %117, %116 : vector<8x32xf32>
    %119 = vector.broadcast %cst_55 : f32 to vector<8x32xf32>
    %120 = arith.minimumf %119, %118 : vector<8x32xf32>
    %121 = vector.extract_strided_slice %90 {offsets = [0, 128], sizes = [8, 10], strides = [1, 1]} : vector<8x138xf32> to vector<8x10xf32>
    %cst_56 = arith.constant 0.166666672 : f32
    %122 = vector.broadcast %cst_56 : f32 to vector<8x10xf32>
    %123 = arith.mulf %121, %122 : vector<8x10xf32>
    %cst_57 = arith.constant 5.000000e-01 : f32
    %124 = vector.broadcast %cst_57 : f32 to vector<8x10xf32>
    %125 = arith.addf %123, %124 : vector<8x10xf32>
    %cst_58 = arith.constant 0.000000e+00 : f32
    %cst_59 = arith.constant 1.000000e+00 : f32
    %126 = vector.broadcast %cst_58 : f32 to vector<8x10xf32>
    %127 = arith.maximumf %126, %125 : vector<8x10xf32>
    %128 = vector.broadcast %cst_59 : f32 to vector<8x10xf32>
    %129 = arith.minimumf %128, %127 : vector<8x10xf32>
    %130 = vector.shape_cast %129 : vector<8x10xf32> to vector<8x10x1xf32>
    %131 = vector.shape_cast %108 : vector<8x32xf32> to vector<8x1x32xf32>
    %132 = vector.broadcast %130 : vector<8x10x1xf32> to vector<8x10x32xf32>
    %133 = vector.broadcast %131 : vector<8x1x32xf32> to vector<8x10x32xf32>
    %134 = arith.mulf %132, %133 : vector<8x10x32xf32>
    %135 = vector.shape_cast %111 : vector<8x32xf32> to vector<8x1x32xf32>
    %136 = arith.mulf %134, %69 : vector<8x10x32xf32>
    %c1 = arith.constant 1 : index
    %c0_60 = arith.constant 0 : index
    %c0_61 = arith.constant 0 : index
    %137 = vector.load %arg2[%c1, %c0_60, %c0_61] : memref<8x10x32xf32, #tpu.memory_space<vmem>>, vector<1x10x32xf32>
    %138 = vector.shape_cast %137 : vector<1x10x32xf32> to vector<10x32xf32>
    %139 = vector.shape_cast %138 : vector<10x32xf32> to vector<1x10x32xf32>
    %140 = vector.broadcast %135 : vector<8x1x32xf32> to vector<8x10x32xf32>
    %141 = vector.broadcast %139 : vector<1x10x32xf32> to vector<8x10x32xf32>
    %142 = arith.mulf %140, %141 : vector<8x10x32xf32>
    %143 = arith.addf %136, %142 : vector<8x10x32xf32>
    %144 = arith.mulf %134, %77 : vector<8x10x32xf32>
    %c1_62 = arith.constant 1 : index
    %c0_63 = arith.constant 0 : index
    %c0_64 = arith.constant 0 : index
    %145 = vector.load %arg3[%c1_62, %c0_63, %c0_64] : memref<8x10x32xf32, #tpu.memory_space<vmem>>, vector<1x10x32xf32>
    %146 = vector.shape_cast %145 : vector<1x10x32xf32> to vector<10x32xf32>
    %147 = vector.shape_cast %146 : vector<10x32xf32> to vector<1x10x32xf32>
    %148 = vector.broadcast %135 : vector<8x1x32xf32> to vector<8x10x32xf32>
    %149 = vector.broadcast %147 : vector<1x10x32xf32> to vector<8x10x32xf32>
    %150 = arith.mulf %148, %149 : vector<8x10x32xf32>
    %151 = arith.addf %144, %150 : vector<8x10x32xf32>
    %152 = arith.mulf %143, %143 : vector<8x10x32xf32>
    %153 = arith.mulf %151, %151 : vector<8x10x32xf32>
    %154 = arith.addf %152, %153 : vector<8x10x32xf32>
    %155 = vector.broadcast %9 : vector<1x10x32xf32> to vector<8x10x32xf32>
    %156 = arith.mulf %154, %155 : vector<8x10x32xf32>
    %cst_65 = arith.constant dense<0.000000e+00> : vector<8x32xf32>
    %157 = vector.multi_reduction <add>, %156, %cst_65 [1] : vector<8x10x32xf32> to vector<8x32xf32>
    %158 = vector.broadcast %10 : vector<1x32xf32> to vector<8x32xf32>
    %159 = arith.addf %157, %158 : vector<8x32xf32>
    %160 = math.tanh %159 : vector<8x32xf32>
    %161 = arith.mulf %120, %160 : vector<8x32xf32>
    %c16 = arith.constant 16 : index
    %c0_66 = arith.constant 0 : index
    %162 = vector.load %arg14[%c16, %c0_66] : memref<64x138xf32, #tpu.memory_space<vmem>>, vector<8x138xf32>
    %cst_67 = arith.constant dense<0.000000e+00> : vector<8x138xf32>
    %163 = tpu.matmul %161, %7, %cst_67 {dimension_numbers = #tpu.dot_dimension_numbers<[1], [0], [0], [1], [0, 0, 1, 1], [], []>} : vector<8x32xf32>, vector<32x138xf32>, vector<8x138xf32> -> vector<8x138xf32>
    %164 = arith.addf %162, %163 : vector<8x138xf32>
    %165 = vector.extract_strided_slice %164 {offsets = [0, 0], sizes = [8, 32], strides = [1, 1]} : vector<8x138xf32> to vector<8x32xf32>
    %cst_68 = arith.constant 0.166666672 : f32
    %166 = vector.broadcast %cst_68 : f32 to vector<8x32xf32>
    %167 = arith.mulf %165, %166 : vector<8x32xf32>
    %cst_69 = arith.constant 5.000000e-01 : f32
    %168 = vector.broadcast %cst_69 : f32 to vector<8x32xf32>
    %169 = arith.addf %167, %168 : vector<8x32xf32>
    %cst_70 = arith.constant 0.000000e+00 : f32
    %cst_71 = arith.constant 1.000000e+00 : f32
    %170 = vector.broadcast %cst_70 : f32 to vector<8x32xf32>
    %171 = arith.maximumf %170, %169 : vector<8x32xf32>
    %172 = vector.broadcast %cst_71 : f32 to vector<8x32xf32>
    %173 = arith.minimumf %172, %171 : vector<8x32xf32>
    %174 = vector.extract_strided_slice %164 {offsets = [0, 32], sizes = [8, 32], strides = [1, 1]} : vector<8x138xf32> to vector<8x32xf32>
    %cst_72 = arith.constant 0.166666672 : f32
    %175 = vector.broadcast %cst_72 : f32 to vector<8x32xf32>
    %176 = arith.mulf %174, %175 : vector<8x32xf32>
    %cst_73 = arith.constant 5.000000e-01 : f32
    %177 = vector.broadcast %cst_73 : f32 to vector<8x32xf32>
    %178 = arith.addf %176, %177 : vector<8x32xf32>
    %cst_74 = arith.constant 0.000000e+00 : f32
    %cst_75 = arith.constant 1.000000e+00 : f32
    %179 = vector.broadcast %cst_74 : f32 to vector<8x32xf32>
    %180 = arith.maximumf %179, %178 : vector<8x32xf32>
    %181 = vector.broadcast %cst_75 : f32 to vector<8x32xf32>
    %182 = arith.minimumf %181, %180 : vector<8x32xf32>
    %183 = vector.extract_strided_slice %164 {offsets = [0, 64], sizes = [8, 32], strides = [1, 1]} : vector<8x138xf32> to vector<8x32xf32>
    %184 = math.tanh %183 : vector<8x32xf32>
    %185 = arith.mulf %173, %184 : vector<8x32xf32>
    %186 = vector.extract_strided_slice %164 {offsets = [0, 96], sizes = [8, 32], strides = [1, 1]} : vector<8x138xf32> to vector<8x32xf32>
    %cst_76 = arith.constant 0.166666672 : f32
    %187 = vector.broadcast %cst_76 : f32 to vector<8x32xf32>
    %188 = arith.mulf %186, %187 : vector<8x32xf32>
    %cst_77 = arith.constant 5.000000e-01 : f32
    %189 = vector.broadcast %cst_77 : f32 to vector<8x32xf32>
    %190 = arith.addf %188, %189 : vector<8x32xf32>
    %cst_78 = arith.constant 0.000000e+00 : f32
    %cst_79 = arith.constant 1.000000e+00 : f32
    %191 = vector.broadcast %cst_78 : f32 to vector<8x32xf32>
    %192 = arith.maximumf %191, %190 : vector<8x32xf32>
    %193 = vector.broadcast %cst_79 : f32 to vector<8x32xf32>
    %194 = arith.minimumf %193, %192 : vector<8x32xf32>
    %195 = vector.extract_strided_slice %164 {offsets = [0, 128], sizes = [8, 10], strides = [1, 1]} : vector<8x138xf32> to vector<8x10xf32>
    %cst_80 = arith.constant 0.166666672 : f32
    %196 = vector.broadcast %cst_80 : f32 to vector<8x10xf32>
    %197 = arith.mulf %195, %196 : vector<8x10xf32>
    %cst_81 = arith.constant 5.000000e-01 : f32
    %198 = vector.broadcast %cst_81 : f32 to vector<8x10xf32>
    %199 = arith.addf %197, %198 : vector<8x10xf32>
    %cst_82 = arith.constant 0.000000e+00 : f32
    %cst_83 = arith.constant 1.000000e+00 : f32
    %200 = vector.broadcast %cst_82 : f32 to vector<8x10xf32>
    %201 = arith.maximumf %200, %199 : vector<8x10xf32>
    %202 = vector.broadcast %cst_83 : f32 to vector<8x10xf32>
    %203 = arith.minimumf %202, %201 : vector<8x10xf32>
    %204 = vector.shape_cast %203 : vector<8x10xf32> to vector<8x10x1xf32>
    %205 = vector.shape_cast %182 : vector<8x32xf32> to vector<8x1x32xf32>
    %206 = vector.broadcast %204 : vector<8x10x1xf32> to vector<8x10x32xf32>
    %207 = vector.broadcast %205 : vector<8x1x32xf32> to vector<8x10x32xf32>
    %208 = arith.mulf %206, %207 : vector<8x10x32xf32>
    %209 = vector.shape_cast %185 : vector<8x32xf32> to vector<8x1x32xf32>
    %210 = arith.mulf %208, %143 : vector<8x10x32xf32>
    %c2 = arith.constant 2 : index
    %c0_84 = arith.constant 0 : index
    %c0_85 = arith.constant 0 : index
    %211 = vector.load %arg2[%c2, %c0_84, %c0_85] : memref<8x10x32xf32, #tpu.memory_space<vmem>>, vector<1x10x32xf32>
    %212 = vector.shape_cast %211 : vector<1x10x32xf32> to vector<10x32xf32>
    %213 = vector.shape_cast %212 : vector<10x32xf32> to vector<1x10x32xf32>
    %214 = vector.broadcast %209 : vector<8x1x32xf32> to vector<8x10x32xf32>
    %215 = vector.broadcast %213 : vector<1x10x32xf32> to vector<8x10x32xf32>
    %216 = arith.mulf %214, %215 : vector<8x10x32xf32>
    %217 = arith.addf %210, %216 : vector<8x10x32xf32>
    %218 = arith.mulf %208, %151 : vector<8x10x32xf32>
    %c2_86 = arith.constant 2 : index
    %c0_87 = arith.constant 0 : index
    %c0_88 = arith.constant 0 : index
    %219 = vector.load %arg3[%c2_86, %c0_87, %c0_88] : memref<8x10x32xf32, #tpu.memory_space<vmem>>, vector<1x10x32xf32>
    %220 = vector.shape_cast %219 : vector<1x10x32xf32> to vector<10x32xf32>
    %221 = vector.shape_cast %220 : vector<10x32xf32> to vector<1x10x32xf32>
    %222 = vector.broadcast %209 : vector<8x1x32xf32> to vector<8x10x32xf32>
    %223 = vector.broadcast %221 : vector<1x10x32xf32> to vector<8x10x32xf32>
    %224 = arith.mulf %222, %223 : vector<8x10x32xf32>
    %225 = arith.addf %218, %224 : vector<8x10x32xf32>
    %226 = arith.mulf %217, %217 : vector<8x10x32xf32>
    %227 = arith.mulf %225, %225 : vector<8x10x32xf32>
    %228 = arith.addf %226, %227 : vector<8x10x32xf32>
    %229 = vector.broadcast %9 : vector<1x10x32xf32> to vector<8x10x32xf32>
    %230 = arith.mulf %228, %229 : vector<8x10x32xf32>
    %cst_89 = arith.constant dense<0.000000e+00> : vector<8x32xf32>
    %231 = vector.multi_reduction <add>, %230, %cst_89 [1] : vector<8x10x32xf32> to vector<8x32xf32>
    %232 = vector.broadcast %10 : vector<1x32xf32> to vector<8x32xf32>
    %233 = arith.addf %231, %232 : vector<8x32xf32>
    %234 = math.tanh %233 : vector<8x32xf32>
    %235 = arith.mulf %194, %234 : vector<8x32xf32>
    %c24 = arith.constant 24 : index
    %c0_90 = arith.constant 0 : index
    %236 = vector.load %arg14[%c24, %c0_90] : memref<64x138xf32, #tpu.memory_space<vmem>>, vector<8x138xf32>
    %cst_91 = arith.constant dense<0.000000e+00> : vector<8x138xf32>
    %237 = tpu.matmul %235, %7, %cst_91 {dimension_numbers = #tpu.dot_dimension_numbers<[1], [0], [0], [1], [0, 0, 1, 1], [], []>} : vector<8x32xf32>, vector<32x138xf32>, vector<8x138xf32> -> vector<8x138xf32>
    %238 = arith.addf %236, %237 : vector<8x138xf32>
    %239 = vector.extract_strided_slice %238 {offsets = [0, 0], sizes = [8, 32], strides = [1, 1]} : vector<8x138xf32> to vector<8x32xf32>
    %cst_92 = arith.constant 0.166666672 : f32
    %240 = vector.broadcast %cst_92 : f32 to vector<8x32xf32>
    %241 = arith.mulf %239, %240 : vector<8x32xf32>
    %cst_93 = arith.constant 5.000000e-01 : f32
    %242 = vector.broadcast %cst_93 : f32 to vector<8x32xf32>
    %243 = arith.addf %241, %242 : vector<8x32xf32>
    %cst_94 = arith.constant 0.000000e+00 : f32
    %cst_95 = arith.constant 1.000000e+00 : f32
    %244 = vector.broadcast %cst_94 : f32 to vector<8x32xf32>
    %245 = arith.maximumf %244, %243 : vector<8x32xf32>
    %246 = vector.broadcast %cst_95 : f32 to vector<8x32xf32>
    %247 = arith.minimumf %246, %245 : vector<8x32xf32>
    %248 = vector.extract_strided_slice %238 {offsets = [0, 32], sizes = [8, 32], strides = [1, 1]} : vector<8x138xf32> to vector<8x32xf32>
    %cst_96 = arith.constant 0.166666672 : f32
    %249 = vector.broadcast %cst_96 : f32 to vector<8x32xf32>
    %250 = arith.mulf %248, %249 : vector<8x32xf32>
    %cst_97 = arith.constant 5.000000e-01 : f32
    %251 = vector.broadcast %cst_97 : f32 to vector<8x32xf32>
    %252 = arith.addf %250, %251 : vector<8x32xf32>
    %cst_98 = arith.constant 0.000000e+00 : f32
    %cst_99 = arith.constant 1.000000e+00 : f32
    %253 = vector.broadcast %cst_98 : f32 to vector<8x32xf32>
    %254 = arith.maximumf %253, %252 : vector<8x32xf32>
    %255 = vector.broadcast %cst_99 : f32 to vector<8x32xf32>
    %256 = arith.minimumf %255, %254 : vector<8x32xf32>
    %257 = vector.extract_strided_slice %238 {offsets = [0, 64], sizes = [8, 32], strides = [1, 1]} : vector<8x138xf32> to vector<8x32xf32>
    %258 = math.tanh %257 : vector<8x32xf32>
    %259 = arith.mulf %247, %258 : vector<8x32xf32>
    %260 = vector.extract_strided_slice %238 {offsets = [0, 96], sizes = [8, 32], strides = [1, 1]} : vector<8x138xf32> to vector<8x32xf32>
    %cst_100 = arith.constant 0.166666672 : f32
    %261 = vector.broadcast %cst_100 : f32 to vector<8x32xf32>
    %262 = arith.mulf %260, %261 : vector<8x32xf32>
    %cst_101 = arith.constant 5.000000e-01 : f32
    %263 = vector.broadcast %cst_101 : f32 to vector<8x32xf32>
    %264 = arith.addf %262, %263 : vector<8x32xf32>
    %cst_102 = arith.constant 0.000000e+00 : f32
    %cst_103 = arith.constant 1.000000e+00 : f32
    %265 = vector.broadcast %cst_102 : f32 to vector<8x32xf32>
    %266 = arith.maximumf %265, %264 : vector<8x32xf32>
    %267 = vector.broadcast %cst_103 : f32 to vector<8x32xf32>
    %268 = arith.minimumf %267, %266 : vector<8x32xf32>
    %269 = vector.extract_strided_slice %238 {offsets = [0, 128], sizes = [8, 10], strides = [1, 1]} : vector<8x138xf32> to vector<8x10xf32>
    %cst_104 = arith.constant 0.166666672 : f32
    %270 = vector.broadcast %cst_104 : f32 to vector<8x10xf32>
    %271 = arith.mulf %269, %270 : vector<8x10xf32>
    %cst_105 = arith.constant 5.000000e-01 : f32
    %272 = vector.broadcast %cst_105 : f32 to vector<8x10xf32>
    %273 = arith.addf %271, %272 : vector<8x10xf32>
    %cst_106 = arith.constant 0.000000e+00 : f32
    %cst_107 = arith.constant 1.000000e+00 : f32
    %274 = vector.broadcast %cst_106 : f32 to vector<8x10xf32>
    %275 = arith.maximumf %274, %273 : vector<8x10xf32>
    %276 = vector.broadcast %cst_107 : f32 to vector<8x10xf32>
    %277 = arith.minimumf %276, %275 : vector<8x10xf32>
    %278 = vector.shape_cast %277 : vector<8x10xf32> to vector<8x10x1xf32>
    %279 = vector.shape_cast %256 : vector<8x32xf32> to vector<8x1x32xf32>
    %280 = vector.broadcast %278 : vector<8x10x1xf32> to vector<8x10x32xf32>
    %281 = vector.broadcast %279 : vector<8x1x32xf32> to vector<8x10x32xf32>
    %282 = arith.mulf %280, %281 : vector<8x10x32xf32>
    %283 = vector.shape_cast %259 : vector<8x32xf32> to vector<8x1x32xf32>
    %284 = arith.mulf %282, %217 : vector<8x10x32xf32>
    %c3 = arith.constant 3 : index
    %c0_108 = arith.constant 0 : index
    %c0_109 = arith.constant 0 : index
    %285 = vector.load %arg2[%c3, %c0_108, %c0_109] : memref<8x10x32xf32, #tpu.memory_space<vmem>>, vector<1x10x32xf32>
    %286 = vector.shape_cast %285 : vector<1x10x32xf32> to vector<10x32xf32>
    %287 = vector.shape_cast %286 : vector<10x32xf32> to vector<1x10x32xf32>
    %288 = vector.broadcast %283 : vector<8x1x32xf32> to vector<8x10x32xf32>
    %289 = vector.broadcast %287 : vector<1x10x32xf32> to vector<8x10x32xf32>
    %290 = arith.mulf %288, %289 : vector<8x10x32xf32>
    %291 = arith.addf %284, %290 : vector<8x10x32xf32>
    %292 = arith.mulf %282, %225 : vector<8x10x32xf32>
    %c3_110 = arith.constant 3 : index
    %c0_111 = arith.constant 0 : index
    %c0_112 = arith.constant 0 : index
    %293 = vector.load %arg3[%c3_110, %c0_111, %c0_112] : memref<8x10x32xf32, #tpu.memory_space<vmem>>, vector<1x10x32xf32>
    %294 = vector.shape_cast %293 : vector<1x10x32xf32> to vector<10x32xf32>
    %295 = vector.shape_cast %294 : vector<10x32xf32> to vector<1x10x32xf32>
    %296 = vector.broadcast %283 : vector<8x1x32xf32> to vector<8x10x32xf32>
    %297 = vector.broadcast %295 : vector<1x10x32xf32> to vector<8x10x32xf32>
    %298 = arith.mulf %296, %297 : vector<8x10x32xf32>
    %299 = arith.addf %292, %298 : vector<8x10x32xf32>
    %300 = arith.mulf %291, %291 : vector<8x10x32xf32>
    %301 = arith.mulf %299, %299 : vector<8x10x32xf32>
    %302 = arith.addf %300, %301 : vector<8x10x32xf32>
    %303 = vector.broadcast %9 : vector<1x10x32xf32> to vector<8x10x32xf32>
    %304 = arith.mulf %302, %303 : vector<8x10x32xf32>
    %cst_113 = arith.constant dense<0.000000e+00> : vector<8x32xf32>
    %305 = vector.multi_reduction <add>, %304, %cst_113 [1] : vector<8x10x32xf32> to vector<8x32xf32>
    %306 = vector.broadcast %10 : vector<1x32xf32> to vector<8x32xf32>
    %307 = arith.addf %305, %306 : vector<8x32xf32>
    %308 = math.tanh %307 : vector<8x32xf32>
    %309 = arith.mulf %268, %308 : vector<8x32xf32>
    %c32 = arith.constant 32 : index
    %c0_114 = arith.constant 0 : index
    %310 = vector.load %arg14[%c32, %c0_114] : memref<64x138xf32, #tpu.memory_space<vmem>>, vector<8x138xf32>
    %cst_115 = arith.constant dense<0.000000e+00> : vector<8x138xf32>
    %311 = tpu.matmul %309, %7, %cst_115 {dimension_numbers = #tpu.dot_dimension_numbers<[1], [0], [0], [1], [0, 0, 1, 1], [], []>} : vector<8x32xf32>, vector<32x138xf32>, vector<8x138xf32> -> vector<8x138xf32>
    %312 = arith.addf %310, %311 : vector<8x138xf32>
    %313 = vector.extract_strided_slice %312 {offsets = [0, 0], sizes = [8, 32], strides = [1, 1]} : vector<8x138xf32> to vector<8x32xf32>
    %cst_116 = arith.constant 0.166666672 : f32
    %314 = vector.broadcast %cst_116 : f32 to vector<8x32xf32>
    %315 = arith.mulf %313, %314 : vector<8x32xf32>
    %cst_117 = arith.constant 5.000000e-01 : f32
    %316 = vector.broadcast %cst_117 : f32 to vector<8x32xf32>
    %317 = arith.addf %315, %316 : vector<8x32xf32>
    %cst_118 = arith.constant 0.000000e+00 : f32
    %cst_119 = arith.constant 1.000000e+00 : f32
    %318 = vector.broadcast %cst_118 : f32 to vector<8x32xf32>
    %319 = arith.maximumf %318, %317 : vector<8x32xf32>
    %320 = vector.broadcast %cst_119 : f32 to vector<8x32xf32>
    %321 = arith.minimumf %320, %319 : vector<8x32xf32>
    %322 = vector.extract_strided_slice %312 {offsets = [0, 32], sizes = [8, 32], strides = [1, 1]} : vector<8x138xf32> to vector<8x32xf32>
    %cst_120 = arith.constant 0.166666672 : f32
    %323 = vector.broadcast %cst_120 : f32 to vector<8x32xf32>
    %324 = arith.mulf %322, %323 : vector<8x32xf32>
    %cst_121 = arith.constant 5.000000e-01 : f32
    %325 = vector.broadcast %cst_121 : f32 to vector<8x32xf32>
    %326 = arith.addf %324, %325 : vector<8x32xf32>
    %cst_122 = arith.constant 0.000000e+00 : f32
    %cst_123 = arith.constant 1.000000e+00 : f32
    %327 = vector.broadcast %cst_122 : f32 to vector<8x32xf32>
    %328 = arith.maximumf %327, %326 : vector<8x32xf32>
    %329 = vector.broadcast %cst_123 : f32 to vector<8x32xf32>
    %330 = arith.minimumf %329, %328 : vector<8x32xf32>
    %331 = vector.extract_strided_slice %312 {offsets = [0, 64], sizes = [8, 32], strides = [1, 1]} : vector<8x138xf32> to vector<8x32xf32>
    %332 = math.tanh %331 : vector<8x32xf32>
    %333 = arith.mulf %321, %332 : vector<8x32xf32>
    %334 = vector.extract_strided_slice %312 {offsets = [0, 96], sizes = [8, 32], strides = [1, 1]} : vector<8x138xf32> to vector<8x32xf32>
    %cst_124 = arith.constant 0.166666672 : f32
    %335 = vector.broadcast %cst_124 : f32 to vector<8x32xf32>
    %336 = arith.mulf %334, %335 : vector<8x32xf32>
    %cst_125 = arith.constant 5.000000e-01 : f32
    %337 = vector.broadcast %cst_125 : f32 to vector<8x32xf32>
    %338 = arith.addf %336, %337 : vector<8x32xf32>
    %cst_126 = arith.constant 0.000000e+00 : f32
    %cst_127 = arith.constant 1.000000e+00 : f32
    %339 = vector.broadcast %cst_126 : f32 to vector<8x32xf32>
    %340 = arith.maximumf %339, %338 : vector<8x32xf32>
    %341 = vector.broadcast %cst_127 : f32 to vector<8x32xf32>
    %342 = arith.minimumf %341, %340 : vector<8x32xf32>
    %343 = vector.extract_strided_slice %312 {offsets = [0, 128], sizes = [8, 10], strides = [1, 1]} : vector<8x138xf32> to vector<8x10xf32>
    %cst_128 = arith.constant 0.166666672 : f32
    %344 = vector.broadcast %cst_128 : f32 to vector<8x10xf32>
    %345 = arith.mulf %343, %344 : vector<8x10xf32>
    %cst_129 = arith.constant 5.000000e-01 : f32
    %346 = vector.broadcast %cst_129 : f32 to vector<8x10xf32>
    %347 = arith.addf %345, %346 : vector<8x10xf32>
    %cst_130 = arith.constant 0.000000e+00 : f32
    %cst_131 = arith.constant 1.000000e+00 : f32
    %348 = vector.broadcast %cst_130 : f32 to vector<8x10xf32>
    %349 = arith.maximumf %348, %347 : vector<8x10xf32>
    %350 = vector.broadcast %cst_131 : f32 to vector<8x10xf32>
    %351 = arith.minimumf %350, %349 : vector<8x10xf32>
    %352 = vector.shape_cast %351 : vector<8x10xf32> to vector<8x10x1xf32>
    %353 = vector.shape_cast %330 : vector<8x32xf32> to vector<8x1x32xf32>
    %354 = vector.broadcast %352 : vector<8x10x1xf32> to vector<8x10x32xf32>
    %355 = vector.broadcast %353 : vector<8x1x32xf32> to vector<8x10x32xf32>
    %356 = arith.mulf %354, %355 : vector<8x10x32xf32>
    %357 = vector.shape_cast %333 : vector<8x32xf32> to vector<8x1x32xf32>
    %358 = arith.mulf %356, %291 : vector<8x10x32xf32>
    %c4 = arith.constant 4 : index
    %c0_132 = arith.constant 0 : index
    %c0_133 = arith.constant 0 : index
    %359 = vector.load %arg2[%c4, %c0_132, %c0_133] : memref<8x10x32xf32, #tpu.memory_space<vmem>>, vector<1x10x32xf32>
    %360 = vector.shape_cast %359 : vector<1x10x32xf32> to vector<10x32xf32>
    %361 = vector.shape_cast %360 : vector<10x32xf32> to vector<1x10x32xf32>
    %362 = vector.broadcast %357 : vector<8x1x32xf32> to vector<8x10x32xf32>
    %363 = vector.broadcast %361 : vector<1x10x32xf32> to vector<8x10x32xf32>
    %364 = arith.mulf %362, %363 : vector<8x10x32xf32>
    %365 = arith.addf %358, %364 : vector<8x10x32xf32>
    %366 = arith.mulf %356, %299 : vector<8x10x32xf32>
    %c4_134 = arith.constant 4 : index
    %c0_135 = arith.constant 0 : index
    %c0_136 = arith.constant 0 : index
    %367 = vector.load %arg3[%c4_134, %c0_135, %c0_136] : memref<8x10x32xf32, #tpu.memory_space<vmem>>, vector<1x10x32xf32>
    %368 = vector.shape_cast %367 : vector<1x10x32xf32> to vector<10x32xf32>
    %369 = vector.shape_cast %368 : vector<10x32xf32> to vector<1x10x32xf32>
    %370 = vector.broadcast %357 : vector<8x1x32xf32> to vector<8x10x32xf32>
    %371 = vector.broadcast %369 : vector<1x10x32xf32> to vector<8x10x32xf32>
    %372 = arith.mulf %370, %371 : vector<8x10x32xf32>
    %373 = arith.addf %366, %372 : vector<8x10x32xf32>
    %374 = arith.mulf %365, %365 : vector<8x10x32xf32>
    %375 = arith.mulf %373, %373 : vector<8x10x32xf32>
    %376 = arith.addf %374, %375 : vector<8x10x32xf32>
    %377 = vector.broadcast %9 : vector<1x10x32xf32> to vector<8x10x32xf32>
    %378 = arith.mulf %376, %377 : vector<8x10x32xf32>
    %cst_137 = arith.constant dense<0.000000e+00> : vector<8x32xf32>
    %379 = vector.multi_reduction <add>, %378, %cst_137 [1] : vector<8x10x32xf32> to vector<8x32xf32>
    %380 = vector.broadcast %10 : vector<1x32xf32> to vector<8x32xf32>
    %381 = arith.addf %379, %380 : vector<8x32xf32>
    %382 = math.tanh %381 : vector<8x32xf32>
    %383 = arith.mulf %342, %382 : vector<8x32xf32>
    %c40 = arith.constant 40 : index
    %c0_138 = arith.constant 0 : index
    %384 = vector.load %arg14[%c40, %c0_138] : memref<64x138xf32, #tpu.memory_space<vmem>>, vector<8x138xf32>
    %cst_139 = arith.constant dense<0.000000e+00> : vector<8x138xf32>
    %385 = tpu.matmul %383, %7, %cst_139 {dimension_numbers = #tpu.dot_dimension_numbers<[1], [0], [0], [1], [0, 0, 1, 1], [], []>} : vector<8x32xf32>, vector<32x138xf32>, vector<8x138xf32> -> vector<8x138xf32>
    %386 = arith.addf %384, %385 : vector<8x138xf32>
    %387 = vector.extract_strided_slice %386 {offsets = [0, 0], sizes = [8, 32], strides = [1, 1]} : vector<8x138xf32> to vector<8x32xf32>
    %cst_140 = arith.constant 0.166666672 : f32
    %388 = vector.broadcast %cst_140 : f32 to vector<8x32xf32>
    %389 = arith.mulf %387, %388 : vector<8x32xf32>
    %cst_141 = arith.constant 5.000000e-01 : f32
    %390 = vector.broadcast %cst_141 : f32 to vector<8x32xf32>
    %391 = arith.addf %389, %390 : vector<8x32xf32>
    %cst_142 = arith.constant 0.000000e+00 : f32
    %cst_143 = arith.constant 1.000000e+00 : f32
    %392 = vector.broadcast %cst_142 : f32 to vector<8x32xf32>
    %393 = arith.maximumf %392, %391 : vector<8x32xf32>
    %394 = vector.broadcast %cst_143 : f32 to vector<8x32xf32>
    %395 = arith.minimumf %394, %393 : vector<8x32xf32>
    %396 = vector.extract_strided_slice %386 {offsets = [0, 32], sizes = [8, 32], strides = [1, 1]} : vector<8x138xf32> to vector<8x32xf32>
    %cst_144 = arith.constant 0.166666672 : f32
    %397 = vector.broadcast %cst_144 : f32 to vector<8x32xf32>
    %398 = arith.mulf %396, %397 : vector<8x32xf32>
    %cst_145 = arith.constant 5.000000e-01 : f32
    %399 = vector.broadcast %cst_145 : f32 to vector<8x32xf32>
    %400 = arith.addf %398, %399 : vector<8x32xf32>
    %cst_146 = arith.constant 0.000000e+00 : f32
    %cst_147 = arith.constant 1.000000e+00 : f32
    %401 = vector.broadcast %cst_146 : f32 to vector<8x32xf32>
    %402 = arith.maximumf %401, %400 : vector<8x32xf32>
    %403 = vector.broadcast %cst_147 : f32 to vector<8x32xf32>
    %404 = arith.minimumf %403, %402 : vector<8x32xf32>
    %405 = vector.extract_strided_slice %386 {offsets = [0, 64], sizes = [8, 32], strides = [1, 1]} : vector<8x138xf32> to vector<8x32xf32>
    %406 = math.tanh %405 : vector<8x32xf32>
    %407 = arith.mulf %395, %406 : vector<8x32xf32>
    %408 = vector.extract_strided_slice %386 {offsets = [0, 96], sizes = [8, 32], strides = [1, 1]} : vector<8x138xf32> to vector<8x32xf32>
    %cst_148 = arith.constant 0.166666672 : f32
    %409 = vector.broadcast %cst_148 : f32 to vector<8x32xf32>
    %410 = arith.mulf %408, %409 : vector<8x32xf32>
    %cst_149 = arith.constant 5.000000e-01 : f32
    %411 = vector.broadcast %cst_149 : f32 to vector<8x32xf32>
    %412 = arith.addf %410, %411 : vector<8x32xf32>
    %cst_150 = arith.constant 0.000000e+00 : f32
    %cst_151 = arith.constant 1.000000e+00 : f32
    %413 = vector.broadcast %cst_150 : f32 to vector<8x32xf32>
    %414 = arith.maximumf %413, %412 : vector<8x32xf32>
    %415 = vector.broadcast %cst_151 : f32 to vector<8x32xf32>
    %416 = arith.minimumf %415, %414 : vector<8x32xf32>
    %417 = vector.extract_strided_slice %386 {offsets = [0, 128], sizes = [8, 10], strides = [1, 1]} : vector<8x138xf32> to vector<8x10xf32>
    %cst_152 = arith.constant 0.166666672 : f32
    %418 = vector.broadcast %cst_152 : f32 to vector<8x10xf32>
    %419 = arith.mulf %417, %418 : vector<8x10xf32>
    %cst_153 = arith.constant 5.000000e-01 : f32
    %420 = vector.broadcast %cst_153 : f32 to vector<8x10xf32>
    %421 = arith.addf %419, %420 : vector<8x10xf32>
    %cst_154 = arith.constant 0.000000e+00 : f32
    %cst_155 = arith.constant 1.000000e+00 : f32
    %422 = vector.broadcast %cst_154 : f32 to vector<8x10xf32>
    %423 = arith.maximumf %422, %421 : vector<8x10xf32>
    %424 = vector.broadcast %cst_155 : f32 to vector<8x10xf32>
    %425 = arith.minimumf %424, %423 : vector<8x10xf32>
    %426 = vector.shape_cast %425 : vector<8x10xf32> to vector<8x10x1xf32>
    %427 = vector.shape_cast %404 : vector<8x32xf32> to vector<8x1x32xf32>
    %428 = vector.broadcast %426 : vector<8x10x1xf32> to vector<8x10x32xf32>
    %429 = vector.broadcast %427 : vector<8x1x32xf32> to vector<8x10x32xf32>
    %430 = arith.mulf %428, %429 : vector<8x10x32xf32>
    %431 = vector.shape_cast %407 : vector<8x32xf32> to vector<8x1x32xf32>
    %432 = arith.mulf %430, %365 : vector<8x10x32xf32>
    %c5 = arith.constant 5 : index
    %c0_156 = arith.constant 0 : index
    %c0_157 = arith.constant 0 : index
    %433 = vector.load %arg2[%c5, %c0_156, %c0_157] : memref<8x10x32xf32, #tpu.memory_space<vmem>>, vector<1x10x32xf32>
    %434 = vector.shape_cast %433 : vector<1x10x32xf32> to vector<10x32xf32>
    %435 = vector.shape_cast %434 : vector<10x32xf32> to vector<1x10x32xf32>
    %436 = vector.broadcast %431 : vector<8x1x32xf32> to vector<8x10x32xf32>
    %437 = vector.broadcast %435 : vector<1x10x32xf32> to vector<8x10x32xf32>
    %438 = arith.mulf %436, %437 : vector<8x10x32xf32>
    %439 = arith.addf %432, %438 : vector<8x10x32xf32>
    %440 = arith.mulf %430, %373 : vector<8x10x32xf32>
    %c5_158 = arith.constant 5 : index
    %c0_159 = arith.constant 0 : index
    %c0_160 = arith.constant 0 : index
    %441 = vector.load %arg3[%c5_158, %c0_159, %c0_160] : memref<8x10x32xf32, #tpu.memory_space<vmem>>, vector<1x10x32xf32>
    %442 = vector.shape_cast %441 : vector<1x10x32xf32> to vector<10x32xf32>
    %443 = vector.shape_cast %442 : vector<10x32xf32> to vector<1x10x32xf32>
    %444 = vector.broadcast %431 : vector<8x1x32xf32> to vector<8x10x32xf32>
    %445 = vector.broadcast %443 : vector<1x10x32xf32> to vector<8x10x32xf32>
    %446 = arith.mulf %444, %445 : vector<8x10x32xf32>
    %447 = arith.addf %440, %446 : vector<8x10x32xf32>
    %448 = arith.mulf %439, %439 : vector<8x10x32xf32>
    %449 = arith.mulf %447, %447 : vector<8x10x32xf32>
    %450 = arith.addf %448, %449 : vector<8x10x32xf32>
    %451 = vector.broadcast %9 : vector<1x10x32xf32> to vector<8x10x32xf32>
    %452 = arith.mulf %450, %451 : vector<8x10x32xf32>
    %cst_161 = arith.constant dense<0.000000e+00> : vector<8x32xf32>
    %453 = vector.multi_reduction <add>, %452, %cst_161 [1] : vector<8x10x32xf32> to vector<8x32xf32>
    %454 = vector.broadcast %10 : vector<1x32xf32> to vector<8x32xf32>
    %455 = arith.addf %453, %454 : vector<8x32xf32>
    %456 = math.tanh %455 : vector<8x32xf32>
    %457 = arith.mulf %416, %456 : vector<8x32xf32>
    %c48 = arith.constant 48 : index
    %c0_162 = arith.constant 0 : index
    %458 = vector.load %arg14[%c48, %c0_162] : memref<64x138xf32, #tpu.memory_space<vmem>>, vector<8x138xf32>
    %cst_163 = arith.constant dense<0.000000e+00> : vector<8x138xf32>
    %459 = tpu.matmul %457, %7, %cst_163 {dimension_numbers = #tpu.dot_dimension_numbers<[1], [0], [0], [1], [0, 0, 1, 1], [], []>} : vector<8x32xf32>, vector<32x138xf32>, vector<8x138xf32> -> vector<8x138xf32>
    %460 = arith.addf %458, %459 : vector<8x138xf32>
    %461 = vector.extract_strided_slice %460 {offsets = [0, 0], sizes = [8, 32], strides = [1, 1]} : vector<8x138xf32> to vector<8x32xf32>
    %cst_164 = arith.constant 0.166666672 : f32
    %462 = vector.broadcast %cst_164 : f32 to vector<8x32xf32>
    %463 = arith.mulf %461, %462 : vector<8x32xf32>
    %cst_165 = arith.constant 5.000000e-01 : f32
    %464 = vector.broadcast %cst_165 : f32 to vector<8x32xf32>
    %465 = arith.addf %463, %464 : vector<8x32xf32>
    %cst_166 = arith.constant 0.000000e+00 : f32
    %cst_167 = arith.constant 1.000000e+00 : f32
    %466 = vector.broadcast %cst_166 : f32 to vector<8x32xf32>
    %467 = arith.maximumf %466, %465 : vector<8x32xf32>
    %468 = vector.broadcast %cst_167 : f32 to vector<8x32xf32>
    %469 = arith.minimumf %468, %467 : vector<8x32xf32>
    %470 = vector.extract_strided_slice %460 {offsets = [0, 32], sizes = [8, 32], strides = [1, 1]} : vector<8x138xf32> to vector<8x32xf32>
    %cst_168 = arith.constant 0.166666672 : f32
    %471 = vector.broadcast %cst_168 : f32 to vector<8x32xf32>
    %472 = arith.mulf %470, %471 : vector<8x32xf32>
    %cst_169 = arith.constant 5.000000e-01 : f32
    %473 = vector.broadcast %cst_169 : f32 to vector<8x32xf32>
    %474 = arith.addf %472, %473 : vector<8x32xf32>
    %cst_170 = arith.constant 0.000000e+00 : f32
    %cst_171 = arith.constant 1.000000e+00 : f32
    %475 = vector.broadcast %cst_170 : f32 to vector<8x32xf32>
    %476 = arith.maximumf %475, %474 : vector<8x32xf32>
    %477 = vector.broadcast %cst_171 : f32 to vector<8x32xf32>
    %478 = arith.minimumf %477, %476 : vector<8x32xf32>
    %479 = vector.extract_strided_slice %460 {offsets = [0, 64], sizes = [8, 32], strides = [1, 1]} : vector<8x138xf32> to vector<8x32xf32>
    %480 = math.tanh %479 : vector<8x32xf32>
    %481 = arith.mulf %469, %480 : vector<8x32xf32>
    %482 = vector.extract_strided_slice %460 {offsets = [0, 96], sizes = [8, 32], strides = [1, 1]} : vector<8x138xf32> to vector<8x32xf32>
    %cst_172 = arith.constant 0.166666672 : f32
    %483 = vector.broadcast %cst_172 : f32 to vector<8x32xf32>
    %484 = arith.mulf %482, %483 : vector<8x32xf32>
    %cst_173 = arith.constant 5.000000e-01 : f32
    %485 = vector.broadcast %cst_173 : f32 to vector<8x32xf32>
    %486 = arith.addf %484, %485 : vector<8x32xf32>
    %cst_174 = arith.constant 0.000000e+00 : f32
    %cst_175 = arith.constant 1.000000e+00 : f32
    %487 = vector.broadcast %cst_174 : f32 to vector<8x32xf32>
    %488 = arith.maximumf %487, %486 : vector<8x32xf32>
    %489 = vector.broadcast %cst_175 : f32 to vector<8x32xf32>
    %490 = arith.minimumf %489, %488 : vector<8x32xf32>
    %491 = vector.extract_strided_slice %460 {offsets = [0, 128], sizes = [8, 10], strides = [1, 1]} : vector<8x138xf32> to vector<8x10xf32>
    %cst_176 = arith.constant 0.166666672 : f32
    %492 = vector.broadcast %cst_176 : f32 to vector<8x10xf32>
    %493 = arith.mulf %491, %492 : vector<8x10xf32>
    %cst_177 = arith.constant 5.000000e-01 : f32
    %494 = vector.broadcast %cst_177 : f32 to vector<8x10xf32>
    %495 = arith.addf %493, %494 : vector<8x10xf32>
    %cst_178 = arith.constant 0.000000e+00 : f32
    %cst_179 = arith.constant 1.000000e+00 : f32
    %496 = vector.broadcast %cst_178 : f32 to vector<8x10xf32>
    %497 = arith.maximumf %496, %495 : vector<8x10xf32>
    %498 = vector.broadcast %cst_179 : f32 to vector<8x10xf32>
    %499 = arith.minimumf %498, %497 : vector<8x10xf32>
    %500 = vector.shape_cast %499 : vector<8x10xf32> to vector<8x10x1xf32>
    %501 = vector.shape_cast %478 : vector<8x32xf32> to vector<8x1x32xf32>
    %502 = vector.broadcast %500 : vector<8x10x1xf32> to vector<8x10x32xf32>
    %503 = vector.broadcast %501 : vector<8x1x32xf32> to vector<8x10x32xf32>
    %504 = arith.mulf %502, %503 : vector<8x10x32xf32>
    %505 = vector.shape_cast %481 : vector<8x32xf32> to vector<8x1x32xf32>
    %506 = arith.mulf %504, %439 : vector<8x10x32xf32>
    %c6 = arith.constant 6 : index
    %c0_180 = arith.constant 0 : index
    %c0_181 = arith.constant 0 : index
    %507 = vector.load %arg2[%c6, %c0_180, %c0_181] : memref<8x10x32xf32, #tpu.memory_space<vmem>>, vector<1x10x32xf32>
    %508 = vector.shape_cast %507 : vector<1x10x32xf32> to vector<10x32xf32>
    %509 = vector.shape_cast %508 : vector<10x32xf32> to vector<1x10x32xf32>
    %510 = vector.broadcast %505 : vector<8x1x32xf32> to vector<8x10x32xf32>
    %511 = vector.broadcast %509 : vector<1x10x32xf32> to vector<8x10x32xf32>
    %512 = arith.mulf %510, %511 : vector<8x10x32xf32>
    %513 = arith.addf %506, %512 : vector<8x10x32xf32>
    %514 = arith.mulf %504, %447 : vector<8x10x32xf32>
    %c6_182 = arith.constant 6 : index
    %c0_183 = arith.constant 0 : index
    %c0_184 = arith.constant 0 : index
    %515 = vector.load %arg3[%c6_182, %c0_183, %c0_184] : memref<8x10x32xf32, #tpu.memory_space<vmem>>, vector<1x10x32xf32>
    %516 = vector.shape_cast %515 : vector<1x10x32xf32> to vector<10x32xf32>
    %517 = vector.shape_cast %516 : vector<10x32xf32> to vector<1x10x32xf32>
    %518 = vector.broadcast %505 : vector<8x1x32xf32> to vector<8x10x32xf32>
    %519 = vector.broadcast %517 : vector<1x10x32xf32> to vector<8x10x32xf32>
    %520 = arith.mulf %518, %519 : vector<8x10x32xf32>
    %521 = arith.addf %514, %520 : vector<8x10x32xf32>
    %522 = arith.mulf %513, %513 : vector<8x10x32xf32>
    %523 = arith.mulf %521, %521 : vector<8x10x32xf32>
    %524 = arith.addf %522, %523 : vector<8x10x32xf32>
    %525 = vector.broadcast %9 : vector<1x10x32xf32> to vector<8x10x32xf32>
    %526 = arith.mulf %524, %525 : vector<8x10x32xf32>
    %cst_185 = arith.constant dense<0.000000e+00> : vector<8x32xf32>
    %527 = vector.multi_reduction <add>, %526, %cst_185 [1] : vector<8x10x32xf32> to vector<8x32xf32>
    %528 = vector.broadcast %10 : vector<1x32xf32> to vector<8x32xf32>
    %529 = arith.addf %527, %528 : vector<8x32xf32>
    %530 = math.tanh %529 : vector<8x32xf32>
    %531 = arith.mulf %490, %530 : vector<8x32xf32>
    %c56 = arith.constant 56 : index
    %c0_186 = arith.constant 0 : index
    %532 = vector.load %arg14[%c56, %c0_186] : memref<64x138xf32, #tpu.memory_space<vmem>>, vector<8x138xf32>
    %cst_187 = arith.constant dense<0.000000e+00> : vector<8x138xf32>
    %533 = tpu.matmul %531, %7, %cst_187 {dimension_numbers = #tpu.dot_dimension_numbers<[1], [0], [0], [1], [0, 0, 1, 1], [], []>} : vector<8x32xf32>, vector<32x138xf32>, vector<8x138xf32> -> vector<8x138xf32>
    %534 = arith.addf %532, %533 : vector<8x138xf32>
    %535 = vector.extract_strided_slice %534 {offsets = [0, 0], sizes = [8, 32], strides = [1, 1]} : vector<8x138xf32> to vector<8x32xf32>
    %cst_188 = arith.constant 0.166666672 : f32
    %536 = vector.broadcast %cst_188 : f32 to vector<8x32xf32>
    %537 = arith.mulf %535, %536 : vector<8x32xf32>
    %cst_189 = arith.constant 5.000000e-01 : f32
    %538 = vector.broadcast %cst_189 : f32 to vector<8x32xf32>
    %539 = arith.addf %537, %538 : vector<8x32xf32>
    %cst_190 = arith.constant 0.000000e+00 : f32
    %cst_191 = arith.constant 1.000000e+00 : f32
    %540 = vector.broadcast %cst_190 : f32 to vector<8x32xf32>
    %541 = arith.maximumf %540, %539 : vector<8x32xf32>
    %542 = vector.broadcast %cst_191 : f32 to vector<8x32xf32>
    %543 = arith.minimumf %542, %541 : vector<8x32xf32>
    %544 = vector.extract_strided_slice %534 {offsets = [0, 32], sizes = [8, 32], strides = [1, 1]} : vector<8x138xf32> to vector<8x32xf32>
    %cst_192 = arith.constant 0.166666672 : f32
    %545 = vector.broadcast %cst_192 : f32 to vector<8x32xf32>
    %546 = arith.mulf %544, %545 : vector<8x32xf32>
    %cst_193 = arith.constant 5.000000e-01 : f32
    %547 = vector.broadcast %cst_193 : f32 to vector<8x32xf32>
    %548 = arith.addf %546, %547 : vector<8x32xf32>
    %cst_194 = arith.constant 0.000000e+00 : f32
    %cst_195 = arith.constant 1.000000e+00 : f32
    %549 = vector.broadcast %cst_194 : f32 to vector<8x32xf32>
    %550 = arith.maximumf %549, %548 : vector<8x32xf32>
    %551 = vector.broadcast %cst_195 : f32 to vector<8x32xf32>
    %552 = arith.minimumf %551, %550 : vector<8x32xf32>
    %553 = vector.extract_strided_slice %534 {offsets = [0, 64], sizes = [8, 32], strides = [1, 1]} : vector<8x138xf32> to vector<8x32xf32>
    %554 = math.tanh %553 : vector<8x32xf32>
    %555 = arith.mulf %543, %554 : vector<8x32xf32>
    %556 = vector.extract_strided_slice %534 {offsets = [0, 96], sizes = [8, 32], strides = [1, 1]} : vector<8x138xf32> to vector<8x32xf32>
    %cst_196 = arith.constant 0.166666672 : f32
    %557 = vector.broadcast %cst_196 : f32 to vector<8x32xf32>
    %558 = arith.mulf %556, %557 : vector<8x32xf32>
    %cst_197 = arith.constant 5.000000e-01 : f32
    %559 = vector.broadcast %cst_197 : f32 to vector<8x32xf32>
    %560 = arith.addf %558, %559 : vector<8x32xf32>
    %cst_198 = arith.constant 0.000000e+00 : f32
    %cst_199 = arith.constant 1.000000e+00 : f32
    %561 = vector.broadcast %cst_198 : f32 to vector<8x32xf32>
    %562 = arith.maximumf %561, %560 : vector<8x32xf32>
    %563 = vector.broadcast %cst_199 : f32 to vector<8x32xf32>
    %564 = arith.minimumf %563, %562 : vector<8x32xf32>
    %565 = vector.extract_strided_slice %534 {offsets = [0, 128], sizes = [8, 10], strides = [1, 1]} : vector<8x138xf32> to vector<8x10xf32>
    %cst_200 = arith.constant 0.166666672 : f32
    %566 = vector.broadcast %cst_200 : f32 to vector<8x10xf32>
    %567 = arith.mulf %565, %566 : vector<8x10xf32>
    %cst_201 = arith.constant 5.000000e-01 : f32
    %568 = vector.broadcast %cst_201 : f32 to vector<8x10xf32>
    %569 = arith.addf %567, %568 : vector<8x10xf32>
    %cst_202 = arith.constant 0.000000e+00 : f32
    %cst_203 = arith.constant 1.000000e+00 : f32
    %570 = vector.broadcast %cst_202 : f32 to vector<8x10xf32>
    %571 = arith.maximumf %570, %569 : vector<8x10xf32>
    %572 = vector.broadcast %cst_203 : f32 to vector<8x10xf32>
    %573 = arith.minimumf %572, %571 : vector<8x10xf32>
    %574 = vector.shape_cast %573 : vector<8x10xf32> to vector<8x10x1xf32>
    %575 = vector.shape_cast %552 : vector<8x32xf32> to vector<8x1x32xf32>
    %576 = vector.broadcast %574 : vector<8x10x1xf32> to vector<8x10x32xf32>
    %577 = vector.broadcast %575 : vector<8x1x32xf32> to vector<8x10x32xf32>
    %578 = arith.mulf %576, %577 : vector<8x10x32xf32>
    %579 = vector.shape_cast %555 : vector<8x32xf32> to vector<8x1x32xf32>
    %580 = arith.mulf %578, %513 : vector<8x10x32xf32>
    %c7 = arith.constant 7 : index
    %c0_204 = arith.constant 0 : index
    %c0_205 = arith.constant 0 : index
    %581 = vector.load %arg2[%c7, %c0_204, %c0_205] : memref<8x10x32xf32, #tpu.memory_space<vmem>>, vector<1x10x32xf32>
    %582 = vector.shape_cast %581 : vector<1x10x32xf32> to vector<10x32xf32>
    %583 = vector.shape_cast %582 : vector<10x32xf32> to vector<1x10x32xf32>
    %584 = vector.broadcast %579 : vector<8x1x32xf32> to vector<8x10x32xf32>
    %585 = vector.broadcast %583 : vector<1x10x32xf32> to vector<8x10x32xf32>
    %586 = arith.mulf %584, %585 : vector<8x10x32xf32>
    %587 = arith.addf %580, %586 : vector<8x10x32xf32>
    %588 = arith.mulf %578, %521 : vector<8x10x32xf32>
    %c7_206 = arith.constant 7 : index
    %c0_207 = arith.constant 0 : index
    %c0_208 = arith.constant 0 : index
    %589 = vector.load %arg3[%c7_206, %c0_207, %c0_208] : memref<8x10x32xf32, #tpu.memory_space<vmem>>, vector<1x10x32xf32>
    %590 = vector.shape_cast %589 : vector<1x10x32xf32> to vector<10x32xf32>
    %591 = vector.shape_cast %590 : vector<10x32xf32> to vector<1x10x32xf32>
    %592 = vector.broadcast %579 : vector<8x1x32xf32> to vector<8x10x32xf32>
    %593 = vector.broadcast %591 : vector<1x10x32xf32> to vector<8x10x32xf32>
    %594 = arith.mulf %592, %593 : vector<8x10x32xf32>
    %595 = arith.addf %588, %594 : vector<8x10x32xf32>
    %596 = arith.mulf %587, %587 : vector<8x10x32xf32>
    %597 = arith.mulf %595, %595 : vector<8x10x32xf32>
    %598 = arith.addf %596, %597 : vector<8x10x32xf32>
    %599 = vector.broadcast %9 : vector<1x10x32xf32> to vector<8x10x32xf32>
    %600 = arith.mulf %598, %599 : vector<8x10x32xf32>
    %cst_209 = arith.constant dense<0.000000e+00> : vector<8x32xf32>
    %601 = vector.multi_reduction <add>, %600, %cst_209 [1] : vector<8x10x32xf32> to vector<8x32xf32>
    %602 = vector.broadcast %10 : vector<1x32xf32> to vector<8x32xf32>
    %603 = arith.addf %601, %602 : vector<8x32xf32>
    %604 = math.tanh %603 : vector<8x32xf32>
    %605 = arith.mulf %564, %604 : vector<8x32xf32>
    %c0_210 = arith.constant 0 : index
    %c0_211 = arith.constant 0 : index
    %606 = vector.load %arg9[%c0_210, %c0_211] : memref<1x32xf32, #tpu.memory_space<vmem>>, vector<1x32xf32>
    %607 = vector.broadcast %606 : vector<1x32xf32> to vector<8x32xf32>
    %608 = arith.mulf %605, %607 : vector<8x32xf32>
    %cst_212 = arith.constant dense<0.000000e+00> : vector<8xf32>
    %609 = vector.multi_reduction <add>, %608, %cst_212 [1] : vector<8x32xf32> to vector<8xf32>
    %610 = vector.shape_cast %609 : vector<8xf32> to vector<8x1xf32>
    %c0_213 = arith.constant 0 : index
    %c0_214 = arith.constant 0 : index
    %611 = vector.load %arg10[%c0_213, %c0_214] : memref<1x1xf32, #tpu.memory_space<vmem>>, vector<1x1xf32>
    %612 = vector.broadcast %611 : vector<1x1xf32> to vector<8x1xf32>
    %613 = arith.addf %610, %612 : vector<8x1xf32>
    %c0_215 = arith.constant 0 : index
    %c0_216 = arith.constant 0 : index
    %614 = vector.load %arg11[%c0_215, %c0_216] : memref<1x1xf32, #tpu.memory_space<vmem>>, vector<1x1xf32>
    %615 = vector.broadcast %614 : vector<1x1xf32> to vector<8x1xf32>
    %616 = arith.mulf %613, %615 : vector<8x1xf32>
    %c0_217 = arith.constant 0 : index
    %c0_218 = arith.constant 0 : index
    %617 = vector.load %arg12[%c0_217, %c0_218] : memref<1x1xf32, #tpu.memory_space<vmem>>, vector<1x1xf32>
    %618 = vector.broadcast %617 : vector<1x1xf32> to vector<8x1xf32>
    %619 = arith.addf %616, %618 : vector<8x1xf32>
    %c0_219 = arith.constant 0 : index
    %c0_220 = arith.constant 0 : index
    %620 = vector.load %arg13[%c0_219, %c0_220] : memref<8x1xf32, #tpu.memory_space<vmem>>, vector<8x1xf32>
    tpu.vector_store %arg13[%c0_219, %c0_220], %619 {strides = array<i32>} : memref<8x1xf32, #tpu.memory_space<vmem>>, vector<8x1xf32>,
    return
  }
  func.func @transform_0(%arg0: i32) -> (i32, i32) {
    %c0_i32 = arith.constant 0 : i32
    %c0_i32_0 = arith.constant 0 : i32
    return %arg0, %c0_i32 : i32, i32
  }
  func.func @transform_1(%arg0: i32) -> (i32, i32, i32) {
    %c0_i32 = arith.constant 0 : i32
    %c0_i32_0 = arith.constant 0 : i32
    %c0_i32_1 = arith.constant 0 : i32
    %c0_i32_2 = arith.constant 0 : i32
    return %c0_i32, %c0_i32_0, %c0_i32_1 : i32, i32, i32
  }
  func.func @transform_2(%arg0: i32) -> (i32, i32, i32) {
    %c0_i32 = arith.constant 0 : i32
    %c0_i32_0 = arith.constant 0 : i32
    %c0_i32_1 = arith.constant 0 : i32
    %c0_i32_2 = arith.constant 0 : i32
    return %c0_i32, %c0_i32_0, %c0_i32_1 : i32, i32, i32
  }
  func.func @transform_3(%arg0: i32) -> (i32, i32) {
    %c0_i32 = arith.constant 0 : i32
    %c0_i32_0 = arith.constant 0 : i32
    %c0_i32_1 = arith.constant 0 : i32
    return %c0_i32, %c0_i32_0 : i32, i32
  }
  func.func @transform_4(%arg0: i32) -> (i32, i32) {
    %c0_i32 = arith.constant 0 : i32
    %c0_i32_0 = arith.constant 0 : i32
    %c0_i32_1 = arith.constant 0 : i32
    return %c0_i32, %c0_i32_0 : i32, i32
  }
  func.func @transform_5(%arg0: i32) -> (i32, i32) {
    %c0_i32 = arith.constant 0 : i32
    %c0_i32_0 = arith.constant 0 : i32
    %c0_i32_1 = arith.constant 0 : i32
    return %c0_i32, %c0_i32_0 : i32, i32
  }
  func.func @transform_6(%arg0: i32) -> (i32, i32) {
    %c0_i32 = arith.constant 0 : i32
    %c0_i32_0 = arith.constant 0 : i32
    %c0_i32_1 = arith.constant 0 : i32
    return %c0_i32, %c0_i32_0 : i32, i32
  }
  func.func @transform_7(%arg0: i32) -> (i32, i32) {
    %c0_i32 = arith.constant 0 : i32
    %c0_i32_0 = arith.constant 0 : i32
    %c0_i32_1 = arith.constant 0 : i32
    return %c0_i32, %c0_i32_0 : i32, i32
  }
  func.func @transform_8(%arg0: i32) -> (i32, i32) {
    %c0_i32 = arith.constant 0 : i32
    %c0_i32_0 = arith.constant 0 : i32
    %c0_i32_1 = arith.constant 0 : i32
    return %c0_i32, %c0_i32_0 : i32, i32
  }
  func.func @transform_9(%arg0: i32) -> (i32, i32) {
    %c0_i32 = arith.constant 0 : i32
    %c0_i32_0 = arith.constant 0 : i32
    %c0_i32_1 = arith.constant 0 : i32
    return %c0_i32, %c0_i32_0 : i32, i32
  }
  func.func @transform_10(%arg0: i32) -> (i32, i32) {
    %c0_i32 = arith.constant 0 : i32
    %c0_i32_0 = arith.constant 0 : i32
    %c0_i32_1 = arith.constant 0 : i32
    return %c0_i32, %c0_i32_0 : i32, i32
  }
  func.func @transform_11(%arg0: i32) -> (i32, i32) {
    %c0_i32 = arith.constant 0 : i32
    %c0_i32_0 = arith.constant 0 : i32
    %c0_i32_1 = arith.constant 0 : i32
    return %c0_i32, %c0_i32_0 : i32, i32
  }
  func.func @transform_12(%arg0: i32) -> (i32, i32) {
    %c0_i32 = arith.constant 0 : i32
    %c0_i32_0 = arith.constant 0 : i32
    return %arg0, %c0_i32 : i32, i32
  }
}

</mosaic_0001>

<llo_original>
// kernel: tpu_custom_call.1
$region0: #{tpu_custom_call.1}
  #allocation0 [shape = 'u32[]', space=smem, size = 0x4, offset = 0x4, fixed_abs, tag = 'smem constant byte address 0x4 - core index']
  #allocation1 [shape = 'u32[144,128]{1,0:T(1,128)}', space=vmem, size = 0x12000, scoped, tag = 'internal scratch']
  #allocation2 [shape = 'f32[64,138]{1,0:T(8,128)}', space=vmem, size = 0x10000, scoped, tag = 'scratch operand']
  #allocation3 [shape = 'f32[1,1]{1,0:T(1,128)S(1)}', space=vmem, size = 0x200, scoped, tag = 'scoped memory for tpu_custom_call.1']
  #allocation4 [shape = 'f32[1,1]{1,0:T(1,128)S(1)}', space=vmem, size = 0x200, scoped, tag = 'scoped memory for tpu_custom_call.1']
  #allocation5 [shape = 'f32[1,1]{1,0:T(1,128)S(1)}', space=vmem, size = 0x200, scoped, tag = 'scoped memory for tpu_custom_call.1']
  %s0 = inlined_call_operand.vmem [shape: f32[128,6], index: 0, kind: input, shape index: {}]
  %s1 = inlined_call_operand.vmem [shape: f32[8,10,32], index: 1, kind: input, shape index: {}]
  %s2 = inlined_call_operand.vmem [shape: f32[8,10,32], index: 2, kind: input, shape index: {}]
  %s3 = inlined_call_operand.vmem [shape: f32[6,138], index: 3, kind: input, shape index: {}]
  %s4 = inlined_call_operand.vmem [shape: f32[1,138], index: 4, kind: input, shape index: {}]
  %s5 = inlined_call_operand.vmem [shape: f32[32,138], index: 5, kind: input, shape index: {}]
  %s6 = inlined_call_operand.vmem [shape: f32[10,32], index: 6, kind: input, shape index: {}]
  %s7 = inlined_call_operand.vmem [shape: f32[1,32], index: 7, kind: input, shape index: {}]
  %s8 = inlined_call_operand.vmem [shape: f32[1,32], index: 8, kind: input, shape index: {}]
  %s9 = inlined_call_operand.<no memory space> [shape: f32[1,1], index: 9, kind: input, shape index: {}]
  %s10 = inlined_call_operand.<no memory space> [shape: f32[1,1], index: 10, kind: input, shape index: {}]
  %s11 = inlined_call_operand.<no memory space> [shape: f32[1,1], index: 11, kind: input, shape index: {}]
  %s12 = inlined_call_operand.vmem [shape: f32[16,1], index: 12, kind: output, shape index: {}]
  %s13 = sld [smem:[#allocation0]]
  $region81: #{tpu_custom_call.1} parent=0
    _
  %s15 = ssub.s32 1, %s13
  %s16 = scalar_select 0, %s15, %s13
  %v17 = vstv %s9
  %18 = vst [vmem:[#allocation3] sm:$0x1] %v17
  %v19 = vstv %s10
  %20 = vst [vmem:[#allocation4] sm:$0x1] %v19
  %v21 = vstv %s11
  %22 = vst [vmem:[#allocation5] sm:$0x1] %v21
  loop: start=0, step=1, limit=4
  $region2: #{tpu_custom_call.1} parent=0 // loop_pre_header
    _
  $region3: #{tpu_custom_call.1} parent=0 // loop_header
    %s24 = sphi 0, %s28
    %p25 = scmp.ge.s32.totalorder %s24, 4
    %s34 = sphi 0, %s36
    %s37 = sphi 0, %s34
    %s38 = sphi 0, %s37
    %s54 = sphi 0, %s38
    %s58 = sphi 0, %s58
    %s60 = sphi 0, %s58
    %s61 = sphi 0, %s60
    %s75 = sphi 0, %s61
    %s79 = sphi 0, %s79
    %s81 = sphi 0, %s79
    %s82 = sphi 0, %s81
    %s96 = sphi 0, %s82
    %s100 = sphi 0, %s100
    %s102 = sphi 0, %s100
    %s103 = sphi 0, %s102
    %s117 = sphi 0, %s103
    %s121 = sphi 0, %s121
    %s123 = sphi 0, %s121
    %s124 = sphi 0, %s123
    %s138 = sphi 0, %s124
    %s142 = sphi 0, %s142
    %s144 = sphi 0, %s142
    %s145 = sphi 0, %s144
    %s159 = sphi 0, %s145
    %s163 = sphi 0, %s163
    %s165 = sphi 0, %s163
    %s166 = sphi 0, %s165
    %s180 = sphi 0, %s166
    %s184 = sphi 0, %s184
    %s186 = sphi 0, %s184
    %s187 = sphi 0, %s186
    %s201 = sphi 0, %s187
    %s205 = sphi 0, %s205
    %s207 = sphi 0, %s205
    %s208 = sphi 0, %s207
    %s222 = sphi 0, %s208
    %s226 = sphi 0, %s226
    %s228 = sphi 0, %s226
    %s229 = sphi 0, %s228
    %s243 = sphi 0, %s229
    %s247 = sphi 0, %s247
    %s249 = sphi 0, %s247
    %s250 = sphi 0, %s249
    %s264 = sphi 0, %s250
    %s268 = sphi 0, %s268
    %s270 = sphi 0, %s268
    %s271 = sphi 0, %s270
    %s285 = sphi 0, %s271
    %s291 = sphi 0, %s293
    %s294 = sphi 0, %s291
    %s295 = sphi 0, %s294
    %s311 = sphi 0, %s295
  $region4: #{tpu_custom_call.1} parent=0 // loop_header_branch
    %27 = sbr.rel (%p25) target = $region8
  $region5: #{tpu_custom_call.1} parent=0 // loop_body
    %s29 = ssub.s32 %s24, 1
    %s30 = ssub.s32 %s24, 2
    %s31 = sadd.s32 %s24, 1
    %s32 = ssub.s32 %s24, %s31
    %p33 = scmp.eq.s32.totalorder %s32, 0
    %s35 = sadd.s32 %s34, 1
    %s36 = scalar_select %p33, %s34, %s35
    %p39 = pneg %p33
    %p40 = scmp.eq.s32.totalorder %s24, 1
    %p41 = por %p39, %p40
    %p42 = scmp.ne.s32.totalorder %s34, %s37
    %p43 = scmp.eq.s32.totalorder %s24, 0
    %p44 = por %p42, %p43
    %p45 = scmp.ne.s32.totalorder %s34, %s37
    %p46 = scmp.eq.s32.totalorder %s29, 1
    %p47 = por %p45, %p46
    %p48 = scmp.ne.s32.totalorder %s37, %s38
    %p49 = scmp.eq.s32.totalorder %s29, 0
    %p50 = por %p48, %p49
    %p51 = scmp.ne.s32.totalorder %s37, %s38
    %p52 = scmp.eq.s32.totalorder %s30, 1
    %p53 = por %p51, %p52
    %p55 = scmp.ne.s32.totalorder %s38, %s54
    %p56 = scmp.eq.s32.totalorder %s30, 0
    %p57 = por %p55, %p56
    %s59 = sadd.s32 %s58, 1
    %p62 = scmp.eq.s32.totalorder %s24, 1
    %p63 = scmp.ne.s32.totalorder %s58, %s60
    %p64 = scmp.eq.s32.totalorder %s24, 0
    %p65 = por %p63, %p64
    %p66 = scmp.ne.s32.totalorder %s58, %s60
    %p67 = scmp.eq.s32.totalorder %s29, 1
    %p68 = por %p66, %p67
    %p69 = scmp.ne.s32.totalorder %s60, %s61
    %p70 = scmp.eq.s32.totalorder %s29, 0
    %p71 = por %p69, %p70
    %p72 = scmp.ne.s32.totalorder %s60, %s61
    %p73 = scmp.eq.s32.totalorder %s30, 1
    %p74 = por %p72, %p73
    %p76 = scmp.ne.s32.totalorder %s61, %s75
    %p77 = scmp.eq.s32.totalorder %s30, 0
    %p78 = por %p76, %p77
    %s80 = sadd.s32 %s79, 1
    %p83 = scmp.eq.s32.totalorder %s24, 1
    %p84 = scmp.ne.s32.totalorder %s79, %s81
    %p85 = scmp.eq.s32.totalorder %s24, 0
    %p86 = por %p84, %p85
    %p87 = scmp.ne.s32.totalorder %s79, %s81
    %p88 = scmp.eq.s32.totalorder %s29, 1
    %p89 = por %p87, %p88
    %p90 = scmp.ne.s32.totalorder %s81, %s82
    %p91 = scmp.eq.s32.totalorder %s29, 0
    %p92 = por %p90, %p91
    %p93 = scmp.ne.s32.totalorder %s81, %s82
    %p94 = scmp.eq.s32.totalorder %s30, 1
    %p95 = por %p93, %p94
    %p97 = scmp.ne.s32.totalorder %s82, %s96
    %p98 = scmp.eq.s32.totalorder %s30, 0
    %p99 = por %p97, %p98
    %s101 = sadd.s32 %s100, 1
    %p104 = scmp.eq.s32.totalorder %s24, 1
    %p105 = scmp.ne.s32.totalorder %s100, %s102
    %p106 = scmp.eq.s32.totalorder %s24, 0
    %p107 = por %p105, %p106
    %p108 = scmp.ne.s32.totalorder %s100, %s102
    %p109 = scmp.eq.s32.totalorder %s29, 1
    %p110 = por %p108, %p109
    %p111 = scmp.ne.s32.totalorder %s102, %s103
    %p112 = scmp.eq.s32.totalorder %s29, 0
    %p113 = por %p111, %p112
    %p114 = scmp.ne.s32.totalorder %s102, %s103
    %p115 = scmp.eq.s32.totalorder %s30, 1
    %p116 = por %p114, %p115
    %p118 = scmp.ne.s32.totalorder %s103, %s117
    %p119 = scmp.eq.s32.totalorder %s30, 0
    %p120 = por %p118, %p119
    %s122 = sadd.s32 %s121, 1
    %p125 = scmp.eq.s32.totalorder %s24, 1
    %p126 = scmp.ne.s32.totalorder %s121, %s123
    %p127 = scmp.eq.s32.totalorder %s24, 0
    %p128 = por %p126, %p127
    %p129 = scmp.ne.s32.totalorder %s121, %s123
    %p130 = scmp.eq.s32.totalorder %s29, 1
    %p131 = por %p129, %p130
    %p132 = scmp.ne.s32.totalorder %s123, %s124
    %p133 = scmp.eq.s32.totalorder %s29, 0
    %p134 = por %p132, %p133
    %p135 = scmp.ne.s32.totalorder %s123, %s124
    %p136 = scmp.eq.s32.totalorder %s30, 1
    %p137 = por %p135, %p136
    %p139 = scmp.ne.s32.totalorder %s124, %s138
    %p140 = scmp.eq.s32.totalorder %s30, 0
    %p141 = por %p139, %p140
    %s143 = sadd.s32 %s142, 1
    %p146 = scmp.eq.s32.totalorder %s24, 1
    %p147 = scmp.ne.s32.totalorder %s142, %s144
    %p148 = scmp.eq.s32.totalorder %s24, 0
    %p149 = por %p147, %p148
    %p150 = scmp.ne.s32.totalorder %s142, %s144
    %p151 = scmp.eq.s32.totalorder %s29, 1
    %p152 = por %p150, %p151
    %p153 = scmp.ne.s32.totalorder %s144, %s145
    %p154 = scmp.eq.s32.totalorder %s29, 0
    %p155 = por %p153, %p154
    %p156 = scmp.ne.s32.totalorder %s144, %s145
    %p157 = scmp.eq.s32.totalorder %s30, 1
    %p158 = por %p156, %p157
    %p160 = scmp.ne.s32.totalorder %s145, %s159
    %p161 = scmp.eq.s32.totalorder %s30, 0
    %p162 = por %p160, %p161
    %s164 = sadd.s32 %s163, 1
    %p167 = scmp.eq.s32.totalorder %s24, 1
    %p168 = scmp.ne.s32.totalorder %s163, %s165
    %p169 = scmp.eq.s32.totalorder %s24, 0
    %p170 = por %p168, %p169
    %p171 = scmp.ne.s32.totalorder %s163, %s165
    %p172 = scmp.eq.s32.totalorder %s29, 1
    %p173 = por %p171, %p172
    %p174 = scmp.ne.s32.totalorder %s165, %s166
    %p175 = scmp.eq.s32.totalorder %s29, 0
    %p176 = por %p174, %p175
    %p177 = scmp.ne.s32.totalorder %s165, %s166
    %p178 = scmp.eq.s32.totalorder %s30, 1
    %p179 = por %p177, %p178
    %p181 = scmp.ne.s32.totalorder %s166, %s180
    %p182 = scmp.eq.s32.totalorder %s30, 0
    %p183 = por %p181, %p182
    %s185 = sadd.s32 %s184, 1
    %p188 = scmp.eq.s32.totalorder %s24, 1
    %p189 = scmp.ne.s32.totalorder %s184, %s186
    %p190 = scmp.eq.s32.totalorder %s24, 0
    %p191 = por %p189, %p190
    %p192 = scmp.ne.s32.totalorder %s184, %s186
    %p193 = scmp.eq.s32.totalorder %s29, 1
    %p194 = por %p192, %p193
    %p195 = scmp.ne.s32.totalorder %s186, %s187
    %p196 = scmp.eq.s32.totalorder %s29, 0
    %p197 = por %p195, %p196
    %p198 = scmp.ne.s32.totalorder %s186, %s187
    %p199 = scmp.eq.s32.totalorder %s30, 1
    %p200 = por %p198, %p199
    %p202 = scmp.ne.s32.totalorder %s187, %s201
    %p203 = scmp.eq.s32.totalorder %s30, 0
    %p204 = por %p202, %p203
    %s206 = sadd.s32 %s205, 1
    %p209 = scmp.eq.s32.totalorder %s24, 1
    %p210 = scmp.ne.s32.totalorder %s205, %s207
    %p211 = scmp.eq.s32.totalorder %s24, 0
    %p212 = por %p210, %p211
    %p213 = scmp.ne.s32.totalorder %s205, %s207
    %p214 = scmp.eq.s32.totalorder %s29, 1
    %p215 = por %p213, %p214
    %p216 = scmp.ne.s32.totalorder %s207, %s208
    %p217 = scmp.eq.s32.totalorder %s29, 0
    %p218 = por %p216, %p217
    %p219 = scmp.ne.s32.totalorder %s207, %s208
    %p220 = scmp.eq.s32.totalorder %s30, 1
    %p221 = por %p219, %p220
    %p223 = scmp.ne.s32.totalorder %s208, %s222
    %p224 = scmp.eq.s32.totalorder %s30, 0
    %p225 = por %p223, %p224
    %s227 = sadd.s32 %s226, 1
    %p230 = scmp.eq.s32.totalorder %s24, 1
    %p231 = scmp.ne.s32.totalorder %s226, %s228
    %p232 = scmp.eq.s32.totalorder %s24, 0
    %p233 = por %p231, %p232
    %p234 = scmp.ne.s32.totalorder %s226, %s228
    %p235 = scmp.eq.s32.totalorder %s29, 1
    %p236 = por %p234, %p235
    %p237 = scmp.ne.s32.totalorder %s228, %s229
    %p238 = scmp.eq.s32.totalorder %s29, 0
    %p239 = por %p237, %p238
    %p240 = scmp.ne.s32.totalorder %s228, %s229
    %p241 = scmp.eq.s32.totalorder %s30, 1
    %p242 = por %p240, %p241
    %p244 = scmp.ne.s32.totalorder %s229, %s243
    %p245 = scmp.eq.s32.totalorder %s30, 0
    %p246 = por %p244, %p245
    %s248 = sadd.s32 %s247, 1
    %p251 = scmp.eq.s32.totalorder %s24, 1
    %p252 = scmp.ne.s32.totalorder %s247, %s249
    %p253 = scmp.eq.s32.totalorder %s24, 0
    %p254 = por %p252, %p253
    %p255 = scmp.ne.s32.totalorder %s247, %s249
    %p256 = scmp.eq.s32.totalorder %s29, 1
    %p257 = por %p255, %p256
    %p258 = scmp.ne.s32.totalorder %s249, %s250
    %p259 = scmp.eq.s32.totalorder %s29, 0
    %p260 = por %p258, %p259
    %p261 = scmp.ne.s32.totalorder %s249, %s250
    %p262 = scmp.eq.s32.totalorder %s30, 1
    %p263 = por %p261, %p262
    %p265 = scmp.ne.s32.totalorder %s250, %s264
    %p266 = scmp.eq.s32.totalorder %s30, 0
    %p267 = por %p265, %p266
    %s269 = sadd.s32 %s268, 1
    %p272 = scmp.eq.s32.totalorder %s24, 1
    %p273 = scmp.ne.s32.totalorder %s268, %s270
    %p274 = scmp.eq.s32.totalorder %s24, 0
    %p275 = por %p273, %p274
    %p276 = scmp.ne.s32.totalorder %s268, %s270
    %p277 = scmp.eq.s32.totalorder %s29, 1
    %p278 = por %p276, %p277
    %p279 = scmp.ne.s32.totalorder %s270, %s271
    %p280 = scmp.eq.s32.totalorder %s29, 0
    %p281 = por %p279, %p280
    %p282 = scmp.ne.s32.totalorder %s270, %s271
    %p283 = scmp.eq.s32.totalorder %s30, 1
    %p284 = por %p282, %p283
    %p286 = scmp.ne.s32.totalorder %s271, %s285
    %p287 = scmp.eq.s32.totalorder %s30, 0
    %p288 = por %p286, %p287
    %s289 = ssub.s32 %s24, %s31
    %p290 = scmp.eq.s32.totalorder %s289, 0
    %s292 = sadd.s32 %s291, 1
    %s293 = scalar_select %p290, %s291, %s292
    %p296 = pneg %p290
    %p297 = scmp.eq.s32.totalorder %s24, 1
    %p298 = por %p296, %p297
    %p299 = scmp.ne.s32.totalorder %s291, %s294
    %p300 = scmp.eq.s32.totalorder %s24, 0
    %p301 = por %p299, %p300
    %p302 = scmp.ne.s32.totalorder %s291, %s294
    %p303 = scmp.eq.s32.totalorder %s29, 1
    %p304 = por %p302, %p303
    %p305 = scmp.ne.s32.totalorder %s294, %s295
    %p306 = scmp.eq.s32.totalorder %s29, 0
    %p307 = por %p305, %p306
    %p308 = scmp.ne.s32.totalorder %s294, %s295
    %p309 = scmp.eq.s32.totalorder %s30, 1
    %p310 = por %p308, %p309
    %p312 = scmp.ne.s32.totalorder %s295, %s311
    %p313 = scmp.eq.s32.totalorder %s30, 0
    %p314 = por %p312, %p313
    %p315 = scmp.le.s32.totalorder 1, %s24
    %p316 = scmp.lt.s32.totalorder %s24, 3
    %p317 = pnand %p315, %p316
    %p318 = pneg %p317
    // Predicated region
    $region9: #{tpu_custom_call.1} parent=5 // pred_check
      _
    $region10: #{tpu_custom_call.1} parent=5 // pred_check_branch
      %320 = sbr.rel (%p317) target = $region12
    $region11: #{tpu_custom_call.1} parent=5 // pred_region
      %s321 = ssub.s32 %s24, 1
      // Predicated region
      $region13: #{tpu_custom_call.1} parent=11 // pred_check
        %p322 = pneg %p71
      $region14: #{tpu_custom_call.1} parent=11 // pred_check_branch
        %324 = sbr.rel (%p322) target = $region16
      $region15: #{tpu_custom_call.1} parent=11 // pred_region
        _
      $region16: #{tpu_custom_call.1} parent=11 // pred_fallthru
        _
      // Predicated region
      $region17: #{tpu_custom_call.1} parent=11 // pred_check
        %p325 = pneg %p92
      $region18: #{tpu_custom_call.1} parent=11 // pred_check_branch
        %327 = sbr.rel (%p325) target = $region20
      $region19: #{tpu_custom_call.1} parent=11 // pred_region
        _
      $region20: #{tpu_custom_call.1} parent=11 // pred_fallthru
        _
      // Predicated region
      $region21: #{tpu_custom_call.1} parent=11 // pred_check
        %p328 = pneg %p113
      $region22: #{tpu_custom_call.1} parent=11 // pred_check_branch
        %330 = sbr.rel (%p328) target = $region24
      $region23: #{tpu_custom_call.1} parent=11 // pred_region
        _
      $region24: #{tpu_custom_call.1} parent=11 // pred_fallthru
        _
      // Predicated region
      $region25: #{tpu_custom_call.1} parent=11 // pred_check
        %p331 = pneg %p134
      $region26: #{tpu_custom_call.1} parent=11 // pred_check_branch
        %333 = sbr.rel (%p331) target = $region28
      $region27: #{tpu_custom_call.1} parent=11 // pred_region
        _
      $region28: #{tpu_custom_call.1} parent=11 // pred_fallthru
        _
      // Predicated region
      $region29: #{tpu_custom_call.1} parent=11 // pred_check
        %p334 = pneg %p155
      $region30: #{tpu_custom_call.1} parent=11 // pred_check_branch
        %336 = sbr.rel (%p334) target = $region32
      $region31: #{tpu_custom_call.1} parent=11 // pred_region
        _
      $region32: #{tpu_custom_call.1} parent=11 // pred_fallthru
        _
      // Predicated region
      $region33: #{tpu_custom_call.1} parent=11 // pred_check
        %p337 = pneg %p176
      $region34: #{tpu_custom_call.1} parent=11 // pred_check_branch
        %339 = sbr.rel (%p337) target = $region36
      $region35: #{tpu_custom_call.1} parent=11 // pred_region
        _
      $region36: #{tpu_custom_call.1} parent=11 // pred_fallthru
        _
      // Predicated region
      $region37: #{tpu_custom_call.1} parent=11 // pred_check
        %p340 = pneg %p197
      $region38: #{tpu_custom_call.1} parent=11 // pred_check_branch
        %342 = sbr.rel (%p340) target = $region40
      $region39: #{tpu_custom_call.1} parent=11 // pred_region
        _
      $region40: #{tpu_custom_call.1} parent=11 // pred_fallthru
        _
      // Predicated region
      $region41: #{tpu_custom_call.1} parent=11 // pred_check
        %p343 = pneg %p218
      $region42: #{tpu_custom_call.1} parent=11 // pred_check_branch
        %345 = sbr.rel (%p343) target = $region44
      $region43: #{tpu_custom_call.1} parent=11 // pred_region
        _
      $region44: #{tpu_custom_call.1} parent=11 // pred_fallthru
        _
      // Predicated region
      $region45: #{tpu_custom_call.1} parent=11 // pred_check
        %p346 = pneg %p239
      $region46: #{tpu_custom_call.1} parent=11 // pred_check_branch
        %348 = sbr.rel (%p346) target = $region48
      $region47: #{tpu_custom_call.1} parent=11 // pred_region
        _
      $region48: #{tpu_custom_call.1} parent=11 // pred_fallthru
        _
      // Predicated region
      $region49: #{tpu_custom_call.1} parent=11 // pred_check
        %p349 = pneg %p260
      $region50: #{tpu_custom_call.1} parent=11 // pred_check_branch
        %351 = sbr.rel (%p349) target = $region52
      $region51: #{tpu_custom_call.1} parent=11 // pred_region
        _
      $region52: #{tpu_custom_call.1} parent=11 // pred_fallthru
        _
      // Predicated region
      $region53: #{tpu_custom_call.1} parent=11 // pred_check
        %p352 = pneg %p281
      $region54: #{tpu_custom_call.1} parent=11 // pred_check_branch
        %354 = sbr.rel (%p352) target = $region56
      $region55: #{tpu_custom_call.1} parent=11 // pred_region
        _
      $region56: #{tpu_custom_call.1} parent=11 // pred_fallthru
        _
    $region12: #{tpu_custom_call.1} parent=5 // pred_fallthru
      _
    %p355 = scmp.lt.s32.totalorder %s24, 2
    // Predicated region
    $region57: #{tpu_custom_call.1} parent=5 // pred_check
      %p356 = pneg %p355
    $region58: #{tpu_custom_call.1} parent=5 // pred_check_branch
      %358 = sbr.rel (%p356) target = $region60
    $region59: #{tpu_custom_call.1} parent=5 // pred_region
      // Predicated region
      $region61: #{tpu_custom_call.1} parent=59 // pred_check
        %p359 = pneg %p44
      $region62: #{tpu_custom_call.1} parent=59 // pred_check_branch
        %361 = sbr.rel (%p359) target = $region64
      $region63: #{tpu_custom_call.1} parent=59 // pred_region
        %s362 = smul.u32 8, %s24
        %p363 = scmp.lt.s32.totalorder %s362, 15
        %s364 = scalar_select %p363, %s362, 15
        %s365 = smul.addr %s364, 8
        %s366 = scalar_lea.vmem %s0, %s365
        %s367 = smul.u32 8, %s24
      $region64: #{tpu_custom_call.1} parent=59 // pred_fallthru
        _
    $region60: #{tpu_custom_call.1} parent=5 // pred_fallthru
      _
    %p368 = scmp.le.s32.totalorder 1, %s24
    %p369 = scmp.lt.s32.totalorder %s24, 3
    %p370 = pnand %p368, %p369
    %p371 = pneg %p370
    // Predicated region
    $region65: #{tpu_custom_call.1} parent=5 // pred_check
      _
    $region66: #{tpu_custom_call.1} parent=5 // pred_check_branch
      %373 = sbr.rel (%p370) target = $region68
    $region67: #{tpu_custom_call.1} parent=5 // pred_region
      %s374 = ssub.s32 %s24, 1
      %s375 = smul.u32 8, %s29
      %p376 = scmp.lt.s32.totalorder %s375, 15
      %s377 = scalar_select %p376, %s375, 15
      %s378 = smul.addr %s377, 8
      %s379 = scalar_lea.vmem %s0, %s378
      %p380 = pneg %p50
      %p381 = pneg %p47
      %p382 = pneg %p71
      %p383 = pneg %p68
      %p384 = pneg %p92
      %p385 = pneg %p89
      %p386 = pneg %p113
      %p387 = pneg %p110
      %p388 = pneg %p134
      %p389 = pneg %p131
      %p390 = pneg %p155
      %p391 = pneg %p152
      %p392 = pneg %p176
      %p393 = pneg %p173
      %p394 = pneg %p197
      %p395 = pneg %p194
      %p396 = pneg %p218
      %p397 = pneg %p215
      %p398 = pneg %p239
      %p399 = pneg %p236
      %p400 = pneg %p260
      %p401 = pneg %p257
      %p402 = pneg %p281
      %p403 = pneg %p278
      %p404 = pneg %p307
      %p405 = pneg %p304
      %p406 = scmp.lt.s32.totalorder %s29, 1
      %s407 = scalar_select %p406, %s29, 1
      %s408 = smul.addr %s407, 8
      %s409 = scalar_lea.vmem %s12, %s408
      %s410 = smul.u32 8, %s29
      %p411 = scmp.lt.s32.totalorder %s410, 15
      %s412 = scalar_select %p411, %s410, 15
      %s413 = smul.addr %s412, 8
      %s414 = scalar_lea.vmem %s0, %s413
      %s415 = smul.u32 8, %s29
      %p416 = scmp.lt.s32.totalorder %s29, 1
      %s417 = scalar_select %p416, %s29, 1
      %s418 = smul.addr %s417, 8
      %s419 = scalar_lea.vmem %s12, %s418
      %v420 = vld [vmem:[%s414] sm:$0xff]
      %v421 = vld [vmem:[%s414 + $0x8] sm:$0xff]
      %v422 = vld [vmem:[%s414 + $0x10] sm:$0xff]
      %v423 = vld [vmem:[%s414 + $0x18] sm:$0xff]
      %v424 = vld [vmem:[%s414 + $0x20] sm:$0xff]
      %v425 = vld [vmem:[%s414 + $0x28] sm:$0xff]
      %v426 = vld [vmem:[%s414 + $0x30] sm:$0xff]
      %v427 = vld [vmem:[%s414 + $0x38] sm:$0xff]
      %v428 = vld [vmem:[%s3] sm:$0x3f]
      %v429 = vld [vmem:[%s3 + $0x8] sm:$0x3f]
      %v430 = vld [vmem:[%s4] sm:$0x3]
      %v432 = vlaneseq
      %v433 = vshrl.u32 %v432, 7
      %v434 = vsub.s32 0, %v433
      %v435 = vrot.slane %v430, %v434
      %v436 = vlaneseq
      %v437 = vshrl.u32 %v436, 7
      %v438 = vsub.s32 1, %v437
      %v439 = vrot.slane %v430, %v438
      %vm442 = vcmask 48128
      %v444 = vsel %vm442, %v420, 0
      %v447 = vsel %vm442, %v421, 0
      %v450 = vsel %vm442, %v422, 0
      %v453 = vsel %vm442, %v423, 0
      %v456 = vsel %vm442, %v424, 0
      %v459 = vsel %vm442, %v425, 0
      %v462 = vsel %vm442, %v426, 0
      %v465 = vsel %vm442, %v427, 0
      %vm467 = vcmask 1045504
      %v469 = vsel %vm467, %v428, 0
      %v472 = vsel %vm467, %v429, 0
      %474 = vmatprep.subr.mxu0 %v472
      %475 = vmatpush1.msra.mxu0 %v469
      %476 = vmatprep.subr.mxu0 0.0
      %477 = vmatpush1.msra.mxu0 0.0
      %478 = vmatprep.subr.mxu0 0.0
      %479 = vmatpush1.msra.mxu0 0.0
      %480 = vmatprep.subr.mxu0 0.0
      %481 = vmatpush1.msra.mxu0 0.0
      %482 = vmatprep.subr.mxu0 0.0
      %483 = vmatpush1.msra.mxu0 0.0
      %484 = vmatprep.subr.mxu0 0.0
      %485 = vmatpush1.msra.mxu0 0.0
      %486 = vmatprep.subr.mxu0 0.0
      %487 = vmatpush1.msra.mxu0 0.0
      %488 = vmatprep.subr.mxu0 0.0
      %489 = vmatpush1.msra.mxu0 0.0
      %490 = vmatprep.subr.mxu0 0.0
      %491 = vmatpush1.msra.mxu0 0.0
      %492 = vmatprep.subr.mxu0 0.0
      %493 = vmatpush1.msra.mxu0 0.0
      %494 = vmatprep.subr.mxu0 0.0
      %495 = vmatpush1.msra.mxu0 0.0
      %496 = vmatprep.subr.mxu0 0.0
      %497 = vmatpush1.msra.mxu0 0.0
      %498 = vmatprep.subr.mxu0 0.0
      %499 = vmatpush1.msra.mxu0 0.0
      %500 = vmatprep.subr.mxu0 0.0
      %501 = vmatpush1.msra.mxu0 0.0
      %502 = vmatprep.subr.mxu0 0.0
      %503 = vmatpush1.msra.mxu0 0.0
      %504 = vmatprep.subr.mxu0 0.0
      %505 = vmatpush1.msra.mxu0 0.0
      %506 = vmatprep.subr.mxu0 0.0
      %507 = vmatpush1.msra.mxu0 0.0
      %508 = vmatprep.subr.mxu0 0.0
      %509 = vmatpush1.msra.mxu0 0.0
      %510 = vmatprep.subr.mxu0 0.0
      %511 = vmatpush1.msra.mxu0 0.0
      %512 = vmatprep.subr.mxu0 0.0
      %513 = vmatpush1.msra.mxu0 0.0
      %514 = vmatprep.subr.mxu0 0.0
      %515 = vmatpush1.msra.mxu0 0.0
      %516 = vmatprep.subr.mxu0 0.0
      %517 = vmatpush1.msra.mxu0 0.0
      %518 = vmatprep.subr.mxu0 0.0
      %519 = vmatpush1.msra.mxu0 0.0
      %520 = vmatprep.subr.mxu0 0.0
      %521 = vmatpush1.msra.mxu0 0.0
      %522 = vmatprep.subr.mxu0 0.0
      %523 = vmatpush1.msra.mxu0 0.0
      %524 = vmatprep.subr.mxu0 0.0
      %525 = vmatpush1.msra.mxu0 0.0
      %526 = vmatprep.subr.mxu0 0.0
      %527 = vmatpush1.msra.mxu0 0.0
      %528 = vmatprep.subr.mxu0 0.0
      %529 = vmatpush1.msra.mxu0 0.0
      %530 = vmatprep.subr.mxu0 0.0
      %531 = vmatpush1.msra.mxu0 0.0
      %532 = vmatprep.subr.mxu0 0.0
      %533 = vmatpush1.msra.mxu0 0.0
      %534 = vmatprep.subr.mxu0 0.0
      %535 = vmatpush1.msra.mxu0 0.0
      %536 = vmatprep.subr.mxu0 0.0
      %537 = vmatpush1.msra.mxu0 0.0
      %538 = vmatprep.mubr.f32.mxu0 0.0
      %539 = vmatmul.mubr.f32.gmra.mrb[0].mxu0 %v444
      %v540 = vpop.f32.mrb[0].mxu0
      %v541 = vadd.f32 %v435, %v540
      %v542 = vpop.f32.mrb[0].mxu0
      %v543 = vadd.f32 %v439, %v542
      %544 = vmatprep.mubr.f32.mxu0 0.0
      %545 = vmatmul.mubr.f32.gmra.mrb[0].mxu0 %v447
      %v546 = vpop.f32.mrb[0].mxu0
      %v547 = vadd.f32 %v435, %v546
      %v548 = vpop.f32.mrb[0].mxu0
      %v549 = vadd.f32 %v439, %v548
      %550 = vmatprep.mubr.f32.mxu0 0.0
      %551 = vmatmul.mubr.f32.gmra.mrb[0].mxu0 %v450
      %v552 = vpop.f32.mrb[0].mxu0
      %v553 = vadd.f32 %v435, %v552
      %v554 = vpop.f32.mrb[0].mxu0
      %v555 = vadd.f32 %v439, %v554
      %556 = vmatprep.mubr.f32.mxu0 0.0
      %557 = vmatmul.mubr.f32.gmra.mrb[0].mxu0 %v453
      %v558 = vpop.f32.mrb[0].mxu0
      %v559 = vadd.f32 %v435, %v558
      %v560 = vpop.f32.mrb[0].mxu0
      %v561 = vadd.f32 %v439, %v560
      %562 = vmatprep.mubr.f32.mxu0 0.0
      %563 = vmatmul.mubr.f32.gmra.mrb[0].mxu0 %v456
      %v564 = vpop.f32.mrb[0].mxu0
      %v565 = vadd.f32 %v435, %v564
      %v566 = vpop.f32.mrb[0].mxu0
      %v567 = vadd.f32 %v439, %v566
      %568 = vmatprep.mubr.f32.mxu0 0.0
      %569 = vmatmul.mubr.f32.gmra.mrb[0].mxu0 %v459
      %v570 = vpop.f32.mrb[0].mxu0
      %v571 = vadd.f32 %v435, %v570
      %v572 = vpop.f32.mrb[0].mxu0
      %v573 = vadd.f32 %v439, %v572
      %574 = vmatprep.mubr.f32.mxu0 0.0
      %575 = vmatmul.mubr.f32.gmra.mrb[0].mxu0 %v462
      %v576 = vpop.f32.mrb[0].mxu0
      %v577 = vadd.f32 %v435, %v576
      %v578 = vpop.f32.mrb[0].mxu0
      %v579 = vadd.f32 %v439, %v578
      %580 = vmatprep.mubr.f32.mxu0 0.0
      %581 = vmatmul.mubr.f32.gmra.mrb[0].mxu0 %v465
      %v582 = vpop.f32.mrb[0].mxu0
      %v583 = vadd.f32 %v435, %v582
      %v584 = vpop.f32.mrb[0].mxu0
      %v585 = vadd.f32 %v439, %v584
      %586 = vdwg.mxu0
      %587 = vst [vmem:[#allocation2] sm:$0xff] %v541
      %vm588 = vcmask 80896
      %589 = vst.msk [vmem:[#allocation2 + $0x8] sm:$0xff] %vm588, %v543
      %590 = vst [vmem:[#allocation2 + $0x10] sm:$0xff] %v547
      %591 = vst.msk [vmem:[#allocation2 + $0x18] sm:$0xff] %vm588, %v549
      %592 = vst [vmem:[#allocation2 + $0x20] sm:$0xff] %v553
      %593 = vst.msk [vmem:[#allocation2 + $0x28] sm:$0xff] %vm588, %v555
      %594 = vst [vmem:[#allocation2 + $0x30] sm:$0xff] %v559
      %595 = vst.msk [vmem:[#allocation2 + $0x38] sm:$0xff] %vm588, %v561
      %596 = vst [vmem:[#allocation2 + $0x40] sm:$0xff] %v565
      %597 = vst.msk [vmem:[#allocation2 + $0x48] sm:$0xff] %vm588, %v567
      %598 = vst [vmem:[#allocation2 + $0x50] sm:$0xff] %v571
      %599 = vst.msk [vmem:[#allocation2 + $0x58] sm:$0xff] %vm588, %v573
      %600 = vst [vmem:[#allocation2 + $0x60] sm:$0xff] %v577
      %601 = vst.msk [vmem:[#allocation2 + $0x68] sm:$0xff] %vm588, %v579
      %602 = vst [vmem:[#allocation2 + $0x70] sm:$0xff] %v583
      %603 = vst.msk [vmem:[#allocation2 + $0x78] sm:$0xff] %vm588, %v585
      %v604 = vld [vmem:[%s5] sm:$0xff]
      %v605 = vld [vmem:[%s5 + $0x8] sm:$0xff]
      %v606 = vld [vmem:[%s5 + $0x10] sm:$0xff]
      %v607 = vld [vmem:[%s5 + $0x18] sm:$0xff]
      %v608 = vld [vmem:[%s5 + $0x20] sm:$0xff]
      %v609 = vld [vmem:[%s5 + $0x28] sm:$0xff]
      %v610 = vld [vmem:[%s5 + $0x30] sm:$0xff]
      %v611 = vld [vmem:[%s5 + $0x38] sm:$0xff]
      %v612 = vld [vmem:[%s6] sm:$0xff]
      %v613 = vld [vmem:[%s6 + $0x8] sm:$0x3]
      %v614 = vld [vmem:[%s7] sm:$0x1]
      %v615 = vld [vmem:[#allocation2] sm:$0xff]
      %v616 = vld [vmem:[#allocation2 + $0x8] sm:$0xff]
      %vm617 = vcmask 261120
      %v619 = vsel %vm617, 0.0, 0
      %621 = vmatprep.subr.mxu0 %v605
      %622 = vmatpush1.msra.mxu0 %v604
      %623 = vmatprep.subr.mxu0 %v607
      %624 = vmatpush1.msra.mxu0 %v606
      %625 = vmatprep.subr.mxu0 %v609
      %626 = vmatpush1.msra.mxu0 %v608
      %627 = vmatprep.subr.mxu0 %v611
      %628 = vmatpush1.msra.mxu0 %v610
      %629 = vmatprep.subr.mxu0 0.0
      %630 = vmatpush1.msra.mxu0 0.0
      %631 = vmatprep.subr.mxu0 0.0
      %632 = vmatpush1.msra.mxu0 0.0
      %633 = vmatprep.subr.mxu0 0.0
      %634 = vmatpush1.msra.mxu0 0.0
      %635 = vmatprep.subr.mxu0 0.0
      %636 = vmatpush1.msra.mxu0 0.0
      %637 = vmatprep.subr.mxu0 0.0
      %638 = vmatpush1.msra.mxu0 0.0
      %639 = vmatprep.subr.mxu0 0.0
      %640 = vmatpush1.msra.mxu0 0.0
      %641 = vmatprep.subr.mxu0 0.0
      %642 = vmatpush1.msra.mxu0 0.0
      %643 = vmatprep.subr.mxu0 0.0
      %644 = vmatpush1.msra.mxu0 0.0
      %645 = vmatprep.subr.mxu0 0.0
      %646 = vmatpush1.msra.mxu0 0.0
      %647 = vmatprep.subr.mxu0 0.0
      %648 = vmatpush1.msra.mxu0 0.0
      %649 = vmatprep.subr.mxu0 0.0
      %650 = vmatpush1.msra.mxu0 0.0
      %651 = vmatprep.subr.mxu0 0.0
      %652 = vmatpush1.msra.mxu0 0.0
      %653 = vmatprep.subr.mxu0 0.0
      %654 = vmatpush1.msra.mxu0 0.0
      %655 = vmatprep.subr.mxu0 0.0
      %656 = vmatpush1.msra.mxu0 0.0
      %657 = vmatprep.subr.mxu0 0.0
      %658 = vmatpush1.msra.mxu0 0.0
      %659 = vmatprep.subr.mxu0 0.0
      %660 = vmatpush1.msra.mxu0 0.0
      %661 = vmatprep.subr.mxu0 0.0
      %662 = vmatpush1.msra.mxu0 0.0
      %663 = vmatprep.subr.mxu0 0.0
      %664 = vmatpush1.msra.mxu0 0.0
      %665 = vmatprep.subr.mxu0 0.0
      %666 = vmatpush1.msra.mxu0 0.0
      %667 = vmatprep.subr.mxu0 0.0
      %668 = vmatpush1.msra.mxu0 0.0
      %669 = vmatprep.subr.mxu0 0.0
      %670 = vmatpush1.msra.mxu0 0.0
      %671 = vmatprep.subr.mxu0 0.0
      %672 = vmatpush1.msra.mxu0 0.0
      %673 = vmatprep.subr.mxu0 0.0
      %674 = vmatpush1.msra.mxu0 0.0
      %675 = vmatprep.subr.mxu0 0.0
      %676 = vmatpush1.msra.mxu0 0.0
      %677 = vmatprep.subr.mxu0 0.0
      %678 = vmatpush1.msra.mxu0 0.0
      %679 = vmatprep.subr.mxu0 0.0
      %680 = vmatpush1.msra.mxu0 0.0
      %681 = vmatprep.subr.mxu0 0.0
      %682 = vmatpush1.msra.mxu0 0.0
      %683 = vmatprep.subr.mxu0 0.0
      %684 = vmatpush1.msra.mxu0 0.0
      %685 = vmatprep.mubr.f32.mxu0 0.0
      %686 = vmatmul.mubr.f32.gmra.mrb[0].mxu0 %v619
      %v687 = vpop.f32.mrb[0].mxu0
      %v688 = vadd.f32 0.0, %v687
      %v689 = vpop.f32.mrb[0].mxu0
      %v690 = vadd.f32 0.0, %v689
      %691 = vdwg.mxu0
      %v692 = vadd.f32 %v615, %v688
      %v693 = vadd.f32 %v616, %v690
      %v694 = vmul.f32 %v692, 0.16666667
      %v695 = vadd.f32 %v694, 0.5
      %v696 = vmax.f32 %v695, 0.0
      %v697 = vmin.f32 %v696, 1.0
      %v698 = vtanh.pop %v692
      %700 = vrot.lane.b32.xlu0 %v698, 64
      %v701 = vpop.permute.xlu0 %700
      %v703 = vmul.f32 %v697, %v701
      %v704 = vmul.f32 %v693, 0.16666667
      %v705 = vadd.f32 %v704, 0.5
      %v706 = vmax.f32 %v705, 0.0
      %v707 = vmin.f32 %v706, 1.0
      %v708 = vlaneseq
      %v709 = vshrl.u32 %v708, 7
      %v710 = vsub.s32 0, %v709
      %v711 = vrot.slane %v707, %v710
      %713 = vbcast.lane.b32.xlu0 %v711, 256
      %v714 = vpop.permute.xlu0 %713
      %s716 = sor.u32 256, 8
      %717 = vbcast.lane.b32.xlu0 %v711, %s716
      %v718 = vpop.permute.xlu0 %717
      %v719 = vlaneseq
      %v720 = vshrl.u32 %v719, 7
      %v721 = vsub.s32 1, %v720
      %v722 = vrot.slane %v707, %v721
      %724 = vbcast.lane.b32.xlu0 %v722, 256
      %v725 = vpop.permute.xlu0 %724
      %s727 = sor.u32 256, 8
      %728 = vbcast.lane.b32.xlu0 %v722, %s727
      %v729 = vpop.permute.xlu0 %728
      %v730 = vlaneseq
      %v731 = vshrl.u32 %v730, 7
      %v732 = vsub.s32 2, %v731
      %v733 = vrot.slane %v707, %v732
      %735 = vbcast.lane.b32.xlu0 %v733, 256
      %v736 = vpop.permute.xlu0 %735
      %s738 = sor.u32 256, 8
      %739 = vbcast.lane.b32.xlu0 %v733, %s738
      %v740 = vpop.permute.xlu0 %739
      %v741 = vlaneseq
      %v742 = vshrl.u32 %v741, 7
      %v743 = vsub.s32 3, %v742
      %v744 = vrot.slane %v707, %v743
      %746 = vbcast.lane.b32.xlu0 %v744, 256
      %v747 = vpop.permute.xlu0 %746
      %s749 = sor.u32 256, 8
      %750 = vbcast.lane.b32.xlu0 %v744, %s749
      %v751 = vpop.permute.xlu0 %750
      %v752 = vlaneseq
      %v753 = vshrl.u32 %v752, 7
      %v754 = vsub.s32 4, %v753
      %v755 = vrot.slane %v707, %v754
      %757 = vbcast.lane.b32.xlu0 %v755, 256
      %v758 = vpop.permute.xlu0 %757
      %s760 = sor.u32 256, 8
      %761 = vbcast.lane.b32.xlu0 %v755, %s760
      %v762 = vpop.permute.xlu0 %761
      %v763 = vlaneseq
      %v764 = vshrl.u32 %v763, 7
      %v765 = vsub.s32 5, %v764
      %v766 = vrot.slane %v707, %v765
      %768 = vbcast.lane.b32.xlu0 %v766, 256
      %v769 = vpop.permute.xlu0 %768
      %s771 = sor.u32 256, 8
      %772 = vbcast.lane.b32.xlu0 %v766, %s771
      %v773 = vpop.permute.xlu0 %772
      %v774 = vlaneseq
      %v775 = vshrl.u32 %v774, 7
      %v776 = vsub.s32 6, %v775
      %v777 = vrot.slane %v707, %v776
      %779 = vbcast.lane.b32.xlu0 %v777, 256
      %v780 = vpop.permute.xlu0 %779
      %s782 = sor.u32 256, 8
      %783 = vbcast.lane.b32.xlu0 %v777, %s782
      %v784 = vpop.permute.xlu0 %783
      %v785 = vlaneseq
      %v786 = vshrl.u32 %v785, 7
      %v787 = vsub.s32 7, %v786
      %v788 = vrot.slane %v707, %v787
      %790 = vbcast.lane.b32.xlu0 %v788, 256
      %v791 = vpop.permute.xlu0 %790
      %s793 = sor.u32 256, 8
      %794 = vbcast.lane.b32.xlu0 %v788, %s793
      %v795 = vpop.permute.xlu0 %794
      %v797 = vcombine.high %v697, %v697
      %v799 = vunpack.c.l.s4 1966171168
      %v800 = vunpack.c.0.s8 %v799
      %v801 = vlaneseq
      %v802 = vshrl.u32 %v801, 7
      %v803 = vsub.s32 %v800, %v802
      %v804 = vrot.slane %v697, %v803
      %v806 = vunpack.c.l.s4 1966171168
      %v807 = vunpack.c.0.s8 %v806
      %v808 = vlaneseq
      %v809 = vshrl.u32 %v808, 7
      %v810 = vsub.s32 %v807, %v809
      %v811 = vrot.slane %v797, %v810
      %v812 = vcombine.high %v804, %v804
      %v813 = vcombine.high %v811, %v811
      %v815 = vunpack.c.l.s4 1966171168
      %v816 = vunpack.c.0.s8 %v815
      %v817 = vlaneseq
      %v818 = vshrl.u32 %v817, 7
      %v819 = vsub.s32 %v816, %v818
      %v820 = vrot.slane %v804, %v819
      %v822 = vunpack.c.l.s4 1966171168
      %v823 = vunpack.c.0.s8 %v822
      %v824 = vlaneseq
      %v825 = vshrl.u32 %v824, 7
      %v826 = vsub.s32 %v823, %v825
      %v827 = vrot.slane %v811, %v826
      %v829 = vunpack.c.l.s4 1966171168
      %v830 = vunpack.c.0.s8 %v829
      %v831 = vlaneseq
      %v832 = vshrl.u32 %v831, 7
      %v833 = vsub.s32 %v830, %v832
      %v834 = vrot.slane %v812, %v833
      %v836 = vunpack.c.l.s4 1966171168
      %v837 = vunpack.c.0.s8 %v836
      %v838 = vlaneseq
      %v839 = vshrl.u32 %v838, 7
      %v840 = vsub.s32 %v837, %v839
      %v841 = vrot.slane %v813, %v840
      %v842 = vcombine.high %v820, %v820
      %v843 = vcombine.high %v827, %v827
      %v844 = vcombine.high %v834, %v834
      %v845 = vcombine.high %v841, %v841
      %v846 = vlaneseq
      %v847 = vshrl.u32 %v846, 7
      %v848 = vsub.s32 0, %v847
      %v849 = vrot.slane %v820, %v848
      %v850 = vlaneseq
      %v851 = vshrl.u32 %v850, 7
      %v852 = vsub.s32 0, %v851
      %v853 = vrot.slane %v834, %v852
      %v854 = vlaneseq
      %v855 = vshrl.u32 %v854, 7
      %v856 = vsub.s32 0, %v855
      %v857 = vrot.slane %v842, %v856
      %v858 = vlaneseq
      %v859 = vshrl.u32 %v858, 7
      %v860 = vsub.s32 0, %v859
      %v861 = vrot.slane %v844, %v860
      %v862 = vlaneseq
      %v863 = vshrl.u32 %v862, 7
      %v864 = vsub.s32 0, %v863
      %v865 = vrot.slane %v827, %v864
      %v866 = vlaneseq
      %v867 = vshrl.u32 %v866, 7
      %v868 = vsub.s32 0, %v867
      %v869 = vrot.slane %v841, %v868
      %v870 = vlaneseq
      %v871 = vshrl.u32 %v870, 7
      %v872 = vsub.s32 0, %v871
      %v873 = vrot.slane %v843, %v872
      %v874 = vlaneseq
      %v875 = vshrl.u32 %v874, 7
      %v876 = vsub.s32 0, %v875
      %v877 = vrot.slane %v845, %v876
      %v886 = vmul.f32 %v714, %v849
      %v887 = vmul.f32 %v718, %v849
      %v888 = vmul.f32 %v725, %v853
      %v889 = vmul.f32 %v729, %v853
      %v890 = vmul.f32 %v736, %v857
      %v891 = vmul.f32 %v740, %v857
      %v892 = vmul.f32 %v747, %v861
      %v893 = vmul.f32 %v751, %v861
      %v894 = vmul.f32 %v758, %v865
      %v895 = vmul.f32 %v762, %v865
      %v896 = vmul.f32 %v769, %v869
      %v897 = vmul.f32 %v773, %v869
      %v898 = vmul.f32 %v780, %v873
      %v899 = vmul.f32 %v784, %v873
      %v900 = vmul.f32 %v791, %v877
      %v901 = vmul.f32 %v795, %v877
      %v903 = vcombine.high %v703, %v703
      %v905 = vunpack.c.l.s4 1966171168
      %v906 = vunpack.c.0.s8 %v905
      %v907 = vlaneseq
      %v908 = vshrl.u32 %v907, 7
      %v909 = vsub.s32 %v906, %v908
      %v910 = vrot.slane %v703, %v909
      %v912 = vunpack.c.l.s4 1966171168
      %v913 = vunpack.c.0.s8 %v912
      %v914 = vlaneseq
      %v915 = vshrl.u32 %v914, 7
      %v916 = vsub.s32 %v913, %v915
      %v917 = vrot.slane %v903, %v916
      %v918 = vcombine.high %v910, %v910
      %v919 = vcombine.high %v917, %v917
      %v921 = vunpack.c.l.s4 1966171168
      %v922 = vunpack.c.0.s8 %v921
      %v923 = vlaneseq
      %v924 = vshrl.u32 %v923, 7
      %v925 = vsub.s32 %v922, %v924
      %v926 = vrot.slane %v910, %v925
      %v928 = vunpack.c.l.s4 1966171168
      %v929 = vunpack.c.0.s8 %v928
      %v930 = vlaneseq
      %v931 = vshrl.u32 %v930, 7
      %v932 = vsub.s32 %v929, %v931
      %v933 = vrot.slane %v917, %v932
      %v935 = vunpack.c.l.s4 1966171168
      %v936 = vunpack.c.0.s8 %v935
      %v937 = vlaneseq
      %v938 = vshrl.u32 %v937, 7
      %v939 = vsub.s32 %v936, %v938
      %v940 = vrot.slane %v918, %v939
      %v942 = vunpack.c.l.s4 1966171168
      %v943 = vunpack.c.0.s8 %v942
      %v944 = vlaneseq
      %v945 = vshrl.u32 %v944, 7
      %v946 = vsub.s32 %v943, %v945
      %v947 = vrot.slane %v919, %v946
      %v948 = vcombine.high %v926, %v926
      %v949 = vcombine.high %v933, %v933
      %v950 = vcombine.high %v940, %v940
      %v951 = vcombine.high %v947, %v947
      %v952 = vmul.f32 %v886, 0.0
      %v953 = vmul.f32 %v887, 0.0
      %v954 = vmul.f32 %v888, 0.0
      %v955 = vmul.f32 %v889, 0.0
      %v956 = vmul.f32 %v890, 0.0
      %v957 = vmul.f32 %v891, 0.0
      %v958 = vmul.f32 %v892, 0.0
      %v959 = vmul.f32 %v893, 0.0
      %v960 = vmul.f32 %v894, 0.0
      %v961 = vmul.f32 %v895, 0.0
      %v962 = vmul.f32 %v896, 0.0
      %v963 = vmul.f32 %v897, 0.0
      %v964 = vmul.f32 %v898, 0.0
      %v965 = vmul.f32 %v899, 0.0
      %v966 = vmul.f32 %v900, 0.0
      %v967 = vmul.f32 %v901, 0.0
      %v968 = vld [vmem:[%s1] sm:$0xff]
      %v969 = vld [vmem:[%s1 + $0x8] sm:$0x3]
      %v970 = vlaneseq
      %v971 = vshrl.u32 %v970, 7
      %v972 = vsub.s32 0, %v971
      %v973 = vrot.slane %v926, %v972
      %v974 = vlaneseq
      %v975 = vshrl.u32 %v974, 7
      %v976 = vsub.s32 0, %v975
      %v977 = vrot.slane %v940, %v976
      %v978 = vlaneseq
      %v979 = vshrl.u32 %v978, 7
      %v980 = vsub.s32 0, %v979
      %v981 = vrot.slane %v948, %v980
      %v982 = vlaneseq
      %v983 = vshrl.u32 %v982, 7
      %v984 = vsub.s32 0, %v983
      %v985 = vrot.slane %v950, %v984
      %v986 = vlaneseq
      %v987 = vshrl.u32 %v986, 7
      %v988 = vsub.s32 0, %v987
      %v989 = vrot.slane %v933, %v988
      %v990 = vlaneseq
      %v991 = vshrl.u32 %v990, 7
      %v992 = vsub.s32 0, %v991
      %v993 = vrot.slane %v947, %v992
      %v994 = vlaneseq
      %v995 = vshrl.u32 %v994, 7
      %v996 = vsub.s32 0, %v995
      %v997 = vrot.slane %v949, %v996
      %v998 = vlaneseq
      %v999 = vshrl.u32 %v998, 7
      %v1000 = vsub.s32 0, %v999
      %v1001 = vrot.slane %v951, %v1000
      %v1010 = vmul.f32 %v973, %v968
      %v1011 = vmul.f32 %v973, %v969
      %v1012 = vmul.f32 %v977, %v968
      %v1013 = vmul.f32 %v977, %v969
      %v1014 = vmul.f32 %v981, %v968
      %v1015 = vmul.f32 %v981, %v969
      %v1016 = vmul.f32 %v985, %v968
      %v1017 = vmul.f32 %v985, %v969
      %v1018 = vmul.f32 %v989, %v968
      %v1019 = vmul.f32 %v989, %v969
      %v1020 = vmul.f32 %v993, %v968
      %v1021 = vmul.f32 %v993, %v969
      %v1022 = vmul.f32 %v997, %v968
      %v1023 = vmul.f32 %v997, %v969
      %v1024 = vmul.f32 %v1001, %v968
      %v1025 = vmul.f32 %v1001, %v969
      %1042 = vrot.lane.b32.xlu0 %v1010, 32
      %v1043 = vpop.permute.xlu0 %1042
      %1044 = vrot.lane.b32.xlu0 %v1011, 32
      %v1045 = vpop.permute.xlu0 %1044
      %1046 = vrot.lane.b32.xlu0 %v1012, 32
      %v1047 = vpop.permute.xlu0 %1046
      %1048 = vrot.lane.b32.xlu0 %v1013, 32
      %v1049 = vpop.permute.xlu0 %1048
      %1050 = vrot.lane.b32.xlu0 %v1014, 32
      %v1051 = vpop.permute.xlu0 %1050
      %1052 = vrot.lane.b32.xlu0 %v1015, 32
      %v1053 = vpop.permute.xlu0 %1052
      %1054 = vrot.lane.b32.xlu0 %v1016, 32
      %v1055 = vpop.permute.xlu0 %1054
      %1056 = vrot.lane.b32.xlu0 %v1017, 32
      %v1057 = vpop.permute.xlu0 %1056
      %1058 = vrot.lane.b32.xlu0 %v1018, 32
      %v1059 = vpop.permute.xlu0 %1058
      %1060 = vrot.lane.b32.xlu0 %v1019, 32
      %v1061 = vpop.permute.xlu0 %1060
      %1062 = vrot.lane.b32.xlu0 %v1020, 32
      %v1063 = vpop.permute.xlu0 %1062
      %1064 = vrot.lane.b32.xlu0 %v1021, 32
      %v1065 = vpop.permute.xlu0 %1064
      %1066 = vrot.lane.b32.xlu0 %v1022, 32
      %v1067 = vpop.permute.xlu0 %1066
      %1068 = vrot.lane.b32.xlu0 %v1023, 32
      %v1069 = vpop.permute.xlu0 %1068
      %1070 = vrot.lane.b32.xlu0 %v1024, 32
      %v1071 = vpop.permute.xlu0 %1070
      %1072 = vrot.lane.b32.xlu0 %v1025, 32
      %v1073 = vpop.permute.xlu0 %1072
      %v1090 = vadd.f32 %v952, %v1043
      %v1091 = vadd.f32 %v953, %v1045
      %v1092 = vadd.f32 %v954, %v1047
      %v1093 = vadd.f32 %v955, %v1049
      %v1094 = vadd.f32 %v956, %v1051
      %v1095 = vadd.f32 %v957, %v1053
      %v1096 = vadd.f32 %v958, %v1055
      %v1097 = vadd.f32 %v959, %v1057
      %v1098 = vadd.f32 %v960, %v1059
      %v1099 = vadd.f32 %v961, %v1061
      %v1100 = vadd.f32 %v962, %v1063
      %v1101 = vadd.f32 %v963, %v1065
      %v1102 = vadd.f32 %v964, %v1067
      %v1103 = vadd.f32 %v965, %v1069
      %v1104 = vadd.f32 %v966, %v1071
      %v1105 = vadd.f32 %v967, %v1073
      %v1106 = vld [vmem:[%s2] sm:$0xff]
      %v1107 = vld [vmem:[%s2 + $0x8] sm:$0x3]
      %v1108 = vmul.f32 %v973, %v1106
      %v1109 = vmul.f32 %v973, %v1107
      %v1110 = vmul.f32 %v977, %v1106
      %v1111 = vmul.f32 %v977, %v1107
      %v1112 = vmul.f32 %v981, %v1106
      %v1113 = vmul.f32 %v981, %v1107
      %v1114 = vmul.f32 %v985, %v1106
      %v1115 = vmul.f32 %v985, %v1107
      %v1116 = vmul.f32 %v989, %v1106
      %v1117 = vmul.f32 %v989, %v1107
      %v1118 = vmul.f32 %v993, %v1106
      %v1119 = vmul.f32 %v993, %v1107
      %v1120 = vmul.f32 %v997, %v1106
      %v1121 = vmul.f32 %v997, %v1107
      %v1122 = vmul.f32 %v1001, %v1106
      %v1123 = vmul.f32 %v1001, %v1107
      %1140 = vrot.lane.b32.xlu0 %v1108, 32
      %v1141 = vpop.permute.xlu0 %1140
      %1142 = vrot.lane.b32.xlu0 %v1109, 32
      %v1143 = vpop.permute.xlu0 %1142
      %1144 = vrot.lane.b32.xlu0 %v1110, 32
      %v1145 = vpop.permute.xlu0 %1144
      %1146 = vrot.lane.b32.xlu0 %v1111, 32
      %v1147 = vpop.permute.xlu0 %1146
      %1148 = vrot.lane.b32.xlu0 %v1112, 32
      %v1149 = vpop.permute.xlu0 %1148
      %1150 = vrot.lane.b32.xlu0 %v1113, 32
      %v1151 = vpop.permute.xlu0 %1150
      %1152 = vrot.lane.b32.xlu0 %v1114, 32
      %v1153 = vpop.permute.xlu0 %1152
      %1154 = vrot.lane.b32.xlu0 %v1115, 32
      %v1155 = vpop.permute.xlu0 %1154
      %1156 = vrot.lane.b32.xlu0 %v1116, 32
      %v1157 = vpop.permute.xlu0 %1156
      %1158 = vrot.lane.b32.xlu0 %v1117, 32
      %v1159 = vpop.permute.xlu0 %1158
      %1160 = vrot.lane.b32.xlu0 %v1118, 32
      %v1161 = vpop.permute.xlu0 %1160
      %1162 = vrot.lane.b32.xlu0 %v1119, 32
      %v1163 = vpop.permute.xlu0 %1162
      %1164 = vrot.lane.b32.xlu0 %v1120, 32
      %v1165 = vpop.permute.xlu0 %1164
      %1166 = vrot.lane.b32.xlu0 %v1121, 32
      %v1167 = vpop.permute.xlu0 %1166
      %1168 = vrot.lane.b32.xlu0 %v1122, 32
      %v1169 = vpop.permute.xlu0 %1168
      %1170 = vrot.lane.b32.xlu0 %v1123, 32
      %v1171 = vpop.permute.xlu0 %1170
      %v1188 = vadd.f32 %v952, %v1141
      %v1189 = vadd.f32 %v953, %v1143
      %v1190 = vadd.f32 %v954, %v1145
      %v1191 = vadd.f32 %v955, %v1147
      %v1192 = vadd.f32 %v956, %v1149
      %v1193 = vadd.f32 %v957, %v1151
      %v1194 = vadd.f32 %v958, %v1153
      %v1195 = vadd.f32 %v959, %v1155
      %v1196 = vadd.f32 %v960, %v1157
      %v1197 = vadd.f32 %v961, %v1159
      %v1198 = vadd.f32 %v962, %v1161
      %v1199 = vadd.f32 %v963, %v1163
      %v1200 = vadd.f32 %v964, %v1165
      %v1201 = vadd.f32 %v965, %v1167
      %v1202 = vadd.f32 %v966, %v1169
      %v1203 = vadd.f32 %v967, %v1171
      %v1204 = vmul.f32 %v1090, %v1090
      %v1205 = vmul.f32 %v1091, %v1091
      %v1206 = vmul.f32 %v1092, %v1092
      %v1207 = vmul.f32 %v1093, %v1093
      %v1208 = vmul.f32 %v1094, %v1094
      %v1209 = vmul.f32 %v1095, %v1095
      %v1210 = vmul.f32 %v1096, %v1096
      %v1211 = vmul.f32 %v1097, %v1097
      %v1212 = vmul.f32 %v1098, %v1098
      %v1213 = vmul.f32 %v1099, %v1099
      %v1214 = vmul.f32 %v1100, %v1100
      %v1215 = vmul.f32 %v1101, %v1101
      %v1216 = vmul.f32 %v1102, %v1102
      %v1217 = vmul.f32 %v1103, %v1103
      %v1218 = vmul.f32 %v1104, %v1104
      %v1219 = vmul.f32 %v1105, %v1105
      %v1220 = vmul.f32 %v1188, %v1188
      %v1221 = vmul.f32 %v1189, %v1189
      %v1222 = vmul.f32 %v1190, %v1190
      %v1223 = vmul.f32 %v1191, %v1191
      %v1224 = vmul.f32 %v1192, %v1192
      %v1225 = vmul.f32 %v1193, %v1193
      %v1226 = vmul.f32 %v1194, %v1194
      %v1227 = vmul.f32 %v1195, %v1195
      %v1228 = vmul.f32 %v1196, %v1196
      %v1229 = vmul.f32 %v1197, %v1197
      %v1230 = vmul.f32 %v1198, %v1198
      %v1231 = vmul.f32 %v1199, %v1199
      %v1232 = vmul.f32 %v1200, %v1200
      %v1233 = vmul.f32 %v1201, %v1201
      %v1234 = vmul.f32 %v1202, %v1202
      %v1235 = vmul.f32 %v1203, %v1203
      %v1236 = vadd.f32 %v1204, %v1220
      %v1237 = vadd.f32 %v1205, %v1221
      %v1238 = vadd.f32 %v1206, %v1222
      %v1239 = vadd.f32 %v1207, %v1223
      %v1240 = vadd.f32 %v1208, %v1224
      %v1241 = vadd.f32 %v1209, %v1225
      %v1242 = vadd.f32 %v1210, %v1226
      %v1243 = vadd.f32 %v1211, %v1227
      %v1244 = vadd.f32 %v1212, %v1228
      %v1245 = vadd.f32 %v1213, %v1229
      %v1246 = vadd.f32 %v1214, %v1230
      %v1247 = vadd.f32 %v1215, %v1231
      %v1248 = vadd.f32 %v1216, %v1232
      %v1249 = vadd.f32 %v1217, %v1233
      %v1250 = vadd.f32 %v1218, %v1234
      %v1251 = vadd.f32 %v1219, %v1235
      %1254 = vrot.lane.b32.xlu0 %v612, 32
      %v1255 = vpop.permute.xlu0 %1254
      %1256 = vrot.lane.b32.xlu0 %v613, 32
      %v1257 = vpop.permute.xlu0 %1256
      %v1260 = vmul.f32 %v1236, %v1255
      %v1261 = vmul.f32 %v1237, %v1257
      %v1262 = vmul.f32 %v1238, %v1255
      %v1263 = vmul.f32 %v1239, %v1257
      %v1264 = vmul.f32 %v1240, %v1255
      %v1265 = vmul.f32 %v1241, %v1257
      %v1266 = vmul.f32 %v1242, %v1255
      %v1267 = vmul.f32 %v1243, %v1257
      %v1268 = vmul.f32 %v1244, %v1255
      %v1269 = vmul.f32 %v1245, %v1257
      %v1270 = vmul.f32 %v1246, %v1255
      %v1271 = vmul.f32 %v1247, %v1257
      %v1272 = vmul.f32 %v1248, %v1255
      %v1273 = vmul.f32 %v1249, %v1257
      %v1274 = vmul.f32 %v1250, %v1255
      %v1275 = vmul.f32 %v1251, %v1257
      %vm1276 = vcmask 523520
      %v1277 = vsel %vm1276, %v1260, 0.0
      %vm1278 = vcmask 517376
      %v1279 = vsel %vm1278, %v1261, 0.0
      %v1280 = vadd.f32 %v1277, %v1279
      %v1281 = vrot.slane %v1280, 4
      %v1282 = vadd.f32 %v1280, %v1281
      %v1283 = vrot.slane %v1282, 2
      %v1284 = vadd.f32 %v1282, %v1283
      %v1285 = vrot.slane %v1284, 1
      %v1286 = vadd.f32 %v1284, %v1285
      %v1287 = vsel %vm1276, %v1262, 0.0
      %v1288 = vsel %vm1278, %v1263, 0.0
      %v1289 = vadd.f32 %v1287, %v1288
      %v1290 = vrot.slane %v1289, 4
      %v1291 = vadd.f32 %v1289, %v1290
      %v1292 = vrot.slane %v1291, 2
      %v1293 = vadd.f32 %v1291, %v1292
      %v1294 = vrot.slane %v1293, 1
      %v1295 = vadd.f32 %v1293, %v1294
      %v1296 = vsel %vm1276, %v1264, 0.0
      %v1297 = vsel %vm1278, %v1265, 0.0
      %v1298 = vadd.f32 %v1296, %v1297
      %v1299 = vrot.slane %v1298, 4
      %v1300 = vadd.f32 %v1298, %v1299
      %v1301 = vrot.slane %v1300, 2
      %v1302 = vadd.f32 %v1300, %v1301
      %v1303 = vrot.slane %v1302, 1
      %v1304 = vadd.f32 %v1302, %v1303
      %v1305 = vsel %vm1276, %v1266, 0.0
      %v1306 = vsel %vm1278, %v1267, 0.0
      %v1307 = vadd.f32 %v1305, %v1306
      %v1308 = vrot.slane %v1307, 4
      %v1309 = vadd.f32 %v1307, %v1308
      %v1310 = vrot.slane %v1309, 2
      %v1311 = vadd.f32 %v1309, %v1310
      %v1312 = vrot.slane %v1311, 1
      %v1313 = vadd.f32 %v1311, %v1312
      %v1314 = vsel %vm1276, %v1268, 0.0
      %v1315 = vsel %vm1278, %v1269, 0.0
      %v1316 = vadd.f32 %v1314, %v1315
      %v1317 = vrot.slane %v1316, 4
      %v1318 = vadd.f32 %v1316, %v1317
      %v1319 = vrot.slane %v1318, 2
      %v1320 = vadd.f32 %v1318, %v1319
      %v1321 = vrot.slane %v1320, 1
      %v1322 = vadd.f32 %v1320, %v1321
      %v1323 = vsel %vm1276, %v1270, 0.0
      %v1324 = vsel %vm1278, %v1271, 0.0
      %v1325 = vadd.f32 %v1323, %v1324
      %v1326 = vrot.slane %v1325, 4
      %v1327 = vadd.f32 %v1325, %v1326
      %v1328 = vrot.slane %v1327, 2
      %v1329 = vadd.f32 %v1327, %v1328
      %v1330 = vrot.slane %v1329, 1
      %v1331 = vadd.f32 %v1329, %v1330
      %v1332 = vsel %vm1276, %v1272, 0.0
      %v1333 = vsel %vm1278, %v1273, 0.0
      %v1334 = vadd.f32 %v1332, %v1333
      %v1335 = vrot.slane %v1334, 4
      %v1336 = vadd.f32 %v1334, %v1335
      %v1337 = vrot.slane %v1336, 2
      %v1338 = vadd.f32 %v1336, %v1337
      %v1339 = vrot.slane %v1338, 1
      %v1340 = vadd.f32 %v1338, %v1339
      %v1341 = vsel %vm1276, %v1274, 0.0
      %v1342 = vsel %vm1278, %v1275, 0.0
      %v1343 = vadd.f32 %v1341, %v1342
      %v1344 = vrot.slane %v1343, 4
      %v1345 = vadd.f32 %v1343, %v1344
      %v1346 = vrot.slane %v1345, 2
      %v1347 = vadd.f32 %v1345, %v1346
      %v1348 = vrot.slane %v1347, 1
      %v1349 = vadd.f32 %v1347, %v1348
      %v1351 = vlaneseq
      %v1352 = vshrl.u32 %v1351, 7
      %v1353 = vsub.s32 0, %v1352
      %v1354 = vrot.slane %v614, %v1353
      %1355 = vrot.lane.b32.xlu0 %v1354, 32
      %v1356 = vpop.permute.xlu0 %1355
      %v1358 = vadd.f32 %v1286, %v1356
      %v1359 = vadd.f32 %v1295, %v1356
      %v1360 = vadd.f32 %v1304, %v1356
      %v1361 = vadd.f32 %v1313, %v1356
      %v1362 = vadd.f32 %v1322, %v1356
      %v1363 = vadd.f32 %v1331, %v1356
      %v1364 = vadd.f32 %v1340, %v1356
      %v1365 = vadd.f32 %v1349, %v1356
      %v1366 = vtanh.pop %v1358
      %v1367 = vtanh.pop %v1359
      %v1368 = vtanh.pop %v1360
      %v1369 = vtanh.pop %v1361
      %v1370 = vtanh.pop %v1362
      %v1371 = vtanh.pop %v1363
      %v1372 = vtanh.pop %v1364
      %v1373 = vtanh.pop %v1365
      %v1382 = vrot.slane %v1367, 7
      %vm1383 = vcmask 1041409
      %v1384 = vsel %vm1383, %v1382, %v1366
      %v1385 = vrot.slane %v1368, 6
      %vm1386 = vcmask 1042434
      %v1387 = vsel %vm1386, %v1385, %v1384
      %v1388 = vrot.slane %v1369, 5
      %vm1389 = vcmask 1043459
      %v1390 = vsel %vm1389, %v1388, %v1387
      %v1391 = vrot.slane %v1370, 4
      %vm1392 = vcmask 1044484
      %v1393 = vsel %vm1392, %v1391, %v1390
      %v1394 = vrot.slane %v1371, 3
      %vm1395 = vcmask 1045509
      %v1396 = vsel %vm1395, %v1394, %v1393
      %v1397 = vrot.slane %v1372, 2
      %vm1398 = vcmask 1046534
      %v1399 = vsel %vm1398, %v1397, %v1396
      %v1400 = vrot.slane %v1373, 1
      %vm1401 = vcmask 1047559
      %v1402 = vsel %vm1401, %v1400, %v1399
      %1403 = vrot.lane.b32.xlu0 %v1402, 64
      %v1404 = vpop.permute.xlu0 %1403
      %v1406 = vmul.f32 %v697, %v1404
      %v1407 = vld [vmem:[#allocation2 + $0x10] sm:$0xff]
      %v1408 = vld [vmem:[#allocation2 + $0x18] sm:$0xff]
      %1410 = vrot.lane.b32.xlu0 %v1406, 32
      %v1411 = vpop.permute.xlu0 %1410
      %v1412 = vsel %vm617, %v1411, 0
      %1414 = vmatprep.subr.mxu0 %v605
      %1415 = vmatpush1.msra.mxu0 %v604
      %1416 = vmatprep.subr.mxu0 %v607
      %1417 = vmatpush1.msra.mxu0 %v606
      %1418 = vmatprep.subr.mxu0 %v609
      %1419 = vmatpush1.msra.mxu0 %v608
      %1420 = vmatprep.subr.mxu0 %v611
      %1421 = vmatpush1.msra.mxu0 %v610
      %1422 = vmatprep.subr.mxu0 0.0
      %1423 = vmatpush1.msra.mxu0 0.0
      %1424 = vmatprep.subr.mxu0 0.0
      %1425 = vmatpush1.msra.mxu0 0.0
      %1426 = vmatprep.subr.mxu0 0.0
      %1427 = vmatpush1.msra.mxu0 0.0
      %1428 = vmatprep.subr.mxu0 0.0
      %1429 = vmatpush1.msra.mxu0 0.0
      %1430 = vmatprep.subr.mxu0 0.0
      %1431 = vmatpush1.msra.mxu0 0.0
      %1432 = vmatprep.subr.mxu0 0.0
      %1433 = vmatpush1.msra.mxu0 0.0
      %1434 = vmatprep.subr.mxu0 0.0
      %1435 = vmatpush1.msra.mxu0 0.0
      %1436 = vmatprep.subr.mxu0 0.0
      %1437 = vmatpush1.msra.mxu0 0.0
      %1438 = vmatprep.subr.mxu0 0.0
      %1439 = vmatpush1.msra.mxu0 0.0
      %1440 = vmatprep.subr.mxu0 0.0
      %1441 = vmatpush1.msra.mxu0 0.0
      %1442 = vmatprep.subr.mxu0 0.0
      %1443 = vmatpush1.msra.mxu0 0.0
      %1444 = vmatprep.subr.mxu0 0.0
      %1445 = vmatpush1.msra.mxu0 0.0
      %1446 = vmatprep.subr.mxu0 0.0
      %1447 = vmatpush1.msra.mxu0 0.0
      %1448 = vmatprep.subr.mxu0 0.0
      %1449 = vmatpush1.msra.mxu0 0.0
      %1450 = vmatprep.subr.mxu0 0.0
      %1451 = vmatpush1.msra.mxu0 0.0
      %1452 = vmatprep.subr.mxu0 0.0
      %1453 = vmatpush1.msra.mxu0 0.0
      %1454 = vmatprep.subr.mxu0 0.0
      %1455 = vmatpush1.msra.mxu0 0.0
      %1456 = vmatprep.subr.mxu0 0.0
      %1457 = vmatpush1.msra.mxu0 0.0
      %1458 = vmatprep.subr.mxu0 0.0
      %1459 = vmatpush1.msra.mxu0 0.0
      %1460 = vmatprep.subr.mxu0 0.0
      %1461 = vmatpush1.msra.mxu0 0.0
      %1462 = vmatprep.subr.mxu0 0.0
      %1463 = vmatpush1.msra.mxu0 0.0
      %1464 = vmatprep.subr.mxu0 0.0
      %1465 = vmatpush1.msra.mxu0 0.0
      %1466 = vmatprep.subr.mxu0 0.0
      %1467 = vmatpush1.msra.mxu0 0.0
      %1468 = vmatprep.subr.mxu0 0.0
      %1469 = vmatpush1.msra.mxu0 0.0
      %1470 = vmatprep.subr.mxu0 0.0
      %1471 = vmatpush1.msra.mxu0 0.0
      %1472 = vmatprep.subr.mxu0 0.0
      %1473 = vmatpush1.msra.mxu0 0.0
      %1474 = vmatprep.subr.mxu0 0.0
      %1475 = vmatpush1.msra.mxu0 0.0
      %1476 = vmatprep.subr.mxu0 0.0
      %1477 = vmatpush1.msra.mxu0 0.0
      %1478 = vmatprep.mubr.f32.mxu0 0.0
      %1479 = vmatmul.mubr.f32.gmra.mrb[0].mxu0 %v1412
      %v1480 = vpop.f32.mrb[0].mxu0
      %v1481 = vadd.f32 0.0, %v1480
      %v1482 = vpop.f32.mrb[0].mxu0
      %v1483 = vadd.f32 0.0, %v1482
      %1484 = vdwg.mxu0
      %v1485 = vadd.f32 %v1407, %v1481
      %v1486 = vadd.f32 %v1408, %v1483
      %v1487 = vmul.f32 %v1485, 0.16666667
      %v1488 = vadd.f32 %v1487, 0.5
      %v1489 = vmax.f32 %v1488, 0.0
      %v1490 = vmin.f32 %v1489, 1.0
      %v1491 = vtanh.pop %v1485
      %1493 = vrot.lane.b32.xlu0 %v1491, 64
      %v1494 = vpop.permute.xlu0 %1493
      %v1496 = vmul.f32 %v1490, %v1494
      %v1497 = vmul.f32 %v1486, 0.16666667
      %v1498 = vadd.f32 %v1497, 0.5
      %v1499 = vmax.f32 %v1498, 0.0
      %v1500 = vmin.f32 %v1499, 1.0
      %v1501 = vlaneseq
      %v1502 = vshrl.u32 %v1501, 7
      %v1503 = vsub.s32 0, %v1502
      %v1504 = vrot.slane %v1500, %v1503
      %1506 = vbcast.lane.b32.xlu0 %v1504, 256
      %v1507 = vpop.permute.xlu0 %1506
      %s1509 = sor.u32 256, 8
      %1510 = vbcast.lane.b32.xlu0 %v1504, %s1509
      %v1511 = vpop.permute.xlu0 %1510
      %v1512 = vlaneseq
      %v1513 = vshrl.u32 %v1512, 7
      %v1514 = vsub.s32 1, %v1513
      %v1515 = vrot.slane %v1500, %v1514
      %1517 = vbcast.lane.b32.xlu0 %v1515, 256
      %v1518 = vpop.permute.xlu0 %1517
      %s1520 = sor.u32 256, 8
      %1521 = vbcast.lane.b32.xlu0 %v1515, %s1520
      %v1522 = vpop.permute.xlu0 %1521
      %v1523 = vlaneseq
      %v1524 = vshrl.u32 %v1523, 7
      %v1525 = vsub.s32 2, %v1524
      %v1526 = vrot.slane %v1500, %v1525
      %1528 = vbcast.lane.b32.xlu0 %v1526, 256
      %v1529 = vpop.permute.xlu0 %1528
      %s1531 = sor.u32 256, 8
      %1532 = vbcast.lane.b32.xlu0 %v1526, %s1531
      %v1533 = vpop.permute.xlu0 %1532
      %v1534 = vlaneseq
      %v1535 = vshrl.u32 %v1534, 7
      %v1536 = vsub.s32 3, %v1535
      %v1537 = vrot.slane %v1500, %v1536
      %1539 = vbcast.lane.b32.xlu0 %v1537, 256
      %v1540 = vpop.permute.xlu0 %1539
      %s1542 = sor.u32 256, 8
      %1543 = vbcast.lane.b32.xlu0 %v1537, %s1542
      %v1544 = vpop.permute.xlu0 %1543
      %v1545 = vlaneseq
      %v1546 = vshrl.u32 %v1545, 7
      %v1547 = vsub.s32 4, %v1546
      %v1548 = vrot.slane %v1500, %v1547
      %1550 = vbcast.lane.b32.xlu0 %v1548, 256
      %v1551 = vpop.permute.xlu0 %1550
      %s1553 = sor.u32 256, 8
      %1554 = vbcast.lane.b32.xlu0 %v1548, %s1553
      %v1555 = vpop.permute.xlu0 %1554
      %v1556 = vlaneseq
      %v1557 = vshrl.u32 %v1556, 7
      %v1558 = vsub.s32 5, %v1557
      %v1559 = vrot.slane %v1500, %v1558
      %1561 = vbcast.lane.b32.xlu0 %v1559, 256
      %v1562 = vpop.permute.xlu0 %1561
      %s1564 = sor.u32 256, 8
      %1565 = vbcast.lane.b32.xlu0 %v1559, %s1564
      %v1566 = vpop.permute.xlu0 %1565
      %v1567 = vlaneseq
      %v1568 = vshrl.u32 %v1567, 7
      %v1569 = vsub.s32 6, %v1568
      %v1570 = vrot.slane %v1500, %v1569
      %1572 = vbcast.lane.b32.xlu0 %v1570, 256
      %v1573 = vpop.permute.xlu0 %1572
      %s1575 = sor.u32 256, 8
      %1576 = vbcast.lane.b32.xlu0 %v1570, %s1575
      %v1577 = vpop.permute.xlu0 %1576
      %v1578 = vlaneseq
      %v1579 = vshrl.u32 %v1578, 7
      %v1580 = vsub.s32 7, %v1579
      %v1581 = vrot.slane %v1500, %v1580
      %1583 = vbcast.lane.b32.xlu0 %v1581, 256
      %v1584 = vpop.permute.xlu0 %1583
      %s1586 = sor.u32 256, 8
      %1587 = vbcast.lane.b32.xlu0 %v1581, %s1586
      %v1588 = vpop.permute.xlu0 %1587
      %v1590 = vcombine.high %v1490, %v1490
      %v1592 = vunpack.c.l.s4 1966171168
      %v1593 = vunpack.c.0.s8 %v1592
      %v1594 = vlaneseq
      %v1595 = vshrl.u32 %v1594, 7
      %v1596 = vsub.s32 %v1593, %v1595
      %v1597 = vrot.slane %v1490, %v1596
      %v1599 = vunpack.c.l.s4 1966171168
      %v1600 = vunpack.c.0.s8 %v1599
      %v1601 = vlaneseq
      %v1602 = vshrl.u32 %v1601, 7
      %v1603 = vsub.s32 %v1600, %v1602
      %v1604 = vrot.slane %v1590, %v1603
      %v1605 = vcombine.high %v1597, %v1597
      %v1606 = vcombine.high %v1604, %v1604
      %v1608 = vunpack.c.l.s4 1966171168
      %v1609 = vunpack.c.0.s8 %v1608
      %v1610 = vlaneseq
      %v1611 = vshrl.u32 %v1610, 7
      %v1612 = vsub.s32 %v1609, %v1611
      %v1613 = vrot.slane %v1597, %v1612
      %v1615 = vunpack.c.l.s4 1966171168
      %v1616 = vunpack.c.0.s8 %v1615
      %v1617 = vlaneseq
      %v1618 = vshrl.u32 %v1617, 7
      %v1619 = vsub.s32 %v1616, %v1618
      %v1620 = vrot.slane %v1604, %v1619
      %v1622 = vunpack.c.l.s4 1966171168
      %v1623 = vunpack.c.0.s8 %v1622
      %v1624 = vlaneseq
      %v1625 = vshrl.u32 %v1624, 7
      %v1626 = vsub.s32 %v1623, %v1625
      %v1627 = vrot.slane %v1605, %v1626
      %v1629 = vunpack.c.l.s4 1966171168
      %v1630 = vunpack.c.0.s8 %v1629
      %v1631 = vlaneseq
      %v1632 = vshrl.u32 %v1631, 7
      %v1633 = vsub.s32 %v1630, %v1632
      %v1634 = vrot.slane %v1606, %v1633
      %v1635 = vcombine.high %v1613, %v1613
      %v1636 = vcombine.high %v1620, %v1620
      %v1637 = vcombine.high %v1627, %v1627
      %v1638 = vcombine.high %v1634, %v1634
      %v1639 = vlaneseq
      %v1640 = vshrl.u32 %v1639, 7
      %v1641 = vsub.s32 0, %v1640
      %v1642 = vrot.slane %v1613, %v1641
      %v1643 = vlaneseq
      %v1644 = vshrl.u32 %v1643, 7
      %v1645 = vsub.s32 0, %v1644
      %v1646 = vrot.slane %v1627, %v1645
      %v1647 = vlaneseq
      %v1648 = vshrl.u32 %v1647, 7
      %v1649 = vsub.s32 0, %v1648
      %v1650 = vrot.slane %v1635, %v1649
      %v1651 = vlaneseq
      %v1652 = vshrl.u32 %v1651, 7
      %v1653 = vsub.s32 0, %v1652
      %v1654 = vrot.slane %v1637, %v1653
      %v1655 = vlaneseq
      %v1656 = vshrl.u32 %v1655, 7
      %v1657 = vsub.s32 0, %v1656
      %v1658 = vrot.slane %v1620, %v1657
      %v1659 = vlaneseq
      %v1660 = vshrl.u32 %v1659, 7
      %v1661 = vsub.s32 0, %v1660
      %v1662 = vrot.slane %v1634, %v1661
      %v1663 = vlaneseq
      %v1664 = vshrl.u32 %v1663, 7
      %v1665 = vsub.s32 0, %v1664
      %v1666 = vrot.slane %v1636, %v1665
      %v1667 = vlaneseq
      %v1668 = vshrl.u32 %v1667, 7
      %v1669 = vsub.s32 0, %v1668
      %v1670 = vrot.slane %v1638, %v1669
      %v1679 = vmul.f32 %v1507, %v1642
      %v1680 = vmul.f32 %v1511, %v1642
      %v1681 = vmul.f32 %v1518, %v1646
      %v1682 = vmul.f32 %v1522, %v1646
      %v1683 = vmul.f32 %v1529, %v1650
      %v1684 = vmul.f32 %v1533, %v1650
      %v1685 = vmul.f32 %v1540, %v1654
      %v1686 = vmul.f32 %v1544, %v1654
      %v1687 = vmul.f32 %v1551, %v1658
      %v1688 = vmul.f32 %v1555, %v1658
      %v1689 = vmul.f32 %v1562, %v1662
      %v1690 = vmul.f32 %v1566, %v1662
      %v1691 = vmul.f32 %v1573, %v1666
      %v1692 = vmul.f32 %v1577, %v1666
      %v1693 = vmul.f32 %v1584, %v1670
      %v1694 = vmul.f32 %v1588, %v1670
      %v1696 = vcombine.high %v1496, %v1496
      %v1698 = vunpack.c.l.s4 1966171168
      %v1699 = vunpack.c.0.s8 %v1698
      %v1700 = vlaneseq
      %v1701 = vshrl.u32 %v1700, 7
      %v1702 = vsub.s32 %v1699, %v1701
      %v1703 = vrot.slane %v1496, %v1702
      %v1705 = vunpack.c.l.s4 1966171168
      %v1706 = vunpack.c.0.s8 %v1705
      %v1707 = vlaneseq
      %v1708 = vshrl.u32 %v1707, 7
      %v1709 = vsub.s32 %v1706, %v1708
      %v1710 = vrot.slane %v1696, %v1709
      %v1711 = vcombine.high %v1703, %v1703
      %v1712 = vcombine.high %v1710, %v1710
      %v1714 = vunpack.c.l.s4 1966171168
      %v1715 = vunpack.c.0.s8 %v1714
      %v1716 = vlaneseq
      %v1717 = vshrl.u32 %v1716, 7
      %v1718 = vsub.s32 %v1715, %v1717
      %v1719 = vrot.slane %v1703, %v1718
      %v1721 = vunpack.c.l.s4 1966171168
      %v1722 = vunpack.c.0.s8 %v1721
      %v1723 = vlaneseq
      %v1724 = vshrl.u32 %v1723, 7
      %v1725 = vsub.s32 %v1722, %v1724
      %v1726 = vrot.slane %v1710, %v1725
      %v1728 = vunpack.c.l.s4 1966171168
      %v1729 = vunpack.c.0.s8 %v1728
      %v1730 = vlaneseq
      %v1731 = vshrl.u32 %v1730, 7
      %v1732 = vsub.s32 %v1729, %v1731
      %v1733 = vrot.slane %v1711, %v1732
      %v1735 = vunpack.c.l.s4 1966171168
      %v1736 = vunpack.c.0.s8 %v1735
      %v1737 = vlaneseq
      %v1738 = vshrl.u32 %v1737, 7
      %v1739 = vsub.s32 %v1736, %v1738
      %v1740 = vrot.slane %v1712, %v1739
      %v1741 = vcombine.high %v1719, %v1719
      %v1742 = vcombine.high %v1726, %v1726
      %v1743 = vcombine.high %v1733, %v1733
      %v1744 = vcombine.high %v1740, %v1740
      %v1745 = vmul.f32 %v1679, %v1090
      %v1746 = vmul.f32 %v1680, %v1091
      %v1747 = vmul.f32 %v1681, %v1092
      %v1748 = vmul.f32 %v1682, %v1093
      %v1749 = vmul.f32 %v1683, %v1094
      %v1750 = vmul.f32 %v1684, %v1095
      %v1751 = vmul.f32 %v1685, %v1096
      %v1752 = vmul.f32 %v1686, %v1097
      %v1753 = vmul.f32 %v1687, %v1098
      %v1754 = vmul.f32 %v1688, %v1099
      %v1755 = vmul.f32 %v1689, %v1100
      %v1756 = vmul.f32 %v1690, %v1101
      %v1757 = vmul.f32 %v1691, %v1102
      %v1758 = vmul.f32 %v1692, %v1103
      %v1759 = vmul.f32 %v1693, %v1104
      %v1760 = vmul.f32 %v1694, %v1105
      %s1761 = scalar_lea.vmem %s1, 16
      %v1762 = vld [vmem:[%s1761] sm:$0xff]
      %v1763 = vld [vmem:[%s1761 + $0x8] sm:$0x3]
      %v1764 = vlaneseq
      %v1765 = vshrl.u32 %v1764, 7
      %v1766 = vsub.s32 0, %v1765
      %v1767 = vrot.slane %v1719, %v1766
      %v1768 = vlaneseq
      %v1769 = vshrl.u32 %v1768, 7
      %v1770 = vsub.s32 0, %v1769
      %v1771 = vrot.slane %v1733, %v1770
      %v1772 = vlaneseq
      %v1773 = vshrl.u32 %v1772, 7
      %v1774 = vsub.s32 0, %v1773
      %v1775 = vrot.slane %v1741, %v1774
      %v1776 = vlaneseq
      %v1777 = vshrl.u32 %v1776, 7
      %v1778 = vsub.s32 0, %v1777
      %v1779 = vrot.slane %v1743, %v1778
      %v1780 = vlaneseq
      %v1781 = vshrl.u32 %v1780, 7
      %v1782 = vsub.s32 0, %v1781
      %v1783 = vrot.slane %v1726, %v1782
      %v1784 = vlaneseq
      %v1785 = vshrl.u32 %v1784, 7
      %v1786 = vsub.s32 0, %v1785
      %v1787 = vrot.slane %v1740, %v1786
      %v1788 = vlaneseq
      %v1789 = vshrl.u32 %v1788, 7
      %v1790 = vsub.s32 0, %v1789
      %v1791 = vrot.slane %v1742, %v1790
      %v1792 = vlaneseq
      %v1793 = vshrl.u32 %v1792, 7
      %v1794 = vsub.s32 0, %v1793
      %v1795 = vrot.slane %v1744, %v1794
      %v1804 = vmul.f32 %v1767, %v1762
      %v1805 = vmul.f32 %v1767, %v1763
      %v1806 = vmul.f32 %v1771, %v1762
      %v1807 = vmul.f32 %v1771, %v1763
      %v1808 = vmul.f32 %v1775, %v1762
      %v1809 = vmul.f32 %v1775, %v1763
      %v1810 = vmul.f32 %v1779, %v1762
      %v1811 = vmul.f32 %v1779, %v1763
      %v1812 = vmul.f32 %v1783, %v1762
      %v1813 = vmul.f32 %v1783, %v1763
      %v1814 = vmul.f32 %v1787, %v1762
      %v1815 = vmul.f32 %v1787, %v1763
      %v1816 = vmul.f32 %v1791, %v1762
      %v1817 = vmul.f32 %v1791, %v1763
      %v1818 = vmul.f32 %v1795, %v1762
      %v1819 = vmul.f32 %v1795, %v1763
      %1836 = vrot.lane.b32.xlu0 %v1804, 32
      %v1837 = vpop.permute.xlu0 %1836
      %1838 = vrot.lane.b32.xlu0 %v1805, 32
      %v1839 = vpop.permute.xlu0 %1838
      %1840 = vrot.lane.b32.xlu0 %v1806, 32
      %v1841 = vpop.permute.xlu0 %1840
      %1842 = vrot.lane.b32.xlu0 %v1807, 32
      %v1843 = vpop.permute.xlu0 %1842
      %1844 = vrot.lane.b32.xlu0 %v1808, 32
      %v1845 = vpop.permute.xlu0 %1844
      %1846 = vrot.lane.b32.xlu0 %v1809, 32
      %v1847 = vpop.permute.xlu0 %1846
      %1848 = vrot.lane.b32.xlu0 %v1810, 32
      %v1849 = vpop.permute.xlu0 %1848
      %1850 = vrot.lane.b32.xlu0 %v1811, 32
      %v1851 = vpop.permute.xlu0 %1850
      %1852 = vrot.lane.b32.xlu0 %v1812, 32
      %v1853 = vpop.permute.xlu0 %1852
      %1854 = vrot.lane.b32.xlu0 %v1813, 32
      %v1855 = vpop.permute.xlu0 %1854
      %1856 = vrot.lane.b32.xlu0 %v1814, 32
      %v1857 = vpop.permute.xlu0 %1856
      %1858 = vrot.lane.b32.xlu0 %v1815, 32
      %v1859 = vpop.permute.xlu0 %1858
      %1860 = vrot.lane.b32.xlu0 %v1816, 32
      %v1861 = vpop.permute.xlu0 %1860
      %1862 = vrot.lane.b32.xlu0 %v1817, 32
      %v1863 = vpop.permute.xlu0 %1862
      %1864 = vrot.lane.b32.xlu0 %v1818, 32
      %v1865 = vpop.permute.xlu0 %1864
      %1866 = vrot.lane.b32.xlu0 %v1819, 32
      %v1867 = vpop.permute.xlu0 %1866
      %v1884 = vadd.f32 %v1745, %v1837
      %v1885 = vadd.f32 %v1746, %v1839
      %v1886 = vadd.f32 %v1747, %v1841
      %v1887 = vadd.f32 %v1748, %v1843
      %v1888 = vadd.f32 %v1749, %v1845
      %v1889 = vadd.f32 %v1750, %v1847
      %v1890 = vadd.f32 %v1751, %v1849
      %v1891 = vadd.f32 %v1752, %v1851
      %v1892 = vadd.f32 %v1753, %v1853
      %v1893 = vadd.f32 %v1754, %v1855
      %v1894 = vadd.f32 %v1755, %v1857
      %v1895 = vadd.f32 %v1756, %v1859
      %v1896 = vadd.f32 %v1757, %v1861
      %v1897 = vadd.f32 %v1758, %v1863
      %v1898 = vadd.f32 %v1759, %v1865
      %v1899 = vadd.f32 %v1760, %v1867
      %v1900 = vmul.f32 %v1679, %v1188
      %v1901 = vmul.f32 %v1680, %v1189
      %v1902 = vmul.f32 %v1681, %v1190
      %v1903 = vmul.f32 %v1682, %v1191
      %v1904 = vmul.f32 %v1683, %v1192
      %v1905 = vmul.f32 %v1684, %v1193
      %v1906 = vmul.f32 %v1685, %v1194
      %v1907 = vmul.f32 %v1686, %v1195
      %v1908 = vmul.f32 %v1687, %v1196
      %v1909 = vmul.f32 %v1688, %v1197
      %v1910 = vmul.f32 %v1689, %v1198
      %v1911 = vmul.f32 %v1690, %v1199
      %v1912 = vmul.f32 %v1691, %v1200
      %v1913 = vmul.f32 %v1692, %v1201
      %v1914 = vmul.f32 %v1693, %v1202
      %v1915 = vmul.f32 %v1694, %v1203
      %s1916 = scalar_lea.vmem %s2, 16
      %v1917 = vld [vmem:[%s1916] sm:$0xff]
      %v1918 = vld [vmem:[%s1916 + $0x8] sm:$0x3]
      %v1919 = vmul.f32 %v1767, %v1917
      %v1920 = vmul.f32 %v1767, %v1918
      %v1921 = vmul.f32 %v1771, %v1917
      %v1922 = vmul.f32 %v1771, %v1918
      %v1923 = vmul.f32 %v1775, %v1917
      %v1924 = vmul.f32 %v1775, %v1918
      %v1925 = vmul.f32 %v1779, %v1917
      %v1926 = vmul.f32 %v1779, %v1918
      %v1927 = vmul.f32 %v1783, %v1917
      %v1928 = vmul.f32 %v1783, %v1918
      %v1929 = vmul.f32 %v1787, %v1917
      %v1930 = vmul.f32 %v1787, %v1918
      %v1931 = vmul.f32 %v1791, %v1917
      %v1932 = vmul.f32 %v1791, %v1918
      %v1933 = vmul.f32 %v1795, %v1917
      %v1934 = vmul.f32 %v1795, %v1918
      %1951 = vrot.lane.b32.xlu0 %v1919, 32
      %v1952 = vpop.permute.xlu0 %1951
      %1953 = vrot.lane.b32.xlu0 %v1920, 32
      %v1954 = vpop.permute.xlu0 %1953
      %1955 = vrot.lane.b32.xlu0 %v1921, 32
      %v1956 = vpop.permute.xlu0 %1955
      %1957 = vrot.lane.b32.xlu0 %v1922, 32
      %v1958 = vpop.permute.xlu0 %1957
      %1959 = vrot.lane.b32.xlu0 %v1923, 32
      %v1960 = vpop.permute.xlu0 %1959
      %1961 = vrot.lane.b32.xlu0 %v1924, 32
      %v1962 = vpop.permute.xlu0 %1961
      %1963 = vrot.lane.b32.xlu0 %v1925, 32
      %v1964 = vpop.permute.xlu0 %1963
      %1965 = vrot.lane.b32.xlu0 %v1926, 32
      %v1966 = vpop.permute.xlu0 %1965
      %1967 = vrot.lane.b32.xlu0 %v1927, 32
      %v1968 = vpop.permute.xlu0 %1967
      %1969 = vrot.lane.b32.xlu0 %v1928, 32
      %v1970 = vpop.permute.xlu0 %1969
      %1971 = vrot.lane.b32.xlu0 %v1929, 32
      %v1972 = vpop.permute.xlu0 %1971
      %1973 = vrot.lane.b32.xlu0 %v1930, 32
      %v1974 = vpop.permute.xlu0 %1973
      %1975 = vrot.lane.b32.xlu0 %v1931, 32
      %v1976 = vpop.permute.xlu0 %1975
      %1977 = vrot.lane.b32.xlu0 %v1932, 32
      %v1978 = vpop.permute.xlu0 %1977
      %1979 = vrot.lane.b32.xlu0 %v1933, 32
      %v1980 = vpop.permute.xlu0 %1979
      %1981 = vrot.lane.b32.xlu0 %v1934, 32
      %v1982 = vpop.permute.xlu0 %1981
      %v1999 = vadd.f32 %v1900, %v1952
      %v2000 = vadd.f32 %v1901, %v1954
      %v2001 = vadd.f32 %v1902, %v1956
      %v2002 = vadd.f32 %v1903, %v1958
      %v2003 = vadd.f32 %v1904, %v1960
      %v2004 = vadd.f32 %v1905, %v1962
      %v2005 = vadd.f32 %v1906, %v1964
      %v2006 = vadd.f32 %v1907, %v1966
      %v2007 = vadd.f32 %v1908, %v1968
      %v2008 = vadd.f32 %v1909, %v1970
      %v2009 = vadd.f32 %v1910, %v1972
      %v2010 = vadd.f32 %v1911, %v1974
      %v2011 = vadd.f32 %v1912, %v1976
      %v2012 = vadd.f32 %v1913, %v1978
      %v2013 = vadd.f32 %v1914, %v1980
      %v2014 = vadd.f32 %v1915, %v1982
      %v2015 = vmul.f32 %v1884, %v1884
      %v2016 = vmul.f32 %v1885, %v1885
      %v2017 = vmul.f32 %v1886, %v1886
      %v2018 = vmul.f32 %v1887, %v1887
      %v2019 = vmul.f32 %v1888, %v1888
      %v2020 = vmul.f32 %v1889, %v1889
      %v2021 = vmul.f32 %v1890, %v1890
      %v2022 = vmul.f32 %v1891, %v1891
      %v2023 = vmul.f32 %v1892, %v1892
      %v2024 = vmul.f32 %v1893, %v1893
      %v2025 = vmul.f32 %v1894, %v1894
      %v2026 = vmul.f32 %v1895, %v1895
      %v2027 = vmul.f32 %v1896, %v1896
      %v2028 = vmul.f32 %v1897, %v1897
      %v2029 = vmul.f32 %v1898, %v1898
      %v2030 = vmul.f32 %v1899, %v1899
      %v2031 = vmul.f32 %v1999, %v1999
      %v2032 = vmul.f32 %v2000, %v2000
      %v2033 = vmul.f32 %v2001, %v2001
      %v2034 = vmul.f32 %v2002, %v2002
      %v2035 = vmul.f32 %v2003, %v2003
      %v2036 = vmul.f32 %v2004, %v2004
      %v2037 = vmul.f32 %v2005, %v2005
      %v2038 = vmul.f32 %v2006, %v2006
      %v2039 = vmul.f32 %v2007, %v2007
      %v2040 = vmul.f32 %v2008, %v2008
      %v2041 = vmul.f32 %v2009, %v2009
      %v2042 = vmul.f32 %v2010, %v2010
      %v2043 = vmul.f32 %v2011, %v2011
      %v2044 = vmul.f32 %v2012, %v2012
      %v2045 = vmul.f32 %v2013, %v2013
      %v2046 = vmul.f32 %v2014, %v2014
      %v2047 = vadd.f32 %v2015, %v2031
      %v2048 = vadd.f32 %v2016, %v2032
      %v2049 = vadd.f32 %v2017, %v2033
      %v2050 = vadd.f32 %v2018, %v2034
      %v2051 = vadd.f32 %v2019, %v2035
      %v2052 = vadd.f32 %v2020, %v2036
      %v2053 = vadd.f32 %v2021, %v2037
      %v2054 = vadd.f32 %v2022, %v2038
      %v2055 = vadd.f32 %v2023, %v2039
      %v2056 = vadd.f32 %v2024, %v2040
      %v2057 = vadd.f32 %v2025, %v2041
      %v2058 = vadd.f32 %v2026, %v2042
      %v2059 = vadd.f32 %v2027, %v2043
      %v2060 = vadd.f32 %v2028, %v2044
      %v2061 = vadd.f32 %v2029, %v2045
      %v2062 = vadd.f32 %v2030, %v2046
      %v2063 = vmul.f32 %v2047, %v1255
      %v2064 = vmul.f32 %v2048, %v1257
      %v2065 = vmul.f32 %v2049, %v1255
      %v2066 = vmul.f32 %v2050, %v1257
      %v2067 = vmul.f32 %v2051, %v1255
      %v2068 = vmul.f32 %v2052, %v1257
      %v2069 = vmul.f32 %v2053, %v1255
      %v2070 = vmul.f32 %v2054, %v1257
      %v2071 = vmul.f32 %v2055, %v1255
      %v2072 = vmul.f32 %v2056, %v1257
      %v2073 = vmul.f32 %v2057, %v1255
      %v2074 = vmul.f32 %v2058, %v1257
      %v2075 = vmul.f32 %v2059, %v1255
      %v2076 = vmul.f32 %v2060, %v1257
      %v2077 = vmul.f32 %v2061, %v1255
      %v2078 = vmul.f32 %v2062, %v1257
      %v2079 = vsel %vm1276, %v2063, 0.0
      %v2080 = vsel %vm1278, %v2064, 0.0
      %v2081 = vadd.f32 %v2079, %v2080
      %v2082 = vrot.slane %v2081, 4
      %v2083 = vadd.f32 %v2081, %v2082
      %v2084 = vrot.slane %v2083, 2
      %v2085 = vadd.f32 %v2083, %v2084
      %v2086 = vrot.slane %v2085, 1
      %v2087 = vadd.f32 %v2085, %v2086
      %v2088 = vsel %vm1276, %v2065, 0.0
      %v2089 = vsel %vm1278, %v2066, 0.0
      %v2090 = vadd.f32 %v2088, %v2089
      %v2091 = vrot.slane %v2090, 4
      %v2092 = vadd.f32 %v2090, %v2091
      %v2093 = vrot.slane %v2092, 2
      %v2094 = vadd.f32 %v2092, %v2093
      %v2095 = vrot.slane %v2094, 1
      %v2096 = vadd.f32 %v2094, %v2095
      %v2097 = vsel %vm1276, %v2067, 0.0
      %v2098 = vsel %vm1278, %v2068, 0.0
      %v2099 = vadd.f32 %v2097, %v2098
      %v2100 = vrot.slane %v2099, 4
      %v2101 = vadd.f32 %v2099, %v2100
      %v2102 = vrot.slane %v2101, 2
      %v2103 = vadd.f32 %v2101, %v2102
      %v2104 = vrot.slane %v2103, 1
      %v2105 = vadd.f32 %v2103, %v2104
      %v2106 = vsel %vm1276, %v2069, 0.0
      %v2107 = vsel %vm1278, %v2070, 0.0
      %v2108 = vadd.f32 %v2106, %v2107
      %v2109 = vrot.slane %v2108, 4
      %v2110 = vadd.f32 %v2108, %v2109
      %v2111 = vrot.slane %v2110, 2
      %v2112 = vadd.f32 %v2110, %v2111
      %v2113 = vrot.slane %v2112, 1
      %v2114 = vadd.f32 %v2112, %v2113
      %v2115 = vsel %vm1276, %v2071, 0.0
      %v2116 = vsel %vm1278, %v2072, 0.0
      %v2117 = vadd.f32 %v2115, %v2116
      %v2118 = vrot.slane %v2117, 4
      %v2119 = vadd.f32 %v2117, %v2118
      %v2120 = vrot.slane %v2119, 2
      %v2121 = vadd.f32 %v2119, %v2120
      %v2122 = vrot.slane %v2121, 1
      %v2123 = vadd.f32 %v2121, %v2122
      %v2124 = vsel %vm1276, %v2073, 0.0
      %v2125 = vsel %vm1278, %v2074, 0.0
      %v2126 = vadd.f32 %v2124, %v2125
      %v2127 = vrot.slane %v2126, 4
      %v2128 = vadd.f32 %v2126, %v2127
      %v2129 = vrot.slane %v2128, 2
      %v2130 = vadd.f32 %v2128, %v2129
      %v2131 = vrot.slane %v2130, 1
      %v2132 = vadd.f32 %v2130, %v2131
      %v2133 = vsel %vm1276, %v2075, 0.0
      %v2134 = vsel %vm1278, %v2076, 0.0
      %v2135 = vadd.f32 %v2133, %v2134
      %v2136 = vrot.slane %v2135, 4
      %v2137 = vadd.f32 %v2135, %v2136
      %v2138 = vrot.slane %v2137, 2
      %v2139 = vadd.f32 %v2137, %v2138
      %v2140 = vrot.slane %v2139, 1
      %v2141 = vadd.f32 %v2139, %v2140
      %v2142 = vsel %vm1276, %v2077, 0.0
      %v2143 = vsel %vm1278, %v2078, 0.0
      %v2144 = vadd.f32 %v2142, %v2143
      %v2145 = vrot.slane %v2144, 4
      %v2146 = vadd.f32 %v2144, %v2145
      %v2147 = vrot.slane %v2146, 2
      %v2148 = vadd.f32 %v2146, %v2147
      %v2149 = vrot.slane %v2148, 1
      %v2150 = vadd.f32 %v2148, %v2149
      %v2151 = vadd.f32 %v2087, %v1356
      %v2152 = vadd.f32 %v2096, %v1356
      %v2153 = vadd.f32 %v2105, %v1356
      %v2154 = vadd.f32 %v2114, %v1356
      %v2155 = vadd.f32 %v2123, %v1356
      %v2156 = vadd.f32 %v2132, %v1356
      %v2157 = vadd.f32 %v2141, %v1356
      %v2158 = vadd.f32 %v2150, %v1356
      %v2159 = vtanh.pop %v2151
      %v2160 = vtanh.pop %v2152
      %v2161 = vtanh.pop %v2153
      %v2162 = vtanh.pop %v2154
      %v2163 = vtanh.pop %v2155
      %v2164 = vtanh.pop %v2156
      %v2165 = vtanh.pop %v2157
      %v2166 = vtanh.pop %v2158
      %v2175 = vrot.slane %v2160, 7
      %v2176 = vsel %vm1383, %v2175, %v2159
      %v2177 = vrot.slane %v2161, 6
      %v2178 = vsel %vm1386, %v2177, %v2176
      %v2179 = vrot.slane %v2162, 5
      %v2180 = vsel %vm1389, %v2179, %v2178
      %v2181 = vrot.slane %v2163, 4
      %v2182 = vsel %vm1392, %v2181, %v2180
      %v2183 = vrot.slane %v2164, 3
      %v2184 = vsel %vm1395, %v2183, %v2182
      %v2185 = vrot.slane %v2165, 2
      %v2186 = vsel %vm1398, %v2185, %v2184
      %v2187 = vrot.slane %v2166, 1
      %v2188 = vsel %vm1401, %v2187, %v2186
      %2189 = vrot.lane.b32.xlu0 %v2188, 64
      %v2190 = vpop.permute.xlu0 %2189
      %v2192 = vmul.f32 %v1490, %v2190
      %v2193 = vld [vmem:[#allocation2 + $0x20] sm:$0xff]
      %v2194 = vld [vmem:[#allocation2 + $0x28] sm:$0xff]
      %2196 = vrot.lane.b32.xlu0 %v2192, 32
      %v2197 = vpop.permute.xlu0 %2196
      %v2198 = vsel %vm617, %v2197, 0
      %2200 = vmatprep.subr.mxu0 %v605
      %2201 = vmatpush1.msra.mxu0 %v604
      %2202 = vmatprep.subr.mxu0 %v607
      %2203 = vmatpush1.msra.mxu0 %v606
      %2204 = vmatprep.subr.mxu0 %v609
      %2205 = vmatpush1.msra.mxu0 %v608
      %2206 = vmatprep.subr.mxu0 %v611
      %2207 = vmatpush1.msra.mxu0 %v610
      %2208 = vmatprep.subr.mxu0 0.0
      %2209 = vmatpush1.msra.mxu0 0.0
      %2210 = vmatprep.subr.mxu0 0.0
      %2211 = vmatpush1.msra.mxu0 0.0
      %2212 = vmatprep.subr.mxu0 0.0
      %2213 = vmatpush1.msra.mxu0 0.0
      %2214 = vmatprep.subr.mxu0 0.0
      %2215 = vmatpush1.msra.mxu0 0.0
      %2216 = vmatprep.subr.mxu0 0.0
      %2217 = vmatpush1.msra.mxu0 0.0
      %2218 = vmatprep.subr.mxu0 0.0
      %2219 = vmatpush1.msra.mxu0 0.0
      %2220 = vmatprep.subr.mxu0 0.0
      %2221 = vmatpush1.msra.mxu0 0.0
      %2222 = vmatprep.subr.mxu0 0.0
      %2223 = vmatpush1.msra.mxu0 0.0
      %2224 = vmatprep.subr.mxu0 0.0
      %2225 = vmatpush1.msra.mxu0 0.0
      %2226 = vmatprep.subr.mxu0 0.0
      %2227 = vmatpush1.msra.mxu0 0.0
      %2228 = vmatprep.subr.mxu0 0.0
      %2229 = vmatpush1.msra.mxu0 0.0
      %2230 = vmatprep.subr.mxu0 0.0
      %2231 = vmatpush1.msra.mxu0 0.0
      %2232 = vmatprep.subr.mxu0 0.0
      %2233 = vmatpush1.msra.mxu0 0.0
      %2234 = vmatprep.subr.mxu0 0.0
      %2235 = vmatpush1.msra.mxu0 0.0
      %2236 = vmatprep.subr.mxu0 0.0
      %2237 = vmatpush1.msra.mxu0 0.0
      %2238 = vmatprep.subr.mxu0 0.0
      %2239 = vmatpush1.msra.mxu0 0.0
      %2240 = vmatprep.subr.mxu0 0.0
      %2241 = vmatpush1.msra.mxu0 0.0
      %2242 = vmatprep.subr.mxu0 0.0
      %2243 = vmatpush1.msra.mxu0 0.0
      %2244 = vmatprep.subr.mxu0 0.0
      %2245 = vmatpush1.msra.mxu0 0.0
      %2246 = vmatprep.subr.mxu0 0.0
      %2247 = vmatpush1.msra.mxu0 0.0
      %2248 = vmatprep.subr.mxu0 0.0
      %2249 = vmatpush1.msra.mxu0 0.0
      %2250 = vmatprep.subr.mxu0 0.0
      %2251 = vmatpush1.msra.mxu0 0.0
      %2252 = vmatprep.subr.mxu0 0.0
      %2253 = vmatpush1.msra.mxu0 0.0
      %2254 = vmatprep.subr.mxu0 0.0
      %2255 = vmatpush1.msra.mxu0 0.0
      %2256 = vmatprep.subr.mxu0 0.0
      %2257 = vmatpush1.msra.mxu0 0.0
      %2258 = vmatprep.subr.mxu0 0.0
      %2259 = vmatpush1.msra.mxu0 0.0
      %2260 = vmatprep.subr.mxu0 0.0
      %2261 = vmatpush1.msra.mxu0 0.0
      %2262 = vmatprep.subr.mxu0 0.0
      %2263 = vmatpush1.msra.mxu0 0.0
      %2264 = vmatprep.mubr.f32.mxu0 0.0
      %2265 = vmatmul.mubr.f32.gmra.mrb[0].mxu0 %v2198
      %v2266 = vpop.f32.mrb[0].mxu0
      %v2267 = vadd.f32 0.0, %v2266
      %v2268 = vpop.f32.mrb[0].mxu0
      %v2269 = vadd.f32 0.0, %v2268
      %2270 = vdwg.mxu0
      %v2271 = vadd.f32 %v2193, %v2267
      %v2272 = vadd.f32 %v2194, %v2269
      %v2273 = vmul.f32 %v2271, 0.16666667
      %v2274 = vadd.f32 %v2273, 0.5
      %v2275 = vmax.f32 %v2274, 0.0
      %v2276 = vmin.f32 %v2275, 1.0
      %v2277 = vtanh.pop %v2271
      %2279 = vrot.lane.b32.xlu0 %v2277, 64
      %v2280 = vpop.permute.xlu0 %2279
      %v2282 = vmul.f32 %v2276, %v2280
      %v2283 = vmul.f32 %v2272, 0.16666667
      %v2284 = vadd.f32 %v2283, 0.5
      %v2285 = vmax.f32 %v2284, 0.0
      %v2286 = vmin.f32 %v2285, 1.0
      %v2287 = vlaneseq
      %v2288 = vshrl.u32 %v2287, 7
      %v2289 = vsub.s32 0, %v2288
      %v2290 = vrot.slane %v2286, %v2289
      %2292 = vbcast.lane.b32.xlu0 %v2290, 256
      %v2293 = vpop.permute.xlu0 %2292
      %s2295 = sor.u32 256, 8
      %2296 = vbcast.lane.b32.xlu0 %v2290, %s2295
      %v2297 = vpop.permute.xlu0 %2296
      %v2298 = vlaneseq
      %v2299 = vshrl.u32 %v2298, 7
      %v2300 = vsub.s32 1, %v2299
      %v2301 = vrot.slane %v2286, %v2300
      %2303 = vbcast.lane.b32.xlu0 %v2301, 256
      %v2304 = vpop.permute.xlu0 %2303
      %s2306 = sor.u32 256, 8
      %2307 = vbcast.lane.b32.xlu0 %v2301, %s2306
      %v2308 = vpop.permute.xlu0 %2307
      %v2309 = vlaneseq
      %v2310 = vshrl.u32 %v2309, 7
      %v2311 = vsub.s32 2, %v2310
      %v2312 = vrot.slane %v2286, %v2311
      %2314 = vbcast.lane.b32.xlu0 %v2312, 256
      %v2315 = vpop.permute.xlu0 %2314
      %s2317 = sor.u32 256, 8
      %2318 = vbcast.lane.b32.xlu0 %v2312, %s2317
      %v2319 = vpop.permute.xlu0 %2318
      %v2320 = vlaneseq
      %v2321 = vshrl.u32 %v2320, 7
      %v2322 = vsub.s32 3, %v2321
      %v2323 = vrot.slane %v2286, %v2322
      %2325 = vbcast.lane.b32.xlu0 %v2323, 256
      %v2326 = vpop.permute.xlu0 %2325
      %s2328 = sor.u32 256, 8
      %2329 = vbcast.lane.b32.xlu0 %v2323, %s2328
      %v2330 = vpop.permute.xlu0 %2329
      %v2331 = vlaneseq
      %v2332 = vshrl.u32 %v2331, 7
      %v2333 = vsub.s32 4, %v2332
      %v2334 = vrot.slane %v2286, %v2333
      %2336 = vbcast.lane.b32.xlu0 %v2334, 256
      %v2337 = vpop.permute.xlu0 %2336
      %s2339 = sor.u32 256, 8
      %2340 = vbcast.lane.b32.xlu0 %v2334, %s2339
      %v2341 = vpop.permute.xlu0 %2340
      %v2342 = vlaneseq
      %v2343 = vshrl.u32 %v2342, 7
      %v2344 = vsub.s32 5, %v2343
      %v2345 = vrot.slane %v2286, %v2344
      %2347 = vbcast.lane.b32.xlu0 %v2345, 256
      %v2348 = vpop.permute.xlu0 %2347
      %s2350 = sor.u32 256, 8
      %2351 = vbcast.lane.b32.xlu0 %v2345, %s2350
      %v2352 = vpop.permute.xlu0 %2351
      %v2353 = vlaneseq
      %v2354 = vshrl.u32 %v2353, 7
      %v2355 = vsub.s32 6, %v2354
      %v2356 = vrot.slane %v2286, %v2355
      %2358 = vbcast.lane.b32.xlu0 %v2356, 256
      %v2359 = vpop.permute.xlu0 %2358
      %s2361 = sor.u32 256, 8
      %2362 = vbcast.lane.b32.xlu0 %v2356, %s2361
      %v2363 = vpop.permute.xlu0 %2362
      %v2364 = vlaneseq
      %v2365 = vshrl.u32 %v2364, 7
      %v2366 = vsub.s32 7, %v2365
      %v2367 = vrot.slane %v2286, %v2366
      %2369 = vbcast.lane.b32.xlu0 %v2367, 256
      %v2370 = vpop.permute.xlu0 %2369
      %s2372 = sor.u32 256, 8
      %2373 = vbcast.lane.b32.xlu0 %v2367, %s2372
      %v2374 = vpop.permute.xlu0 %2373
      %v2376 = vcombine.high %v2276, %v2276
      %v2378 = vunpack.c.l.s4 1966171168
      %v2379 = vunpack.c.0.s8 %v2378
      %v2380 = vlaneseq
      %v2381 = vshrl.u32 %v2380, 7
      %v2382 = vsub.s32 %v2379, %v2381
      %v2383 = vrot.slane %v2276, %v2382
      %v2385 = vunpack.c.l.s4 1966171168
      %v2386 = vunpack.c.0.s8 %v2385
      %v2387 = vlaneseq
      %v2388 = vshrl.u32 %v2387, 7
      %v2389 = vsub.s32 %v2386, %v2388
      %v2390 = vrot.slane %v2376, %v2389
      %v2391 = vcombine.high %v2383, %v2383
      %v2392 = vcombine.high %v2390, %v2390
      %v2394 = vunpack.c.l.s4 1966171168
      %v2395 = vunpack.c.0.s8 %v2394
      %v2396 = vlaneseq
      %v2397 = vshrl.u32 %v2396, 7
      %v2398 = vsub.s32 %v2395, %v2397
      %v2399 = vrot.slane %v2383, %v2398
      %v2401 = vunpack.c.l.s4 1966171168
      %v2402 = vunpack.c.0.s8 %v2401
      %v2403 = vlaneseq
      %v2404 = vshrl.u32 %v2403, 7
      %v2405 = vsub.s32 %v2402, %v2404
      %v2406 = vrot.slane %v2390, %v2405
      %v2408 = vunpack.c.l.s4 1966171168
      %v2409 = vunpack.c.0.s8 %v2408
      %v2410 = vlaneseq
      %v2411 = vshrl.u32 %v2410, 7
      %v2412 = vsub.s32 %v2409, %v2411
      %v2413 = vrot.slane %v2391, %v2412
      %v2415 = vunpack.c.l.s4 1966171168
      %v2416 = vunpack.c.0.s8 %v2415
      %v2417 = vlaneseq
      %v2418 = vshrl.u32 %v2417, 7
      %v2419 = vsub.s32 %v2416, %v2418
      %v2420 = vrot.slane %v2392, %v2419
      %v2421 = vcombine.high %v2399, %v2399
      %v2422 = vcombine.high %v2406, %v2406
      %v2423 = vcombine.high %v2413, %v2413
      %v2424 = vcombine.high %v2420, %v2420
      %v2425 = vlaneseq
      %v2426 = vshrl.u32 %v2425, 7
      %v2427 = vsub.s32 0, %v2426
      %v2428 = vrot.slane %v2399, %v2427
      %v2429 = vlaneseq
      %v2430 = vshrl.u32 %v2429, 7
      %v2431 = vsub.s32 0, %v2430
      %v2432 = vrot.slane %v2413, %v2431
      %v2433 = vlaneseq
      %v2434 = vshrl.u32 %v2433, 7
      %v2435 = vsub.s32 0, %v2434
      %v2436 = vrot.slane %v2421, %v2435
      %v2437 = vlaneseq
      %v2438 = vshrl.u32 %v2437, 7
      %v2439 = vsub.s32 0, %v2438
      %v2440 = vrot.slane %v2423, %v2439
      %v2441 = vlaneseq
      %v2442 = vshrl.u32 %v2441, 7
      %v2443 = vsub.s32 0, %v2442
      %v2444 = vrot.slane %v2406, %v2443
      %v2445 = vlaneseq
      %v2446 = vshrl.u32 %v2445, 7
      %v2447 = vsub.s32 0, %v2446
      %v2448 = vrot.slane %v2420, %v2447
      %v2449 = vlaneseq
      %v2450 = vshrl.u32 %v2449, 7
      %v2451 = vsub.s32 0, %v2450
      %v2452 = vrot.slane %v2422, %v2451
      %v2453 = vlaneseq
      %v2454 = vshrl.u32 %v2453, 7
      %v2455 = vsub.s32 0, %v2454
      %v2456 = vrot.slane %v2424, %v2455
      %v2465 = vmul.f32 %v2293, %v2428
      %v2466 = vmul.f32 %v2297, %v2428
      %v2467 = vmul.f32 %v2304, %v2432
      %v2468 = vmul.f32 %v2308, %v2432
      %v2469 = vmul.f32 %v2315, %v2436
      %v2470 = vmul.f32 %v2319, %v2436
      %v2471 = vmul.f32 %v2326, %v2440
      %v2472 = vmul.f32 %v2330, %v2440
      %v2473 = vmul.f32 %v2337, %v2444
      %v2474 = vmul.f32 %v2341, %v2444
      %v2475 = vmul.f32 %v2348, %v2448
      %v2476 = vmul.f32 %v2352, %v2448
      %v2477 = vmul.f32 %v2359, %v2452
      %v2478 = vmul.f32 %v2363, %v2452
      %v2479 = vmul.f32 %v2370, %v2456
      %v2480 = vmul.f32 %v2374, %v2456
      %v2482 = vcombine.high %v2282, %v2282
      %v2484 = vunpack.c.l.s4 1966171168
      %v2485 = vunpack.c.0.s8 %v2484
      %v2486 = vlaneseq
      %v2487 = vshrl.u32 %v2486, 7
      %v2488 = vsub.s32 %v2485, %v2487
      %v2489 = vrot.slane %v2282, %v2488
      %v2491 = vunpack.c.l.s4 1966171168
      %v2492 = vunpack.c.0.s8 %v2491
      %v2493 = vlaneseq
      %v2494 = vshrl.u32 %v2493, 7
      %v2495 = vsub.s32 %v2492, %v2494
      %v2496 = vrot.slane %v2482, %v2495
      %v2497 = vcombine.high %v2489, %v2489
      %v2498 = vcombine.high %v2496, %v2496
      %v2500 = vunpack.c.l.s4 1966171168
      %v2501 = vunpack.c.0.s8 %v2500
      %v2502 = vlaneseq
      %v2503 = vshrl.u32 %v2502, 7
      %v2504 = vsub.s32 %v2501, %v2503
      %v2505 = vrot.slane %v2489, %v2504
      %v2507 = vunpack.c.l.s4 1966171168
      %v2508 = vunpack.c.0.s8 %v2507
      %v2509 = vlaneseq
      %v2510 = vshrl.u32 %v2509, 7
      %v2511 = vsub.s32 %v2508, %v2510
      %v2512 = vrot.slane %v2496, %v2511
      %v2514 = vunpack.c.l.s4 1966171168
      %v2515 = vunpack.c.0.s8 %v2514
      %v2516 = vlaneseq
      %v2517 = vshrl.u32 %v2516, 7
      %v2518 = vsub.s32 %v2515, %v2517
      %v2519 = vrot.slane %v2497, %v2518
      %v2521 = vunpack.c.l.s4 1966171168
      %v2522 = vunpack.c.0.s8 %v2521
      %v2523 = vlaneseq
      %v2524 = vshrl.u32 %v2523, 7
      %v2525 = vsub.s32 %v2522, %v2524
      %v2526 = vrot.slane %v2498, %v2525
      %v2527 = vcombine.high %v2505, %v2505
      %v2528 = vcombine.high %v2512, %v2512
      %v2529 = vcombine.high %v2519, %v2519
      %v2530 = vcombine.high %v2526, %v2526
      %v2531 = vmul.f32 %v2465, %v1884
      %v2532 = vmul.f32 %v2466, %v1885
      %v2533 = vmul.f32 %v2467, %v1886
      %v2534 = vmul.f32 %v2468, %v1887
      %v2535 = vmul.f32 %v2469, %v1888
      %v2536 = vmul.f32 %v2470, %v1889
      %v2537 = vmul.f32 %v2471, %v1890
      %v2538 = vmul.f32 %v2472, %v1891
      %v2539 = vmul.f32 %v2473, %v1892
      %v2540 = vmul.f32 %v2474, %v1893
      %v2541 = vmul.f32 %v2475, %v1894
      %v2542 = vmul.f32 %v2476, %v1895
      %v2543 = vmul.f32 %v2477, %v1896
      %v2544 = vmul.f32 %v2478, %v1897
      %v2545 = vmul.f32 %v2479, %v1898
      %v2546 = vmul.f32 %v2480, %v1899
      %s2547 = scalar_lea.vmem %s1, 32
      %v2548 = vld [vmem:[%s2547] sm:$0xff]
      %v2549 = vld [vmem:[%s2547 + $0x8] sm:$0x3]
      %v2550 = vlaneseq
      %v2551 = vshrl.u32 %v2550, 7
      %v2552 = vsub.s32 0, %v2551
      %v2553 = vrot.slane %v2505, %v2552
      %v2554 = vlaneseq
      %v2555 = vshrl.u32 %v2554, 7
      %v2556 = vsub.s32 0, %v2555
      %v2557 = vrot.slane %v2519, %v2556
      %v2558 = vlaneseq
      %v2559 = vshrl.u32 %v2558, 7
      %v2560 = vsub.s32 0, %v2559
      %v2561 = vrot.slane %v2527, %v2560
      %v2562 = vlaneseq
      %v2563 = vshrl.u32 %v2562, 7
      %v2564 = vsub.s32 0, %v2563
      %v2565 = vrot.slane %v2529, %v2564
      %v2566 = vlaneseq
      %v2567 = vshrl.u32 %v2566, 7
      %v2568 = vsub.s32 0, %v2567
      %v2569 = vrot.slane %v2512, %v2568
      %v2570 = vlaneseq
      %v2571 = vshrl.u32 %v2570, 7
      %v2572 = vsub.s32 0, %v2571
      %v2573 = vrot.slane %v2526, %v2572
      %v2574 = vlaneseq
      %v2575 = vshrl.u32 %v2574, 7
      %v2576 = vsub.s32 0, %v2575
      %v2577 = vrot.slane %v2528, %v2576
      %v2578 = vlaneseq
      %v2579 = vshrl.u32 %v2578, 7
      %v2580 = vsub.s32 0, %v2579
      %v2581 = vrot.slane %v2530, %v2580
      %v2590 = vmul.f32 %v2553, %v2548
      %v2591 = vmul.f32 %v2553, %v2549
      %v2592 = vmul.f32 %v2557, %v2548
      %v2593 = vmul.f32 %v2557, %v2549
      %v2594 = vmul.f32 %v2561, %v2548
      %v2595 = vmul.f32 %v2561, %v2549
      %v2596 = vmul.f32 %v2565, %v2548
      %v2597 = vmul.f32 %v2565, %v2549
      %v2598 = vmul.f32 %v2569, %v2548
      %v2599 = vmul.f32 %v2569, %v2549
      %v2600 = vmul.f32 %v2573, %v2548
      %v2601 = vmul.f32 %v2573, %v2549
      %v2602 = vmul.f32 %v2577, %v2548
      %v2603 = vmul.f32 %v2577, %v2549
      %v2604 = vmul.f32 %v2581, %v2548
      %v2605 = vmul.f32 %v2581, %v2549
      %2622 = vrot.lane.b32.xlu0 %v2590, 32
      %v2623 = vpop.permute.xlu0 %2622
      %2624 = vrot.lane.b32.xlu0 %v2591, 32
      %v2625 = vpop.permute.xlu0 %2624
      %2626 = vrot.lane.b32.xlu0 %v2592, 32
      %v2627 = vpop.permute.xlu0 %2626
      %2628 = vrot.lane.b32.xlu0 %v2593, 32
      %v2629 = vpop.permute.xlu0 %2628
      %2630 = vrot.lane.b32.xlu0 %v2594, 32
      %v2631 = vpop.permute.xlu0 %2630
      %2632 = vrot.lane.b32.xlu0 %v2595, 32
      %v2633 = vpop.permute.xlu0 %2632
      %2634 = vrot.lane.b32.xlu0 %v2596, 32
      %v2635 = vpop.permute.xlu0 %2634
      %2636 = vrot.lane.b32.xlu0 %v2597, 32
      %v2637 = vpop.permute.xlu0 %2636
      %2638 = vrot.lane.b32.xlu0 %v2598, 32
      %v2639 = vpop.permute.xlu0 %2638
      %2640 = vrot.lane.b32.xlu0 %v2599, 32
      %v2641 = vpop.permute.xlu0 %2640
      %2642 = vrot.lane.b32.xlu0 %v2600, 32
      %v2643 = vpop.permute.xlu0 %2642
      %2644 = vrot.lane.b32.xlu0 %v2601, 32
      %v2645 = vpop.permute.xlu0 %2644
      %2646 = vrot.lane.b32.xlu0 %v2602, 32
      %v2647 = vpop.permute.xlu0 %2646
      %2648 = vrot.lane.b32.xlu0 %v2603, 32
      %v2649 = vpop.permute.xlu0 %2648
      %2650 = vrot.lane.b32.xlu0 %v2604, 32
      %v2651 = vpop.permute.xlu0 %2650
      %2652 = vrot.lane.b32.xlu0 %v2605, 32
      %v2653 = vpop.permute.xlu0 %2652
      %v2670 = vadd.f32 %v2531, %v2623
      %v2671 = vadd.f32 %v2532, %v2625
      %v2672 = vadd.f32 %v2533, %v2627
      %v2673 = vadd.f32 %v2534, %v2629
      %v2674 = vadd.f32 %v2535, %v2631
      %v2675 = vadd.f32 %v2536, %v2633
      %v2676 = vadd.f32 %v2537, %v2635
      %v2677 = vadd.f32 %v2538, %v2637
      %v2678 = vadd.f32 %v2539, %v2639
      %v2679 = vadd.f32 %v2540, %v2641
      %v2680 = vadd.f32 %v2541, %v2643
      %v2681 = vadd.f32 %v2542, %v2645
      %v2682 = vadd.f32 %v2543, %v2647
      %v2683 = vadd.f32 %v2544, %v2649
      %v2684 = vadd.f32 %v2545, %v2651
      %v2685 = vadd.f32 %v2546, %v2653
      %v2686 = vmul.f32 %v2465, %v1999
      %v2687 = vmul.f32 %v2466, %v2000
      %v2688 = vmul.f32 %v2467, %v2001
      %v2689 = vmul.f32 %v2468, %v2002
      %v2690 = vmul.f32 %v2469, %v2003
      %v2691 = vmul.f32 %v2470, %v2004
      %v2692 = vmul.f32 %v2471, %v2005
      %v2693 = vmul.f32 %v2472, %v2006
      %v2694 = vmul.f32 %v2473, %v2007
      %v2695 = vmul.f32 %v2474, %v2008
      %v2696 = vmul.f32 %v2475, %v2009
      %v2697 = vmul.f32 %v2476, %v2010
      %v2698 = vmul.f32 %v2477, %v2011
      %v2699 = vmul.f32 %v2478, %v2012
      %v2700 = vmul.f32 %v2479, %v2013
      %v2701 = vmul.f32 %v2480, %v2014
      %s2702 = scalar_lea.vmem %s2, 32
      %v2703 = vld [vmem:[%s2702] sm:$0xff]
      %v2704 = vld [vmem:[%s2702 + $0x8] sm:$0x3]
      %v2705 = vmul.f32 %v2553, %v2703
      %v2706 = vmul.f32 %v2553, %v2704
      %v2707 = vmul.f32 %v2557, %v2703
      %v2708 = vmul.f32 %v2557, %v2704
      %v2709 = vmul.f32 %v2561, %v2703
      %v2710 = vmul.f32 %v2561, %v2704
      %v2711 = vmul.f32 %v2565, %v2703
      %v2712 = vmul.f32 %v2565, %v2704
      %v2713 = vmul.f32 %v2569, %v2703
      %v2714 = vmul.f32 %v2569, %v2704
      %v2715 = vmul.f32 %v2573, %v2703
      %v2716 = vmul.f32 %v2573, %v2704
      %v2717 = vmul.f32 %v2577, %v2703
      %v2718 = vmul.f32 %v2577, %v2704
      %v2719 = vmul.f32 %v2581, %v2703
      %v2720 = vmul.f32 %v2581, %v2704
      %2737 = vrot.lane.b32.xlu0 %v2705, 32
      %v2738 = vpop.permute.xlu0 %2737
      %2739 = vrot.lane.b32.xlu0 %v2706, 32
      %v2740 = vpop.permute.xlu0 %2739
      %2741 = vrot.lane.b32.xlu0 %v2707, 32
      %v2742 = vpop.permute.xlu0 %2741
      %2743 = vrot.lane.b32.xlu0 %v2708, 32
      %v2744 = vpop.permute.xlu0 %2743
      %2745 = vrot.lane.b32.xlu0 %v2709, 32
      %v2746 = vpop.permute.xlu0 %2745
      %2747 = vrot.lane.b32.xlu0 %v2710, 32
      %v2748 = vpop.permute.xlu0 %2747
      %2749 = vrot.lane.b32.xlu0 %v2711, 32
      %v2750 = vpop.permute.xlu0 %2749
      %2751 = vrot.lane.b32.xlu0 %v2712, 32
      %v2752 = vpop.permute.xlu0 %2751
      %2753 = vrot.lane.b32.xlu0 %v2713, 32
      %v2754 = vpop.permute.xlu0 %2753
      %2755 = vrot.lane.b32.xlu0 %v2714, 32
      %v2756 = vpop.permute.xlu0 %2755
      %2757 = vrot.lane.b32.xlu0 %v2715, 32
      %v2758 = vpop.permute.xlu0 %2757
      %2759 = vrot.lane.b32.xlu0 %v2716, 32
      %v2760 = vpop.permute.xlu0 %2759
      %2761 = vrot.lane.b32.xlu0 %v2717, 32
      %v2762 = vpop.permute.xlu0 %2761
      %2763 = vrot.lane.b32.xlu0 %v2718, 32
      %v2764 = vpop.permute.xlu0 %2763
      %2765 = vrot.lane.b32.xlu0 %v2719, 32
      %v2766 = vpop.permute.xlu0 %2765
      %2767 = vrot.lane.b32.xlu0 %v2720, 32
      %v2768 = vpop.permute.xlu0 %2767
      %v2785 = vadd.f32 %v2686, %v2738
      %v2786 = vadd.f32 %v2687, %v2740
      %v2787 = vadd.f32 %v2688, %v2742
      %v2788 = vadd.f32 %v2689, %v2744
      %v2789 = vadd.f32 %v2690, %v2746
      %v2790 = vadd.f32 %v2691, %v2748
      %v2791 = vadd.f32 %v2692, %v2750
      %v2792 = vadd.f32 %v2693, %v2752
      %v2793 = vadd.f32 %v2694, %v2754
      %v2794 = vadd.f32 %v2695, %v2756
      %v2795 = vadd.f32 %v2696, %v2758
      %v2796 = vadd.f32 %v2697, %v2760
      %v2797 = vadd.f32 %v2698, %v2762
      %v2798 = vadd.f32 %v2699, %v2764
      %v2799 = vadd.f32 %v2700, %v2766
      %v2800 = vadd.f32 %v2701, %v2768
      %v2801 = vmul.f32 %v2670, %v2670
      %v2802 = vmul.f32 %v2671, %v2671
      %v2803 = vmul.f32 %v2672, %v2672
      %v2804 = vmul.f32 %v2673, %v2673
      %v2805 = vmul.f32 %v2674, %v2674
      %v2806 = vmul.f32 %v2675, %v2675
      %v2807 = vmul.f32 %v2676, %v2676
      %v2808 = vmul.f32 %v2677, %v2677
      %v2809 = vmul.f32 %v2678, %v2678
      %v2810 = vmul.f32 %v2679, %v2679
      %v2811 = vmul.f32 %v2680, %v2680
      %v2812 = vmul.f32 %v2681, %v2681
      %v2813 = vmul.f32 %v2682, %v2682
      %v2814 = vmul.f32 %v2683, %v2683
      %v2815 = vmul.f32 %v2684, %v2684
      %v2816 = vmul.f32 %v2685, %v2685
      %v2817 = vmul.f32 %v2785, %v2785
      %v2818 = vmul.f32 %v2786, %v2786
      %v2819 = vmul.f32 %v2787, %v2787
      %v2820 = vmul.f32 %v2788, %v2788
      %v2821 = vmul.f32 %v2789, %v2789
      %v2822 = vmul.f32 %v2790, %v2790
      %v2823 = vmul.f32 %v2791, %v2791
      %v2824 = vmul.f32 %v2792, %v2792
      %v2825 = vmul.f32 %v2793, %v2793
      %v2826 = vmul.f32 %v2794, %v2794
      %v2827 = vmul.f32 %v2795, %v2795
      %v2828 = vmul.f32 %v2796, %v2796
      %v2829 = vmul.f32 %v2797, %v2797
      %v2830 = vmul.f32 %v2798, %v2798
      %v2831 = vmul.f32 %v2799, %v2799
      %v2832 = vmul.f32 %v2800, %v2800
      %v2833 = vadd.f32 %v2801, %v2817
      %v2834 = vadd.f32 %v2802, %v2818
      %v2835 = vadd.f32 %v2803, %v2819
      %v2836 = vadd.f32 %v2804, %v2820
      %v2837 = vadd.f32 %v2805, %v2821
      %v2838 = vadd.f32 %v2806, %v2822
      %v2839 = vadd.f32 %v2807, %v2823
      %v2840 = vadd.f32 %v2808, %v2824
      %v2841 = vadd.f32 %v2809, %v2825
      %v2842 = vadd.f32 %v2810, %v2826
      %v2843 = vadd.f32 %v2811, %v2827
      %v2844 = vadd.f32 %v2812, %v2828
      %v2845 = vadd.f32 %v2813, %v2829
      %v2846 = vadd.f32 %v2814, %v2830
      %v2847 = vadd.f32 %v2815, %v2831
      %v2848 = vadd.f32 %v2816, %v2832
      %v2849 = vmul.f32 %v2833, %v1255
      %v2850 = vmul.f32 %v2834, %v1257
      %v2851 = vmul.f32 %v2835, %v1255
      %v2852 = vmul.f32 %v2836, %v1257
      %v2853 = vmul.f32 %v2837, %v1255
      %v2854 = vmul.f32 %v2838, %v1257
      %v2855 = vmul.f32 %v2839, %v1255
      %v2856 = vmul.f32 %v2840, %v1257
      %v2857 = vmul.f32 %v2841, %v1255
      %v2858 = vmul.f32 %v2842, %v1257
      %v2859 = vmul.f32 %v2843, %v1255
      %v2860 = vmul.f32 %v2844, %v1257
      %v2861 = vmul.f32 %v2845, %v1255
      %v2862 = vmul.f32 %v2846, %v1257
      %v2863 = vmul.f32 %v2847, %v1255
      %v2864 = vmul.f32 %v2848, %v1257
      %v2865 = vsel %vm1276, %v2849, 0.0
      %v2866 = vsel %vm1278, %v2850, 0.0
      %v2867 = vadd.f32 %v2865, %v2866
      %v2868 = vrot.slane %v2867, 4
      %v2869 = vadd.f32 %v2867, %v2868
      %v2870 = vrot.slane %v2869, 2
      %v2871 = vadd.f32 %v2869, %v2870
      %v2872 = vrot.slane %v2871, 1
      %v2873 = vadd.f32 %v2871, %v2872
      %v2874 = vsel %vm1276, %v2851, 0.0
      %v2875 = vsel %vm1278, %v2852, 0.0
      %v2876 = vadd.f32 %v2874, %v2875
      %v2877 = vrot.slane %v2876, 4
      %v2878 = vadd.f32 %v2876, %v2877
      %v2879 = vrot.slane %v2878, 2
      %v2880 = vadd.f32 %v2878, %v2879
      %v2881 = vrot.slane %v2880, 1
      %v2882 = vadd.f32 %v2880, %v2881
      %v2883 = vsel %vm1276, %v2853, 0.0
      %v2884 = vsel %vm1278, %v2854, 0.0
      %v2885 = vadd.f32 %v2883, %v2884
      %v2886 = vrot.slane %v2885, 4
      %v2887 = vadd.f32 %v2885, %v2886
      %v2888 = vrot.slane %v2887, 2
      %v2889 = vadd.f32 %v2887, %v2888
      %v2890 = vrot.slane %v2889, 1
      %v2891 = vadd.f32 %v2889, %v2890
      %v2892 = vsel %vm1276, %v2855, 0.0
      %v2893 = vsel %vm1278, %v2856, 0.0
      %v2894 = vadd.f32 %v2892, %v2893
      %v2895 = vrot.slane %v2894, 4
      %v2896 = vadd.f32 %v2894, %v2895
      %v2897 = vrot.slane %v2896, 2
      %v2898 = vadd.f32 %v2896, %v2897
      %v2899 = vrot.slane %v2898, 1
      %v2900 = vadd.f32 %v2898, %v2899
      %v2901 = vsel %vm1276, %v2857, 0.0
      %v2902 = vsel %vm1278, %v2858, 0.0
      %v2903 = vadd.f32 %v2901, %v2902
      %v2904 = vrot.slane %v2903, 4
      %v2905 = vadd.f32 %v2903, %v2904
      %v2906 = vrot.slane %v2905, 2
      %v2907 = vadd.f32 %v2905, %v2906
      %v2908 = vrot.slane %v2907, 1
      %v2909 = vadd.f32 %v2907, %v2908
      %v2910 = vsel %vm1276, %v2859, 0.0
      %v2911 = vsel %vm1278, %v2860, 0.0
      %v2912 = vadd.f32 %v2910, %v2911
      %v2913 = vrot.slane %v2912, 4
      %v2914 = vadd.f32 %v2912, %v2913
      %v2915 = vrot.slane %v2914, 2
      %v2916 = vadd.f32 %v2914, %v2915
      %v2917 = vrot.slane %v2916, 1
      %v2918 = vadd.f32 %v2916, %v2917
      %v2919 = vsel %vm1276, %v2861, 0.0
      %v2920 = vsel %vm1278, %v2862, 0.0
      %v2921 = vadd.f32 %v2919, %v2920
      %v2922 = vrot.slane %v2921, 4
      %v2923 = vadd.f32 %v2921, %v2922
      %v2924 = vrot.slane %v2923, 2
      %v2925 = vadd.f32 %v2923, %v2924
      %v2926 = vrot.slane %v2925, 1
      %v2927 = vadd.f32 %v2925, %v2926
      %v2928 = vsel %vm1276, %v2863, 0.0
      %v2929 = vsel %vm1278, %v2864, 0.0
      %v2930 = vadd.f32 %v2928, %v2929
      %v2931 = vrot.slane %v2930, 4
      %v2932 = vadd.f32 %v2930, %v2931
      %v2933 = vrot.slane %v2932, 2
      %v2934 = vadd.f32 %v2932, %v2933
      %v2935 = vrot.slane %v2934, 1
      %v2936 = vadd.f32 %v2934, %v2935
      %v2937 = vadd.f32 %v2873, %v1356
      %v2938 = vadd.f32 %v2882, %v1356
      %v2939 = vadd.f32 %v2891, %v1356
      %v2940 = vadd.f32 %v2900, %v1356
      %v2941 = vadd.f32 %v2909, %v1356
      %v2942 = vadd.f32 %v2918, %v1356
      %v2943 = vadd.f32 %v2927, %v1356
      %v2944 = vadd.f32 %v2936, %v1356
      %v2945 = vtanh.pop %v2937
      %v2946 = vtanh.pop %v2938
      %v2947 = vtanh.pop %v2939
      %v2948 = vtanh.pop %v2940
      %v2949 = vtanh.pop %v2941
      %v2950 = vtanh.pop %v2942
      %v2951 = vtanh.pop %v2943
      %v2952 = vtanh.pop %v2944
      %v2961 = vrot.slane %v2946, 7
      %v2962 = vsel %vm1383, %v2961, %v2945
      %v2963 = vrot.slane %v2947, 6
      %v2964 = vsel %vm1386, %v2963, %v2962
      %v2965 = vrot.slane %v2948, 5
      %v2966 = vsel %vm1389, %v2965, %v2964
      %v2967 = vrot.slane %v2949, 4
      %v2968 = vsel %vm1392, %v2967, %v2966
      %v2969 = vrot.slane %v2950, 3
      %v2970 = vsel %vm1395, %v2969, %v2968
      %v2971 = vrot.slane %v2951, 2
      %v2972 = vsel %vm1398, %v2971, %v2970
      %v2973 = vrot.slane %v2952, 1
      %v2974 = vsel %vm1401, %v2973, %v2972
      %2975 = vrot.lane.b32.xlu0 %v2974, 64
      %v2976 = vpop.permute.xlu0 %2975
      %v2978 = vmul.f32 %v2276, %v2976
      %v2979 = vld [vmem:[#allocation2 + $0x30] sm:$0xff]
      %v2980 = vld [vmem:[#allocation2 + $0x38] sm:$0xff]
      %2982 = vrot.lane.b32.xlu0 %v2978, 32
      %v2983 = vpop.permute.xlu0 %2982
      %v2984 = vsel %vm617, %v2983, 0
      %2986 = vmatprep.subr.mxu0 %v605
      %2987 = vmatpush1.msra.mxu0 %v604
      %2988 = vmatprep.subr.mxu0 %v607
      %2989 = vmatpush1.msra.mxu0 %v606
      %2990 = vmatprep.subr.mxu0 %v609
      %2991 = vmatpush1.msra.mxu0 %v608
      %2992 = vmatprep.subr.mxu0 %v611
      %2993 = vmatpush1.msra.mxu0 %v610
      %2994 = vmatprep.subr.mxu0 0.0
      %2995 = vmatpush1.msra.mxu0 0.0
      %2996 = vmatprep.subr.mxu0 0.0
      %2997 = vmatpush1.msra.mxu0 0.0
      %2998 = vmatprep.subr.mxu0 0.0
      %2999 = vmatpush1.msra.mxu0 0.0
      %3000 = vmatprep.subr.mxu0 0.0
      %3001 = vmatpush1.msra.mxu0 0.0
      %3002 = vmatprep.subr.mxu0 0.0
      %3003 = vmatpush1.msra.mxu0 0.0
      %3004 = vmatprep.subr.mxu0 0.0
      %3005 = vmatpush1.msra.mxu0 0.0
      %3006 = vmatprep.subr.mxu0 0.0
      %3007 = vmatpush1.msra.mxu0 0.0
      %3008 = vmatprep.subr.mxu0 0.0
      %3009 = vmatpush1.msra.mxu0 0.0
      %3010 = vmatprep.subr.mxu0 0.0
      %3011 = vmatpush1.msra.mxu0 0.0
      %3012 = vmatprep.subr.mxu0 0.0
      %3013 = vmatpush1.msra.mxu0 0.0
      %3014 = vmatprep.subr.mxu0 0.0
      %3015 = vmatpush1.msra.mxu0 0.0
      %3016 = vmatprep.subr.mxu0 0.0
      %3017 = vmatpush1.msra.mxu0 0.0
      %3018 = vmatprep.subr.mxu0 0.0
      %3019 = vmatpush1.msra.mxu0 0.0
      %3020 = vmatprep.subr.mxu0 0.0
      %3021 = vmatpush1.msra.mxu0 0.0
      %3022 = vmatprep.subr.mxu0 0.0
      %3023 = vmatpush1.msra.mxu0 0.0
      %3024 = vmatprep.subr.mxu0 0.0
      %3025 = vmatpush1.msra.mxu0 0.0
      %3026 = vmatprep.subr.mxu0 0.0
      %3027 = vmatpush1.msra.mxu0 0.0
      %3028 = vmatprep.subr.mxu0 0.0
      %3029 = vmatpush1.msra.mxu0 0.0
      %3030 = vmatprep.subr.mxu0 0.0
      %3031 = vmatpush1.msra.mxu0 0.0
      %3032 = vmatprep.subr.mxu0 0.0
      %3033 = vmatpush1.msra.mxu0 0.0
      %3034 = vmatprep.subr.mxu0 0.0
      %3035 = vmatpush1.msra.mxu0 0.0
      %3036 = vmatprep.subr.mxu0 0.0
      %3037 = vmatpush1.msra.mxu0 0.0
      %3038 = vmatprep.subr.mxu0 0.0
      %3039 = vmatpush1.msra.mxu0 0.0
      %3040 = vmatprep.subr.mxu0 0.0
      %3041 = vmatpush1.msra.mxu0 0.0
      %3042 = vmatprep.subr.mxu0 0.0
      %3043 = vmatpush1.msra.mxu0 0.0
      %3044 = vmatprep.subr.mxu0 0.0
      %3045 = vmatpush1.msra.mxu0 0.0
      %3046 = vmatprep.subr.mxu0 0.0
      %3047 = vmatpush1.msra.mxu0 0.0
      %3048 = vmatprep.subr.mxu0 0.0
      %3049 = vmatpush1.msra.mxu0 0.0
      %3050 = vmatprep.mubr.f32.mxu0 0.0
      %3051 = vmatmul.mubr.f32.gmra.mrb[0].mxu0 %v2984
      %v3052 = vpop.f32.mrb[0].mxu0
      %v3053 = vadd.f32 0.0, %v3052
      %v3054 = vpop.f32.mrb[0].mxu0
      %v3055 = vadd.f32 0.0, %v3054
      %3056 = vdwg.mxu0
      %v3057 = vadd.f32 %v2979, %v3053
      %v3058 = vadd.f32 %v2980, %v3055
      %v3059 = vmul.f32 %v3057, 0.16666667
      %v3060 = vadd.f32 %v3059, 0.5
      %v3061 = vmax.f32 %v3060, 0.0
      %v3062 = vmin.f32 %v3061, 1.0
      %v3063 = vtanh.pop %v3057
      %3065 = vrot.lane.b32.xlu0 %v3063, 64
      %v3066 = vpop.permute.xlu0 %3065
      %v3068 = vmul.f32 %v3062, %v3066
      %v3069 = vmul.f32 %v3058, 0.16666667
      %v3070 = vadd.f32 %v3069, 0.5
      %v3071 = vmax.f32 %v3070, 0.0
      %v3072 = vmin.f32 %v3071, 1.0
      %v3073 = vlaneseq
      %v3074 = vshrl.u32 %v3073, 7
      %v3075 = vsub.s32 0, %v3074
      %v3076 = vrot.slane %v3072, %v3075
      %3078 = vbcast.lane.b32.xlu0 %v3076, 256
      %v3079 = vpop.permute.xlu0 %3078
      %s3081 = sor.u32 256, 8
      %3082 = vbcast.lane.b32.xlu0 %v3076, %s3081
      %v3083 = vpop.permute.xlu0 %3082
      %v3084 = vlaneseq
      %v3085 = vshrl.u32 %v3084, 7
      %v3086 = vsub.s32 1, %v3085
      %v3087 = vrot.slane %v3072, %v3086
      %3089 = vbcast.lane.b32.xlu0 %v3087, 256
      %v3090 = vpop.permute.xlu0 %3089
      %s3092 = sor.u32 256, 8
      %3093 = vbcast.lane.b32.xlu0 %v3087, %s3092
      %v3094 = vpop.permute.xlu0 %3093
      %v3095 = vlaneseq
      %v3096 = vshrl.u32 %v3095, 7
      %v3097 = vsub.s32 2, %v3096
      %v3098 = vrot.slane %v3072, %v3097
      %3100 = vbcast.lane.b32.xlu0 %v3098, 256
      %v3101 = vpop.permute.xlu0 %3100
      %s3103 = sor.u32 256, 8
      %3104 = vbcast.lane.b32.xlu0 %v3098, %s3103
      %v3105 = vpop.permute.xlu0 %3104
      %v3106 = vlaneseq
      %v3107 = vshrl.u32 %v3106, 7
      %v3108 = vsub.s32 3, %v3107
      %v3109 = vrot.slane %v3072, %v3108
      %3111 = vbcast.lane.b32.xlu0 %v3109, 256
      %v3112 = vpop.permute.xlu0 %3111
      %s3114 = sor.u32 256, 8
      %3115 = vbcast.lane.b32.xlu0 %v3109, %s3114
      %v3116 = vpop.permute.xlu0 %3115
      %v3117 = vlaneseq
      %v3118 = vshrl.u32 %v3117, 7
      %v3119 = vsub.s32 4, %v3118
      %v3120 = vrot.slane %v3072, %v3119
      %3122 = vbcast.lane.b32.xlu0 %v3120, 256
      %v3123 = vpop.permute.xlu0 %3122
      %s3125 = sor.u32 256, 8
      %3126 = vbcast.lane.b32.xlu0 %v3120, %s3125
      %v3127 = vpop.permute.xlu0 %3126
      %v3128 = vlaneseq
      %v3129 = vshrl.u32 %v3128, 7
      %v3130 = vsub.s32 5, %v3129
      %v3131 = vrot.slane %v3072, %v3130
      %3133 = vbcast.lane.b32.xlu0 %v3131, 256
      %v3134 = vpop.permute.xlu0 %3133
      %s3136 = sor.u32 256, 8
      %3137 = vbcast.lane.b32.xlu0 %v3131, %s3136
      %v3138 = vpop.permute.xlu0 %3137
      %v3139 = vlaneseq
      %v3140 = vshrl.u32 %v3139, 7
      %v3141 = vsub.s32 6, %v3140
      %v3142 = vrot.slane %v3072, %v3141
      %3144 = vbcast.lane.b32.xlu0 %v3142, 256
      %v3145 = vpop.permute.xlu0 %3144
      %s3147 = sor.u32 256, 8
      %3148 = vbcast.lane.b32.xlu0 %v3142, %s3147
      %v3149 = vpop.permute.xlu0 %3148
      %v3150 = vlaneseq
      %v3151 = vshrl.u32 %v3150, 7
      %v3152 = vsub.s32 7, %v3151
      %v3153 = vrot.slane %v3072, %v3152
      %3155 = vbcast.lane.b32.xlu0 %v3153, 256
      %v3156 = vpop.permute.xlu0 %3155
      %s3158 = sor.u32 256, 8
      %3159 = vbcast.lane.b32.xlu0 %v3153, %s3158
      %v3160 = vpop.permute.xlu0 %3159
      %v3162 = vcombine.high %v3062, %v3062
      %v3164 = vunpack.c.l.s4 1966171168
      %v3165 = vunpack.c.0.s8 %v3164
      %v3166 = vlaneseq
      %v3167 = vshrl.u32 %v3166, 7
      %v3168 = vsub.s32 %v3165, %v3167
      %v3169 = vrot.slane %v3062, %v3168
      %v3171 = vunpack.c.l.s4 1966171168
      %v3172 = vunpack.c.0.s8 %v3171
      %v3173 = vlaneseq
      %v3174 = vshrl.u32 %v3173, 7
      %v3175 = vsub.s32 %v3172, %v3174
      %v3176 = vrot.slane %v3162, %v3175
      %v3177 = vcombine.high %v3169, %v3169
      %v3178 = vcombine.high %v3176, %v3176
      %v3180 = vunpack.c.l.s4 1966171168
      %v3181 = vunpack.c.0.s8 %v3180
      %v3182 = vlaneseq
      %v3183 = vshrl.u32 %v3182, 7
      %v3184 = vsub.s32 %v3181, %v3183
      %v3185 = vrot.slane %v3169, %v3184
      %v3187 = vunpack.c.l.s4 1966171168
      %v3188 = vunpack.c.0.s8 %v3187
      %v3189 = vlaneseq
      %v3190 = vshrl.u32 %v3189, 7
      %v3191 = vsub.s32 %v3188, %v3190
      %v3192 = vrot.slane %v3176, %v3191
      %v3194 = vunpack.c.l.s4 1966171168
      %v3195 = vunpack.c.0.s8 %v3194
      %v3196 = vlaneseq
      %v3197 = vshrl.u32 %v3196, 7
      %v3198 = vsub.s32 %v3195, %v3197
      %v3199 = vrot.slane %v3177, %v3198
      %v3201 = vunpack.c.l.s4 1966171168
      %v3202 = vunpack.c.0.s8 %v3201
      %v3203 = vlaneseq
      %v3204 = vshrl.u32 %v3203, 7
      %v3205 = vsub.s32 %v3202, %v3204
      %v3206 = vrot.slane %v3178, %v3205
      %v3207 = vcombine.high %v3185, %v3185
      %v3208 = vcombine.high %v3192, %v3192
      %v3209 = vcombine.high %v3199, %v3199
      %v3210 = vcombine.high %v3206, %v3206
      %v3211 = vlaneseq
      %v3212 = vshrl.u32 %v3211, 7
      %v3213 = vsub.s32 0, %v3212
      %v3214 = vrot.slane %v3185, %v3213
      %v3215 = vlaneseq
      %v3216 = vshrl.u32 %v3215, 7
      %v3217 = vsub.s32 0, %v3216
      %v3218 = vrot.slane %v3199, %v3217
      %v3219 = vlaneseq
      %v3220 = vshrl.u32 %v3219, 7
      %v3221 = vsub.s32 0, %v3220
      %v3222 = vrot.slane %v3207, %v3221
      %v3223 = vlaneseq
      %v3224 = vshrl.u32 %v3223, 7
      %v3225 = vsub.s32 0, %v3224
      %v3226 = vrot.slane %v3209, %v3225
      %v3227 = vlaneseq
      %v3228 = vshrl.u32 %v3227, 7
      %v3229 = vsub.s32 0, %v3228
      %v3230 = vrot.slane %v3192, %v3229
      %v3231 = vlaneseq
      %v3232 = vshrl.u32 %v3231, 7
      %v3233 = vsub.s32 0, %v3232
      %v3234 = vrot.slane %v3206, %v3233
      %v3235 = vlaneseq
      %v3236 = vshrl.u32 %v3235, 7
      %v3237 = vsub.s32 0, %v3236
      %v3238 = vrot.slane %v3208, %v3237
      %v3239 = vlaneseq
      %v3240 = vshrl.u32 %v3239, 7
      %v3241 = vsub.s32 0, %v3240
      %v3242 = vrot.slane %v3210, %v3241
      %v3251 = vmul.f32 %v3079, %v3214
      %v3252 = vmul.f32 %v3083, %v3214
      %v3253 = vmul.f32 %v3090, %v3218
      %v3254 = vmul.f32 %v3094, %v3218
      %v3255 = vmul.f32 %v3101, %v3222
      %v3256 = vmul.f32 %v3105, %v3222
      %v3257 = vmul.f32 %v3112, %v3226
      %v3258 = vmul.f32 %v3116, %v3226
      %v3259 = vmul.f32 %v3123, %v3230
      %v3260 = vmul.f32 %v3127, %v3230
      %v3261 = vmul.f32 %v3134, %v3234
      %v3262 = vmul.f32 %v3138, %v3234
      %v3263 = vmul.f32 %v3145, %v3238
      %v3264 = vmul.f32 %v3149, %v3238
      %v3265 = vmul.f32 %v3156, %v3242
      %v3266 = vmul.f32 %v3160, %v3242
      %v3268 = vcombine.high %v3068, %v3068
      %v3270 = vunpack.c.l.s4 1966171168
      %v3271 = vunpack.c.0.s8 %v3270
      %v3272 = vlaneseq
      %v3273 = vshrl.u32 %v3272, 7
      %v3274 = vsub.s32 %v3271, %v3273
      %v3275 = vrot.slane %v3068, %v3274
      %v3277 = vunpack.c.l.s4 1966171168
      %v3278 = vunpack.c.0.s8 %v3277
      %v3279 = vlaneseq
      %v3280 = vshrl.u32 %v3279, 7
      %v3281 = vsub.s32 %v3278, %v3280
      %v3282 = vrot.slane %v3268, %v3281
      %v3283 = vcombine.high %v3275, %v3275
      %v3284 = vcombine.high %v3282, %v3282
      %v3286 = vunpack.c.l.s4 1966171168
      %v3287 = vunpack.c.0.s8 %v3286
      %v3288 = vlaneseq
      %v3289 = vshrl.u32 %v3288, 7
      %v3290 = vsub.s32 %v3287, %v3289
      %v3291 = vrot.slane %v3275, %v3290
      %v3293 = vunpack.c.l.s4 1966171168
      %v3294 = vunpack.c.0.s8 %v3293
      %v3295 = vlaneseq
      %v3296 = vshrl.u32 %v3295, 7
      %v3297 = vsub.s32 %v3294, %v3296
      %v3298 = vrot.slane %v3282, %v3297
      %v3300 = vunpack.c.l.s4 1966171168
      %v3301 = vunpack.c.0.s8 %v3300
      %v3302 = vlaneseq
      %v3303 = vshrl.u32 %v3302, 7
      %v3304 = vsub.s32 %v3301, %v3303
      %v3305 = vrot.slane %v3283, %v3304
      %v3307 = vunpack.c.l.s4 1966171168
      %v3308 = vunpack.c.0.s8 %v3307
      %v3309 = vlaneseq
      %v3310 = vshrl.u32 %v3309, 7
      %v3311 = vsub.s32 %v3308, %v3310
      %v3312 = vrot.slane %v3284, %v3311
      %v3313 = vcombine.high %v3291, %v3291
      %v3314 = vcombine.high %v3298, %v3298
      %v3315 = vcombine.high %v3305, %v3305
      %v3316 = vcombine.high %v3312, %v3312
      %v3317 = vmul.f32 %v3251, %v2670
      %v3318 = vmul.f32 %v3252, %v2671
      %v3319 = vmul.f32 %v3253, %v2672
      %v3320 = vmul.f32 %v3254, %v2673
      %v3321 = vmul.f32 %v3255, %v2674
      %v3322 = vmul.f32 %v3256, %v2675
      %v3323 = vmul.f32 %v3257, %v2676
      %v3324 = vmul.f32 %v3258, %v2677
      %v3325 = vmul.f32 %v3259, %v2678
      %v3326 = vmul.f32 %v3260, %v2679
      %v3327 = vmul.f32 %v3261, %v2680
      %v3328 = vmul.f32 %v3262, %v2681
      %v3329 = vmul.f32 %v3263, %v2682
      %v3330 = vmul.f32 %v3264, %v2683
      %v3331 = vmul.f32 %v3265, %v2684
      %v3332 = vmul.f32 %v3266, %v2685
      %s3333 = scalar_lea.vmem %s1, 48
      %v3334 = vld [vmem:[%s3333] sm:$0xff]
      %v3335 = vld [vmem:[%s3333 + $0x8] sm:$0x3]
      %v3336 = vlaneseq
      %v3337 = vshrl.u32 %v3336, 7
      %v3338 = vsub.s32 0, %v3337
      %v3339 = vrot.slane %v3291, %v3338
      %v3340 = vlaneseq
      %v3341 = vshrl.u32 %v3340, 7
      %v3342 = vsub.s32 0, %v3341
      %v3343 = vrot.slane %v3305, %v3342
      %v3344 = vlaneseq
      %v3345 = vshrl.u32 %v3344, 7
      %v3346 = vsub.s32 0, %v3345
      %v3347 = vrot.slane %v3313, %v3346
      %v3348 = vlaneseq
      %v3349 = vshrl.u32 %v3348, 7
      %v3350 = vsub.s32 0, %v3349
      %v3351 = vrot.slane %v3315, %v3350
      %v3352 = vlaneseq
      %v3353 = vshrl.u32 %v3352, 7
      %v3354 = vsub.s32 0, %v3353
      %v3355 = vrot.slane %v3298, %v3354
      %v3356 = vlaneseq
      %v3357 = vshrl.u32 %v3356, 7
      %v3358 = vsub.s32 0, %v3357
      %v3359 = vrot.slane %v3312, %v3358
      %v3360 = vlaneseq
      %v3361 = vshrl.u32 %v3360, 7
      %v3362 = vsub.s32 0, %v3361
      %v3363 = vrot.slane %v3314, %v3362
      %v3364 = vlaneseq
      %v3365 = vshrl.u32 %v3364, 7
      %v3366 = vsub.s32 0, %v3365
      %v3367 = vrot.slane %v3316, %v3366
      %v3376 = vmul.f32 %v3339, %v3334
      %v3377 = vmul.f32 %v3339, %v3335
      %v3378 = vmul.f32 %v3343, %v3334
      %v3379 = vmul.f32 %v3343, %v3335
      %v3380 = vmul.f32 %v3347, %v3334
      %v3381 = vmul.f32 %v3347, %v3335
      %v3382 = vmul.f32 %v3351, %v3334
      %v3383 = vmul.f32 %v3351, %v3335
      %v3384 = vmul.f32 %v3355, %v3334
      %v3385 = vmul.f32 %v3355, %v3335
      %v3386 = vmul.f32 %v3359, %v3334
      %v3387 = vmul.f32 %v3359, %v3335
      %v3388 = vmul.f32 %v3363, %v3334
      %v3389 = vmul.f32 %v3363, %v3335
      %v3390 = vmul.f32 %v3367, %v3334
      %v3391 = vmul.f32 %v3367, %v3335
      %3408 = vrot.lane.b32.xlu0 %v3376, 32
      %v3409 = vpop.permute.xlu0 %3408
      %3410 = vrot.lane.b32.xlu0 %v3377, 32
      %v3411 = vpop.permute.xlu0 %3410
      %3412 = vrot.lane.b32.xlu0 %v3378, 32
      %v3413 = vpop.permute.xlu0 %3412
      %3414 = vrot.lane.b32.xlu0 %v3379, 32
      %v3415 = vpop.permute.xlu0 %3414
      %3416 = vrot.lane.b32.xlu0 %v3380, 32
      %v3417 = vpop.permute.xlu0 %3416
      %3418 = vrot.lane.b32.xlu0 %v3381, 32
      %v3419 = vpop.permute.xlu0 %3418
      %3420 = vrot.lane.b32.xlu0 %v3382, 32
      %v3421 = vpop.permute.xlu0 %3420
      %3422 = vrot.lane.b32.xlu0 %v3383, 32
      %v3423 = vpop.permute.xlu0 %3422
      %3424 = vrot.lane.b32.xlu0 %v3384, 32
      %v3425 = vpop.permute.xlu0 %3424
      %3426 = vrot.lane.b32.xlu0 %v3385, 32
      %v3427 = vpop.permute.xlu0 %3426
      %3428 = vrot.lane.b32.xlu0 %v3386, 32
      %v3429 = vpop.permute.xlu0 %3428
      %3430 = vrot.lane.b32.xlu0 %v3387, 32
      %v3431 = vpop.permute.xlu0 %3430
      %3432 = vrot.lane.b32.xlu0 %v3388, 32
      %v3433 = vpop.permute.xlu0 %3432
      %3434 = vrot.lane.b32.xlu0 %v3389, 32
      %v3435 = vpop.permute.xlu0 %3434
      %3436 = vrot.lane.b32.xlu0 %v3390, 32
      %v3437 = vpop.permute.xlu0 %3436
      %3438 = vrot.lane.b32.xlu0 %v3391, 32
      %v3439 = vpop.permute.xlu0 %3438
      %v3456 = vadd.f32 %v3317, %v3409
      %v3457 = vadd.f32 %v3318, %v3411
      %v3458 = vadd.f32 %v3319, %v3413
      %v3459 = vadd.f32 %v3320, %v3415
      %v3460 = vadd.f32 %v3321, %v3417
      %v3461 = vadd.f32 %v3322, %v3419
      %v3462 = vadd.f32 %v3323, %v3421
      %v3463 = vadd.f32 %v3324, %v3423
      %v3464 = vadd.f32 %v3325, %v3425
      %v3465 = vadd.f32 %v3326, %v3427
      %v3466 = vadd.f32 %v3327, %v3429
      %v3467 = vadd.f32 %v3328, %v3431
      %v3468 = vadd.f32 %v3329, %v3433
      %v3469 = vadd.f32 %v3330, %v3435
      %v3470 = vadd.f32 %v3331, %v3437
      %v3471 = vadd.f32 %v3332, %v3439
      %v3472 = vmul.f32 %v3251, %v2785
      %v3473 = vmul.f32 %v3252, %v2786
      %v3474 = vmul.f32 %v3253, %v2787
      %v3475 = vmul.f32 %v3254, %v2788
      %v3476 = vmul.f32 %v3255, %v2789
      %v3477 = vmul.f32 %v3256, %v2790
      %v3478 = vmul.f32 %v3257, %v2791
      %v3479 = vmul.f32 %v3258, %v2792
      %v3480 = vmul.f32 %v3259, %v2793
      %v3481 = vmul.f32 %v3260, %v2794
      %v3482 = vmul.f32 %v3261, %v2795
      %v3483 = vmul.f32 %v3262, %v2796
      %v3484 = vmul.f32 %v3263, %v2797
      %v3485 = vmul.f32 %v3264, %v2798
      %v3486 = vmul.f32 %v3265, %v2799
      %v3487 = vmul.f32 %v3266, %v2800
      %s3488 = scalar_lea.vmem %s2, 48
      %v3489 = vld [vmem:[%s3488] sm:$0xff]
      %v3490 = vld [vmem:[%s3488 + $0x8] sm:$0x3]
      %v3491 = vmul.f32 %v3339, %v3489
      %v3492 = vmul.f32 %v3339, %v3490
      %v3493 = vmul.f32 %v3343, %v3489
      %v3494 = vmul.f32 %v3343, %v3490
      %v3495 = vmul.f32 %v3347, %v3489
      %v3496 = vmul.f32 %v3347, %v3490
      %v3497 = vmul.f32 %v3351, %v3489
      %v3498 = vmul.f32 %v3351, %v3490
      %v3499 = vmul.f32 %v3355, %v3489
      %v3500 = vmul.f32 %v3355, %v3490
      %v3501 = vmul.f32 %v3359, %v3489
      %v3502 = vmul.f32 %v3359, %v3490
      %v3503 = vmul.f32 %v3363, %v3489
      %v3504 = vmul.f32 %v3363, %v3490
      %v3505 = vmul.f32 %v3367, %v3489
      %v3506 = vmul.f32 %v3367, %v3490
      %3523 = vrot.lane.b32.xlu0 %v3491, 32
      %v3524 = vpop.permute.xlu0 %3523
      %3525 = vrot.lane.b32.xlu0 %v3492, 32
      %v3526 = vpop.permute.xlu0 %3525
      %3527 = vrot.lane.b32.xlu0 %v3493, 32
      %v3528 = vpop.permute.xlu0 %3527
      %3529 = vrot.lane.b32.xlu0 %v3494, 32
      %v3530 = vpop.permute.xlu0 %3529
      %3531 = vrot.lane.b32.xlu0 %v3495, 32
      %v3532 = vpop.permute.xlu0 %3531
      %3533 = vrot.lane.b32.xlu0 %v3496, 32
      %v3534 = vpop.permute.xlu0 %3533
      %3535 = vrot.lane.b32.xlu0 %v3497, 32
      %v3536 = vpop.permute.xlu0 %3535
      %3537 = vrot.lane.b32.xlu0 %v3498, 32
      %v3538 = vpop.permute.xlu0 %3537
      %3539 = vrot.lane.b32.xlu0 %v3499, 32
      %v3540 = vpop.permute.xlu0 %3539
      %3541 = vrot.lane.b32.xlu0 %v3500, 32
      %v3542 = vpop.permute.xlu0 %3541
      %3543 = vrot.lane.b32.xlu0 %v3501, 32
      %v3544 = vpop.permute.xlu0 %3543
      %3545 = vrot.lane.b32.xlu0 %v3502, 32
      %v3546 = vpop.permute.xlu0 %3545
      %3547 = vrot.lane.b32.xlu0 %v3503, 32
      %v3548 = vpop.permute.xlu0 %3547
      %3549 = vrot.lane.b32.xlu0 %v3504, 32
      %v3550 = vpop.permute.xlu0 %3549
      %3551 = vrot.lane.b32.xlu0 %v3505, 32
      %v3552 = vpop.permute.xlu0 %3551
      %3553 = vrot.lane.b32.xlu0 %v3506, 32
      %v3554 = vpop.permute.xlu0 %3553
      %v3571 = vadd.f32 %v3472, %v3524
      %v3572 = vadd.f32 %v3473, %v3526
      %v3573 = vadd.f32 %v3474, %v3528
      %v3574 = vadd.f32 %v3475, %v3530
      %v3575 = vadd.f32 %v3476, %v3532
      %v3576 = vadd.f32 %v3477, %v3534
      %v3577 = vadd.f32 %v3478, %v3536
      %v3578 = vadd.f32 %v3479, %v3538
      %v3579 = vadd.f32 %v3480, %v3540
      %v3580 = vadd.f32 %v3481, %v3542
      %v3581 = vadd.f32 %v3482, %v3544
      %v3582 = vadd.f32 %v3483, %v3546
      %v3583 = vadd.f32 %v3484, %v3548
      %v3584 = vadd.f32 %v3485, %v3550
      %v3585 = vadd.f32 %v3486, %v3552
      %v3586 = vadd.f32 %v3487, %v3554
      %v3587 = vmul.f32 %v3456, %v3456
      %v3588 = vmul.f32 %v3457, %v3457
      %v3589 = vmul.f32 %v3458, %v3458
      %v3590 = vmul.f32 %v3459, %v3459
      %v3591 = vmul.f32 %v3460, %v3460
      %v3592 = vmul.f32 %v3461, %v3461
      %v3593 = vmul.f32 %v3462, %v3462
      %v3594 = vmul.f32 %v3463, %v3463
      %v3595 = vmul.f32 %v3464, %v3464
      %v3596 = vmul.f32 %v3465, %v3465
      %v3597 = vmul.f32 %v3466, %v3466
      %v3598 = vmul.f32 %v3467, %v3467
      %v3599 = vmul.f32 %v3468, %v3468
      %v3600 = vmul.f32 %v3469, %v3469
      %v3601 = vmul.f32 %v3470, %v3470
      %v3602 = vmul.f32 %v3471, %v3471
      %v3603 = vmul.f32 %v3571, %v3571
      %v3604 = vmul.f32 %v3572, %v3572
      %v3605 = vmul.f32 %v3573, %v3573
      %v3606 = vmul.f32 %v3574, %v3574
      %v3607 = vmul.f32 %v3575, %v3575
      %v3608 = vmul.f32 %v3576, %v3576
      %v3609 = vmul.f32 %v3577, %v3577
      %v3610 = vmul.f32 %v3578, %v3578
      %v3611 = vmul.f32 %v3579, %v3579
      %v3612 = vmul.f32 %v3580, %v3580
      %v3613 = vmul.f32 %v3581, %v3581
      %v3614 = vmul.f32 %v3582, %v3582
      %v3615 = vmul.f32 %v3583, %v3583
      %v3616 = vmul.f32 %v3584, %v3584
      %v3617 = vmul.f32 %v3585, %v3585
      %v3618 = vmul.f32 %v3586, %v3586
      %v3619 = vadd.f32 %v3587, %v3603
      %v3620 = vadd.f32 %v3588, %v3604
      %v3621 = vadd.f32 %v3589, %v3605
      %v3622 = vadd.f32 %v3590, %v3606
      %v3623 = vadd.f32 %v3591, %v3607
      %v3624 = vadd.f32 %v3592, %v3608
      %v3625 = vadd.f32 %v3593, %v3609
      %v3626 = vadd.f32 %v3594, %v3610
      %v3627 = vadd.f32 %v3595, %v3611
      %v3628 = vadd.f32 %v3596, %v3612
      %v3629 = vadd.f32 %v3597, %v3613
      %v3630 = vadd.f32 %v3598, %v3614
      %v3631 = vadd.f32 %v3599, %v3615
      %v3632 = vadd.f32 %v3600, %v3616
      %v3633 = vadd.f32 %v3601, %v3617
      %v3634 = vadd.f32 %v3602, %v3618
      %v3635 = vmul.f32 %v3619, %v1255
      %v3636 = vmul.f32 %v3620, %v1257
      %v3637 = vmul.f32 %v3621, %v1255
      %v3638 = vmul.f32 %v3622, %v1257
      %v3639 = vmul.f32 %v3623, %v1255
      %v3640 = vmul.f32 %v3624, %v1257
      %v3641 = vmul.f32 %v3625, %v1255
      %v3642 = vmul.f32 %v3626, %v1257
      %v3643 = vmul.f32 %v3627, %v1255
      %v3644 = vmul.f32 %v3628, %v1257
      %v3645 = vmul.f32 %v3629, %v1255
      %v3646 = vmul.f32 %v3630, %v1257
      %v3647 = vmul.f32 %v3631, %v1255
      %v3648 = vmul.f32 %v3632, %v1257
      %v3649 = vmul.f32 %v3633, %v1255
      %v3650 = vmul.f32 %v3634, %v1257
      %v3651 = vsel %vm1276, %v3635, 0.0
      %v3652 = vsel %vm1278, %v3636, 0.0
      %v3653 = vadd.f32 %v3651, %v3652
      %v3654 = vrot.slane %v3653, 4
      %v3655 = vadd.f32 %v3653, %v3654
      %v3656 = vrot.slane %v3655, 2
      %v3657 = vadd.f32 %v3655, %v3656
      %v3658 = vrot.slane %v3657, 1
      %v3659 = vadd.f32 %v3657, %v3658
      %v3660 = vsel %vm1276, %v3637, 0.0
      %v3661 = vsel %vm1278, %v3638, 0.0
      %v3662 = vadd.f32 %v3660, %v3661
      %v3663 = vrot.slane %v3662, 4
      %v3664 = vadd.f32 %v3662, %v3663
      %v3665 = vrot.slane %v3664, 2
      %v3666 = vadd.f32 %v3664, %v3665
      %v3667 = vrot.slane %v3666, 1
      %v3668 = vadd.f32 %v3666, %v3667
      %v3669 = vsel %vm1276, %v3639, 0.0
      %v3670 = vsel %vm1278, %v3640, 0.0
      %v3671 = vadd.f32 %v3669, %v3670
      %v3672 = vrot.slane %v3671, 4
      %v3673 = vadd.f32 %v3671, %v3672
      %v3674 = vrot.slane %v3673, 2
      %v3675 = vadd.f32 %v3673, %v3674
      %v3676 = vrot.slane %v3675, 1
      %v3677 = vadd.f32 %v3675, %v3676
      %v3678 = vsel %vm1276, %v3641, 0.0
      %v3679 = vsel %vm1278, %v3642, 0.0
      %v3680 = vadd.f32 %v3678, %v3679
      %v3681 = vrot.slane %v3680, 4
      %v3682 = vadd.f32 %v3680, %v3681
      %v3683 = vrot.slane %v3682, 2
      %v3684 = vadd.f32 %v3682, %v3683
      %v3685 = vrot.slane %v3684, 1
      %v3686 = vadd.f32 %v3684, %v3685
      %v3687 = vsel %vm1276, %v3643, 0.0
      %v3688 = vsel %vm1278, %v3644, 0.0
      %v3689 = vadd.f32 %v3687, %v3688
      %v3690 = vrot.slane %v3689, 4
      %v3691 = vadd.f32 %v3689, %v3690
      %v3692 = vrot.slane %v3691, 2
      %v3693 = vadd.f32 %v3691, %v3692
      %v3694 = vrot.slane %v3693, 1
      %v3695 = vadd.f32 %v3693, %v3694
      %v3696 = vsel %vm1276, %v3645, 0.0
      %v3697 = vsel %vm1278, %v3646, 0.0
      %v3698 = vadd.f32 %v3696, %v3697
      %v3699 = vrot.slane %v3698, 4
      %v3700 = vadd.f32 %v3698, %v3699
      %v3701 = vrot.slane %v3700, 2
      %v3702 = vadd.f32 %v3700, %v3701
      %v3703 = vrot.slane %v3702, 1
      %v3704 = vadd.f32 %v3702, %v3703
      %v3705 = vsel %vm1276, %v3647, 0.0
      %v3706 = vsel %vm1278, %v3648, 0.0
      %v3707 = vadd.f32 %v3705, %v3706
      %v3708 = vrot.slane %v3707, 4
      %v3709 = vadd.f32 %v3707, %v3708
      %v3710 = vrot.slane %v3709, 2
      %v3711 = vadd.f32 %v3709, %v3710
      %v3712 = vrot.slane %v3711, 1
      %v3713 = vadd.f32 %v3711, %v3712
      %v3714 = vsel %vm1276, %v3649, 0.0
      %v3715 = vsel %vm1278, %v3650, 0.0
      %v3716 = vadd.f32 %v3714, %v3715
      %v3717 = vrot.slane %v3716, 4
      %v3718 = vadd.f32 %v3716, %v3717
      %v3719 = vrot.slane %v3718, 2
      %v3720 = vadd.f32 %v3718, %v3719
      %v3721 = vrot.slane %v3720, 1
      %v3722 = vadd.f32 %v3720, %v3721
      %v3723 = vadd.f32 %v3659, %v1356
      %v3724 = vadd.f32 %v3668, %v1356
      %v3725 = vadd.f32 %v3677, %v1356
      %v3726 = vadd.f32 %v3686, %v1356
      %v3727 = vadd.f32 %v3695, %v1356
      %v3728 = vadd.f32 %v3704, %v1356
      %v3729 = vadd.f32 %v3713, %v1356
      %v3730 = vadd.f32 %v3722, %v1356
      %v3731 = vtanh.pop %v3723
      %v3732 = vtanh.pop %v3724
      %v3733 = vtanh.pop %v3725
      %v3734 = vtanh.pop %v3726
      %v3735 = vtanh.pop %v3727
      %v3736 = vtanh.pop %v3728
      %v3737 = vtanh.pop %v3729
      %v3738 = vtanh.pop %v3730
      %v3747 = vrot.slane %v3732, 7
      %v3748 = vsel %vm1383, %v3747, %v3731
      %v3749 = vrot.slane %v3733, 6
      %v3750 = vsel %vm1386, %v3749, %v3748
      %v3751 = vrot.slane %v3734, 5
      %v3752 = vsel %vm1389, %v3751, %v3750
      %v3753 = vrot.slane %v3735, 4
      %v3754 = vsel %vm1392, %v3753, %v3752
      %v3755 = vrot.slane %v3736, 3
      %v3756 = vsel %vm1395, %v3755, %v3754
      %v3757 = vrot.slane %v3737, 2
      %v3758 = vsel %vm1398, %v3757, %v3756
      %v3759 = vrot.slane %v3738, 1
      %v3760 = vsel %vm1401, %v3759, %v3758
      %3761 = vrot.lane.b32.xlu0 %v3760, 64
      %v3762 = vpop.permute.xlu0 %3761
      %v3764 = vmul.f32 %v3062, %v3762
      %v3765 = vld [vmem:[#allocation2 + $0x40] sm:$0xff]
      %v3766 = vld [vmem:[#allocation2 + $0x48] sm:$0xff]
      %3768 = vrot.lane.b32.xlu0 %v3764, 32
      %v3769 = vpop.permute.xlu0 %3768
      %v3770 = vsel %vm617, %v3769, 0
      %3772 = vmatprep.subr.mxu0 %v605
      %3773 = vmatpush1.msra.mxu0 %v604
      %3774 = vmatprep.subr.mxu0 %v607
      %3775 = vmatpush1.msra.mxu0 %v606
      %3776 = vmatprep.subr.mxu0 %v609
      %3777 = vmatpush1.msra.mxu0 %v608
      %3778 = vmatprep.subr.mxu0 %v611
      %3779 = vmatpush1.msra.mxu0 %v610
      %3780 = vmatprep.subr.mxu0 0.0
      %3781 = vmatpush1.msra.mxu0 0.0
      %3782 = vmatprep.subr.mxu0 0.0
      %3783 = vmatpush1.msra.mxu0 0.0
      %3784 = vmatprep.subr.mxu0 0.0
      %3785 = vmatpush1.msra.mxu0 0.0
      %3786 = vmatprep.subr.mxu0 0.0
      %3787 = vmatpush1.msra.mxu0 0.0
      %3788 = vmatprep.subr.mxu0 0.0
      %3789 = vmatpush1.msra.mxu0 0.0
      %3790 = vmatprep.subr.mxu0 0.0
      %3791 = vmatpush1.msra.mxu0 0.0
      %3792 = vmatprep.subr.mxu0 0.0
      %3793 = vmatpush1.msra.mxu0 0.0
      %3794 = vmatprep.subr.mxu0 0.0
      %3795 = vmatpush1.msra.mxu0 0.0
      %3796 = vmatprep.subr.mxu0 0.0
      %3797 = vmatpush1.msra.mxu0 0.0
      %3798 = vmatprep.subr.mxu0 0.0
      %3799 = vmatpush1.msra.mxu0 0.0
      %3800 = vmatprep.subr.mxu0 0.0
      %3801 = vmatpush1.msra.mxu0 0.0
      %3802 = vmatprep.subr.mxu0 0.0
      %3803 = vmatpush1.msra.mxu0 0.0
      %3804 = vmatprep.subr.mxu0 0.0
      %3805 = vmatpush1.msra.mxu0 0.0
      %3806 = vmatprep.subr.mxu0 0.0
      %3807 = vmatpush1.msra.mxu0 0.0
      %3808 = vmatprep.subr.mxu0 0.0
      %3809 = vmatpush1.msra.mxu0 0.0
      %3810 = vmatprep.subr.mxu0 0.0
      %3811 = vmatpush1.msra.mxu0 0.0
      %3812 = vmatprep.subr.mxu0 0.0
      %3813 = vmatpush1.msra.mxu0 0.0
      %3814 = vmatprep.subr.mxu0 0.0
      %3815 = vmatpush1.msra.mxu0 0.0
      %3816 = vmatprep.subr.mxu0 0.0
      %3817 = vmatpush1.msra.mxu0 0.0
      %3818 = vmatprep.subr.mxu0 0.0
      %3819 = vmatpush1.msra.mxu0 0.0
      %3820 = vmatprep.subr.mxu0 0.0
      %3821 = vmatpush1.msra.mxu0 0.0
      %3822 = vmatprep.subr.mxu0 0.0
      %3823 = vmatpush1.msra.mxu0 0.0
      %3824 = vmatprep.subr.mxu0 0.0
      %3825 = vmatpush1.msra.mxu0 0.0
      %3826 = vmatprep.subr.mxu0 0.0
      %3827 = vmatpush1.msra.mxu0 0.0
      %3828 = vmatprep.subr.mxu0 0.0
      %3829 = vmatpush1.msra.mxu0 0.0
      %3830 = vmatprep.subr.mxu0 0.0
      %3831 = vmatpush1.msra.mxu0 0.0
      %3832 = vmatprep.subr.mxu0 0.0
      %3833 = vmatpush1.msra.mxu0 0.0
      %3834 = vmatprep.subr.mxu0 0.0
      %3835 = vmatpush1.msra.mxu0 0.0
      %3836 = vmatprep.mubr.f32.mxu0 0.0
      %3837 = vmatmul.mubr.f32.gmra.mrb[0].mxu0 %v3770
      %v3838 = vpop.f32.mrb[0].mxu0
      %v3839 = vadd.f32 0.0, %v3838
      %v3840 = vpop.f32.mrb[0].mxu0
      %v3841 = vadd.f32 0.0, %v3840
      %3842 = vdwg.mxu0
      %v3843 = vadd.f32 %v3765, %v3839
      %v3844 = vadd.f32 %v3766, %v3841
      %v3845 = vmul.f32 %v3843, 0.16666667
      %v3846 = vadd.f32 %v3845, 0.5
      %v3847 = vmax.f32 %v3846, 0.0
      %v3848 = vmin.f32 %v3847, 1.0
      %v3849 = vtanh.pop %v3843
      %3851 = vrot.lane.b32.xlu0 %v3849, 64
      %v3852 = vpop.permute.xlu0 %3851
      %v3854 = vmul.f32 %v3848, %v3852
      %v3855 = vmul.f32 %v3844, 0.16666667
      %v3856 = vadd.f32 %v3855, 0.5
      %v3857 = vmax.f32 %v3856, 0.0
      %v3858 = vmin.f32 %v3857, 1.0
      %v3859 = vlaneseq
      %v3860 = vshrl.u32 %v3859, 7
      %v3861 = vsub.s32 0, %v3860
      %v3862 = vrot.slane %v3858, %v3861
      %3864 = vbcast.lane.b32.xlu0 %v3862, 256
      %v3865 = vpop.permute.xlu0 %3864
      %s3867 = sor.u32 256, 8
      %3868 = vbcast.lane.b32.xlu0 %v3862, %s3867
      %v3869 = vpop.permute.xlu0 %3868
      %v3870 = vlaneseq
      %v3871 = vshrl.u32 %v3870, 7
      %v3872 = vsub.s32 1, %v3871
      %v3873 = vrot.slane %v3858, %v3872
      %3875 = vbcast.lane.b32.xlu0 %v3873, 256
      %v3876 = vpop.permute.xlu0 %3875
      %s3878 = sor.u32 256, 8
      %3879 = vbcast.lane.b32.xlu0 %v3873, %s3878
      %v3880 = vpop.permute.xlu0 %3879
      %v3881 = vlaneseq
      %v3882 = vshrl.u32 %v3881, 7
      %v3883 = vsub.s32 2, %v3882
      %v3884 = vrot.slane %v3858, %v3883
      %3886 = vbcast.lane.b32.xlu0 %v3884, 256
      %v3887 = vpop.permute.xlu0 %3886
      %s3889 = sor.u32 256, 8
      %3890 = vbcast.lane.b32.xlu0 %v3884, %s3889
      %v3891 = vpop.permute.xlu0 %3890
      %v3892 = vlaneseq
      %v3893 = vshrl.u32 %v3892, 7
      %v3894 = vsub.s32 3, %v3893
      %v3895 = vrot.slane %v3858, %v3894
      %3897 = vbcast.lane.b32.xlu0 %v3895, 256
      %v3898 = vpop.permute.xlu0 %3897
      %s3900 = sor.u32 256, 8
      %3901 = vbcast.lane.b32.xlu0 %v3895, %s3900
      %v3902 = vpop.permute.xlu0 %3901
      %v3903 = vlaneseq
      %v3904 = vshrl.u32 %v3903, 7
      %v3905 = vsub.s32 4, %v3904
      %v3906 = vrot.slane %v3858, %v3905
      %3908 = vbcast.lane.b32.xlu0 %v3906, 256
      %v3909 = vpop.permute.xlu0 %3908
      %s3911 = sor.u32 256, 8
      %3912 = vbcast.lane.b32.xlu0 %v3906, %s3911
      %v3913 = vpop.permute.xlu0 %3912
      %v3914 = vlaneseq
      %v3915 = vshrl.u32 %v3914, 7
      %v3916 = vsub.s32 5, %v3915
      %v3917 = vrot.slane %v3858, %v3916
      %3919 = vbcast.lane.b32.xlu0 %v3917, 256
      %v3920 = vpop.permute.xlu0 %3919
      %s3922 = sor.u32 256, 8
      %3923 = vbcast.lane.b32.xlu0 %v3917, %s3922
      %v3924 = vpop.permute.xlu0 %3923
      %v3925 = vlaneseq
      %v3926 = vshrl.u32 %v3925, 7
      %v3927 = vsub.s32 6, %v3926
      %v3928 = vrot.slane %v3858, %v3927
      %3930 = vbcast.lane.b32.xlu0 %v3928, 256
      %v3931 = vpop.permute.xlu0 %3930
      %s3933 = sor.u32 256, 8
      %3934 = vbcast.lane.b32.xlu0 %v3928, %s3933
      %v3935 = vpop.permute.xlu0 %3934
      %v3936 = vlaneseq
      %v3937 = vshrl.u32 %v3936, 7
      %v3938 = vsub.s32 7, %v3937
      %v3939 = vrot.slane %v3858, %v3938
      %3941 = vbcast.lane.b32.xlu0 %v3939, 256
      %v3942 = vpop.permute.xlu0 %3941
      %s3944 = sor.u32 256, 8
      %3945 = vbcast.lane.b32.xlu0 %v3939, %s3944
      %v3946 = vpop.permute.xlu0 %3945
      %v3948 = vcombine.high %v3848, %v3848
      %v3950 = vunpack.c.l.s4 1966171168
      %v3951 = vunpack.c.0.s8 %v3950
      %v3952 = vlaneseq
      %v3953 = vshrl.u32 %v3952, 7
      %v3954 = vsub.s32 %v3951, %v3953
      %v3955 = vrot.slane %v3848, %v3954
      %v3957 = vunpack.c.l.s4 1966171168
      %v3958 = vunpack.c.0.s8 %v3957
      %v3959 = vlaneseq
      %v3960 = vshrl.u32 %v3959, 7
      %v3961 = vsub.s32 %v3958, %v3960
      %v3962 = vrot.slane %v3948, %v3961
      %v3963 = vcombine.high %v3955, %v3955
      %v3964 = vcombine.high %v3962, %v3962
      %v3966 = vunpack.c.l.s4 1966171168
      %v3967 = vunpack.c.0.s8 %v3966
      %v3968 = vlaneseq
      %v3969 = vshrl.u32 %v3968, 7
      %v3970 = vsub.s32 %v3967, %v3969
      %v3971 = vrot.slane %v3955, %v3970
      %v3973 = vunpack.c.l.s4 1966171168
      %v3974 = vunpack.c.0.s8 %v3973
      %v3975 = vlaneseq
      %v3976 = vshrl.u32 %v3975, 7
      %v3977 = vsub.s32 %v3974, %v3976
      %v3978 = vrot.slane %v3962, %v3977
      %v3980 = vunpack.c.l.s4 1966171168
      %v3981 = vunpack.c.0.s8 %v3980
      %v3982 = vlaneseq
      %v3983 = vshrl.u32 %v3982, 7
      %v3984 = vsub.s32 %v3981, %v3983
      %v3985 = vrot.slane %v3963, %v3984
      %v3987 = vunpack.c.l.s4 1966171168
      %v3988 = vunpack.c.0.s8 %v3987
      %v3989 = vlaneseq
      %v3990 = vshrl.u32 %v3989, 7
      %v3991 = vsub.s32 %v3988, %v3990
      %v3992 = vrot.slane %v3964, %v3991
      %v3993 = vcombine.high %v3971, %v3971
      %v3994 = vcombine.high %v3978, %v3978
      %v3995 = vcombine.high %v3985, %v3985
      %v3996 = vcombine.high %v3992, %v3992
      %v3997 = vlaneseq
      %v3998 = vshrl.u32 %v3997, 7
      %v3999 = vsub.s32 0, %v3998
      %v4000 = vrot.slane %v3971, %v3999
      %v4001 = vlaneseq
      %v4002 = vshrl.u32 %v4001, 7
      %v4003 = vsub.s32 0, %v4002
      %v4004 = vrot.slane %v3985, %v4003
      %v4005 = vlaneseq
      %v4006 = vshrl.u32 %v4005, 7
      %v4007 = vsub.s32 0, %v4006
      %v4008 = vrot.slane %v3993, %v4007
      %v4009 = vlaneseq
      %v4010 = vshrl.u32 %v4009, 7
      %v4011 = vsub.s32 0, %v4010
      %v4012 = vrot.slane %v3995, %v4011
      %v4013 = vlaneseq
      %v4014 = vshrl.u32 %v4013, 7
      %v4015 = vsub.s32 0, %v4014
      %v4016 = vrot.slane %v3978, %v4015
      %v4017 = vlaneseq
      %v4018 = vshrl.u32 %v4017, 7
      %v4019 = vsub.s32 0, %v4018
      %v4020 = vrot.slane %v3992, %v4019
      %v4021 = vlaneseq
      %v4022 = vshrl.u32 %v4021, 7
      %v4023 = vsub.s32 0, %v4022
      %v4024 = vrot.slane %v3994, %v4023
      %v4025 = vlaneseq
      %v4026 = vshrl.u32 %v4025, 7
      %v4027 = vsub.s32 0, %v4026
      %v4028 = vrot.slane %v3996, %v4027
      %v4037 = vmul.f32 %v3865, %v4000
      %v4038 = vmul.f32 %v3869, %v4000
      %v4039 = vmul.f32 %v3876, %v4004
      %v4040 = vmul.f32 %v3880, %v4004
      %v4041 = vmul.f32 %v3887, %v4008
      %v4042 = vmul.f32 %v3891, %v4008
      %v4043 = vmul.f32 %v3898, %v4012
      %v4044 = vmul.f32 %v3902, %v4012
      %v4045 = vmul.f32 %v3909, %v4016
      %v4046 = vmul.f32 %v3913, %v4016
      %v4047 = vmul.f32 %v3920, %v4020
      %v4048 = vmul.f32 %v3924, %v4020
      %v4049 = vmul.f32 %v3931, %v4024
      %v4050 = vmul.f32 %v3935, %v4024
      %v4051 = vmul.f32 %v3942, %v4028
      %v4052 = vmul.f32 %v3946, %v4028
      %v4054 = vcombine.high %v3854, %v3854
      %v4056 = vunpack.c.l.s4 1966171168
      %v4057 = vunpack.c.0.s8 %v4056
      %v4058 = vlaneseq
      %v4059 = vshrl.u32 %v4058, 7
      %v4060 = vsub.s32 %v4057, %v4059
      %v4061 = vrot.slane %v3854, %v4060
      %v4063 = vunpack.c.l.s4 1966171168
      %v4064 = vunpack.c.0.s8 %v4063
      %v4065 = vlaneseq
      %v4066 = vshrl.u32 %v4065, 7
      %v4067 = vsub.s32 %v4064, %v4066
      %v4068 = vrot.slane %v4054, %v4067
      %v4069 = vcombine.high %v4061, %v4061
      %v4070 = vcombine.high %v4068, %v4068
      %v4072 = vunpack.c.l.s4 1966171168
      %v4073 = vunpack.c.0.s8 %v4072
      %v4074 = vlaneseq
      %v4075 = vshrl.u32 %v4074, 7
      %v4076 = vsub.s32 %v4073, %v4075
      %v4077 = vrot.slane %v4061, %v4076
      %v4079 = vunpack.c.l.s4 1966171168
      %v4080 = vunpack.c.0.s8 %v4079
      %v4081 = vlaneseq
      %v4082 = vshrl.u32 %v4081, 7
      %v4083 = vsub.s32 %v4080, %v4082
      %v4084 = vrot.slane %v4068, %v4083
      %v4086 = vunpack.c.l.s4 1966171168
      %v4087 = vunpack.c.0.s8 %v4086
      %v4088 = vlaneseq
      %v4089 = vshrl.u32 %v4088, 7
      %v4090 = vsub.s32 %v4087, %v4089
      %v4091 = vrot.slane %v4069, %v4090
      %v4093 = vunpack.c.l.s4 1966171168
      %v4094 = vunpack.c.0.s8 %v4093
      %v4095 = vlaneseq
      %v4096 = vshrl.u32 %v4095, 7
      %v4097 = vsub.s32 %v4094, %v4096
      %v4098 = vrot.slane %v4070, %v4097
      %v4099 = vcombine.high %v4077, %v4077
      %v4100 = vcombine.high %v4084, %v4084
      %v4101 = vcombine.high %v4091, %v4091
      %v4102 = vcombine.high %v4098, %v4098
      %v4103 = vmul.f32 %v4037, %v3456
      %v4104 = vmul.f32 %v4038, %v3457
      %v4105 = vmul.f32 %v4039, %v3458
      %v4106 = vmul.f32 %v4040, %v3459
      %v4107 = vmul.f32 %v4041, %v3460
      %v4108 = vmul.f32 %v4042, %v3461
      %v4109 = vmul.f32 %v4043, %v3462
      %v4110 = vmul.f32 %v4044, %v3463
      %v4111 = vmul.f32 %v4045, %v3464
      %v4112 = vmul.f32 %v4046, %v3465
      %v4113 = vmul.f32 %v4047, %v3466
      %v4114 = vmul.f32 %v4048, %v3467
      %v4115 = vmul.f32 %v4049, %v3468
      %v4116 = vmul.f32 %v4050, %v3469
      %v4117 = vmul.f32 %v4051, %v3470
      %v4118 = vmul.f32 %v4052, %v3471
      %s4119 = scalar_lea.vmem %s1, 64
      %v4120 = vld [vmem:[%s4119] sm:$0xff]
      %v4121 = vld [vmem:[%s4119 + $0x8] sm:$0x3]
      %v4122 = vlaneseq
      %v4123 = vshrl.u32 %v4122, 7
      %v4124 = vsub.s32 0, %v4123
      %v4125 = vrot.slane %v4077, %v4124
      %v4126 = vlaneseq
      %v4127 = vshrl.u32 %v4126, 7
      %v4128 = vsub.s32 0, %v4127
      %v4129 = vrot.slane %v4091, %v4128
      %v4130 = vlaneseq
      %v4131 = vshrl.u32 %v4130, 7
      %v4132 = vsub.s32 0, %v4131
      %v4133 = vrot.slane %v4099, %v4132
      %v4134 = vlaneseq
      %v4135 = vshrl.u32 %v4134, 7
      %v4136 = vsub.s32 0, %v4135
      %v4137 = vrot.slane %v4101, %v4136
      %v4138 = vlaneseq
      %v4139 = vshrl.u32 %v4138, 7
      %v4140 = vsub.s32 0, %v4139
      %v4141 = vrot.slane %v4084, %v4140
      %v4142 = vlaneseq
      %v4143 = vshrl.u32 %v4142, 7
      %v4144 = vsub.s32 0, %v4143
      %v4145 = vrot.slane %v4098, %v4144
      %v4146 = vlaneseq
      %v4147 = vshrl.u32 %v4146, 7
      %v4148 = vsub.s32 0, %v4147
      %v4149 = vrot.slane %v4100, %v4148
      %v4150 = vlaneseq
      %v4151 = vshrl.u32 %v4150, 7
      %v4152 = vsub.s32 0, %v4151
      %v4153 = vrot.slane %v4102, %v4152
      %v4162 = vmul.f32 %v4125, %v4120
      %v4163 = vmul.f32 %v4125, %v4121
      %v4164 = vmul.f32 %v4129, %v4120
      %v4165 = vmul.f32 %v4129, %v4121
      %v4166 = vmul.f32 %v4133, %v4120
      %v4167 = vmul.f32 %v4133, %v4121
      %v4168 = vmul.f32 %v4137, %v4120
      %v4169 = vmul.f32 %v4137, %v4121
      %v4170 = vmul.f32 %v4141, %v4120
      %v4171 = vmul.f32 %v4141, %v4121
      %v4172 = vmul.f32 %v4145, %v4120
      %v4173 = vmul.f32 %v4145, %v4121
      %v4174 = vmul.f32 %v4149, %v4120
      %v4175 = vmul.f32 %v4149, %v4121
      %v4176 = vmul.f32 %v4153, %v4120
      %v4177 = vmul.f32 %v4153, %v4121
      %4194 = vrot.lane.b32.xlu0 %v4162, 32
      %v4195 = vpop.permute.xlu0 %4194
      %4196 = vrot.lane.b32.xlu0 %v4163, 32
      %v4197 = vpop.permute.xlu0 %4196
      %4198 = vrot.lane.b32.xlu0 %v4164, 32
      %v4199 = vpop.permute.xlu0 %4198
      %4200 = vrot.lane.b32.xlu0 %v4165, 32
      %v4201 = vpop.permute.xlu0 %4200
      %4202 = vrot.lane.b32.xlu0 %v4166, 32
      %v4203 = vpop.permute.xlu0 %4202
      %4204 = vrot.lane.b32.xlu0 %v4167, 32
      %v4205 = vpop.permute.xlu0 %4204
      %4206 = vrot.lane.b32.xlu0 %v4168, 32
      %v4207 = vpop.permute.xlu0 %4206
      %4208 = vrot.lane.b32.xlu0 %v4169, 32
      %v4209 = vpop.permute.xlu0 %4208
      %4210 = vrot.lane.b32.xlu0 %v4170, 32
      %v4211 = vpop.permute.xlu0 %4210
      %4212 = vrot.lane.b32.xlu0 %v4171, 32
      %v4213 = vpop.permute.xlu0 %4212
      %4214 = vrot.lane.b32.xlu0 %v4172, 32
      %v4215 = vpop.permute.xlu0 %4214
      %4216 = vrot.lane.b32.xlu0 %v4173, 32
      %v4217 = vpop.permute.xlu0 %4216
      %4218 = vrot.lane.b32.xlu0 %v4174, 32
      %v4219 = vpop.permute.xlu0 %4218
      %4220 = vrot.lane.b32.xlu0 %v4175, 32
      %v4221 = vpop.permute.xlu0 %4220
      %4222 = vrot.lane.b32.xlu0 %v4176, 32
      %v4223 = vpop.permute.xlu0 %4222
      %4224 = vrot.lane.b32.xlu0 %v4177, 32
      %v4225 = vpop.permute.xlu0 %4224
      %v4242 = vadd.f32 %v4103, %v4195
      %v4243 = vadd.f32 %v4104, %v4197
      %v4244 = vadd.f32 %v4105, %v4199
      %v4245 = vadd.f32 %v4106, %v4201
      %v4246 = vadd.f32 %v4107, %v4203
      %v4247 = vadd.f32 %v4108, %v4205
      %v4248 = vadd.f32 %v4109, %v4207
      %v4249 = vadd.f32 %v4110, %v4209
      %v4250 = vadd.f32 %v4111, %v4211
      %v4251 = vadd.f32 %v4112, %v4213
      %v4252 = vadd.f32 %v4113, %v4215
      %v4253 = vadd.f32 %v4114, %v4217
      %v4254 = vadd.f32 %v4115, %v4219
      %v4255 = vadd.f32 %v4116, %v4221
      %v4256 = vadd.f32 %v4117, %v4223
      %v4257 = vadd.f32 %v4118, %v4225
      %v4258 = vmul.f32 %v4037, %v3571
      %v4259 = vmul.f32 %v4038, %v3572
      %v4260 = vmul.f32 %v4039, %v3573
      %v4261 = vmul.f32 %v4040, %v3574
      %v4262 = vmul.f32 %v4041, %v3575
      %v4263 = vmul.f32 %v4042, %v3576
      %v4264 = vmul.f32 %v4043, %v3577
      %v4265 = vmul.f32 %v4044, %v3578
      %v4266 = vmul.f32 %v4045, %v3579
      %v4267 = vmul.f32 %v4046, %v3580
      %v4268 = vmul.f32 %v4047, %v3581
      %v4269 = vmul.f32 %v4048, %v3582
      %v4270 = vmul.f32 %v4049, %v3583
      %v4271 = vmul.f32 %v4050, %v3584
      %v4272 = vmul.f32 %v4051, %v3585
      %v4273 = vmul.f32 %v4052, %v3586
      %s4274 = scalar_lea.vmem %s2, 64
      %v4275 = vld [vmem:[%s4274] sm:$0xff]
      %v4276 = vld [vmem:[%s4274 + $0x8] sm:$0x3]
      %v4277 = vmul.f32 %v4125, %v4275
      %v4278 = vmul.f32 %v4125, %v4276
      %v4279 = vmul.f32 %v4129, %v4275
      %v4280 = vmul.f32 %v4129, %v4276
      %v4281 = vmul.f32 %v4133, %v4275
      %v4282 = vmul.f32 %v4133, %v4276
      %v4283 = vmul.f32 %v4137, %v4275
      %v4284 = vmul.f32 %v4137, %v4276
      %v4285 = vmul.f32 %v4141, %v4275
      %v4286 = vmul.f32 %v4141, %v4276
      %v4287 = vmul.f32 %v4145, %v4275
      %v4288 = vmul.f32 %v4145, %v4276
      %v4289 = vmul.f32 %v4149, %v4275
      %v4290 = vmul.f32 %v4149, %v4276
      %v4291 = vmul.f32 %v4153, %v4275
      %v4292 = vmul.f32 %v4153, %v4276
      %4309 = vrot.lane.b32.xlu0 %v4277, 32
      %v4310 = vpop.permute.xlu0 %4309
      %4311 = vrot.lane.b32.xlu0 %v4278, 32
      %v4312 = vpop.permute.xlu0 %4311
      %4313 = vrot.lane.b32.xlu0 %v4279, 32
      %v4314 = vpop.permute.xlu0 %4313
      %4315 = vrot.lane.b32.xlu0 %v4280, 32
      %v4316 = vpop.permute.xlu0 %4315
      %4317 = vrot.lane.b32.xlu0 %v4281, 32
      %v4318 = vpop.permute.xlu0 %4317
      %4319 = vrot.lane.b32.xlu0 %v4282, 32
      %v4320 = vpop.permute.xlu0 %4319
      %4321 = vrot.lane.b32.xlu0 %v4283, 32
      %v4322 = vpop.permute.xlu0 %4321
      %4323 = vrot.lane.b32.xlu0 %v4284, 32
      %v4324 = vpop.permute.xlu0 %4323
      %4325 = vrot.lane.b32.xlu0 %v4285, 32
      %v4326 = vpop.permute.xlu0 %4325
      %4327 = vrot.lane.b32.xlu0 %v4286, 32
      %v4328 = vpop.permute.xlu0 %4327
      %4329 = vrot.lane.b32.xlu0 %v4287, 32
      %v4330 = vpop.permute.xlu0 %4329
      %4331 = vrot.lane.b32.xlu0 %v4288, 32
      %v4332 = vpop.permute.xlu0 %4331
      %4333 = vrot.lane.b32.xlu0 %v4289, 32
      %v4334 = vpop.permute.xlu0 %4333
      %4335 = vrot.lane.b32.xlu0 %v4290, 32
      %v4336 = vpop.permute.xlu0 %4335
      %4337 = vrot.lane.b32.xlu0 %v4291, 32
      %v4338 = vpop.permute.xlu0 %4337
      %4339 = vrot.lane.b32.xlu0 %v4292, 32
      %v4340 = vpop.permute.xlu0 %4339
      %v4357 = vadd.f32 %v4258, %v4310
      %v4358 = vadd.f32 %v4259, %v4312
      %v4359 = vadd.f32 %v4260, %v4314
      %v4360 = vadd.f32 %v4261, %v4316
      %v4361 = vadd.f32 %v4262, %v4318
      %v4362 = vadd.f32 %v4263, %v4320
      %v4363 = vadd.f32 %v4264, %v4322
      %v4364 = vadd.f32 %v4265, %v4324
      %v4365 = vadd.f32 %v4266, %v4326
      %v4366 = vadd.f32 %v4267, %v4328
      %v4367 = vadd.f32 %v4268, %v4330
      %v4368 = vadd.f32 %v4269, %v4332
      %v4369 = vadd.f32 %v4270, %v4334
      %v4370 = vadd.f32 %v4271, %v4336
      %v4371 = vadd.f32 %v4272, %v4338
      %v4372 = vadd.f32 %v4273, %v4340
      %v4373 = vmul.f32 %v4242, %v4242
      %v4374 = vmul.f32 %v4243, %v4243
      %v4375 = vmul.f32 %v4244, %v4244
      %v4376 = vmul.f32 %v4245, %v4245
      %v4377 = vmul.f32 %v4246, %v4246
      %v4378 = vmul.f32 %v4247, %v4247
      %v4379 = vmul.f32 %v4248, %v4248
      %v4380 = vmul.f32 %v4249, %v4249
      %v4381 = vmul.f32 %v4250, %v4250
      %v4382 = vmul.f32 %v4251, %v4251
      %v4383 = vmul.f32 %v4252, %v4252
      %v4384 = vmul.f32 %v4253, %v4253
      %v4385 = vmul.f32 %v4254, %v4254
      %v4386 = vmul.f32 %v4255, %v4255
      %v4387 = vmul.f32 %v4256, %v4256
      %v4388 = vmul.f32 %v4257, %v4257
      %v4389 = vmul.f32 %v4357, %v4357
      %v4390 = vmul.f32 %v4358, %v4358
      %v4391 = vmul.f32 %v4359, %v4359
      %v4392 = vmul.f32 %v4360, %v4360
      %v4393 = vmul.f32 %v4361, %v4361
      %v4394 = vmul.f32 %v4362, %v4362
      %v4395 = vmul.f32 %v4363, %v4363
      %v4396 = vmul.f32 %v4364, %v4364
      %v4397 = vmul.f32 %v4365, %v4365
      %v4398 = vmul.f32 %v4366, %v4366
      %v4399 = vmul.f32 %v4367, %v4367
      %v4400 = vmul.f32 %v4368, %v4368
      %v4401 = vmul.f32 %v4369, %v4369
      %v4402 = vmul.f32 %v4370, %v4370
      %v4403 = vmul.f32 %v4371, %v4371
      %v4404 = vmul.f32 %v4372, %v4372
      %v4405 = vadd.f32 %v4373, %v4389
      %v4406 = vadd.f32 %v4374, %v4390
      %v4407 = vadd.f32 %v4375, %v4391
      %v4408 = vadd.f32 %v4376, %v4392
      %v4409 = vadd.f32 %v4377, %v4393
      %v4410 = vadd.f32 %v4378, %v4394
      %v4411 = vadd.f32 %v4379, %v4395
      %v4412 = vadd.f32 %v4380, %v4396
      %v4413 = vadd.f32 %v4381, %v4397
      %v4414 = vadd.f32 %v4382, %v4398
      %v4415 = vadd.f32 %v4383, %v4399
      %v4416 = vadd.f32 %v4384, %v4400
      %v4417 = vadd.f32 %v4385, %v4401
      %v4418 = vadd.f32 %v4386, %v4402
      %v4419 = vadd.f32 %v4387, %v4403
      %v4420 = vadd.f32 %v4388, %v4404
      %v4421 = vmul.f32 %v4405, %v1255
      %v4422 = vmul.f32 %v4406, %v1257
      %v4423 = vmul.f32 %v4407, %v1255
      %v4424 = vmul.f32 %v4408, %v1257
      %v4425 = vmul.f32 %v4409, %v1255
      %v4426 = vmul.f32 %v4410, %v1257
      %v4427 = vmul.f32 %v4411, %v1255
      %v4428 = vmul.f32 %v4412, %v1257
      %v4429 = vmul.f32 %v4413, %v1255
      %v4430 = vmul.f32 %v4414, %v1257
      %v4431 = vmul.f32 %v4415, %v1255
      %v4432 = vmul.f32 %v4416, %v1257
      %v4433 = vmul.f32 %v4417, %v1255
      %v4434 = vmul.f32 %v4418, %v1257
      %v4435 = vmul.f32 %v4419, %v1255
      %v4436 = vmul.f32 %v4420, %v1257
      %v4437 = vsel %vm1276, %v4421, 0.0
      %v4438 = vsel %vm1278, %v4422, 0.0
      %v4439 = vadd.f32 %v4437, %v4438
      %v4440 = vrot.slane %v4439, 4
      %v4441 = vadd.f32 %v4439, %v4440
      %v4442 = vrot.slane %v4441, 2
      %v4443 = vadd.f32 %v4441, %v4442
      %v4444 = vrot.slane %v4443, 1
      %v4445 = vadd.f32 %v4443, %v4444
      %v4446 = vsel %vm1276, %v4423, 0.0
      %v4447 = vsel %vm1278, %v4424, 0.0
      %v4448 = vadd.f32 %v4446, %v4447
      %v4449 = vrot.slane %v4448, 4
      %v4450 = vadd.f32 %v4448, %v4449
      %v4451 = vrot.slane %v4450, 2
      %v4452 = vadd.f32 %v4450, %v4451
      %v4453 = vrot.slane %v4452, 1
      %v4454 = vadd.f32 %v4452, %v4453
      %v4455 = vsel %vm1276, %v4425, 0.0
      %v4456 = vsel %vm1278, %v4426, 0.0
      %v4457 = vadd.f32 %v4455, %v4456
      %v4458 = vrot.slane %v4457, 4
      %v4459 = vadd.f32 %v4457, %v4458
      %v4460 = vrot.slane %v4459, 2
      %v4461 = vadd.f32 %v4459, %v4460
      %v4462 = vrot.slane %v4461, 1
      %v4463 = vadd.f32 %v4461, %v4462
      %v4464 = vsel %vm1276, %v4427, 0.0
      %v4465 = vsel %vm1278, %v4428, 0.0
      %v4466 = vadd.f32 %v4464, %v4465
      %v4467 = vrot.slane %v4466, 4
      %v4468 = vadd.f32 %v4466, %v4467
      %v4469 = vrot.slane %v4468, 2
      %v4470 = vadd.f32 %v4468, %v4469
      %v4471 = vrot.slane %v4470, 1
      %v4472 = vadd.f32 %v4470, %v4471
      %v4473 = vsel %vm1276, %v4429, 0.0
      %v4474 = vsel %vm1278, %v4430, 0.0
      %v4475 = vadd.f32 %v4473, %v4474
      %v4476 = vrot.slane %v4475, 4
      %v4477 = vadd.f32 %v4475, %v4476
      %v4478 = vrot.slane %v4477, 2
      %v4479 = vadd.f32 %v4477, %v4478
      %v4480 = vrot.slane %v4479, 1
      %v4481 = vadd.f32 %v4479, %v4480
      %v4482 = vsel %vm1276, %v4431, 0.0
      %v4483 = vsel %vm1278, %v4432, 0.0
      %v4484 = vadd.f32 %v4482, %v4483
      %v4485 = vrot.slane %v4484, 4
      %v4486 = vadd.f32 %v4484, %v4485
      %v4487 = vrot.slane %v4486, 2
      %v4488 = vadd.f32 %v4486, %v4487
      %v4489 = vrot.slane %v4488, 1
      %v4490 = vadd.f32 %v4488, %v4489
      %v4491 = vsel %vm1276, %v4433, 0.0
      %v4492 = vsel %vm1278, %v4434, 0.0
      %v4493 = vadd.f32 %v4491, %v4492
      %v4494 = vrot.slane %v4493, 4
      %v4495 = vadd.f32 %v4493, %v4494
      %v4496 = vrot.slane %v4495, 2
      %v4497 = vadd.f32 %v4495, %v4496
      %v4498 = vrot.slane %v4497, 1
      %v4499 = vadd.f32 %v4497, %v4498
      %v4500 = vsel %vm1276, %v4435, 0.0
      %v4501 = vsel %vm1278, %v4436, 0.0
      %v4502 = vadd.f32 %v4500, %v4501
      %v4503 = vrot.slane %v4502, 4
      %v4504 = vadd.f32 %v4502, %v4503
      %v4505 = vrot.slane %v4504, 2
      %v4506 = vadd.f32 %v4504, %v4505
      %v4507 = vrot.slane %v4506, 1
      %v4508 = vadd.f32 %v4506, %v4507
      %v4509 = vadd.f32 %v4445, %v1356
      %v4510 = vadd.f32 %v4454, %v1356
      %v4511 = vadd.f32 %v4463, %v1356
      %v4512 = vadd.f32 %v4472, %v1356
      %v4513 = vadd.f32 %v4481, %v1356
      %v4514 = vadd.f32 %v4490, %v1356
      %v4515 = vadd.f32 %v4499, %v1356
      %v4516 = vadd.f32 %v4508, %v1356
      %v4517 = vtanh.pop %v4509
      %v4518 = vtanh.pop %v4510
      %v4519 = vtanh.pop %v4511
      %v4520 = vtanh.pop %v4512
      %v4521 = vtanh.pop %v4513
      %v4522 = vtanh.pop %v4514
      %v4523 = vtanh.pop %v4515
      %v4524 = vtanh.pop %v4516
      %v4533 = vrot.slane %v4518, 7
      %v4534 = vsel %vm1383, %v4533, %v4517
      %v4535 = vrot.slane %v4519, 6
      %v4536 = vsel %vm1386, %v4535, %v4534
      %v4537 = vrot.slane %v4520, 5
      %v4538 = vsel %vm1389, %v4537, %v4536
      %v4539 = vrot.slane %v4521, 4
      %v4540 = vsel %vm1392, %v4539, %v4538
      %v4541 = vrot.slane %v4522, 3
      %v4542 = vsel %vm1395, %v4541, %v4540
      %v4543 = vrot.slane %v4523, 2
      %v4544 = vsel %vm1398, %v4543, %v4542
      %v4545 = vrot.slane %v4524, 1
      %v4546 = vsel %vm1401, %v4545, %v4544
      %4547 = vrot.lane.b32.xlu0 %v4546, 64
      %v4548 = vpop.permute.xlu0 %4547
      %v4550 = vmul.f32 %v3848, %v4548
      %v4551 = vld [vmem:[#allocation2 + $0x50] sm:$0xff]
      %v4552 = vld [vmem:[#allocation2 + $0x58] sm:$0xff]
      %4554 = vrot.lane.b32.xlu0 %v4550, 32
      %v4555 = vpop.permute.xlu0 %4554
      %v4556 = vsel %vm617, %v4555, 0
      %4558 = vmatprep.subr.mxu0 %v605
      %4559 = vmatpush1.msra.mxu0 %v604
      %4560 = vmatprep.subr.mxu0 %v607
      %4561 = vmatpush1.msra.mxu0 %v606
      %4562 = vmatprep.subr.mxu0 %v609
      %4563 = vmatpush1.msra.mxu0 %v608
      %4564 = vmatprep.subr.mxu0 %v611
      %4565 = vmatpush1.msra.mxu0 %v610
      %4566 = vmatprep.subr.mxu0 0.0
      %4567 = vmatpush1.msra.mxu0 0.0
      %4568 = vmatprep.subr.mxu0 0.0
      %4569 = vmatpush1.msra.mxu0 0.0
      %4570 = vmatprep.subr.mxu0 0.0
      %4571 = vmatpush1.msra.mxu0 0.0
      %4572 = vmatprep.subr.mxu0 0.0
      %4573 = vmatpush1.msra.mxu0 0.0
      %4574 = vmatprep.subr.mxu0 0.0
      %4575 = vmatpush1.msra.mxu0 0.0
      %4576 = vmatprep.subr.mxu0 0.0
      %4577 = vmatpush1.msra.mxu0 0.0
      %4578 = vmatprep.subr.mxu0 0.0
      %4579 = vmatpush1.msra.mxu0 0.0
      %4580 = vmatprep.subr.mxu0 0.0
      %4581 = vmatpush1.msra.mxu0 0.0
      %4582 = vmatprep.subr.mxu0 0.0
      %4583 = vmatpush1.msra.mxu0 0.0
      %4584 = vmatprep.subr.mxu0 0.0
      %4585 = vmatpush1.msra.mxu0 0.0
      %4586 = vmatprep.subr.mxu0 0.0
      %4587 = vmatpush1.msra.mxu0 0.0
      %4588 = vmatprep.subr.mxu0 0.0
      %4589 = vmatpush1.msra.mxu0 0.0
      %4590 = vmatprep.subr.mxu0 0.0
      %4591 = vmatpush1.msra.mxu0 0.0
      %4592 = vmatprep.subr.mxu0 0.0
      %4593 = vmatpush1.msra.mxu0 0.0
      %4594 = vmatprep.subr.mxu0 0.0
      %4595 = vmatpush1.msra.mxu0 0.0
      %4596 = vmatprep.subr.mxu0 0.0
      %4597 = vmatpush1.msra.mxu0 0.0
      %4598 = vmatprep.subr.mxu0 0.0
      %4599 = vmatpush1.msra.mxu0 0.0
      %4600 = vmatprep.subr.mxu0 0.0
      %4601 = vmatpush1.msra.mxu0 0.0
      %4602 = vmatprep.subr.mxu0 0.0
      %4603 = vmatpush1.msra.mxu0 0.0
      %4604 = vmatprep.subr.mxu0 0.0
      %4605 = vmatpush1.msra.mxu0 0.0
      %4606 = vmatprep.subr.mxu0 0.0
      %4607 = vmatpush1.msra.mxu0 0.0
      %4608 = vmatprep.subr.mxu0 0.0
      %4609 = vmatpush1.msra.mxu0 0.0
      %4610 = vmatprep.subr.mxu0 0.0
      %4611 = vmatpush1.msra.mxu0 0.0
      %4612 = vmatprep.subr.mxu0 0.0
      %4613 = vmatpush1.msra.mxu0 0.0
      %4614 = vmatprep.subr.mxu0 0.0
      %4615 = vmatpush1.msra.mxu0 0.0
      %4616 = vmatprep.subr.mxu0 0.0
      %4617 = vmatpush1.msra.mxu0 0.0
      %4618 = vmatprep.subr.mxu0 0.0
      %4619 = vmatpush1.msra.mxu0 0.0
      %4620 = vmatprep.subr.mxu0 0.0
      %4621 = vmatpush1.msra.mxu0 0.0
      %4622 = vmatprep.mubr.f32.mxu0 0.0
      %4623 = vmatmul.mubr.f32.gmra.mrb[0].mxu0 %v4556
      %v4624 = vpop.f32.mrb[0].mxu0
      %v4625 = vadd.f32 0.0, %v4624
      %v4626 = vpop.f32.mrb[0].mxu0
      %v4627 = vadd.f32 0.0, %v4626
      %4628 = vdwg.mxu0
      %v4629 = vadd.f32 %v4551, %v4625
      %v4630 = vadd.f32 %v4552, %v4627
      %v4631 = vmul.f32 %v4629, 0.16666667
      %v4632 = vadd.f32 %v4631, 0.5
      %v4633 = vmax.f32 %v4632, 0.0
      %v4634 = vmin.f32 %v4633, 1.0
      %v4635 = vtanh.pop %v4629
      %4637 = vrot.lane.b32.xlu0 %v4635, 64
      %v4638 = vpop.permute.xlu0 %4637
      %v4640 = vmul.f32 %v4634, %v4638
      %v4641 = vmul.f32 %v4630, 0.16666667
      %v4642 = vadd.f32 %v4641, 0.5
      %v4643 = vmax.f32 %v4642, 0.0
      %v4644 = vmin.f32 %v4643, 1.0
      %v4645 = vlaneseq
      %v4646 = vshrl.u32 %v4645, 7
      %v4647 = vsub.s32 0, %v4646
      %v4648 = vrot.slane %v4644, %v4647
      %4650 = vbcast.lane.b32.xlu0 %v4648, 256
      %v4651 = vpop.permute.xlu0 %4650
      %s4653 = sor.u32 256, 8
      %4654 = vbcast.lane.b32.xlu0 %v4648, %s4653
      %v4655 = vpop.permute.xlu0 %4654
      %v4656 = vlaneseq
      %v4657 = vshrl.u32 %v4656, 7
      %v4658 = vsub.s32 1, %v4657
      %v4659 = vrot.slane %v4644, %v4658
      %4661 = vbcast.lane.b32.xlu0 %v4659, 256
      %v4662 = vpop.permute.xlu0 %4661
      %s4664 = sor.u32 256, 8
      %4665 = vbcast.lane.b32.xlu0 %v4659, %s4664
      %v4666 = vpop.permute.xlu0 %4665
      %v4667 = vlaneseq
      %v4668 = vshrl.u32 %v4667, 7
      %v4669 = vsub.s32 2, %v4668
      %v4670 = vrot.slane %v4644, %v4669
      %4672 = vbcast.lane.b32.xlu0 %v4670, 256
      %v4673 = vpop.permute.xlu0 %4672
      %s4675 = sor.u32 256, 8
      %4676 = vbcast.lane.b32.xlu0 %v4670, %s4675
      %v4677 = vpop.permute.xlu0 %4676
      %v4678 = vlaneseq
      %v4679 = vshrl.u32 %v4678, 7
      %v4680 = vsub.s32 3, %v4679
      %v4681 = vrot.slane %v4644, %v4680
      %4683 = vbcast.lane.b32.xlu0 %v4681, 256
      %v4684 = vpop.permute.xlu0 %4683
      %s4686 = sor.u32 256, 8
      %4687 = vbcast.lane.b32.xlu0 %v4681, %s4686
      %v4688 = vpop.permute.xlu0 %4687
      %v4689 = vlaneseq
      %v4690 = vshrl.u32 %v4689, 7
      %v4691 = vsub.s32 4, %v4690
      %v4692 = vrot.slane %v4644, %v4691
      %4694 = vbcast.lane.b32.xlu0 %v4692, 256
      %v4695 = vpop.permute.xlu0 %4694
      %s4697 = sor.u32 256, 8
      %4698 = vbcast.lane.b32.xlu0 %v4692, %s4697
      %v4699 = vpop.permute.xlu0 %4698
      %v4700 = vlaneseq
      %v4701 = vshrl.u32 %v4700, 7
      %v4702 = vsub.s32 5, %v4701
      %v4703 = vrot.slane %v4644, %v4702
      %4705 = vbcast.lane.b32.xlu0 %v4703, 256
      %v4706 = vpop.permute.xlu0 %4705
      %s4708 = sor.u32 256, 8
      %4709 = vbcast.lane.b32.xlu0 %v4703, %s4708
      %v4710 = vpop.permute.xlu0 %4709
      %v4711 = vlaneseq
      %v4712 = vshrl.u32 %v4711, 7
      %v4713 = vsub.s32 6, %v4712
      %v4714 = vrot.slane %v4644, %v4713
      %4716 = vbcast.lane.b32.xlu0 %v4714, 256
      %v4717 = vpop.permute.xlu0 %4716
      %s4719 = sor.u32 256, 8
      %4720 = vbcast.lane.b32.xlu0 %v4714, %s4719
      %v4721 = vpop.permute.xlu0 %4720
      %v4722 = vlaneseq
      %v4723 = vshrl.u32 %v4722, 7
      %v4724 = vsub.s32 7, %v4723
      %v4725 = vrot.slane %v4644, %v4724
      %4727 = vbcast.lane.b32.xlu0 %v4725, 256
      %v4728 = vpop.permute.xlu0 %4727
      %s4730 = sor.u32 256, 8
      %4731 = vbcast.lane.b32.xlu0 %v4725, %s4730
      %v4732 = vpop.permute.xlu0 %4731
      %v4734 = vcombine.high %v4634, %v4634
      %v4736 = vunpack.c.l.s4 1966171168
      %v4737 = vunpack.c.0.s8 %v4736
      %v4738 = vlaneseq
      %v4739 = vshrl.u32 %v4738, 7
      %v4740 = vsub.s32 %v4737, %v4739
      %v4741 = vrot.slane %v4634, %v4740
      %v4743 = vunpack.c.l.s4 1966171168
      %v4744 = vunpack.c.0.s8 %v4743
      %v4745 = vlaneseq
      %v4746 = vshrl.u32 %v4745, 7
      %v4747 = vsub.s32 %v4744, %v4746
      %v4748 = vrot.slane %v4734, %v4747
      %v4749 = vcombine.high %v4741, %v4741
      %v4750 = vcombine.high %v4748, %v4748
      %v4752 = vunpack.c.l.s4 1966171168
      %v4753 = vunpack.c.0.s8 %v4752
      %v4754 = vlaneseq
      %v4755 = vshrl.u32 %v4754, 7
      %v4756 = vsub.s32 %v4753, %v4755
      %v4757 = vrot.slane %v4741, %v4756
      %v4759 = vunpack.c.l.s4 1966171168
      %v4760 = vunpack.c.0.s8 %v4759
      %v4761 = vlaneseq
      %v4762 = vshrl.u32 %v4761, 7
      %v4763 = vsub.s32 %v4760, %v4762
      %v4764 = vrot.slane %v4748, %v4763
      %v4766 = vunpack.c.l.s4 1966171168
      %v4767 = vunpack.c.0.s8 %v4766
      %v4768 = vlaneseq
      %v4769 = vshrl.u32 %v4768, 7
      %v4770 = vsub.s32 %v4767, %v4769
      %v4771 = vrot.slane %v4749, %v4770
      %v4773 = vunpack.c.l.s4 1966171168
      %v4774 = vunpack.c.0.s8 %v4773
      %v4775 = vlaneseq
      %v4776 = vshrl.u32 %v4775, 7
      %v4777 = vsub.s32 %v4774, %v4776
      %v4778 = vrot.slane %v4750, %v4777
      %v4779 = vcombine.high %v4757, %v4757
      %v4780 = vcombine.high %v4764, %v4764
      %v4781 = vcombine.high %v4771, %v4771
      %v4782 = vcombine.high %v4778, %v4778
      %v4783 = vlaneseq
      %v4784 = vshrl.u32 %v4783, 7
      %v4785 = vsub.s32 0, %v4784
      %v4786 = vrot.slane %v4757, %v4785
      %v4787 = vlaneseq
      %v4788 = vshrl.u32 %v4787, 7
      %v4789 = vsub.s32 0, %v4788
      %v4790 = vrot.slane %v4771, %v4789
      %v4791 = vlaneseq
      %v4792 = vshrl.u32 %v4791, 7
      %v4793 = vsub.s32 0, %v4792
      %v4794 = vrot.slane %v4779, %v4793
      %v4795 = vlaneseq
      %v4796 = vshrl.u32 %v4795, 7
      %v4797 = vsub.s32 0, %v4796
      %v4798 = vrot.slane %v4781, %v4797
      %v4799 = vlaneseq
      %v4800 = vshrl.u32 %v4799, 7
      %v4801 = vsub.s32 0, %v4800
      %v4802 = vrot.slane %v4764, %v4801
      %v4803 = vlaneseq
      %v4804 = vshrl.u32 %v4803, 7
      %v4805 = vsub.s32 0, %v4804
      %v4806 = vrot.slane %v4778, %v4805
      %v4807 = vlaneseq
      %v4808 = vshrl.u32 %v4807, 7
      %v4809 = vsub.s32 0, %v4808
      %v4810 = vrot.slane %v4780, %v4809
      %v4811 = vlaneseq
      %v4812 = vshrl.u32 %v4811, 7
      %v4813 = vsub.s32 0, %v4812
      %v4814 = vrot.slane %v4782, %v4813
      %v4823 = vmul.f32 %v4651, %v4786
      %v4824 = vmul.f32 %v4655, %v4786
      %v4825 = vmul.f32 %v4662, %v4790
      %v4826 = vmul.f32 %v4666, %v4790
      %v4827 = vmul.f32 %v4673, %v4794
      %v4828 = vmul.f32 %v4677, %v4794
      %v4829 = vmul.f32 %v4684, %v4798
      %v4830 = vmul.f32 %v4688, %v4798
      %v4831 = vmul.f32 %v4695, %v4802
      %v4832 = vmul.f32 %v4699, %v4802
      %v4833 = vmul.f32 %v4706, %v4806
      %v4834 = vmul.f32 %v4710, %v4806
      %v4835 = vmul.f32 %v4717, %v4810
      %v4836 = vmul.f32 %v4721, %v4810
      %v4837 = vmul.f32 %v4728, %v4814
      %v4838 = vmul.f32 %v4732, %v4814
      %v4840 = vcombine.high %v4640, %v4640
      %v4842 = vunpack.c.l.s4 1966171168
      %v4843 = vunpack.c.0.s8 %v4842
      %v4844 = vlaneseq
      %v4845 = vshrl.u32 %v4844, 7
      %v4846 = vsub.s32 %v4843, %v4845
      %v4847 = vrot.slane %v4640, %v4846
      %v4849 = vunpack.c.l.s4 1966171168
      %v4850 = vunpack.c.0.s8 %v4849
      %v4851 = vlaneseq
      %v4852 = vshrl.u32 %v4851, 7
      %v4853 = vsub.s32 %v4850, %v4852
      %v4854 = vrot.slane %v4840, %v4853
      %v4855 = vcombine.high %v4847, %v4847
      %v4856 = vcombine.high %v4854, %v4854
      %v4858 = vunpack.c.l.s4 1966171168
      %v4859 = vunpack.c.0.s8 %v4858
      %v4860 = vlaneseq
      %v4861 = vshrl.u32 %v4860, 7
      %v4862 = vsub.s32 %v4859, %v4861
      %v4863 = vrot.slane %v4847, %v4862
      %v4865 = vunpack.c.l.s4 1966171168
      %v4866 = vunpack.c.0.s8 %v4865
      %v4867 = vlaneseq
      %v4868 = vshrl.u32 %v4867, 7
      %v4869 = vsub.s32 %v4866, %v4868
      %v4870 = vrot.slane %v4854, %v4869
      %v4872 = vunpack.c.l.s4 1966171168
      %v4873 = vunpack.c.0.s8 %v4872
      %v4874 = vlaneseq
      %v4875 = vshrl.u32 %v4874, 7
      %v4876 = vsub.s32 %v4873, %v4875
      %v4877 = vrot.slane %v4855, %v4876
      %v4879 = vunpack.c.l.s4 1966171168
      %v4880 = vunpack.c.0.s8 %v4879
      %v4881 = vlaneseq
      %v4882 = vshrl.u32 %v4881, 7
      %v4883 = vsub.s32 %v4880, %v4882
      %v4884 = vrot.slane %v4856, %v4883
      %v4885 = vcombine.high %v4863, %v4863
      %v4886 = vcombine.high %v4870, %v4870
      %v4887 = vcombine.high %v4877, %v4877
      %v4888 = vcombine.high %v4884, %v4884
      %v4889 = vmul.f32 %v4823, %v4242
      %v4890 = vmul.f32 %v4824, %v4243
      %v4891 = vmul.f32 %v4825, %v4244
      %v4892 = vmul.f32 %v4826, %v4245
      %v4893 = vmul.f32 %v4827, %v4246
      %v4894 = vmul.f32 %v4828, %v4247
      %v4895 = vmul.f32 %v4829, %v4248
      %v4896 = vmul.f32 %v4830, %v4249
      %v4897 = vmul.f32 %v4831, %v4250
      %v4898 = vmul.f32 %v4832, %v4251
      %v4899 = vmul.f32 %v4833, %v4252
      %v4900 = vmul.f32 %v4834, %v4253
      %v4901 = vmul.f32 %v4835, %v4254
      %v4902 = vmul.f32 %v4836, %v4255
      %v4903 = vmul.f32 %v4837, %v4256
      %v4904 = vmul.f32 %v4838, %v4257
      %s4905 = scalar_lea.vmem %s1, 80
      %v4906 = vld [vmem:[%s4905] sm:$0xff]
      %v4907 = vld [vmem:[%s4905 + $0x8] sm:$0x3]
      %v4908 = vlaneseq
      %v4909 = vshrl.u32 %v4908, 7
      %v4910 = vsub.s32 0, %v4909
      %v4911 = vrot.slane %v4863, %v4910
      %v4912 = vlaneseq
      %v4913 = vshrl.u32 %v4912, 7
      %v4914 = vsub.s32 0, %v4913
      %v4915 = vrot.slane %v4877, %v4914
      %v4916 = vlaneseq
      %v4917 = vshrl.u32 %v4916, 7
      %v4918 = vsub.s32 0, %v4917
      %v4919 = vrot.slane %v4885, %v4918
      %v4920 = vlaneseq
      %v4921 = vshrl.u32 %v4920, 7
      %v4922 = vsub.s32 0, %v4921
      %v4923 = vrot.slane %v4887, %v4922
      %v4924 = vlaneseq
      %v4925 = vshrl.u32 %v4924, 7
      %v4926 = vsub.s32 0, %v4925
      %v4927 = vrot.slane %v4870, %v4926
      %v4928 = vlaneseq
      %v4929 = vshrl.u32 %v4928, 7
      %v4930 = vsub.s32 0, %v4929
      %v4931 = vrot.slane %v4884, %v4930
      %v4932 = vlaneseq
      %v4933 = vshrl.u32 %v4932, 7
      %v4934 = vsub.s32 0, %v4933
      %v4935 = vrot.slane %v4886, %v4934
      %v4936 = vlaneseq
      %v4937 = vshrl.u32 %v4936, 7
      %v4938 = vsub.s32 0, %v4937
      %v4939 = vrot.slane %v4888, %v4938
      %v4948 = vmul.f32 %v4911, %v4906
      %v4949 = vmul.f32 %v4911, %v4907
      %v4950 = vmul.f32 %v4915, %v4906
      %v4951 = vmul.f32 %v4915, %v4907
      %v4952 = vmul.f32 %v4919, %v4906
      %v4953 = vmul.f32 %v4919, %v4907
      %v4954 = vmul.f32 %v4923, %v4906
      %v4955 = vmul.f32 %v4923, %v4907
      %v4956 = vmul.f32 %v4927, %v4906
      %v4957 = vmul.f32 %v4927, %v4907
      %v4958 = vmul.f32 %v4931, %v4906
      %v4959 = vmul.f32 %v4931, %v4907
      %v4960 = vmul.f32 %v4935, %v4906
      %v4961 = vmul.f32 %v4935, %v4907
      %v4962 = vmul.f32 %v4939, %v4906
      %v4963 = vmul.f32 %v4939, %v4907
      %4980 = vrot.lane.b32.xlu0 %v4948, 32
      %v4981 = vpop.permute.xlu0 %4980
      %4982 = vrot.lane.b32.xlu0 %v4949, 32
      %v4983 = vpop.permute.xlu0 %4982
      %4984 = vrot.lane.b32.xlu0 %v4950, 32
      %v4985 = vpop.permute.xlu0 %4984
      %4986 = vrot.lane.b32.xlu0 %v4951, 32
      %v4987 = vpop.permute.xlu0 %4986
      %4988 = vrot.lane.b32.xlu0 %v4952, 32
      %v4989 = vpop.permute.xlu0 %4988
      %4990 = vrot.lane.b32.xlu0 %v4953, 32
      %v4991 = vpop.permute.xlu0 %4990
      %4992 = vrot.lane.b32.xlu0 %v4954, 32
      %v4993 = vpop.permute.xlu0 %4992
      %4994 = vrot.lane.b32.xlu0 %v4955, 32
      %v4995 = vpop.permute.xlu0 %4994
      %4996 = vrot.lane.b32.xlu0 %v4956, 32
      %v4997 = vpop.permute.xlu0 %4996
      %4998 = vrot.lane.b32.xlu0 %v4957, 32
      %v4999 = vpop.permute.xlu0 %4998
      %5000 = vrot.lane.b32.xlu0 %v4958, 32
      %v5001 = vpop.permute.xlu0 %5000
      %5002 = vrot.lane.b32.xlu0 %v4959, 32
      %v5003 = vpop.permute.xlu0 %5002
      %5004 = vrot.lane.b32.xlu0 %v4960, 32
      %v5005 = vpop.permute.xlu0 %5004
      %5006 = vrot.lane.b32.xlu0 %v4961, 32
      %v5007 = vpop.permute.xlu0 %5006
      %5008 = vrot.lane.b32.xlu0 %v4962, 32
      %v5009 = vpop.permute.xlu0 %5008
      %5010 = vrot.lane.b32.xlu0 %v4963, 32
      %v5011 = vpop.permute.xlu0 %5010
      %v5028 = vadd.f32 %v4889, %v4981
      %v5029 = vadd.f32 %v4890, %v4983
      %v5030 = vadd.f32 %v4891, %v4985
      %v5031 = vadd.f32 %v4892, %v4987
      %v5032 = vadd.f32 %v4893, %v4989
      %v5033 = vadd.f32 %v4894, %v4991
      %v5034 = vadd.f32 %v4895, %v4993
      %v5035 = vadd.f32 %v4896, %v4995
      %v5036 = vadd.f32 %v4897, %v4997
      %v5037 = vadd.f32 %v4898, %v4999
      %v5038 = vadd.f32 %v4899, %v5001
      %v5039 = vadd.f32 %v4900, %v5003
      %v5040 = vadd.f32 %v4901, %v5005
      %v5041 = vadd.f32 %v4902, %v5007
      %v5042 = vadd.f32 %v4903, %v5009
      %v5043 = vadd.f32 %v4904, %v5011
      %v5044 = vmul.f32 %v4823, %v4357
      %v5045 = vmul.f32 %v4824, %v4358
      %v5046 = vmul.f32 %v4825, %v4359
      %v5047 = vmul.f32 %v4826, %v4360
      %v5048 = vmul.f32 %v4827, %v4361
      %v5049 = vmul.f32 %v4828, %v4362
      %v5050 = vmul.f32 %v4829, %v4363
      %v5051 = vmul.f32 %v4830, %v4364
      %v5052 = vmul.f32 %v4831, %v4365
      %v5053 = vmul.f32 %v4832, %v4366
      %v5054 = vmul.f32 %v4833, %v4367
      %v5055 = vmul.f32 %v4834, %v4368
      %v5056 = vmul.f32 %v4835, %v4369
      %v5057 = vmul.f32 %v4836, %v4370
      %v5058 = vmul.f32 %v4837, %v4371
      %v5059 = vmul.f32 %v4838, %v4372
      %s5060 = scalar_lea.vmem %s2, 80
      %v5061 = vld [vmem:[%s5060] sm:$0xff]
      %v5062 = vld [vmem:[%s5060 + $0x8] sm:$0x3]
      %v5063 = vmul.f32 %v4911, %v5061
      %v5064 = vmul.f32 %v4911, %v5062
      %v5065 = vmul.f32 %v4915, %v5061
      %v5066 = vmul.f32 %v4915, %v5062
      %v5067 = vmul.f32 %v4919, %v5061
      %v5068 = vmul.f32 %v4919, %v5062
      %v5069 = vmul.f32 %v4923, %v5061
      %v5070 = vmul.f32 %v4923, %v5062
      %v5071 = vmul.f32 %v4927, %v5061
      %v5072 = vmul.f32 %v4927, %v5062
      %v5073 = vmul.f32 %v4931, %v5061
      %v5074 = vmul.f32 %v4931, %v5062
      %v5075 = vmul.f32 %v4935, %v5061
      %v5076 = vmul.f32 %v4935, %v5062
      %v5077 = vmul.f32 %v4939, %v5061
      %v5078 = vmul.f32 %v4939, %v5062
      %5095 = vrot.lane.b32.xlu0 %v5063, 32
      %v5096 = vpop.permute.xlu0 %5095
      %5097 = vrot.lane.b32.xlu0 %v5064, 32
      %v5098 = vpop.permute.xlu0 %5097
      %5099 = vrot.lane.b32.xlu0 %v5065, 32
      %v5100 = vpop.permute.xlu0 %5099
      %5101 = vrot.lane.b32.xlu0 %v5066, 32
      %v5102 = vpop.permute.xlu0 %5101
      %5103 = vrot.lane.b32.xlu0 %v5067, 32
      %v5104 = vpop.permute.xlu0 %5103
      %5105 = vrot.lane.b32.xlu0 %v5068, 32
      %v5106 = vpop.permute.xlu0 %5105
      %5107 = vrot.lane.b32.xlu0 %v5069, 32
      %v5108 = vpop.permute.xlu0 %5107
      %5109 = vrot.lane.b32.xlu0 %v5070, 32
      %v5110 = vpop.permute.xlu0 %5109
      %5111 = vrot.lane.b32.xlu0 %v5071, 32
      %v5112 = vpop.permute.xlu0 %5111
      %5113 = vrot.lane.b32.xlu0 %v5072, 32
      %v5114 = vpop.permute.xlu0 %5113
      %5115 = vrot.lane.b32.xlu0 %v5073, 32
      %v5116 = vpop.permute.xlu0 %5115
      %5117 = vrot.lane.b32.xlu0 %v5074, 32
      %v5118 = vpop.permute.xlu0 %5117
      %5119 = vrot.lane.b32.xlu0 %v5075, 32
      %v5120 = vpop.permute.xlu0 %5119
      %5121 = vrot.lane.b32.xlu0 %v5076, 32
      %v5122 = vpop.permute.xlu0 %5121
      %5123 = vrot.lane.b32.xlu0 %v5077, 32
      %v5124 = vpop.permute.xlu0 %5123
      %5125 = vrot.lane.b32.xlu0 %v5078, 32
      %v5126 = vpop.permute.xlu0 %5125
      %v5143 = vadd.f32 %v5044, %v5096
      %v5144 = vadd.f32 %v5045, %v5098
      %v5145 = vadd.f32 %v5046, %v5100
      %v5146 = vadd.f32 %v5047, %v5102
      %v5147 = vadd.f32 %v5048, %v5104
      %v5148 = vadd.f32 %v5049, %v5106
      %v5149 = vadd.f32 %v5050, %v5108
      %v5150 = vadd.f32 %v5051, %v5110
      %v5151 = vadd.f32 %v5052, %v5112
      %v5152 = vadd.f32 %v5053, %v5114
      %v5153 = vadd.f32 %v5054, %v5116
      %v5154 = vadd.f32 %v5055, %v5118
      %v5155 = vadd.f32 %v5056, %v5120
      %v5156 = vadd.f32 %v5057, %v5122
      %v5157 = vadd.f32 %v5058, %v5124
      %v5158 = vadd.f32 %v5059, %v5126
      %v5159 = vmul.f32 %v5028, %v5028
      %v5160 = vmul.f32 %v5029, %v5029
      %v5161 = vmul.f32 %v5030, %v5030
      %v5162 = vmul.f32 %v5031, %v5031
      %v5163 = vmul.f32 %v5032, %v5032
      %v5164 = vmul.f32 %v5033, %v5033
      %v5165 = vmul.f32 %v5034, %v5034
      %v5166 = vmul.f32 %v5035, %v5035
      %v5167 = vmul.f32 %v5036, %v5036
      %v5168 = vmul.f32 %v5037, %v5037
      %v5169 = vmul.f32 %v5038, %v5038
      %v5170 = vmul.f32 %v5039, %v5039
      %v5171 = vmul.f32 %v5040, %v5040
      %v5172 = vmul.f32 %v5041, %v5041
      %v5173 = vmul.f32 %v5042, %v5042
      %v5174 = vmul.f32 %v5043, %v5043
      %v5175 = vmul.f32 %v5143, %v5143
      %v5176 = vmul.f32 %v5144, %v5144
      %v5177 = vmul.f32 %v5145, %v5145
      %v5178 = vmul.f32 %v5146, %v5146
      %v5179 = vmul.f32 %v5147, %v5147
      %v5180 = vmul.f32 %v5148, %v5148
      %v5181 = vmul.f32 %v5149, %v5149
      %v5182 = vmul.f32 %v5150, %v5150
      %v5183 = vmul.f32 %v5151, %v5151
      %v5184 = vmul.f32 %v5152, %v5152
      %v5185 = vmul.f32 %v5153, %v5153
      %v5186 = vmul.f32 %v5154, %v5154
      %v5187 = vmul.f32 %v5155, %v5155
      %v5188 = vmul.f32 %v5156, %v5156
      %v5189 = vmul.f32 %v5157, %v5157
      %v5190 = vmul.f32 %v5158, %v5158
      %v5191 = vadd.f32 %v5159, %v5175
      %v5192 = vadd.f32 %v5160, %v5176
      %v5193 = vadd.f32 %v5161, %v5177
      %v5194 = vadd.f32 %v5162, %v5178
      %v5195 = vadd.f32 %v5163, %v5179
      %v5196 = vadd.f32 %v5164, %v5180
      %v5197 = vadd.f32 %v5165, %v5181
      %v5198 = vadd.f32 %v5166, %v5182
      %v5199 = vadd.f32 %v5167, %v5183
      %v5200 = vadd.f32 %v5168, %v5184
      %v5201 = vadd.f32 %v5169, %v5185
      %v5202 = vadd.f32 %v5170, %v5186
      %v5203 = vadd.f32 %v5171, %v5187
      %v5204 = vadd.f32 %v5172, %v5188
      %v5205 = vadd.f32 %v5173, %v5189
      %v5206 = vadd.f32 %v5174, %v5190
      %v5207 = vmul.f32 %v5191, %v1255
      %v5208 = vmul.f32 %v5192, %v1257
      %v5209 = vmul.f32 %v5193, %v1255
      %v5210 = vmul.f32 %v5194, %v1257
      %v5211 = vmul.f32 %v5195, %v1255
      %v5212 = vmul.f32 %v5196, %v1257
      %v5213 = vmul.f32 %v5197, %v1255
      %v5214 = vmul.f32 %v5198, %v1257
      %v5215 = vmul.f32 %v5199, %v1255
      %v5216 = vmul.f32 %v5200, %v1257
      %v5217 = vmul.f32 %v5201, %v1255
      %v5218 = vmul.f32 %v5202, %v1257
      %v5219 = vmul.f32 %v5203, %v1255
      %v5220 = vmul.f32 %v5204, %v1257
      %v5221 = vmul.f32 %v5205, %v1255
      %v5222 = vmul.f32 %v5206, %v1257
      %v5223 = vsel %vm1276, %v5207, 0.0
      %v5224 = vsel %vm1278, %v5208, 0.0
      %v5225 = vadd.f32 %v5223, %v5224
      %v5226 = vrot.slane %v5225, 4
      %v5227 = vadd.f32 %v5225, %v5226
      %v5228 = vrot.slane %v5227, 2
      %v5229 = vadd.f32 %v5227, %v5228
      %v5230 = vrot.slane %v5229, 1
      %v5231 = vadd.f32 %v5229, %v5230
      %v5232 = vsel %vm1276, %v5209, 0.0
      %v5233 = vsel %vm1278, %v5210, 0.0
      %v5234 = vadd.f32 %v5232, %v5233
      %v5235 = vrot.slane %v5234, 4
      %v5236 = vadd.f32 %v5234, %v5235
      %v5237 = vrot.slane %v5236, 2
      %v5238 = vadd.f32 %v5236, %v5237
      %v5239 = vrot.slane %v5238, 1
      %v5240 = vadd.f32 %v5238, %v5239
      %v5241 = vsel %vm1276, %v5211, 0.0
      %v5242 = vsel %vm1278, %v5212, 0.0
      %v5243 = vadd.f32 %v5241, %v5242
      %v5244 = vrot.slane %v5243, 4
      %v5245 = vadd.f32 %v5243, %v5244
      %v5246 = vrot.slane %v5245, 2
      %v5247 = vadd.f32 %v5245, %v5246
      %v5248 = vrot.slane %v5247, 1
      %v5249 = vadd.f32 %v5247, %v5248
      %v5250 = vsel %vm1276, %v5213, 0.0
      %v5251 = vsel %vm1278, %v5214, 0.0
      %v5252 = vadd.f32 %v5250, %v5251
      %v5253 = vrot.slane %v5252, 4
      %v5254 = vadd.f32 %v5252, %v5253
      %v5255 = vrot.slane %v5254, 2
      %v5256 = vadd.f32 %v5254, %v5255
      %v5257 = vrot.slane %v5256, 1
      %v5258 = vadd.f32 %v5256, %v5257
      %v5259 = vsel %vm1276, %v5215, 0.0
      %v5260 = vsel %vm1278, %v5216, 0.0
      %v5261 = vadd.f32 %v5259, %v5260
      %v5262 = vrot.slane %v5261, 4
      %v5263 = vadd.f32 %v5261, %v5262
      %v5264 = vrot.slane %v5263, 2
      %v5265 = vadd.f32 %v5263, %v5264
      %v5266 = vrot.slane %v5265, 1
      %v5267 = vadd.f32 %v5265, %v5266
      %v5268 = vsel %vm1276, %v5217, 0.0
      %v5269 = vsel %vm1278, %v5218, 0.0
      %v5270 = vadd.f32 %v5268, %v5269
      %v5271 = vrot.slane %v5270, 4
      %v5272 = vadd.f32 %v5270, %v5271
      %v5273 = vrot.slane %v5272, 2
      %v5274 = vadd.f32 %v5272, %v5273
      %v5275 = vrot.slane %v5274, 1
      %v5276 = vadd.f32 %v5274, %v5275
      %v5277 = vsel %vm1276, %v5219, 0.0
      %v5278 = vsel %vm1278, %v5220, 0.0
      %v5279 = vadd.f32 %v5277, %v5278
      %v5280 = vrot.slane %v5279, 4
      %v5281 = vadd.f32 %v5279, %v5280
      %v5282 = vrot.slane %v5281, 2
      %v5283 = vadd.f32 %v5281, %v5282
      %v5284 = vrot.slane %v5283, 1
      %v5285 = vadd.f32 %v5283, %v5284
      %v5286 = vsel %vm1276, %v5221, 0.0
      %v5287 = vsel %vm1278, %v5222, 0.0
      %v5288 = vadd.f32 %v5286, %v5287
      %v5289 = vrot.slane %v5288, 4
      %v5290 = vadd.f32 %v5288, %v5289
      %v5291 = vrot.slane %v5290, 2
      %v5292 = vadd.f32 %v5290, %v5291
      %v5293 = vrot.slane %v5292, 1
      %v5294 = vadd.f32 %v5292, %v5293
      %v5295 = vadd.f32 %v5231, %v1356
      %v5296 = vadd.f32 %v5240, %v1356
      %v5297 = vadd.f32 %v5249, %v1356
      %v5298 = vadd.f32 %v5258, %v1356
      %v5299 = vadd.f32 %v5267, %v1356
      %v5300 = vadd.f32 %v5276, %v1356
      %v5301 = vadd.f32 %v5285, %v1356
      %v5302 = vadd.f32 %v5294, %v1356
      %v5303 = vtanh.pop %v5295
      %v5304 = vtanh.pop %v5296
      %v5305 = vtanh.pop %v5297
      %v5306 = vtanh.pop %v5298
      %v5307 = vtanh.pop %v5299
      %v5308 = vtanh.pop %v5300
      %v5309 = vtanh.pop %v5301
      %v5310 = vtanh.pop %v5302
      %v5319 = vrot.slane %v5304, 7
      %v5320 = vsel %vm1383, %v5319, %v5303
      %v5321 = vrot.slane %v5305, 6
      %v5322 = vsel %vm1386, %v5321, %v5320
      %v5323 = vrot.slane %v5306, 5
      %v5324 = vsel %vm1389, %v5323, %v5322
      %v5325 = vrot.slane %v5307, 4
      %v5326 = vsel %vm1392, %v5325, %v5324
      %v5327 = vrot.slane %v5308, 3
      %v5328 = vsel %vm1395, %v5327, %v5326
      %v5329 = vrot.slane %v5309, 2
      %v5330 = vsel %vm1398, %v5329, %v5328
      %v5331 = vrot.slane %v5310, 1
      %v5332 = vsel %vm1401, %v5331, %v5330
      %5333 = vrot.lane.b32.xlu0 %v5332, 64
      %v5334 = vpop.permute.xlu0 %5333
      %v5336 = vmul.f32 %v4634, %v5334
      %v5337 = vld [vmem:[#allocation2 + $0x60] sm:$0xff]
      %v5338 = vld [vmem:[#allocation2 + $0x68] sm:$0xff]
      %5340 = vrot.lane.b32.xlu0 %v5336, 32
      %v5341 = vpop.permute.xlu0 %5340
      %v5342 = vsel %vm617, %v5341, 0
      %5344 = vmatprep.subr.mxu0 %v605
      %5345 = vmatpush1.msra.mxu0 %v604
      %5346 = vmatprep.subr.mxu0 %v607
      %5347 = vmatpush1.msra.mxu0 %v606
      %5348 = vmatprep.subr.mxu0 %v609
      %5349 = vmatpush1.msra.mxu0 %v608
      %5350 = vmatprep.subr.mxu0 %v611
      %5351 = vmatpush1.msra.mxu0 %v610
      %5352 = vmatprep.subr.mxu0 0.0
      %5353 = vmatpush1.msra.mxu0 0.0
      %5354 = vmatprep.subr.mxu0 0.0
      %5355 = vmatpush1.msra.mxu0 0.0
      %5356 = vmatprep.subr.mxu0 0.0
      %5357 = vmatpush1.msra.mxu0 0.0
      %5358 = vmatprep.subr.mxu0 0.0
      %5359 = vmatpush1.msra.mxu0 0.0
      %5360 = vmatprep.subr.mxu0 0.0
      %5361 = vmatpush1.msra.mxu0 0.0
      %5362 = vmatprep.subr.mxu0 0.0
      %5363 = vmatpush1.msra.mxu0 0.0
      %5364 = vmatprep.subr.mxu0 0.0
      %5365 = vmatpush1.msra.mxu0 0.0
      %5366 = vmatprep.subr.mxu0 0.0
      %5367 = vmatpush1.msra.mxu0 0.0
      %5368 = vmatprep.subr.mxu0 0.0
      %5369 = vmatpush1.msra.mxu0 0.0
      %5370 = vmatprep.subr.mxu0 0.0
      %5371 = vmatpush1.msra.mxu0 0.0
      %5372 = vmatprep.subr.mxu0 0.0
      %5373 = vmatpush1.msra.mxu0 0.0
      %5374 = vmatprep.subr.mxu0 0.0
      %5375 = vmatpush1.msra.mxu0 0.0
      %5376 = vmatprep.subr.mxu0 0.0
      %5377 = vmatpush1.msra.mxu0 0.0
      %5378 = vmatprep.subr.mxu0 0.0
      %5379 = vmatpush1.msra.mxu0 0.0
      %5380 = vmatprep.subr.mxu0 0.0
      %5381 = vmatpush1.msra.mxu0 0.0
      %5382 = vmatprep.subr.mxu0 0.0
      %5383 = vmatpush1.msra.mxu0 0.0
      %5384 = vmatprep.subr.mxu0 0.0
      %5385 = vmatpush1.msra.mxu0 0.0
      %5386 = vmatprep.subr.mxu0 0.0
      %5387 = vmatpush1.msra.mxu0 0.0
      %5388 = vmatprep.subr.mxu0 0.0
      %5389 = vmatpush1.msra.mxu0 0.0
      %5390 = vmatprep.subr.mxu0 0.0
      %5391 = vmatpush1.msra.mxu0 0.0
      %5392 = vmatprep.subr.mxu0 0.0
      %5393 = vmatpush1.msra.mxu0 0.0
      %5394 = vmatprep.subr.mxu0 0.0
      %5395 = vmatpush1.msra.mxu0 0.0
      %5396 = vmatprep.subr.mxu0 0.0
      %5397 = vmatpush1.msra.mxu0 0.0
      %5398 = vmatprep.subr.mxu0 0.0
      %5399 = vmatpush1.msra.mxu0 0.0
      %5400 = vmatprep.subr.mxu0 0.0
      %5401 = vmatpush1.msra.mxu0 0.0
      %5402 = vmatprep.subr.mxu0 0.0
      %5403 = vmatpush1.msra.mxu0 0.0
      %5404 = vmatprep.subr.mxu0 0.0
      %5405 = vmatpush1.msra.mxu0 0.0
      %5406 = vmatprep.subr.mxu0 0.0
      %5407 = vmatpush1.msra.mxu0 0.0
      %5408 = vmatprep.mubr.f32.mxu0 0.0
      %5409 = vmatmul.mubr.f32.gmra.mrb[0].mxu0 %v5342
      %v5410 = vpop.f32.mrb[0].mxu0
      %v5411 = vadd.f32 0.0, %v5410
      %v5412 = vpop.f32.mrb[0].mxu0
      %v5413 = vadd.f32 0.0, %v5412
      %5414 = vdwg.mxu0
      %v5415 = vadd.f32 %v5337, %v5411
      %v5416 = vadd.f32 %v5338, %v5413
      %v5417 = vmul.f32 %v5415, 0.16666667
      %v5418 = vadd.f32 %v5417, 0.5
      %v5419 = vmax.f32 %v5418, 0.0
      %v5420 = vmin.f32 %v5419, 1.0
      %v5421 = vtanh.pop %v5415
      %5423 = vrot.lane.b32.xlu0 %v5421, 64
      %v5424 = vpop.permute.xlu0 %5423
      %v5426 = vmul.f32 %v5420, %v5424
      %v5427 = vmul.f32 %v5416, 0.16666667
      %v5428 = vadd.f32 %v5427, 0.5
      %v5429 = vmax.f32 %v5428, 0.0
      %v5430 = vmin.f32 %v5429, 1.0
      %v5431 = vlaneseq
      %v5432 = vshrl.u32 %v5431, 7
      %v5433 = vsub.s32 0, %v5432
      %v5434 = vrot.slane %v5430, %v5433
      %5436 = vbcast.lane.b32.xlu0 %v5434, 256
      %v5437 = vpop.permute.xlu0 %5436
      %s5439 = sor.u32 256, 8
      %5440 = vbcast.lane.b32.xlu0 %v5434, %s5439
      %v5441 = vpop.permute.xlu0 %5440
      %v5442 = vlaneseq
      %v5443 = vshrl.u32 %v5442, 7
      %v5444 = vsub.s32 1, %v5443
      %v5445 = vrot.slane %v5430, %v5444
      %5447 = vbcast.lane.b32.xlu0 %v5445, 256
      %v5448 = vpop.permute.xlu0 %5447
      %s5450 = sor.u32 256, 8
      %5451 = vbcast.lane.b32.xlu0 %v5445, %s5450
      %v5452 = vpop.permute.xlu0 %5451
      %v5453 = vlaneseq
      %v5454 = vshrl.u32 %v5453, 7
      %v5455 = vsub.s32 2, %v5454
      %v5456 = vrot.slane %v5430, %v5455
      %5458 = vbcast.lane.b32.xlu0 %v5456, 256
      %v5459 = vpop.permute.xlu0 %5458
      %s5461 = sor.u32 256, 8
      %5462 = vbcast.lane.b32.xlu0 %v5456, %s5461
      %v5463 = vpop.permute.xlu0 %5462
      %v5464 = vlaneseq
      %v5465 = vshrl.u32 %v5464, 7
      %v5466 = vsub.s32 3, %v5465
      %v5467 = vrot.slane %v5430, %v5466
      %5469 = vbcast.lane.b32.xlu0 %v5467, 256
      %v5470 = vpop.permute.xlu0 %5469
      %s5472 = sor.u32 256, 8
      %5473 = vbcast.lane.b32.xlu0 %v5467, %s5472
      %v5474 = vpop.permute.xlu0 %5473
      %v5475 = vlaneseq
      %v5476 = vshrl.u32 %v5475, 7
      %v5477 = vsub.s32 4, %v5476
      %v5478 = vrot.slane %v5430, %v5477
      %5480 = vbcast.lane.b32.xlu0 %v5478, 256
      %v5481 = vpop.permute.xlu0 %5480
      %s5483 = sor.u32 256, 8
      %5484 = vbcast.lane.b32.xlu0 %v5478, %s5483
      %v5485 = vpop.permute.xlu0 %5484
      %v5486 = vlaneseq
      %v5487 = vshrl.u32 %v5486, 7
      %v5488 = vsub.s32 5, %v5487
      %v5489 = vrot.slane %v5430, %v5488
      %5491 = vbcast.lane.b32.xlu0 %v5489, 256
      %v5492 = vpop.permute.xlu0 %5491
      %s5494 = sor.u32 256, 8
      %5495 = vbcast.lane.b32.xlu0 %v5489, %s5494
      %v5496 = vpop.permute.xlu0 %5495
      %v5497 = vlaneseq
      %v5498 = vshrl.u32 %v5497, 7
      %v5499 = vsub.s32 6, %v5498
      %v5500 = vrot.slane %v5430, %v5499
      %5502 = vbcast.lane.b32.xlu0 %v5500, 256
      %v5503 = vpop.permute.xlu0 %5502
      %s5505 = sor.u32 256, 8
      %5506 = vbcast.lane.b32.xlu0 %v5500, %s5505
      %v5507 = vpop.permute.xlu0 %5506
      %v5508 = vlaneseq
      %v5509 = vshrl.u32 %v5508, 7
      %v5510 = vsub.s32 7, %v5509
      %v5511 = vrot.slane %v5430, %v5510
      %5513 = vbcast.lane.b32.xlu0 %v5511, 256
      %v5514 = vpop.permute.xlu0 %5513
      %s5516 = sor.u32 256, 8
      %5517 = vbcast.lane.b32.xlu0 %v5511, %s5516
      %v5518 = vpop.permute.xlu0 %5517
      %v5520 = vcombine.high %v5420, %v5420
      %v5522 = vunpack.c.l.s4 1966171168
      %v5523 = vunpack.c.0.s8 %v5522
      %v5524 = vlaneseq
      %v5525 = vshrl.u32 %v5524, 7
      %v5526 = vsub.s32 %v5523, %v5525
      %v5527 = vrot.slane %v5420, %v5526
      %v5529 = vunpack.c.l.s4 1966171168
      %v5530 = vunpack.c.0.s8 %v5529
      %v5531 = vlaneseq
      %v5532 = vshrl.u32 %v5531, 7
      %v5533 = vsub.s32 %v5530, %v5532
      %v5534 = vrot.slane %v5520, %v5533
      %v5535 = vcombine.high %v5527, %v5527
      %v5536 = vcombine.high %v5534, %v5534
      %v5538 = vunpack.c.l.s4 1966171168
      %v5539 = vunpack.c.0.s8 %v5538
      %v5540 = vlaneseq
      %v5541 = vshrl.u32 %v5540, 7
      %v5542 = vsub.s32 %v5539, %v5541
      %v5543 = vrot.slane %v5527, %v5542
      %v5545 = vunpack.c.l.s4 1966171168
      %v5546 = vunpack.c.0.s8 %v5545
      %v5547 = vlaneseq
      %v5548 = vshrl.u32 %v5547, 7
      %v5549 = vsub.s32 %v5546, %v5548
      %v5550 = vrot.slane %v5534, %v5549
      %v5552 = vunpack.c.l.s4 1966171168
      %v5553 = vunpack.c.0.s8 %v5552
      %v5554 = vlaneseq
      %v5555 = vshrl.u32 %v5554, 7
      %v5556 = vsub.s32 %v5553, %v5555
      %v5557 = vrot.slane %v5535, %v5556
      %v5559 = vunpack.c.l.s4 1966171168
      %v5560 = vunpack.c.0.s8 %v5559
      %v5561 = vlaneseq
      %v5562 = vshrl.u32 %v5561, 7
      %v5563 = vsub.s32 %v5560, %v5562
      %v5564 = vrot.slane %v5536, %v5563
      %v5565 = vcombine.high %v5543, %v5543
      %v5566 = vcombine.high %v5550, %v5550
      %v5567 = vcombine.high %v5557, %v5557
      %v5568 = vcombine.high %v5564, %v5564
      %v5569 = vlaneseq
      %v5570 = vshrl.u32 %v5569, 7
      %v5571 = vsub.s32 0, %v5570
      %v5572 = vrot.slane %v5543, %v5571
      %v5573 = vlaneseq
      %v5574 = vshrl.u32 %v5573, 7
      %v5575 = vsub.s32 0, %v5574
      %v5576 = vrot.slane %v5557, %v5575
      %v5577 = vlaneseq
      %v5578 = vshrl.u32 %v5577, 7
      %v5579 = vsub.s32 0, %v5578
      %v5580 = vrot.slane %v5565, %v5579
      %v5581 = vlaneseq
      %v5582 = vshrl.u32 %v5581, 7
      %v5583 = vsub.s32 0, %v5582
      %v5584 = vrot.slane %v5567, %v5583
      %v5585 = vlaneseq
      %v5586 = vshrl.u32 %v5585, 7
      %v5587 = vsub.s32 0, %v5586
      %v5588 = vrot.slane %v5550, %v5587
      %v5589 = vlaneseq
      %v5590 = vshrl.u32 %v5589, 7
      %v5591 = vsub.s32 0, %v5590
      %v5592 = vrot.slane %v5564, %v5591
      %v5593 = vlaneseq
      %v5594 = vshrl.u32 %v5593, 7
      %v5595 = vsub.s32 0, %v5594
      %v5596 = vrot.slane %v5566, %v5595
      %v5597 = vlaneseq
      %v5598 = vshrl.u32 %v5597, 7
      %v5599 = vsub.s32 0, %v5598
      %v5600 = vrot.slane %v5568, %v5599
      %v5609 = vmul.f32 %v5437, %v5572
      %v5610 = vmul.f32 %v5441, %v5572
      %v5611 = vmul.f32 %v5448, %v5576
      %v5612 = vmul.f32 %v5452, %v5576
      %v5613 = vmul.f32 %v5459, %v5580
      %v5614 = vmul.f32 %v5463, %v5580
      %v5615 = vmul.f32 %v5470, %v5584
      %v5616 = vmul.f32 %v5474, %v5584
      %v5617 = vmul.f32 %v5481, %v5588
      %v5618 = vmul.f32 %v5485, %v5588
      %v5619 = vmul.f32 %v5492, %v5592
      %v5620 = vmul.f32 %v5496, %v5592
      %v5621 = vmul.f32 %v5503, %v5596
      %v5622 = vmul.f32 %v5507, %v5596
      %v5623 = vmul.f32 %v5514, %v5600
      %v5624 = vmul.f32 %v5518, %v5600
      %v5626 = vcombine.high %v5426, %v5426
      %v5628 = vunpack.c.l.s4 1966171168
      %v5629 = vunpack.c.0.s8 %v5628
      %v5630 = vlaneseq
      %v5631 = vshrl.u32 %v5630, 7
      %v5632 = vsub.s32 %v5629, %v5631
      %v5633 = vrot.slane %v5426, %v5632
      %v5635 = vunpack.c.l.s4 1966171168
      %v5636 = vunpack.c.0.s8 %v5635
      %v5637 = vlaneseq
      %v5638 = vshrl.u32 %v5637, 7
      %v5639 = vsub.s32 %v5636, %v5638
      %v5640 = vrot.slane %v5626, %v5639
      %v5641 = vcombine.high %v5633, %v5633
      %v5642 = vcombine.high %v5640, %v5640
      %v5644 = vunpack.c.l.s4 1966171168
      %v5645 = vunpack.c.0.s8 %v5644
      %v5646 = vlaneseq
      %v5647 = vshrl.u32 %v5646, 7
      %v5648 = vsub.s32 %v5645, %v5647
      %v5649 = vrot.slane %v5633, %v5648
      %v5651 = vunpack.c.l.s4 1966171168
      %v5652 = vunpack.c.0.s8 %v5651
      %v5653 = vlaneseq
      %v5654 = vshrl.u32 %v5653, 7
      %v5655 = vsub.s32 %v5652, %v5654
      %v5656 = vrot.slane %v5640, %v5655
      %v5658 = vunpack.c.l.s4 1966171168
      %v5659 = vunpack.c.0.s8 %v5658
      %v5660 = vlaneseq
      %v5661 = vshrl.u32 %v5660, 7
      %v5662 = vsub.s32 %v5659, %v5661
      %v5663 = vrot.slane %v5641, %v5662
      %v5665 = vunpack.c.l.s4 1966171168
      %v5666 = vunpack.c.0.s8 %v5665
      %v5667 = vlaneseq
      %v5668 = vshrl.u32 %v5667, 7
      %v5669 = vsub.s32 %v5666, %v5668
      %v5670 = vrot.slane %v5642, %v5669
      %v5671 = vcombine.high %v5649, %v5649
      %v5672 = vcombine.high %v5656, %v5656
      %v5673 = vcombine.high %v5663, %v5663
      %v5674 = vcombine.high %v5670, %v5670
      %v5675 = vmul.f32 %v5609, %v5028
      %v5676 = vmul.f32 %v5610, %v5029
      %v5677 = vmul.f32 %v5611, %v5030
      %v5678 = vmul.f32 %v5612, %v5031
      %v5679 = vmul.f32 %v5613, %v5032
      %v5680 = vmul.f32 %v5614, %v5033
      %v5681 = vmul.f32 %v5615, %v5034
      %v5682 = vmul.f32 %v5616, %v5035
      %v5683 = vmul.f32 %v5617, %v5036
      %v5684 = vmul.f32 %v5618, %v5037
      %v5685 = vmul.f32 %v5619, %v5038
      %v5686 = vmul.f32 %v5620, %v5039
      %v5687 = vmul.f32 %v5621, %v5040
      %v5688 = vmul.f32 %v5622, %v5041
      %v5689 = vmul.f32 %v5623, %v5042
      %v5690 = vmul.f32 %v5624, %v5043
      %s5691 = scalar_lea.vmem %s1, 96
      %v5692 = vld [vmem:[%s5691] sm:$0xff]
      %v5693 = vld [vmem:[%s5691 + $0x8] sm:$0x3]
      %v5694 = vlaneseq
      %v5695 = vshrl.u32 %v5694, 7
      %v5696 = vsub.s32 0, %v5695
      %v5697 = vrot.slane %v5649, %v5696
      %v5698 = vlaneseq
      %v5699 = vshrl.u32 %v5698, 7
      %v5700 = vsub.s32 0, %v5699
      %v5701 = vrot.slane %v5663, %v5700
      %v5702 = vlaneseq
      %v5703 = vshrl.u32 %v5702, 7
      %v5704 = vsub.s32 0, %v5703
      %v5705 = vrot.slane %v5671, %v5704
      %v5706 = vlaneseq
      %v5707 = vshrl.u32 %v5706, 7
      %v5708 = vsub.s32 0, %v5707
      %v5709 = vrot.slane %v5673, %v5708
      %v5710 = vlaneseq
      %v5711 = vshrl.u32 %v5710, 7
      %v5712 = vsub.s32 0, %v5711
      %v5713 = vrot.slane %v5656, %v5712
      %v5714 = vlaneseq
      %v5715 = vshrl.u32 %v5714, 7
      %v5716 = vsub.s32 0, %v5715
      %v5717 = vrot.slane %v5670, %v5716
      %v5718 = vlaneseq
      %v5719 = vshrl.u32 %v5718, 7
      %v5720 = vsub.s32 0, %v5719
      %v5721 = vrot.slane %v5672, %v5720
      %v5722 = vlaneseq
      %v5723 = vshrl.u32 %v5722, 7
      %v5724 = vsub.s32 0, %v5723
      %v5725 = vrot.slane %v5674, %v5724
      %v5734 = vmul.f32 %v5697, %v5692
      %v5735 = vmul.f32 %v5697, %v5693
      %v5736 = vmul.f32 %v5701, %v5692
      %v5737 = vmul.f32 %v5701, %v5693
      %v5738 = vmul.f32 %v5705, %v5692
      %v5739 = vmul.f32 %v5705, %v5693
      %v5740 = vmul.f32 %v5709, %v5692
      %v5741 = vmul.f32 %v5709, %v5693
      %v5742 = vmul.f32 %v5713, %v5692
      %v5743 = vmul.f32 %v5713, %v5693
      %v5744 = vmul.f32 %v5717, %v5692
      %v5745 = vmul.f32 %v5717, %v5693
      %v5746 = vmul.f32 %v5721, %v5692
      %v5747 = vmul.f32 %v5721, %v5693
      %v5748 = vmul.f32 %v5725, %v5692
      %v5749 = vmul.f32 %v5725, %v5693
      %5766 = vrot.lane.b32.xlu0 %v5734, 32
      %v5767 = vpop.permute.xlu0 %5766
      %5768 = vrot.lane.b32.xlu0 %v5735, 32
      %v5769 = vpop.permute.xlu0 %5768
      %5770 = vrot.lane.b32.xlu0 %v5736, 32
      %v5771 = vpop.permute.xlu0 %5770
      %5772 = vrot.lane.b32.xlu0 %v5737, 32
      %v5773 = vpop.permute.xlu0 %5772
      %5774 = vrot.lane.b32.xlu0 %v5738, 32
      %v5775 = vpop.permute.xlu0 %5774
      %5776 = vrot.lane.b32.xlu0 %v5739, 32
      %v5777 = vpop.permute.xlu0 %5776
      %5778 = vrot.lane.b32.xlu0 %v5740, 32
      %v5779 = vpop.permute.xlu0 %5778
      %5780 = vrot.lane.b32.xlu0 %v5741, 32
      %v5781 = vpop.permute.xlu0 %5780
      %5782 = vrot.lane.b32.xlu0 %v5742, 32
      %v5783 = vpop.permute.xlu0 %5782
      %5784 = vrot.lane.b32.xlu0 %v5743, 32
      %v5785 = vpop.permute.xlu0 %5784
      %5786 = vrot.lane.b32.xlu0 %v5744, 32
      %v5787 = vpop.permute.xlu0 %5786
      %5788 = vrot.lane.b32.xlu0 %v5745, 32
      %v5789 = vpop.permute.xlu0 %5788
      %5790 = vrot.lane.b32.xlu0 %v5746, 32
      %v5791 = vpop.permute.xlu0 %5790
      %5792 = vrot.lane.b32.xlu0 %v5747, 32
      %v5793 = vpop.permute.xlu0 %5792
      %5794 = vrot.lane.b32.xlu0 %v5748, 32
      %v5795 = vpop.permute.xlu0 %5794
      %5796 = vrot.lane.b32.xlu0 %v5749, 32
      %v5797 = vpop.permute.xlu0 %5796
      %v5814 = vadd.f32 %v5675, %v5767
      %v5815 = vadd.f32 %v5676, %v5769
      %v5816 = vadd.f32 %v5677, %v5771
      %v5817 = vadd.f32 %v5678, %v5773
      %v5818 = vadd.f32 %v5679, %v5775
      %v5819 = vadd.f32 %v5680, %v5777
      %v5820 = vadd.f32 %v5681, %v5779
      %v5821 = vadd.f32 %v5682, %v5781
      %v5822 = vadd.f32 %v5683, %v5783
      %v5823 = vadd.f32 %v5684, %v5785
      %v5824 = vadd.f32 %v5685, %v5787
      %v5825 = vadd.f32 %v5686, %v5789
      %v5826 = vadd.f32 %v5687, %v5791
      %v5827 = vadd.f32 %v5688, %v5793
      %v5828 = vadd.f32 %v5689, %v5795
      %v5829 = vadd.f32 %v5690, %v5797
      %v5830 = vmul.f32 %v5609, %v5143
      %v5831 = vmul.f32 %v5610, %v5144
      %v5832 = vmul.f32 %v5611, %v5145
      %v5833 = vmul.f32 %v5612, %v5146
      %v5834 = vmul.f32 %v5613, %v5147
      %v5835 = vmul.f32 %v5614, %v5148
      %v5836 = vmul.f32 %v5615, %v5149
      %v5837 = vmul.f32 %v5616, %v5150
      %v5838 = vmul.f32 %v5617, %v5151
      %v5839 = vmul.f32 %v5618, %v5152
      %v5840 = vmul.f32 %v5619, %v5153
      %v5841 = vmul.f32 %v5620, %v5154
      %v5842 = vmul.f32 %v5621, %v5155
      %v5843 = vmul.f32 %v5622, %v5156
      %v5844 = vmul.f32 %v5623, %v5157
      %v5845 = vmul.f32 %v5624, %v5158
      %s5846 = scalar_lea.vmem %s2, 96
      %v5847 = vld [vmem:[%s5846] sm:$0xff]
      %v5848 = vld [vmem:[%s5846 + $0x8] sm:$0x3]
      %v5849 = vmul.f32 %v5697, %v5847
      %v5850 = vmul.f32 %v5697, %v5848
      %v5851 = vmul.f32 %v5701, %v5847
      %v5852 = vmul.f32 %v5701, %v5848
      %v5853 = vmul.f32 %v5705, %v5847
      %v5854 = vmul.f32 %v5705, %v5848
      %v5855 = vmul.f32 %v5709, %v5847
      %v5856 = vmul.f32 %v5709, %v5848
      %v5857 = vmul.f32 %v5713, %v5847
      %v5858 = vmul.f32 %v5713, %v5848
      %v5859 = vmul.f32 %v5717, %v5847
      %v5860 = vmul.f32 %v5717, %v5848
      %v5861 = vmul.f32 %v5721, %v5847
      %v5862 = vmul.f32 %v5721, %v5848
      %v5863 = vmul.f32 %v5725, %v5847
      %v5864 = vmul.f32 %v5725, %v5848
      %5881 = vrot.lane.b32.xlu0 %v5849, 32
      %v5882 = vpop.permute.xlu0 %5881
      %5883 = vrot.lane.b32.xlu0 %v5850, 32
      %v5884 = vpop.permute.xlu0 %5883
      %5885 = vrot.lane.b32.xlu0 %v5851, 32
      %v5886 = vpop.permute.xlu0 %5885
      %5887 = vrot.lane.b32.xlu0 %v5852, 32
      %v5888 = vpop.permute.xlu0 %5887
      %5889 = vrot.lane.b32.xlu0 %v5853, 32
      %v5890 = vpop.permute.xlu0 %5889
      %5891 = vrot.lane.b32.xlu0 %v5854, 32
      %v5892 = vpop.permute.xlu0 %5891
      %5893 = vrot.lane.b32.xlu0 %v5855, 32
      %v5894 = vpop.permute.xlu0 %5893
      %5895 = vrot.lane.b32.xlu0 %v5856, 32
      %v5896 = vpop.permute.xlu0 %5895
      %5897 = vrot.lane.b32.xlu0 %v5857, 32
      %v5898 = vpop.permute.xlu0 %5897
      %5899 = vrot.lane.b32.xlu0 %v5858, 32
      %v5900 = vpop.permute.xlu0 %5899
      %5901 = vrot.lane.b32.xlu0 %v5859, 32
      %v5902 = vpop.permute.xlu0 %5901
      %5903 = vrot.lane.b32.xlu0 %v5860, 32
      %v5904 = vpop.permute.xlu0 %5903
      %5905 = vrot.lane.b32.xlu0 %v5861, 32
      %v5906 = vpop.permute.xlu0 %5905
      %5907 = vrot.lane.b32.xlu0 %v5862, 32
      %v5908 = vpop.permute.xlu0 %5907
      %5909 = vrot.lane.b32.xlu0 %v5863, 32
      %v5910 = vpop.permute.xlu0 %5909
      %5911 = vrot.lane.b32.xlu0 %v5864, 32
      %v5912 = vpop.permute.xlu0 %5911
      %v5929 = vadd.f32 %v5830, %v5882
      %v5930 = vadd.f32 %v5831, %v5884
      %v5931 = vadd.f32 %v5832, %v5886
      %v5932 = vadd.f32 %v5833, %v5888
      %v5933 = vadd.f32 %v5834, %v5890
      %v5934 = vadd.f32 %v5835, %v5892
      %v5935 = vadd.f32 %v5836, %v5894
      %v5936 = vadd.f32 %v5837, %v5896
      %v5937 = vadd.f32 %v5838, %v5898
      %v5938 = vadd.f32 %v5839, %v5900
      %v5939 = vadd.f32 %v5840, %v5902
      %v5940 = vadd.f32 %v5841, %v5904
      %v5941 = vadd.f32 %v5842, %v5906
      %v5942 = vadd.f32 %v5843, %v5908
      %v5943 = vadd.f32 %v5844, %v5910
      %v5944 = vadd.f32 %v5845, %v5912
      %v5945 = vmul.f32 %v5814, %v5814
      %v5946 = vmul.f32 %v5815, %v5815
      %v5947 = vmul.f32 %v5816, %v5816
      %v5948 = vmul.f32 %v5817, %v5817
      %v5949 = vmul.f32 %v5818, %v5818
      %v5950 = vmul.f32 %v5819, %v5819
      %v5951 = vmul.f32 %v5820, %v5820
      %v5952 = vmul.f32 %v5821, %v5821
      %v5953 = vmul.f32 %v5822, %v5822
      %v5954 = vmul.f32 %v5823, %v5823
      %v5955 = vmul.f32 %v5824, %v5824
      %v5956 = vmul.f32 %v5825, %v5825
      %v5957 = vmul.f32 %v5826, %v5826
      %v5958 = vmul.f32 %v5827, %v5827
      %v5959 = vmul.f32 %v5828, %v5828
      %v5960 = vmul.f32 %v5829, %v5829
      %v5961 = vmul.f32 %v5929, %v5929
      %v5962 = vmul.f32 %v5930, %v5930
      %v5963 = vmul.f32 %v5931, %v5931
      %v5964 = vmul.f32 %v5932, %v5932
      %v5965 = vmul.f32 %v5933, %v5933
      %v5966 = vmul.f32 %v5934, %v5934
      %v5967 = vmul.f32 %v5935, %v5935
      %v5968 = vmul.f32 %v5936, %v5936
      %v5969 = vmul.f32 %v5937, %v5937
      %v5970 = vmul.f32 %v5938, %v5938
      %v5971 = vmul.f32 %v5939, %v5939
      %v5972 = vmul.f32 %v5940, %v5940
      %v5973 = vmul.f32 %v5941, %v5941
      %v5974 = vmul.f32 %v5942, %v5942
      %v5975 = vmul.f32 %v5943, %v5943
      %v5976 = vmul.f32 %v5944, %v5944
      %v5977 = vadd.f32 %v5945, %v5961
      %v5978 = vadd.f32 %v5946, %v5962
      %v5979 = vadd.f32 %v5947, %v5963
      %v5980 = vadd.f32 %v5948, %v5964
      %v5981 = vadd.f32 %v5949, %v5965
      %v5982 = vadd.f32 %v5950, %v5966
      %v5983 = vadd.f32 %v5951, %v5967
      %v5984 = vadd.f32 %v5952, %v5968
      %v5985 = vadd.f32 %v5953, %v5969
      %v5986 = vadd.f32 %v5954, %v5970
      %v5987 = vadd.f32 %v5955, %v5971
      %v5988 = vadd.f32 %v5956, %v5972
      %v5989 = vadd.f32 %v5957, %v5973
      %v5990 = vadd.f32 %v5958, %v5974
      %v5991 = vadd.f32 %v5959, %v5975
      %v5992 = vadd.f32 %v5960, %v5976
      %v5993 = vmul.f32 %v5977, %v1255
      %v5994 = vmul.f32 %v5978, %v1257
      %v5995 = vmul.f32 %v5979, %v1255
      %v5996 = vmul.f32 %v5980, %v1257
      %v5997 = vmul.f32 %v5981, %v1255
      %v5998 = vmul.f32 %v5982, %v1257
      %v5999 = vmul.f32 %v5983, %v1255
      %v6000 = vmul.f32 %v5984, %v1257
      %v6001 = vmul.f32 %v5985, %v1255
      %v6002 = vmul.f32 %v5986, %v1257
      %v6003 = vmul.f32 %v5987, %v1255
      %v6004 = vmul.f32 %v5988, %v1257
      %v6005 = vmul.f32 %v5989, %v1255
      %v6006 = vmul.f32 %v5990, %v1257
      %v6007 = vmul.f32 %v5991, %v1255
      %v6008 = vmul.f32 %v5992, %v1257
      %v6009 = vsel %vm1276, %v5993, 0.0
      %v6010 = vsel %vm1278, %v5994, 0.0
      %v6011 = vadd.f32 %v6009, %v6010
      %v6012 = vrot.slane %v6011, 4
      %v6013 = vadd.f32 %v6011, %v6012
      %v6014 = vrot.slane %v6013, 2
      %v6015 = vadd.f32 %v6013, %v6014
      %v6016 = vrot.slane %v6015, 1
      %v6017 = vadd.f32 %v6015, %v6016
      %v6018 = vsel %vm1276, %v5995, 0.0
      %v6019 = vsel %vm1278, %v5996, 0.0
      %v6020 = vadd.f32 %v6018, %v6019
      %v6021 = vrot.slane %v6020, 4
      %v6022 = vadd.f32 %v6020, %v6021
      %v6023 = vrot.slane %v6022, 2
      %v6024 = vadd.f32 %v6022, %v6023
      %v6025 = vrot.slane %v6024, 1
      %v6026 = vadd.f32 %v6024, %v6025
      %v6027 = vsel %vm1276, %v5997, 0.0
      %v6028 = vsel %vm1278, %v5998, 0.0
      %v6029 = vadd.f32 %v6027, %v6028
      %v6030 = vrot.slane %v6029, 4
      %v6031 = vadd.f32 %v6029, %v6030
      %v6032 = vrot.slane %v6031, 2
      %v6033 = vadd.f32 %v6031, %v6032
      %v6034 = vrot.slane %v6033, 1
      %v6035 = vadd.f32 %v6033, %v6034
      %v6036 = vsel %vm1276, %v5999, 0.0
      %v6037 = vsel %vm1278, %v6000, 0.0
      %v6038 = vadd.f32 %v6036, %v6037
      %v6039 = vrot.slane %v6038, 4
      %v6040 = vadd.f32 %v6038, %v6039
      %v6041 = vrot.slane %v6040, 2
      %v6042 = vadd.f32 %v6040, %v6041
      %v6043 = vrot.slane %v6042, 1
      %v6044 = vadd.f32 %v6042, %v6043
      %v6045 = vsel %vm1276, %v6001, 0.0
      %v6046 = vsel %vm1278, %v6002, 0.0
      %v6047 = vadd.f32 %v6045, %v6046
      %v6048 = vrot.slane %v6047, 4
      %v6049 = vadd.f32 %v6047, %v6048
      %v6050 = vrot.slane %v6049, 2
      %v6051 = vadd.f32 %v6049, %v6050
      %v6052 = vrot.slane %v6051, 1
      %v6053 = vadd.f32 %v6051, %v6052
      %v6054 = vsel %vm1276, %v6003, 0.0
      %v6055 = vsel %vm1278, %v6004, 0.0
      %v6056 = vadd.f32 %v6054, %v6055
      %v6057 = vrot.slane %v6056, 4
      %v6058 = vadd.f32 %v6056, %v6057
      %v6059 = vrot.slane %v6058, 2
      %v6060 = vadd.f32 %v6058, %v6059
      %v6061 = vrot.slane %v6060, 1
      %v6062 = vadd.f32 %v6060, %v6061
      %v6063 = vsel %vm1276, %v6005, 0.0
      %v6064 = vsel %vm1278, %v6006, 0.0
      %v6065 = vadd.f32 %v6063, %v6064
      %v6066 = vrot.slane %v6065, 4
      %v6067 = vadd.f32 %v6065, %v6066
      %v6068 = vrot.slane %v6067, 2
      %v6069 = vadd.f32 %v6067, %v6068
      %v6070 = vrot.slane %v6069, 1
      %v6071 = vadd.f32 %v6069, %v6070
      %v6072 = vsel %vm1276, %v6007, 0.0
      %v6073 = vsel %vm1278, %v6008, 0.0
      %v6074 = vadd.f32 %v6072, %v6073
      %v6075 = vrot.slane %v6074, 4
      %v6076 = vadd.f32 %v6074, %v6075
      %v6077 = vrot.slane %v6076, 2
      %v6078 = vadd.f32 %v6076, %v6077
      %v6079 = vrot.slane %v6078, 1
      %v6080 = vadd.f32 %v6078, %v6079
      %v6081 = vadd.f32 %v6017, %v1356
      %v6082 = vadd.f32 %v6026, %v1356
      %v6083 = vadd.f32 %v6035, %v1356
      %v6084 = vadd.f32 %v6044, %v1356
      %v6085 = vadd.f32 %v6053, %v1356
      %v6086 = vadd.f32 %v6062, %v1356
      %v6087 = vadd.f32 %v6071, %v1356
      %v6088 = vadd.f32 %v6080, %v1356
      %v6089 = vtanh.pop %v6081
      %v6090 = vtanh.pop %v6082
      %v6091 = vtanh.pop %v6083
      %v6092 = vtanh.pop %v6084
      %v6093 = vtanh.pop %v6085
      %v6094 = vtanh.pop %v6086
      %v6095 = vtanh.pop %v6087
      %v6096 = vtanh.pop %v6088
      %v6105 = vrot.slane %v6090, 7
      %v6106 = vsel %vm1383, %v6105, %v6089
      %v6107 = vrot.slane %v6091, 6
      %v6108 = vsel %vm1386, %v6107, %v6106
      %v6109 = vrot.slane %v6092, 5
      %v6110 = vsel %vm1389, %v6109, %v6108
      %v6111 = vrot.slane %v6093, 4
      %v6112 = vsel %vm1392, %v6111, %v6110
      %v6113 = vrot.slane %v6094, 3
      %v6114 = vsel %vm1395, %v6113, %v6112
      %v6115 = vrot.slane %v6095, 2
      %v6116 = vsel %vm1398, %v6115, %v6114
      %v6117 = vrot.slane %v6096, 1
      %v6118 = vsel %vm1401, %v6117, %v6116
      %6119 = vrot.lane.b32.xlu0 %v6118, 64
      %v6120 = vpop.permute.xlu0 %6119
      %v6122 = vmul.f32 %v5420, %v6120
      %v6123 = vld [vmem:[#allocation2 + $0x70] sm:$0xff]
      %v6124 = vld [vmem:[#allocation2 + $0x78] sm:$0xff]
      %6126 = vrot.lane.b32.xlu0 %v6122, 32
      %v6127 = vpop.permute.xlu0 %6126
      %v6128 = vsel %vm617, %v6127, 0
      %6130 = vmatprep.subr.mxu0 %v605
      %6131 = vmatpush1.msra.mxu0 %v604
      %6132 = vmatprep.subr.mxu0 %v607
      %6133 = vmatpush1.msra.mxu0 %v606
      %6134 = vmatprep.subr.mxu0 %v609
      %6135 = vmatpush1.msra.mxu0 %v608
      %6136 = vmatprep.subr.mxu0 %v611
      %6137 = vmatpush1.msra.mxu0 %v610
      %6138 = vmatprep.subr.mxu0 0.0
      %6139 = vmatpush1.msra.mxu0 0.0
      %6140 = vmatprep.subr.mxu0 0.0
      %6141 = vmatpush1.msra.mxu0 0.0
      %6142 = vmatprep.subr.mxu0 0.0
      %6143 = vmatpush1.msra.mxu0 0.0
      %6144 = vmatprep.subr.mxu0 0.0
      %6145 = vmatpush1.msra.mxu0 0.0
      %6146 = vmatprep.subr.mxu0 0.0
      %6147 = vmatpush1.msra.mxu0 0.0
      %6148 = vmatprep.subr.mxu0 0.0
      %6149 = vmatpush1.msra.mxu0 0.0
      %6150 = vmatprep.subr.mxu0 0.0
      %6151 = vmatpush1.msra.mxu0 0.0
      %6152 = vmatprep.subr.mxu0 0.0
      %6153 = vmatpush1.msra.mxu0 0.0
      %6154 = vmatprep.subr.mxu0 0.0
      %6155 = vmatpush1.msra.mxu0 0.0
      %6156 = vmatprep.subr.mxu0 0.0
      %6157 = vmatpush1.msra.mxu0 0.0
      %6158 = vmatprep.subr.mxu0 0.0
      %6159 = vmatpush1.msra.mxu0 0.0
      %6160 = vmatprep.subr.mxu0 0.0
      %6161 = vmatpush1.msra.mxu0 0.0
      %6162 = vmatprep.subr.mxu0 0.0
      %6163 = vmatpush1.msra.mxu0 0.0
      %6164 = vmatprep.subr.mxu0 0.0
      %6165 = vmatpush1.msra.mxu0 0.0
      %6166 = vmatprep.subr.mxu0 0.0
      %6167 = vmatpush1.msra.mxu0 0.0
      %6168 = vmatprep.subr.mxu0 0.0
      %6169 = vmatpush1.msra.mxu0 0.0
      %6170 = vmatprep.subr.mxu0 0.0
      %6171 = vmatpush1.msra.mxu0 0.0
      %6172 = vmatprep.subr.mxu0 0.0
      %6173 = vmatpush1.msra.mxu0 0.0
      %6174 = vmatprep.subr.mxu0 0.0
      %6175 = vmatpush1.msra.mxu0 0.0
      %6176 = vmatprep.subr.mxu0 0.0
      %6177 = vmatpush1.msra.mxu0 0.0
      %6178 = vmatprep.subr.mxu0 0.0
      %6179 = vmatpush1.msra.mxu0 0.0
      %6180 = vmatprep.subr.mxu0 0.0
      %6181 = vmatpush1.msra.mxu0 0.0
      %6182 = vmatprep.subr.mxu0 0.0
      %6183 = vmatpush1.msra.mxu0 0.0
      %6184 = vmatprep.subr.mxu0 0.0
      %6185 = vmatpush1.msra.mxu0 0.0
      %6186 = vmatprep.subr.mxu0 0.0
      %6187 = vmatpush1.msra.mxu0 0.0
      %6188 = vmatprep.subr.mxu0 0.0
      %6189 = vmatpush1.msra.mxu0 0.0
      %6190 = vmatprep.subr.mxu0 0.0
      %6191 = vmatpush1.msra.mxu0 0.0
      %6192 = vmatprep.subr.mxu0 0.0
      %6193 = vmatpush1.msra.mxu0 0.0
      %6194 = vmatprep.mubr.f32.mxu0 0.0
      %6195 = vmatmul.mubr.f32.gmra.mrb[0].mxu0 %v6128
      %v6196 = vpop.f32.mrb[0].mxu0
      %v6197 = vadd.f32 0.0, %v6196
      %v6198 = vpop.f32.mrb[0].mxu0
      %v6199 = vadd.f32 0.0, %v6198
      %6200 = vdwg.mxu0
      %v6201 = vadd.f32 %v6123, %v6197
      %v6202 = vadd.f32 %v6124, %v6199
      %v6203 = vmul.f32 %v6201, 0.16666667
      %v6204 = vadd.f32 %v6203, 0.5
      %v6205 = vmax.f32 %v6204, 0.0
      %v6206 = vmin.f32 %v6205, 1.0
      %v6207 = vtanh.pop %v6201
      %6209 = vrot.lane.b32.xlu0 %v6207, 64
      %v6210 = vpop.permute.xlu0 %6209
      %v6212 = vmul.f32 %v6206, %v6210
      %v6213 = vmul.f32 %v6202, 0.16666667
      %v6214 = vadd.f32 %v6213, 0.5
      %v6215 = vmax.f32 %v6214, 0.0
      %v6216 = vmin.f32 %v6215, 1.0
      %v6217 = vlaneseq
      %v6218 = vshrl.u32 %v6217, 7
      %v6219 = vsub.s32 0, %v6218
      %v6220 = vrot.slane %v6216, %v6219
      %6222 = vbcast.lane.b32.xlu0 %v6220, 256
      %v6223 = vpop.permute.xlu0 %6222
      %s6225 = sor.u32 256, 8
      %6226 = vbcast.lane.b32.xlu0 %v6220, %s6225
      %v6227 = vpop.permute.xlu0 %6226
      %v6228 = vlaneseq
      %v6229 = vshrl.u32 %v6228, 7
      %v6230 = vsub.s32 1, %v6229
      %v6231 = vrot.slane %v6216, %v6230
      %6233 = vbcast.lane.b32.xlu0 %v6231, 256
      %v6234 = vpop.permute.xlu0 %6233
      %s6236 = sor.u32 256, 8
      %6237 = vbcast.lane.b32.xlu0 %v6231, %s6236
      %v6238 = vpop.permute.xlu0 %6237
      %v6239 = vlaneseq
      %v6240 = vshrl.u32 %v6239, 7
      %v6241 = vsub.s32 2, %v6240
      %v6242 = vrot.slane %v6216, %v6241
      %6244 = vbcast.lane.b32.xlu0 %v6242, 256
      %v6245 = vpop.permute.xlu0 %6244
      %s6247 = sor.u32 256, 8
      %6248 = vbcast.lane.b32.xlu0 %v6242, %s6247
      %v6249 = vpop.permute.xlu0 %6248
      %v6250 = vlaneseq
      %v6251 = vshrl.u32 %v6250, 7
      %v6252 = vsub.s32 3, %v6251
      %v6253 = vrot.slane %v6216, %v6252
      %6255 = vbcast.lane.b32.xlu0 %v6253, 256
      %v6256 = vpop.permute.xlu0 %6255
      %s6258 = sor.u32 256, 8
      %6259 = vbcast.lane.b32.xlu0 %v6253, %s6258
      %v6260 = vpop.permute.xlu0 %6259
      %v6261 = vlaneseq
      %v6262 = vshrl.u32 %v6261, 7
      %v6263 = vsub.s32 4, %v6262
      %v6264 = vrot.slane %v6216, %v6263
      %6266 = vbcast.lane.b32.xlu0 %v6264, 256
      %v6267 = vpop.permute.xlu0 %6266
      %s6269 = sor.u32 256, 8
      %6270 = vbcast.lane.b32.xlu0 %v6264, %s6269
      %v6271 = vpop.permute.xlu0 %6270
      %v6272 = vlaneseq
      %v6273 = vshrl.u32 %v6272, 7
      %v6274 = vsub.s32 5, %v6273
      %v6275 = vrot.slane %v6216, %v6274
      %6277 = vbcast.lane.b32.xlu0 %v6275, 256
      %v6278 = vpop.permute.xlu0 %6277
      %s6280 = sor.u32 256, 8
      %6281 = vbcast.lane.b32.xlu0 %v6275, %s6280
      %v6282 = vpop.permute.xlu0 %6281
      %v6283 = vlaneseq
      %v6284 = vshrl.u32 %v6283, 7
      %v6285 = vsub.s32 6, %v6284
      %v6286 = vrot.slane %v6216, %v6285
      %6288 = vbcast.lane.b32.xlu0 %v6286, 256
      %v6289 = vpop.permute.xlu0 %6288
      %s6291 = sor.u32 256, 8
      %6292 = vbcast.lane.b32.xlu0 %v6286, %s6291
      %v6293 = vpop.permute.xlu0 %6292
      %v6294 = vlaneseq
      %v6295 = vshrl.u32 %v6294, 7
      %v6296 = vsub.s32 7, %v6295
      %v6297 = vrot.slane %v6216, %v6296
      %6299 = vbcast.lane.b32.xlu0 %v6297, 256
      %v6300 = vpop.permute.xlu0 %6299
      %s6302 = sor.u32 256, 8
      %6303 = vbcast.lane.b32.xlu0 %v6297, %s6302
      %v6304 = vpop.permute.xlu0 %6303
      %v6306 = vcombine.high %v6206, %v6206
      %v6308 = vunpack.c.l.s4 1966171168
      %v6309 = vunpack.c.0.s8 %v6308
      %v6310 = vlaneseq
      %v6311 = vshrl.u32 %v6310, 7
      %v6312 = vsub.s32 %v6309, %v6311
      %v6313 = vrot.slane %v6206, %v6312
      %v6315 = vunpack.c.l.s4 1966171168
      %v6316 = vunpack.c.0.s8 %v6315
      %v6317 = vlaneseq
      %v6318 = vshrl.u32 %v6317, 7
      %v6319 = vsub.s32 %v6316, %v6318
      %v6320 = vrot.slane %v6306, %v6319
      %v6321 = vcombine.high %v6313, %v6313
      %v6322 = vcombine.high %v6320, %v6320
      %v6324 = vunpack.c.l.s4 1966171168
      %v6325 = vunpack.c.0.s8 %v6324
      %v6326 = vlaneseq
      %v6327 = vshrl.u32 %v6326, 7
      %v6328 = vsub.s32 %v6325, %v6327
      %v6329 = vrot.slane %v6313, %v6328
      %v6331 = vunpack.c.l.s4 1966171168
      %v6332 = vunpack.c.0.s8 %v6331
      %v6333 = vlaneseq
      %v6334 = vshrl.u32 %v6333, 7
      %v6335 = vsub.s32 %v6332, %v6334
      %v6336 = vrot.slane %v6320, %v6335
      %v6338 = vunpack.c.l.s4 1966171168
      %v6339 = vunpack.c.0.s8 %v6338
      %v6340 = vlaneseq
      %v6341 = vshrl.u32 %v6340, 7
      %v6342 = vsub.s32 %v6339, %v6341
      %v6343 = vrot.slane %v6321, %v6342
      %v6345 = vunpack.c.l.s4 1966171168
      %v6346 = vunpack.c.0.s8 %v6345
      %v6347 = vlaneseq
      %v6348 = vshrl.u32 %v6347, 7
      %v6349 = vsub.s32 %v6346, %v6348
      %v6350 = vrot.slane %v6322, %v6349
      %v6351 = vcombine.high %v6329, %v6329
      %v6352 = vcombine.high %v6336, %v6336
      %v6353 = vcombine.high %v6343, %v6343
      %v6354 = vcombine.high %v6350, %v6350
      %v6355 = vlaneseq
      %v6356 = vshrl.u32 %v6355, 7
      %v6357 = vsub.s32 0, %v6356
      %v6358 = vrot.slane %v6329, %v6357
      %v6359 = vlaneseq
      %v6360 = vshrl.u32 %v6359, 7
      %v6361 = vsub.s32 0, %v6360
      %v6362 = vrot.slane %v6343, %v6361
      %v6363 = vlaneseq
      %v6364 = vshrl.u32 %v6363, 7
      %v6365 = vsub.s32 0, %v6364
      %v6366 = vrot.slane %v6351, %v6365
      %v6367 = vlaneseq
      %v6368 = vshrl.u32 %v6367, 7
      %v6369 = vsub.s32 0, %v6368
      %v6370 = vrot.slane %v6353, %v6369
      %v6371 = vlaneseq
      %v6372 = vshrl.u32 %v6371, 7
      %v6373 = vsub.s32 0, %v6372
      %v6374 = vrot.slane %v6336, %v6373
      %v6375 = vlaneseq
      %v6376 = vshrl.u32 %v6375, 7
      %v6377 = vsub.s32 0, %v6376
      %v6378 = vrot.slane %v6350, %v6377
      %v6379 = vlaneseq
      %v6380 = vshrl.u32 %v6379, 7
      %v6381 = vsub.s32 0, %v6380
      %v6382 = vrot.slane %v6352, %v6381
      %v6383 = vlaneseq
      %v6384 = vshrl.u32 %v6383, 7
      %v6385 = vsub.s32 0, %v6384
      %v6386 = vrot.slane %v6354, %v6385
      %v6395 = vmul.f32 %v6223, %v6358
      %v6396 = vmul.f32 %v6227, %v6358
      %v6397 = vmul.f32 %v6234, %v6362
      %v6398 = vmul.f32 %v6238, %v6362
      %v6399 = vmul.f32 %v6245, %v6366
      %v6400 = vmul.f32 %v6249, %v6366
      %v6401 = vmul.f32 %v6256, %v6370
      %v6402 = vmul.f32 %v6260, %v6370
      %v6403 = vmul.f32 %v6267, %v6374
      %v6404 = vmul.f32 %v6271, %v6374
      %v6405 = vmul.f32 %v6278, %v6378
      %v6406 = vmul.f32 %v6282, %v6378
      %v6407 = vmul.f32 %v6289, %v6382
      %v6408 = vmul.f32 %v6293, %v6382
      %v6409 = vmul.f32 %v6300, %v6386
      %v6410 = vmul.f32 %v6304, %v6386
      %v6412 = vcombine.high %v6212, %v6212
      %v6414 = vunpack.c.l.s4 1966171168
      %v6415 = vunpack.c.0.s8 %v6414
      %v6416 = vlaneseq
      %v6417 = vshrl.u32 %v6416, 7
      %v6418 = vsub.s32 %v6415, %v6417
      %v6419 = vrot.slane %v6212, %v6418
      %v6421 = vunpack.c.l.s4 1966171168
      %v6422 = vunpack.c.0.s8 %v6421
      %v6423 = vlaneseq
      %v6424 = vshrl.u32 %v6423, 7
      %v6425 = vsub.s32 %v6422, %v6424
      %v6426 = vrot.slane %v6412, %v6425
      %v6427 = vcombine.high %v6419, %v6419
      %v6428 = vcombine.high %v6426, %v6426
      %v6430 = vunpack.c.l.s4 1966171168
      %v6431 = vunpack.c.0.s8 %v6430
      %v6432 = vlaneseq
      %v6433 = vshrl.u32 %v6432, 7
      %v6434 = vsub.s32 %v6431, %v6433
      %v6435 = vrot.slane %v6419, %v6434
      %v6437 = vunpack.c.l.s4 1966171168
      %v6438 = vunpack.c.0.s8 %v6437
      %v6439 = vlaneseq
      %v6440 = vshrl.u32 %v6439, 7
      %v6441 = vsub.s32 %v6438, %v6440
      %v6442 = vrot.slane %v6426, %v6441
      %v6444 = vunpack.c.l.s4 1966171168
      %v6445 = vunpack.c.0.s8 %v6444
      %v6446 = vlaneseq
      %v6447 = vshrl.u32 %v6446, 7
      %v6448 = vsub.s32 %v6445, %v6447
      %v6449 = vrot.slane %v6427, %v6448
      %v6451 = vunpack.c.l.s4 1966171168
      %v6452 = vunpack.c.0.s8 %v6451
      %v6453 = vlaneseq
      %v6454 = vshrl.u32 %v6453, 7
      %v6455 = vsub.s32 %v6452, %v6454
      %v6456 = vrot.slane %v6428, %v6455
      %v6457 = vcombine.high %v6435, %v6435
      %v6458 = vcombine.high %v6442, %v6442
      %v6459 = vcombine.high %v6449, %v6449
      %v6460 = vcombine.high %v6456, %v6456
      %v6461 = vmul.f32 %v6395, %v5814
      %v6462 = vmul.f32 %v6396, %v5815
      %v6463 = vmul.f32 %v6397, %v5816
      %v6464 = vmul.f32 %v6398, %v5817
      %v6465 = vmul.f32 %v6399, %v5818
      %v6466 = vmul.f32 %v6400, %v5819
      %v6467 = vmul.f32 %v6401, %v5820
      %v6468 = vmul.f32 %v6402, %v5821
      %v6469 = vmul.f32 %v6403, %v5822
      %v6470 = vmul.f32 %v6404, %v5823
      %v6471 = vmul.f32 %v6405, %v5824
      %v6472 = vmul.f32 %v6406, %v5825
      %v6473 = vmul.f32 %v6407, %v5826
      %v6474 = vmul.f32 %v6408, %v5827
      %v6475 = vmul.f32 %v6409, %v5828
      %v6476 = vmul.f32 %v6410, %v5829
      %s6477 = scalar_lea.vmem %s1, 112
      %v6478 = vld [vmem:[%s6477] sm:$0xff]
      %v6479 = vld [vmem:[%s6477 + $0x8] sm:$0x3]
      %v6480 = vlaneseq
      %v6481 = vshrl.u32 %v6480, 7
      %v6482 = vsub.s32 0, %v6481
      %v6483 = vrot.slane %v6435, %v6482
      %v6484 = vlaneseq
      %v6485 = vshrl.u32 %v6484, 7
      %v6486 = vsub.s32 0, %v6485
      %v6487 = vrot.slane %v6449, %v6486
      %v6488 = vlaneseq
      %v6489 = vshrl.u32 %v6488, 7
      %v6490 = vsub.s32 0, %v6489
      %v6491 = vrot.slane %v6457, %v6490
      %v6492 = vlaneseq
      %v6493 = vshrl.u32 %v6492, 7
      %v6494 = vsub.s32 0, %v6493
      %v6495 = vrot.slane %v6459, %v6494
      %v6496 = vlaneseq
      %v6497 = vshrl.u32 %v6496, 7
      %v6498 = vsub.s32 0, %v6497
      %v6499 = vrot.slane %v6442, %v6498
      %v6500 = vlaneseq
      %v6501 = vshrl.u32 %v6500, 7
      %v6502 = vsub.s32 0, %v6501
      %v6503 = vrot.slane %v6456, %v6502
      %v6504 = vlaneseq
      %v6505 = vshrl.u32 %v6504, 7
      %v6506 = vsub.s32 0, %v6505
      %v6507 = vrot.slane %v6458, %v6506
      %v6508 = vlaneseq
      %v6509 = vshrl.u32 %v6508, 7
      %v6510 = vsub.s32 0, %v6509
      %v6511 = vrot.slane %v6460, %v6510
      %v6520 = vmul.f32 %v6483, %v6478
      %v6521 = vmul.f32 %v6483, %v6479
      %v6522 = vmul.f32 %v6487, %v6478
      %v6523 = vmul.f32 %v6487, %v6479
      %v6524 = vmul.f32 %v6491, %v6478
      %v6525 = vmul.f32 %v6491, %v6479
      %v6526 = vmul.f32 %v6495, %v6478
      %v6527 = vmul.f32 %v6495, %v6479
      %v6528 = vmul.f32 %v6499, %v6478
      %v6529 = vmul.f32 %v6499, %v6479
      %v6530 = vmul.f32 %v6503, %v6478
      %v6531 = vmul.f32 %v6503, %v6479
      %v6532 = vmul.f32 %v6507, %v6478
      %v6533 = vmul.f32 %v6507, %v6479
      %v6534 = vmul.f32 %v6511, %v6478
      %v6535 = vmul.f32 %v6511, %v6479
      %6552 = vrot.lane.b32.xlu0 %v6520, 32
      %v6553 = vpop.permute.xlu0 %6552
      %6554 = vrot.lane.b32.xlu0 %v6521, 32
      %v6555 = vpop.permute.xlu0 %6554
      %6556 = vrot.lane.b32.xlu0 %v6522, 32
      %v6557 = vpop.permute.xlu0 %6556
      %6558 = vrot.lane.b32.xlu0 %v6523, 32
      %v6559 = vpop.permute.xlu0 %6558
      %6560 = vrot.lane.b32.xlu0 %v6524, 32
      %v6561 = vpop.permute.xlu0 %6560
      %6562 = vrot.lane.b32.xlu0 %v6525, 32
      %v6563 = vpop.permute.xlu0 %6562
      %6564 = vrot.lane.b32.xlu0 %v6526, 32
      %v6565 = vpop.permute.xlu0 %6564
      %6566 = vrot.lane.b32.xlu0 %v6527, 32
      %v6567 = vpop.permute.xlu0 %6566
      %6568 = vrot.lane.b32.xlu0 %v6528, 32
      %v6569 = vpop.permute.xlu0 %6568
      %6570 = vrot.lane.b32.xlu0 %v6529, 32
      %v6571 = vpop.permute.xlu0 %6570
      %6572 = vrot.lane.b32.xlu0 %v6530, 32
      %v6573 = vpop.permute.xlu0 %6572
      %6574 = vrot.lane.b32.xlu0 %v6531, 32
      %v6575 = vpop.permute.xlu0 %6574
      %6576 = vrot.lane.b32.xlu0 %v6532, 32
      %v6577 = vpop.permute.xlu0 %6576
      %6578 = vrot.lane.b32.xlu0 %v6533, 32
      %v6579 = vpop.permute.xlu0 %6578
      %6580 = vrot.lane.b32.xlu0 %v6534, 32
      %v6581 = vpop.permute.xlu0 %6580
      %6582 = vrot.lane.b32.xlu0 %v6535, 32
      %v6583 = vpop.permute.xlu0 %6582
      %v6600 = vadd.f32 %v6461, %v6553
      %v6601 = vadd.f32 %v6462, %v6555
      %v6602 = vadd.f32 %v6463, %v6557
      %v6603 = vadd.f32 %v6464, %v6559
      %v6604 = vadd.f32 %v6465, %v6561
      %v6605 = vadd.f32 %v6466, %v6563
      %v6606 = vadd.f32 %v6467, %v6565
      %v6607 = vadd.f32 %v6468, %v6567
      %v6608 = vadd.f32 %v6469, %v6569
      %v6609 = vadd.f32 %v6470, %v6571
      %v6610 = vadd.f32 %v6471, %v6573
      %v6611 = vadd.f32 %v6472, %v6575
      %v6612 = vadd.f32 %v6473, %v6577
      %v6613 = vadd.f32 %v6474, %v6579
      %v6614 = vadd.f32 %v6475, %v6581
      %v6615 = vadd.f32 %v6476, %v6583
      %v6616 = vmul.f32 %v6395, %v5929
      %v6617 = vmul.f32 %v6396, %v5930
      %v6618 = vmul.f32 %v6397, %v5931
      %v6619 = vmul.f32 %v6398, %v5932
      %v6620 = vmul.f32 %v6399, %v5933
      %v6621 = vmul.f32 %v6400, %v5934
      %v6622 = vmul.f32 %v6401, %v5935
      %v6623 = vmul.f32 %v6402, %v5936
      %v6624 = vmul.f32 %v6403, %v5937
      %v6625 = vmul.f32 %v6404, %v5938
      %v6626 = vmul.f32 %v6405, %v5939
      %v6627 = vmul.f32 %v6406, %v5940
      %v6628 = vmul.f32 %v6407, %v5941
      %v6629 = vmul.f32 %v6408, %v5942
      %v6630 = vmul.f32 %v6409, %v5943
      %v6631 = vmul.f32 %v6410, %v5944
      %s6632 = scalar_lea.vmem %s2, 112
      %v6633 = vld [vmem:[%s6632] sm:$0xff]
      %v6634 = vld [vmem:[%s6632 + $0x8] sm:$0x3]
      %v6635 = vmul.f32 %v6483, %v6633
      %v6636 = vmul.f32 %v6483, %v6634
      %v6637 = vmul.f32 %v6487, %v6633
      %v6638 = vmul.f32 %v6487, %v6634
      %v6639 = vmul.f32 %v6491, %v6633
      %v6640 = vmul.f32 %v6491, %v6634
      %v6641 = vmul.f32 %v6495, %v6633
      %v6642 = vmul.f32 %v6495, %v6634
      %v6643 = vmul.f32 %v6499, %v6633
      %v6644 = vmul.f32 %v6499, %v6634
      %v6645 = vmul.f32 %v6503, %v6633
      %v6646 = vmul.f32 %v6503, %v6634
      %v6647 = vmul.f32 %v6507, %v6633
      %v6648 = vmul.f32 %v6507, %v6634
      %v6649 = vmul.f32 %v6511, %v6633
      %v6650 = vmul.f32 %v6511, %v6634
      %6667 = vrot.lane.b32.xlu0 %v6635, 32
      %v6668 = vpop.permute.xlu0 %6667
      %6669 = vrot.lane.b32.xlu0 %v6636, 32
      %v6670 = vpop.permute.xlu0 %6669
      %6671 = vrot.lane.b32.xlu0 %v6637, 32
      %v6672 = vpop.permute.xlu0 %6671
      %6673 = vrot.lane.b32.xlu0 %v6638, 32
      %v6674 = vpop.permute.xlu0 %6673
      %6675 = vrot.lane.b32.xlu0 %v6639, 32
      %v6676 = vpop.permute.xlu0 %6675
      %6677 = vrot.lane.b32.xlu0 %v6640, 32
      %v6678 = vpop.permute.xlu0 %6677
      %6679 = vrot.lane.b32.xlu0 %v6641, 32
      %v6680 = vpop.permute.xlu0 %6679
      %6681 = vrot.lane.b32.xlu0 %v6642, 32
      %v6682 = vpop.permute.xlu0 %6681
      %6683 = vrot.lane.b32.xlu0 %v6643, 32
      %v6684 = vpop.permute.xlu0 %6683
      %6685 = vrot.lane.b32.xlu0 %v6644, 32
      %v6686 = vpop.permute.xlu0 %6685
      %6687 = vrot.lane.b32.xlu0 %v6645, 32
      %v6688 = vpop.permute.xlu0 %6687
      %6689 = vrot.lane.b32.xlu0 %v6646, 32
      %v6690 = vpop.permute.xlu0 %6689
      %6691 = vrot.lane.b32.xlu0 %v6647, 32
      %v6692 = vpop.permute.xlu0 %6691
      %6693 = vrot.lane.b32.xlu0 %v6648, 32
      %v6694 = vpop.permute.xlu0 %6693
      %6695 = vrot.lane.b32.xlu0 %v6649, 32
      %v6696 = vpop.permute.xlu0 %6695
      %6697 = vrot.lane.b32.xlu0 %v6650, 32
      %v6698 = vpop.permute.xlu0 %6697
      %v6715 = vadd.f32 %v6616, %v6668
      %v6716 = vadd.f32 %v6617, %v6670
      %v6717 = vadd.f32 %v6618, %v6672
      %v6718 = vadd.f32 %v6619, %v6674
      %v6719 = vadd.f32 %v6620, %v6676
      %v6720 = vadd.f32 %v6621, %v6678
      %v6721 = vadd.f32 %v6622, %v6680
      %v6722 = vadd.f32 %v6623, %v6682
      %v6723 = vadd.f32 %v6624, %v6684
      %v6724 = vadd.f32 %v6625, %v6686
      %v6725 = vadd.f32 %v6626, %v6688
      %v6726 = vadd.f32 %v6627, %v6690
      %v6727 = vadd.f32 %v6628, %v6692
      %v6728 = vadd.f32 %v6629, %v6694
      %v6729 = vadd.f32 %v6630, %v6696
      %v6730 = vadd.f32 %v6631, %v6698
      %v6731 = vmul.f32 %v6600, %v6600
      %v6732 = vmul.f32 %v6601, %v6601
      %v6733 = vmul.f32 %v6602, %v6602
      %v6734 = vmul.f32 %v6603, %v6603
      %v6735 = vmul.f32 %v6604, %v6604
      %v6736 = vmul.f32 %v6605, %v6605
      %v6737 = vmul.f32 %v6606, %v6606
      %v6738 = vmul.f32 %v6607, %v6607
      %v6739 = vmul.f32 %v6608, %v6608
      %v6740 = vmul.f32 %v6609, %v6609
      %v6741 = vmul.f32 %v6610, %v6610
      %v6742 = vmul.f32 %v6611, %v6611
      %v6743 = vmul.f32 %v6612, %v6612
      %v6744 = vmul.f32 %v6613, %v6613
      %v6745 = vmul.f32 %v6614, %v6614
      %v6746 = vmul.f32 %v6615, %v6615
      %v6747 = vmul.f32 %v6715, %v6715
      %v6748 = vmul.f32 %v6716, %v6716
      %v6749 = vmul.f32 %v6717, %v6717
      %v6750 = vmul.f32 %v6718, %v6718
      %v6751 = vmul.f32 %v6719, %v6719
      %v6752 = vmul.f32 %v6720, %v6720
      %v6753 = vmul.f32 %v6721, %v6721
      %v6754 = vmul.f32 %v6722, %v6722
      %v6755 = vmul.f32 %v6723, %v6723
      %v6756 = vmul.f32 %v6724, %v6724
      %v6757 = vmul.f32 %v6725, %v6725
      %v6758 = vmul.f32 %v6726, %v6726
      %v6759 = vmul.f32 %v6727, %v6727
      %v6760 = vmul.f32 %v6728, %v6728
      %v6761 = vmul.f32 %v6729, %v6729
      %v6762 = vmul.f32 %v6730, %v6730
      %v6763 = vadd.f32 %v6731, %v6747
      %v6764 = vadd.f32 %v6732, %v6748
      %v6765 = vadd.f32 %v6733, %v6749
      %v6766 = vadd.f32 %v6734, %v6750
      %v6767 = vadd.f32 %v6735, %v6751
      %v6768 = vadd.f32 %v6736, %v6752
      %v6769 = vadd.f32 %v6737, %v6753
      %v6770 = vadd.f32 %v6738, %v6754
      %v6771 = vadd.f32 %v6739, %v6755
      %v6772 = vadd.f32 %v6740, %v6756
      %v6773 = vadd.f32 %v6741, %v6757
      %v6774 = vadd.f32 %v6742, %v6758
      %v6775 = vadd.f32 %v6743, %v6759
      %v6776 = vadd.f32 %v6744, %v6760
      %v6777 = vadd.f32 %v6745, %v6761
      %v6778 = vadd.f32 %v6746, %v6762
      %v6779 = vmul.f32 %v6763, %v1255
      %v6780 = vmul.f32 %v6764, %v1257
      %v6781 = vmul.f32 %v6765, %v1255
      %v6782 = vmul.f32 %v6766, %v1257
      %v6783 = vmul.f32 %v6767, %v1255
      %v6784 = vmul.f32 %v6768, %v1257
      %v6785 = vmul.f32 %v6769, %v1255
      %v6786 = vmul.f32 %v6770, %v1257
      %v6787 = vmul.f32 %v6771, %v1255
      %v6788 = vmul.f32 %v6772, %v1257
      %v6789 = vmul.f32 %v6773, %v1255
      %v6790 = vmul.f32 %v6774, %v1257
      %v6791 = vmul.f32 %v6775, %v1255
      %v6792 = vmul.f32 %v6776, %v1257
      %v6793 = vmul.f32 %v6777, %v1255
      %v6794 = vmul.f32 %v6778, %v1257
      %v6795 = vsel %vm1276, %v6779, 0.0
      %v6796 = vsel %vm1278, %v6780, 0.0
      %v6797 = vadd.f32 %v6795, %v6796
      %v6798 = vrot.slane %v6797, 4
      %v6799 = vadd.f32 %v6797, %v6798
      %v6800 = vrot.slane %v6799, 2
      %v6801 = vadd.f32 %v6799, %v6800
      %v6802 = vrot.slane %v6801, 1
      %v6803 = vadd.f32 %v6801, %v6802
      %v6804 = vsel %vm1276, %v6781, 0.0
      %v6805 = vsel %vm1278, %v6782, 0.0
      %v6806 = vadd.f32 %v6804, %v6805
      %v6807 = vrot.slane %v6806, 4
      %v6808 = vadd.f32 %v6806, %v6807
      %v6809 = vrot.slane %v6808, 2
      %v6810 = vadd.f32 %v6808, %v6809
      %v6811 = vrot.slane %v6810, 1
      %v6812 = vadd.f32 %v6810, %v6811
      %v6813 = vsel %vm1276, %v6783, 0.0
      %v6814 = vsel %vm1278, %v6784, 0.0
      %v6815 = vadd.f32 %v6813, %v6814
      %v6816 = vrot.slane %v6815, 4
      %v6817 = vadd.f32 %v6815, %v6816
      %v6818 = vrot.slane %v6817, 2
      %v6819 = vadd.f32 %v6817, %v6818
      %v6820 = vrot.slane %v6819, 1
      %v6821 = vadd.f32 %v6819, %v6820
      %v6822 = vsel %vm1276, %v6785, 0.0
      %v6823 = vsel %vm1278, %v6786, 0.0
      %v6824 = vadd.f32 %v6822, %v6823
      %v6825 = vrot.slane %v6824, 4
      %v6826 = vadd.f32 %v6824, %v6825
      %v6827 = vrot.slane %v6826, 2
      %v6828 = vadd.f32 %v6826, %v6827
      %v6829 = vrot.slane %v6828, 1
      %v6830 = vadd.f32 %v6828, %v6829
      %v6831 = vsel %vm1276, %v6787, 0.0
      %v6832 = vsel %vm1278, %v6788, 0.0
      %v6833 = vadd.f32 %v6831, %v6832
      %v6834 = vrot.slane %v6833, 4
      %v6835 = vadd.f32 %v6833, %v6834
      %v6836 = vrot.slane %v6835, 2
      %v6837 = vadd.f32 %v6835, %v6836
      %v6838 = vrot.slane %v6837, 1
      %v6839 = vadd.f32 %v6837, %v6838
      %v6840 = vsel %vm1276, %v6789, 0.0
      %v6841 = vsel %vm1278, %v6790, 0.0
      %v6842 = vadd.f32 %v6840, %v6841
      %v6843 = vrot.slane %v6842, 4
      %v6844 = vadd.f32 %v6842, %v6843
      %v6845 = vrot.slane %v6844, 2
      %v6846 = vadd.f32 %v6844, %v6845
      %v6847 = vrot.slane %v6846, 1
      %v6848 = vadd.f32 %v6846, %v6847
      %v6849 = vsel %vm1276, %v6791, 0.0
      %v6850 = vsel %vm1278, %v6792, 0.0
      %v6851 = vadd.f32 %v6849, %v6850
      %v6852 = vrot.slane %v6851, 4
      %v6853 = vadd.f32 %v6851, %v6852
      %v6854 = vrot.slane %v6853, 2
      %v6855 = vadd.f32 %v6853, %v6854
      %v6856 = vrot.slane %v6855, 1
      %v6857 = vadd.f32 %v6855, %v6856
      %v6858 = vsel %vm1276, %v6793, 0.0
      %v6859 = vsel %vm1278, %v6794, 0.0
      %v6860 = vadd.f32 %v6858, %v6859
      %v6861 = vrot.slane %v6860, 4
      %v6862 = vadd.f32 %v6860, %v6861
      %v6863 = vrot.slane %v6862, 2
      %v6864 = vadd.f32 %v6862, %v6863
      %v6865 = vrot.slane %v6864, 1
      %v6866 = vadd.f32 %v6864, %v6865
      %v6867 = vadd.f32 %v6803, %v1356
      %v6868 = vadd.f32 %v6812, %v1356
      %v6869 = vadd.f32 %v6821, %v1356
      %v6870 = vadd.f32 %v6830, %v1356
      %v6871 = vadd.f32 %v6839, %v1356
      %v6872 = vadd.f32 %v6848, %v1356
      %v6873 = vadd.f32 %v6857, %v1356
      %v6874 = vadd.f32 %v6866, %v1356
      %v6875 = vtanh.pop %v6867
      %v6876 = vtanh.pop %v6868
      %v6877 = vtanh.pop %v6869
      %v6878 = vtanh.pop %v6870
      %v6879 = vtanh.pop %v6871
      %v6880 = vtanh.pop %v6872
      %v6881 = vtanh.pop %v6873
      %v6882 = vtanh.pop %v6874
      %v6891 = vrot.slane %v6876, 7
      %v6892 = vsel %vm1383, %v6891, %v6875
      %v6893 = vrot.slane %v6877, 6
      %v6894 = vsel %vm1386, %v6893, %v6892
      %v6895 = vrot.slane %v6878, 5
      %v6896 = vsel %vm1389, %v6895, %v6894
      %v6897 = vrot.slane %v6879, 4
      %v6898 = vsel %vm1392, %v6897, %v6896
      %v6899 = vrot.slane %v6880, 3
      %v6900 = vsel %vm1395, %v6899, %v6898
      %v6901 = vrot.slane %v6881, 2
      %v6902 = vsel %vm1398, %v6901, %v6900
      %v6903 = vrot.slane %v6882, 1
      %v6904 = vsel %vm1401, %v6903, %v6902
      %6905 = vrot.lane.b32.xlu0 %v6904, 64
      %v6906 = vpop.permute.xlu0 %6905
      %v6908 = vmul.f32 %v6206, %v6906
      %v6909 = vld [vmem:[%s8] sm:$0x1]
      %v6911 = vlaneseq
      %v6912 = vshrl.u32 %v6911, 7
      %v6913 = vsub.s32 0, %v6912
      %v6914 = vrot.slane %v6909, %v6913
      %6915 = vrot.lane.b32.xlu0 %v6914, 96
      %v6916 = vpop.permute.xlu0 %6915
      %v6918 = vmul.f32 %v6908, %v6916
      %6920 = vrot.lane.b32.xlu0 %v6918, 32
      %v6921 = vpop.permute.xlu0 %6920
      %v6923 = vsel %vm617, %v6921, 0.0
      %6924 = vadd.xlane.f32.xlu0 %v6923
      %v6925 = vpop.xlane.xlu0 %6924
      %v6926 = vld [vmem:[#allocation3] sm:$0x1]
      %v6928 = vlaneseq
      %v6929 = vshrl.u32 %v6928, 7
      %v6930 = vsub.s32 0, %v6929
      %v6931 = vrot.slane %v6926, %v6930
      %v6933 = vadd.f32 %v6925, %v6931
      %v6934 = vld [vmem:[#allocation4] sm:$0x1]
      %v6936 = vlaneseq
      %v6937 = vshrl.u32 %v6936, 7
      %v6938 = vsub.s32 0, %v6937
      %v6939 = vrot.slane %v6934, %v6938
      %v6941 = vmul.f32 %v6933, %v6939
      %v6942 = vld [vmem:[#allocation5] sm:$0x1]
      %v6944 = vlaneseq
      %v6945 = vshrl.u32 %v6944, 7
      %v6946 = vsub.s32 0, %v6945
      %v6947 = vrot.slane %v6942, %v6946
      %v6949 = vadd.f32 %v6941, %v6947
      %vm6950 = vcmask 7168
      %6951 = vst.msk [vmem:[%s419] sm:$0xff] %vm6950, %v6949
      %p6952 = scmp.lt.s32.totalorder %s29, 1
      %s6953 = scalar_select %p6952, %s29, 1
      %s6954 = smul.addr %s6953, 8
      %s6955 = scalar_lea.vmem %s12, %s6954
      // Predicated region
      $region69: #{tpu_custom_call.1} parent=67 // pred_check
        %p6956 = pneg %p304
      $region70: #{tpu_custom_call.1} parent=67 // pred_check_branch
        %6958 = sbr.rel (%p6956) target = $region72
      $region71: #{tpu_custom_call.1} parent=67 // pred_region
        _
      $region72: #{tpu_custom_call.1} parent=67 // pred_fallthru
        _
    $region68: #{tpu_custom_call.1} parent=5 // pred_fallthru
      _
    %p6959 = scmp.le.s32.totalorder 2, %s24
    // Predicated region
    $region73: #{tpu_custom_call.1} parent=5 // pred_check
      %p6960 = pneg %p6959
    $region74: #{tpu_custom_call.1} parent=5 // pred_check_branch
      %6962 = sbr.rel (%p6960) target = $region76
    $region75: #{tpu_custom_call.1} parent=5 // pred_region
      %s6963 = ssub.s32 %s24, 2
      // Predicated region
      $region77: #{tpu_custom_call.1} parent=75 // pred_check
        %p6964 = pneg %p310
      $region78: #{tpu_custom_call.1} parent=75 // pred_check_branch
        %6966 = sbr.rel (%p6964) target = $region80
      $region79: #{tpu_custom_call.1} parent=75 // pred_region
        %p6967 = scmp.lt.s32.totalorder %s30, 1
        %s6968 = scalar_select %p6967, %s30, 1
        %s6969 = smul.addr %s6968, 8
        %s6970 = scalar_lea.vmem %s12, %s6969
      $region80: #{tpu_custom_call.1} parent=75 // pred_fallthru
        _
    $region76: #{tpu_custom_call.1} parent=5 // pred_fallthru
      _
  $region6: #{tpu_custom_call.1} parent=0 // loop_footer
    %s28 = sadd.s32 1, %s24
  $region7: #{tpu_custom_call.1} parent=0 // loop_footer_branch
    %23 = sbr.rel target = $region3
  $region8: #{tpu_custom_call.1} parent=0 // loop_exit
    _

</llo_original>
